<compile_context>
chip_gen: v5e
topology: v5e:2x2
jax: 0.10.0
libtpu: 0.0.40
codegen_flags: <defaults>
</compile_context>

<pallas_src>
import functools
import math

import jax
import jax.numpy as jnp
from jax.experimental import pallas as pl
from jax.experimental.pallas import tpu as pltpu

EXPANSION = 4


def _round_up(x, m):
    return (x + m - 1) // m * m


# ---------------------------------------------------------------------------
# Pallas kernels
# ---------------------------------------------------------------------------
def _mm_kernel(a_ref, w_ref, b_ref, o_ref, acc_ref, *, relu):
    """out = act(A @ W + bias); K reduction over grid axis 2."""
    @pl.when(pl.program_id(2) == 0)
    def _():
        acc_ref[...] = jnp.zeros_like(acc_ref)

    acc_ref[...] += jnp.dot(a_ref[...], w_ref[...],
                            preferred_element_type=jnp.float32)

    @pl.when(pl.program_id(2) == pl.num_programs(2) - 1)
    def _():
        y = acc_ref[...] + b_ref[...]
        if relu:
            y = jnp.maximum(y, 0.0)
        o_ref[...] = y.astype(o_ref.dtype)


def _mm_res_kernel(a_ref, w_ref, b_ref, r_ref, o_ref, acc_ref, *, relu):
    """out = act(A @ W + bias + residual); residual/ReLU fused in epilogue."""
    @pl.when(pl.program_id(2) == 0)
    def _():
        acc_ref[...] = jnp.zeros_like(acc_ref)

    acc_ref[...] += jnp.dot(a_ref[...], w_ref[...],
                            preferred_element_type=jnp.float32)

    @pl.when(pl.program_id(2) == pl.num_programs(2) - 1)
    def _():
        y = acc_ref[...] + b_ref[...] + r_ref[...].astype(jnp.float32)
        if relu:
            y = jnp.maximum(y, 0.0)
        o_ref[...] = y.astype(o_ref.dtype)


def _conv3x3_kernel(x_ref, w_ref, b_ref, o_ref, *, oh, ow, relu):
    """3x3 conv (stride 1, pad already applied) as an in-kernel 9-tap GEMM.

    x_ref: (1, oh+2, ow+2, Cin) bf16   padded NHWC activation block
    w_ref: (3, 3, Cin, tc)      bf16   BN-folded weights (Cout tile tc)
    b_ref: (1, tc)              f32
    o_ref: (1, oh, ow, tc)      bf16
    """
    xv = x_ref[...]        # (1, oh+2, ow+2, Cin)
    wv = w_ref[...]        # (3, 3, Cin, tc)
    cin = xv.shape[-1]
    tc = wv.shape[-1]
    acc = jnp.zeros((oh * ow, tc), jnp.float32)
    for dy in range(3):
        for dx in range(3):
            a = xv[0, dy:dy + oh, dx:dx + ow, :].reshape(oh * ow, cin)
            acc = acc + jnp.dot(a, wv[dy, dx],
                                preferred_element_type=jnp.float32)
    y = acc + b_ref[...]
    if relu:
        y = jnp.maximum(y, 0.0)
    o_ref[...] = y.reshape(1, oh, ow, tc).astype(o_ref.dtype)


# ---------------------------------------------------------------------------
# Pallas wrappers
# ---------------------------------------------------------------------------
def matmul_bias_act(a, w, bias, residual=None, relu=True):
    """Tiled bf16 GEMM with fused bias (+ optional residual) + ReLU epilogue."""
    M, K = a.shape
    K2, N = w.shape
    assert K == K2
    # 256x256 output tiles (MXU-shaped on v6e/v7x); full-dim tiles when small
    # so no padding / slicing copies are needed for aligned shapes.
    tm = M if M <= 256 else 256
    tn = N if N <= 256 else 256
    tk = K if K <= 512 else 512
    Mp, Np, Kp = _round_up(M, tm), _round_up(N, tn), _round_up(K, tk)

    a_p = a if (Mp == M and Kp == K) else jnp.pad(a, ((0, Mp - M), (0, Kp - K)))
    w_p = w if (Kp == K and Np == N) else jnp.pad(w, ((0, Kp - K), (0, Np - N)))
    b_p = bias.reshape(1, N)
    if Np != N:
        b_p = jnp.pad(b_p, ((0, 0), (0, Np - N)))

    in_specs = [
        pl.BlockSpec((tm, tk), lambda i, j, k: (i, k)),
        pl.BlockSpec((tk, tn), lambda i, j, k: (k, j)),
        pl.BlockSpec((1, tn), lambda i, j, k: (0, j)),
    ]
    operands = [a_p.astype(jnp.bfloat16), w_p.astype(jnp.bfloat16),
                b_p.astype(jnp.float32)]

    if residual is not None:
        r_p = residual
        if Mp != M or Np != N:
            r_p = jnp.pad(r_p, ((0, Mp - M), (0, Np - N)))
        in_specs.append(pl.BlockSpec((tm, tn), lambda i, j, k: (i, j)))
        operands.append(r_p.astype(jnp.bfloat16))
        kernel = functools.partial(_mm_res_kernel, relu=relu)
    else:
        kernel = functools.partial(_mm_kernel, relu=relu)

    out = pl.pallas_call(
        kernel,
        out_shape=jax.ShapeDtypeStruct((Mp, Np), jnp.bfloat16),
        grid_spec=pltpu.PrefetchScalarGridSpec(
            num_scalar_prefetch=0,
            grid=(Mp // tm, Np // tn, Kp // tk),
            in_specs=in_specs,
            out_specs=pl.BlockSpec((tm, tn), lambda i, j, k: (i, j)),
            scratch_shapes=[pltpu.VMEM((tm, tn), jnp.float32)],
        ),
        compiler_params=pltpu.CompilerParams(
            dimension_semantics=("parallel", "parallel", "arbitrary")),
    )(*operands)
    if Mp == M and Np == N:
        return out
    return out[:M, :N]


def conv1x1_fused(x, w, bias, residual=None, relu=True, stride=1):
    """1x1 conv + folded BN (+ fused residual / ReLU) as a plain GEMM."""
    if stride > 1:
        x = x[:, ::stride, ::stride, :]
    N, H, W, Cin = x.shape
    Cout = w.shape[1]
    a = x.reshape(N * H * W, Cin)
    r = residual.reshape(N * H * W, Cout) if residual is not None else None
    y = matmul_bias_act(a, w, bias, residual=r, relu=relu)
    return y.reshape(N, H, W, Cout)


def conv3x3_bn_relu(x, w, bias, relu=True):
    """3x3 conv, stride 1, pad 1, folded BN + ReLU.  No HBM im2col."""
    N, H, W, Cin = x.shape
    Cout = w.shape[-1]
    oh, ow = H, W
    xp = jnp.pad(x, ((0, 0), (1, 1), (1, 1), (0, 0)))
    Hp, Wp = H + 2, W + 2

    tc = Cout if Cout <= 256 else 256
    assert Cout % tc == 0
    grid = (N, Cout // tc)

    return pl.pallas_call(
        functools.partial(_conv3x3_kernel, oh=oh, ow=ow, relu=relu),
        out_shape=jax.ShapeDtypeStruct((N, oh, ow, Cout), jnp.bfloat16),
        grid_spec=pltpu.PrefetchScalarGridSpec(
            num_scalar_prefetch=0,
            grid=grid,
            in_specs=[
                pl.BlockSpec((1, Hp, Wp, Cin), lambda n, j: (n, 0, 0, 0)),
                pl.BlockSpec((3, 3, Cin, tc), lambda n, j: (0, 0, 0, j)),
                pl.BlockSpec((1, tc), lambda n, j: (0, j)),
            ],
            out_specs=pl.BlockSpec((1, oh, ow, tc), lambda n, j: (n, 0, 0, j)),
        ),
        compiler_params=pltpu.CompilerParams(
            dimension_semantics=("parallel", "parallel")),
    )(xp.astype(jnp.bfloat16), w.astype(jnp.bfloat16),
      bias.reshape(1, Cout).astype(jnp.float32))


def conv3x3_im2col(x, w, bias, stride, relu=True):
    # TODO(synk): stride>1 3x3 path falls back to host-side im2col + the fused
    # GEMM kernel; only the stride-1 hot path is fully tap-fused in-kernel.
    N, H, W, Cin = x.shape
    Cout = w.shape[-1]
    pad, k = 1, 3
    oh = (H + 2 * pad - k) // stride + 1
    ow = (W + 2 * pad - k) // stride + 1
    xp = jnp.pad(x, ((0, 0), (pad, pad), (pad, pad), (0, 0)))
    cols = [xp[:, dy:dy + stride * oh:stride, dx:dx + stride * ow:stride, :]
            for dy in range(k) for dx in range(k)]
    a = jnp.concatenate(cols, axis=-1).reshape(N * oh * ow, k * k * Cin)
    y = matmul_bias_act(a, w.reshape(k * k * Cin, Cout), bias, relu=relu)
    return y.reshape(N, oh, ow, Cout)


# ---------------------------------------------------------------------------
# Bottleneck block
# ---------------------------------------------------------------------------
def bottleneck_forward(p, x, stride=1):
    """x: NHWC bf16. Mirrors torchvision/MAP_network Bottleneck.forward."""
    out = conv1x1_fused(x, p["conv1"]["w"], p["conv1"]["b"], relu=True)
    if stride == 1:
        out = conv3x3_bn_relu(out, p["conv2"]["w"], p["conv2"]["b"], relu=True)
    else:
        out = conv3x3_im2col(out, p["conv2"]["w"], p["conv2"]["b"], stride,
                             relu=True)
    if "down" in p:
        identity = conv1x1_fused(x, p["down"]["w"], p["down"]["b"],
                                 relu=False, stride=stride)
    else:
        identity = x
    # conv3 + BN + residual add + ReLU, all fused in one GEMM epilogue.
    out = conv1x1_fused(out, p["conv3"]["w"], p["conv3"]["b"],
                        residual=identity, relu=True)
    return out


def forward(params_list, x_nchw, strides):
    x = jnp.transpose(x_nchw, (0, 2, 3, 1)).astype(jnp.bfloat16)  # NCHW->NHWC
    for p, s in zip(params_list, strides):
        x = bottleneck_forward(p, x, s)
    return jnp.transpose(x, (0, 3, 1, 2)).astype(jnp.float32)     # NHWC->NCHW


# ---------------------------------------------------------------------------
# Parameters (deterministic init; eval-mode BN folded into the weights)
# ---------------------------------------------------------------------------
def _conv_bn_params(key, cin, cout, k):
    w = jax.random.normal(key, (k, k, cin, cout), jnp.float32) * math.sqrt(
        2.0 / (k * k * cout))
    eps = 1e-5
    gamma = jnp.ones((cout,), jnp.float32)
    beta = jnp.zeros((cout,), jnp.float32)
    mean = jnp.zeros((cout,), jnp.float32)
    var = jnp.ones((cout,), jnp.float32)
    scale = gamma / jnp.sqrt(var + eps)
    bias = beta - mean * scale
    w = (w * scale).astype(jnp.bfloat16)          # fold BN scale into weights
    if k == 1:
        w = w.reshape(cin, cout)
    return {"w": w, "b": bias.astype(jnp.float32)}


def init_bottleneck(key, inplanes, planes, stride=1, downsample=False):
    ks = jax.random.split(key, 4)
    p = {
        "conv1": _conv_bn_params(ks[0], inplanes, planes, 1),
        "conv2": _conv_bn_params(ks[1], planes, planes, 3),
        "conv3": _conv_bn_params(ks[2], planes, planes * EXPANSION, 1),
    }
    if downsample or stride != 1 or inplanes != planes * EXPANSION:
        p["down"] = _conv_bn_params(ks[3], inplanes, planes * EXPANSION, 1)
    return p


# ---------------------------------------------------------------------------
if __name__ == "__main__":
    key = jax.random.PRNGKey(0)
    kx, k1, k2 = jax.random.split(key, 3)

    # Two chained Bottleneck blocks (classic ResNet layer1 structure):
    #   block1: inplanes=64,  planes=64, stride=1, with 1x1 downsample 64->256
    #   block2: inplanes=256, planes=64, stride=1, identity residual
    params1 = init_bottleneck(k1, 64, 64, stride=1, downsample=True)
    params2 = init_bottleneck(k2, 256, 64, stride=1, downsample=False)

    x = jax.random.normal(kx, (2, 64, 16, 16), jnp.float32)   # NCHW

    fwd = jax.jit(lambda ps, inp: forward(ps, inp, strides=(1, 1)))
    out = fwd([params1, params2], x)
    jax.block_until_ready(out)
    assert out.shape == (2, 256, 16, 16)
    print("KERNEL_OK")
</pallas_src>

<mosaic_0001>
module attributes {stable_mosaic.version = 11 : i64} {
  func.func @_mm_kernel(%arg0: i32, %arg1: i32, %arg2: i32, %arg3: memref<256x64xbf16, #tpu.memory_space<vmem>>, %arg4: memref<64x64xbf16, #tpu.memory_space<vmem>>, %arg5: memref<1x64xf32, #tpu.memory_space<vmem>>, %arg6: memref<256x64xbf16, #tpu.memory_space<vmem>>, %arg7: memref<256x64xf32, #tpu.memory_space<vmem>>) attributes {dimension_semantics = [#tpu.dimension_semantics<parallel>, #tpu.dimension_semantics<parallel>, #tpu.dimension_semantics<arbitrary>], iteration_bounds = array<i64: 2, 1, 1>, scalar_prefetch = 0 : i64, scratch_operands = 1 : i64, tpu.core_type = #tpu.core_type<tc>, window_params = [{transform_indices = @transform_0, window_bounds = array<i64: 256, 64>}, {transform_indices = @transform_1, window_bounds = array<i64: 64, 64>}, {transform_indices = @transform_2, window_bounds = array<i64: 1, 64>}, {transform_indices = @transform_3, window_bounds = array<i64: 256, 64>}]} {
    %c0_i32 = arith.constant 0 : i32
    %0 = arith.cmpi eq, %arg2, %c0_i32 : i32
    %1 = arith.extui %0 : i1 to i32
    %c0_i32_0 = arith.constant 0 : i32
    %2 = arith.cmpi ne, %1, %c0_i32_0 : i32
    scf.if %2 {
      %cst_10 = arith.constant 0.000000e+00 : f32
      %12 = vector.broadcast %cst_10 : f32 to vector<256x64xf32>
      %c0_11 = arith.constant 0 : index
      %c0_12 = arith.constant 0 : index
      %13 = vector.load %arg7[%c0_11, %c0_12] : memref<256x64xf32, #tpu.memory_space<vmem>>, vector<256x64xf32>
      tpu.vector_store %arg7[%c0_11, %c0_12], %12 {strides = array<i32>} : memref<256x64xf32, #tpu.memory_space<vmem>>, vector<256x64xf32>,
    } else {
    }
    %c0 = arith.constant 0 : index
    %c0_1 = arith.constant 0 : index
    %3 = vector.load %arg7[%c0, %c0_1] : memref<256x64xf32, #tpu.memory_space<vmem>>, vector<256x64xf32>
    %c0_2 = arith.constant 0 : index
    %c0_3 = arith.constant 0 : index
    %4 = vector.load %arg3[%c0_2, %c0_3] : memref<256x64xbf16, #tpu.memory_space<vmem>>, vector<256x64xbf16>
    %c0_4 = arith.constant 0 : index
    %c0_5 = arith.constant 0 : index
    %5 = vector.load %arg4[%c0_4, %c0_5] : memref<64x64xbf16, #tpu.memory_space<vmem>>, vector<64x64xbf16>
    %cst = arith.constant dense<0.000000e+00> : vector<256x64xf32>
    %6 = tpu.matmul %4, %5, %cst {dimension_numbers = #tpu.dot_dimension_numbers<[1], [0], [0], [1], [0, 0, 1, 1], [], []>} : vector<256x64xbf16>, vector<64x64xbf16>, vector<256x64xf32> -> vector<256x64xf32>
    %7 = arith.addf %3, %6 : vector<256x64xf32>
    %c0_6 = arith.constant 0 : index
    %c0_7 = arith.constant 0 : index
    %8 = vector.load %arg7[%c0_6, %c0_7] : memref<256x64xf32, #tpu.memory_space<vmem>>, vector<256x64xf32>
    tpu.vector_store %arg7[%c0_6, %c0_7], %7 {strides = array<i32>} : memref<256x64xf32, #tpu.memory_space<vmem>>, vector<256x64xf32>,
    %c0_i32_8 = arith.constant 0 : i32
    %9 = arith.cmpi eq, %arg2, %c0_i32_8 : i32
    %10 = arith.extui %9 : i1 to i32
    %c0_i32_9 = arith.constant 0 : i32
    %11 = arith.cmpi ne, %10, %c0_i32_9 : i32
    scf.if %11 {
      %c0_10 = arith.constant 0 : index
      %c0_11 = arith.constant 0 : index
      %12 = vector.load %arg7[%c0_10, %c0_11] : memref<256x64xf32, #tpu.memory_space<vmem>>, vector<256x64xf32>
      %c0_12 = arith.constant 0 : index
      %c0_13 = arith.constant 0 : index
      %13 = vector.load %arg5[%c0_12, %c0_13] : memref<1x64xf32, #tpu.memory_space<vmem>>, vector<1x64xf32>
      %14 = vector.broadcast %13 : vector<1x64xf32> to vector<256x64xf32>
      %15 = arith.addf %12, %14 : vector<256x64xf32>
      %cst_14 = arith.constant 0.000000e+00 : f32
      %16 = vector.broadcast %cst_14 : f32 to vector<256x64xf32>
      %17 = arith.maximumf %15, %16 : vector<256x64xf32>
      %18 = arith.truncf %17 : vector<256x64xf32> to vector<256x64xbf16>
      %c0_15 = arith.constant 0 : index
      %c0_16 = arith.constant 0 : index
      %19 = vector.load %arg6[%c0_15, %c0_16] : memref<256x64xbf16, #tpu.memory_space<vmem>>, vector<256x64xbf16>
      tpu.vector_store %arg6[%c0_15, %c0_16], %18 {strides = array<i32>} : memref<256x64xbf16, #tpu.memory_space<vmem>>, vector<256x64xbf16>,
    } else {
    }
    return
  }
  func.func @transform_0(%arg0: i32, %arg1: i32, %arg2: i32) -> (i32, i32) {
    %c0_i32 = arith.constant 0 : i32
    return %arg0, %arg2 : i32, i32
  }
  func.func @transform_1(%arg0: i32, %arg1: i32, %arg2: i32) -> (i32, i32) {
    %c0_i32 = arith.constant 0 : i32
    return %arg2, %arg1 : i32, i32
  }
  func.func @transform_2(%arg0: i32, %arg1: i32, %arg2: i32) -> (i32, i32) {
    %c0_i32 = arith.constant 0 : i32
    %c0_i32_0 = arith.constant 0 : i32
    return %c0_i32, %arg1 : i32, i32
  }
  func.func @transform_3(%arg0: i32, %arg1: i32, %arg2: i32) -> (i32, i32) {
    %c0_i32 = arith.constant 0 : i32
    return %arg0, %arg1 : i32, i32
  }
}

module attributes {stable_mosaic.version = 11 : i64} {
  func.func @_conv3x3_kernel(%arg0: i32, %arg1: i32, %arg2: memref<1x18x18x64xbf16, #tpu.memory_space<vmem>>, %arg3: memref<3x3x64x64xbf16, #tpu.memory_space<vmem>>, %arg4: memref<1x64xf32, #tpu.memory_space<vmem>>, %arg5: memref<1x16x16x64xbf16, #tpu.memory_space<vmem>>) attributes {dimension_semantics = [#tpu.dimension_semantics<parallel>, #tpu.dimension_semantics<parallel>], iteration_bounds = array<i64: 2, 1>, scalar_prefetch = 0 : i64, scratch_operands = 0 : i64, tpu.core_type = #tpu.core_type<tc>, window_params = [{transform_indices = @transform_0, window_bounds = array<i64: 1, 18, 18, 64>}, {transform_indices = @transform_1, window_bounds = array<i64: 3, 3, 64, 64>}, {transform_indices = @transform_2, window_bounds = array<i64: 1, 64>}, {transform_indices = @transform_3, window_bounds = array<i64: 1, 16, 16, 64>}]} {
    %c0 = arith.constant 0 : index
    %c0_0 = arith.constant 0 : index
    %c0_1 = arith.constant 0 : index
    %c0_2 = arith.constant 0 : index
    %0 = vector.load %arg2[%c0, %c0_0, %c0_1, %c0_2] : memref<1x18x18x64xbf16, #tpu.memory_space<vmem>>, vector<1x18x18x64xbf16>
    %c0_3 = arith.constant 0 : index
    %c0_4 = arith.constant 0 : index
    %c0_5 = arith.constant 0 : index
    %c0_6 = arith.constant 0 : index
    %1 = vector.load %arg3[%c0_3, %c0_4, %c0_5, %c0_6] : memref<3x3x64x64xbf16, #tpu.memory_space<vmem>>, vector<3x3x64x64xbf16>
    %cst = arith.constant 0.000000e+00 : f32
    %2 = vector.broadcast %cst : f32 to vector<256x64xf32>
    %3 = vector.extract_strided_slice %0 {offsets = [0, 0, 0, 0], sizes = [1, 16, 16, 64], strides = [1, 1, 1, 1]} : vector<1x18x18x64xbf16> to vector<1x16x16x64xbf16>
    %4 = vector.shape_cast %3 : vector<1x16x16x64xbf16> to vector<16x16x64xbf16>
    %5 = vector.shape_cast %4 : vector<16x16x64xbf16> to vector<256x64xbf16>
    %6 = vector.extract_strided_slice %1 {offsets = [0, 0, 0, 0], sizes = [1, 1, 64, 64], strides = [1, 1, 1, 1]} : vector<3x3x64x64xbf16> to vector<1x1x64x64xbf16>
    %7 = vector.shape_cast %6 : vector<1x1x64x64xbf16> to vector<64x64xbf16>
    %cst_7 = arith.constant dense<0.000000e+00> : vector<256x64xf32>
    %8 = tpu.matmul %5, %7, %cst_7 {dimension_numbers = #tpu.dot_dimension_numbers<[1], [0], [0], [1], [0, 0, 1, 1], [], []>} : vector<256x64xbf16>, vector<64x64xbf16>, vector<256x64xf32> -> vector<256x64xf32>
    %9 = arith.addf %2, %8 : vector<256x64xf32>
    %10 = vector.extract_strided_slice %0 {offsets = [0, 0, 1, 0], sizes = [1, 16, 16, 64], strides = [1, 1, 1, 1]} : vector<1x18x18x64xbf16> to vector<1x16x16x64xbf16>
    %11 = vector.shape_cast %10 : vector<1x16x16x64xbf16> to vector<16x16x64xbf16>
    %12 = vector.shape_cast %11 : vector<16x16x64xbf16> to vector<256x64xbf16>
    %13 = vector.extract_strided_slice %1 {offsets = [0, 1, 0, 0], sizes = [1, 1, 64, 64], strides = [1, 1, 1, 1]} : vector<3x3x64x64xbf16> to vector<1x1x64x64xbf16>
    %14 = vector.shape_cast %13 : vector<1x1x64x64xbf16> to vector<64x64xbf16>
    %cst_8 = arith.constant dense<0.000000e+00> : vector<256x64xf32>
    %15 = tpu.matmul %12, %14, %cst_8 {dimension_numbers = #tpu.dot_dimension_numbers<[1], [0], [0], [1], [0, 0, 1, 1], [], []>} : vector<256x64xbf16>, vector<64x64xbf16>, vector<256x64xf32> -> vector<256x64xf32>
    %16 = arith.addf %9, %15 : vector<256x64xf32>
    %17 = vector.extract_strided_slice %0 {offsets = [0, 0, 2, 0], sizes = [1, 16, 16, 64], strides = [1, 1, 1, 1]} : vector<1x18x18x64xbf16> to vector<1x16x16x64xbf16>
    %18 = vector.shape_cast %17 : vector<1x16x16x64xbf16> to vector<16x16x64xbf16>
    %19 = vector.shape_cast %18 : vector<16x16x64xbf16> to vector<256x64xbf16>
    %20 = vector.extract_strided_slice %1 {offsets = [0, 2, 0, 0], sizes = [1, 1, 64, 64], strides = [1, 1, 1, 1]} : vector<3x3x64x64xbf16> to vector<1x1x64x64xbf16>
    %21 = vector.shape_cast %20 : vector<1x1x64x64xbf16> to vector<64x64xbf16>
    %cst_9 = arith.constant dense<0.000000e+00> : vector<256x64xf32>
    %22 = tpu.matmul %19, %21, %cst_9 {dimension_numbers = #tpu.dot_dimension_numbers<[1], [0], [0], [1], [0, 0, 1, 1], [], []>} : vector<256x64xbf16>, vector<64x64xbf16>, vector<256x64xf32> -> vector<256x64xf32>
    %23 = arith.addf %16, %22 : vector<256x64xf32>
    %24 = vector.extract_strided_slice %0 {offsets = [0, 1, 0, 0], sizes = [1, 16, 16, 64], strides = [1, 1, 1, 1]} : vector<1x18x18x64xbf16> to vector<1x16x16x64xbf16>
    %25 = vector.shape_cast %24 : vector<1x16x16x64xbf16> to vector<16x16x64xbf16>
    %26 = vector.shape_cast %25 : vector<16x16x64xbf16> to vector<256x64xbf16>
    %27 = vector.extract_strided_slice %1 {offsets = [1, 0, 0, 0], sizes = [1, 1, 64, 64], strides = [1, 1, 1, 1]} : vector<3x3x64x64xbf16> to vector<1x1x64x64xbf16>
    %28 = vector.shape_cast %27 : vector<1x1x64x64xbf16> to vector<64x64xbf16>
    %cst_10 = arith.constant dense<0.000000e+00> : vector<256x64xf32>
    %29 = tpu.matmul %26, %28, %cst_10 {dimension_numbers = #tpu.dot_dimension_numbers<[1], [0], [0], [1], [0, 0, 1, 1], [], []>} : vector<256x64xbf16>, vector<64x64xbf16>, vector<256x64xf32> -> vector<256x64xf32>
    %30 = arith.addf %23, %29 : vector<256x64xf32>
    %31 = vector.extract_strided_slice %0 {offsets = [0, 1, 1, 0], sizes = [1, 16, 16, 64], strides = [1, 1, 1, 1]} : vector<1x18x18x64xbf16> to vector<1x16x16x64xbf16>
    %32 = vector.shape_cast %31 : vector<1x16x16x64xbf16> to vector<16x16x64xbf16>
    %33 = vector.shape_cast %32 : vector<16x16x64xbf16> to vector<256x64xbf16>
    %34 = vector.extract_strided_slice %1 {offsets = [1, 1, 0, 0], sizes = [1, 1, 64, 64], strides = [1, 1, 1, 1]} : vector<3x3x64x64xbf16> to vector<1x1x64x64xbf16>
    %35 = vector.shape_cast %34 : vector<1x1x64x64xbf16> to vector<64x64xbf16>
    %cst_11 = arith.constant dense<0.000000e+00> : vector<256x64xf32>
    %36 = tpu.matmul %33, %35, %cst_11 {dimension_numbers = #tpu.dot_dimension_numbers<[1], [0], [0], [1], [0, 0, 1, 1], [], []>} : vector<256x64xbf16>, vector<64x64xbf16>, vector<256x64xf32> -> vector<256x64xf32>
    %37 = arith.addf %30, %36 : vector<256x64xf32>
    %38 = vector.extract_strided_slice %0 {offsets = [0, 1, 2, 0], sizes = [1, 16, 16, 64], strides = [1, 1, 1, 1]} : vector<1x18x18x64xbf16> to vector<1x16x16x64xbf16>
    %39 = vector.shape_cast %38 : vector<1x16x16x64xbf16> to vector<16x16x64xbf16>
    %40 = vector.shape_cast %39 : vector<16x16x64xbf16> to vector<256x64xbf16>
    %41 = vector.extract_strided_slice %1 {offsets = [1, 2, 0, 0], sizes = [1, 1, 64, 64], strides = [1, 1, 1, 1]} : vector<3x3x64x64xbf16> to vector<1x1x64x64xbf16>
    %42 = vector.shape_cast %41 : vector<1x1x64x64xbf16> to vector<64x64xbf16>
    %cst_12 = arith.constant dense<0.000000e+00> : vector<256x64xf32>
    %43 = tpu.matmul %40, %42, %cst_12 {dimension_numbers = #tpu.dot_dimension_numbers<[1], [0], [0], [1], [0, 0, 1, 1], [], []>} : vector<256x64xbf16>, vector<64x64xbf16>, vector<256x64xf32> -> vector<256x64xf32>
    %44 = arith.addf %37, %43 : vector<256x64xf32>
    %45 = vector.extract_strided_slice %0 {offsets = [0, 2, 0, 0], sizes = [1, 16, 16, 64], strides = [1, 1, 1, 1]} : vector<1x18x18x64xbf16> to vector<1x16x16x64xbf16>
    %46 = vector.shape_cast %45 : vector<1x16x16x64xbf16> to vector<16x16x64xbf16>
    %47 = vector.shape_cast %46 : vector<16x16x64xbf16> to vector<256x64xbf16>
    %48 = vector.extract_strided_slice %1 {offsets = [2, 0, 0, 0], sizes = [1, 1, 64, 64], strides = [1, 1, 1, 1]} : vector<3x3x64x64xbf16> to vector<1x1x64x64xbf16>
    %49 = vector.shape_cast %48 : vector<1x1x64x64xbf16> to vector<64x64xbf16>
    %cst_13 = arith.constant dense<0.000000e+00> : vector<256x64xf32>
    %50 = tpu.matmul %47, %49, %cst_13 {dimension_numbers = #tpu.dot_dimension_numbers<[1], [0], [0], [1], [0, 0, 1, 1], [], []>} : vector<256x64xbf16>, vector<64x64xbf16>, vector<256x64xf32> -> vector<256x64xf32>
    %51 = arith.addf %44, %50 : vector<256x64xf32>
    %52 = vector.extract_strided_slice %0 {offsets = [0, 2, 1, 0], sizes = [1, 16, 16, 64], strides = [1, 1, 1, 1]} : vector<1x18x18x64xbf16> to vector<1x16x16x64xbf16>
    %53 = vector.shape_cast %52 : vector<1x16x16x64xbf16> to vector<16x16x64xbf16>
    %54 = vector.shape_cast %53 : vector<16x16x64xbf16> to vector<256x64xbf16>
    %55 = vector.extract_strided_slice %1 {offsets = [2, 1, 0, 0], sizes = [1, 1, 64, 64], strides = [1, 1, 1, 1]} : vector<3x3x64x64xbf16> to vector<1x1x64x64xbf16>
    %56 = vector.shape_cast %55 : vector<1x1x64x64xbf16> to vector<64x64xbf16>
    %cst_14 = arith.constant dense<0.000000e+00> : vector<256x64xf32>
    %57 = tpu.matmul %54, %56, %cst_14 {dimension_numbers = #tpu.dot_dimension_numbers<[1], [0], [0], [1], [0, 0, 1, 1], [], []>} : vector<256x64xbf16>, vector<64x64xbf16>, vector<256x64xf32> -> vector<256x64xf32>
    %58 = arith.addf %51, %57 : vector<256x64xf32>
    %59 = vector.extract_strided_slice %0 {offsets = [0, 2, 2, 0], sizes = [1, 16, 16, 64], strides = [1, 1, 1, 1]} : vector<1x18x18x64xbf16> to vector<1x16x16x64xbf16>
    %60 = vector.shape_cast %59 : vector<1x16x16x64xbf16> to vector<16x16x64xbf16>
    %61 = vector.shape_cast %60 : vector<16x16x64xbf16> to vector<256x64xbf16>
    %62 = vector.extract_strided_slice %1 {offsets = [2, 2, 0, 0], sizes = [1, 1, 64, 64], strides = [1, 1, 1, 1]} : vector<3x3x64x64xbf16> to vector<1x1x64x64xbf16>
    %63 = vector.shape_cast %62 : vector<1x1x64x64xbf16> to vector<64x64xbf16>
    %cst_15 = arith.constant dense<0.000000e+00> : vector<256x64xf32>
    %64 = tpu.matmul %61, %63, %cst_15 {dimension_numbers = #tpu.dot_dimension_numbers<[1], [0], [0], [1], [0, 0, 1, 1], [], []>} : vector<256x64xbf16>, vector<64x64xbf16>, vector<256x64xf32> -> vector<256x64xf32>
    %65 = arith.addf %58, %64 : vector<256x64xf32>
    %c0_16 = arith.constant 0 : index
    %c0_17 = arith.constant 0 : index
    %66 = vector.load %arg4[%c0_16, %c0_17] : memref<1x64xf32, #tpu.memory_space<vmem>>, vector<1x64xf32>
    %67 = vector.broadcast %66 : vector<1x64xf32> to vector<256x64xf32>
    %68 = arith.addf %65, %67 : vector<256x64xf32>
    %cst_18 = arith.constant 0.000000e+00 : f32
    %69 = vector.broadcast %cst_18 : f32 to vector<256x64xf32>
    %70 = arith.maximumf %68, %69 : vector<256x64xf32>
    %71 = vector.shape_cast %70 : vector<256x64xf32> to vector<1x16x16x64xf32>
    %72 = arith.truncf %71 : vector<1x16x16x64xf32> to vector<1x16x16x64xbf16>
    %c0_19 = arith.constant 0 : index
    %c0_20 = arith.constant 0 : index
    %c0_21 = arith.constant 0 : index
    %c0_22 = arith.constant 0 : index
    %73 = vector.load %arg5[%c0_19, %c0_20, %c0_21, %c0_22] : memref<1x16x16x64xbf16, #tpu.memory_space<vmem>>, vector<1x16x16x64xbf16>
    tpu.vector_store %arg5[%c0_19, %c0_20, %c0_21, %c0_22], %72 {strides = array<i32>} : memref<1x16x16x64xbf16, #tpu.memory_space<vmem>>, vector<1x16x16x64xbf16>,
    return
  }
  func.func @transform_0(%arg0: i32, %arg1: i32) -> (i32, i32, i32, i32) {
    %c0_i32 = arith.constant 0 : i32
    %c0_i32_0 = arith.constant 0 : i32
    %c0_i32_1 = arith.constant 0 : i32
    %c0_i32_2 = arith.constant 0 : i32
    return %arg0, %c0_i32, %c0_i32_0, %c0_i32_1 : i32, i32, i32, i32
  }
  func.func @transform_1(%arg0: i32, %arg1: i32) -> (i32, i32, i32, i32) {
    %c0_i32 = arith.constant 0 : i32
    %c0_i32_0 = arith.constant 0 : i32
    %c0_i32_1 = arith.constant 0 : i32
    %c0_i32_2 = arith.constant 0 : i32
    return %c0_i32, %c0_i32_0, %c0_i32_1, %arg1 : i32, i32, i32, i32
  }
  func.func @transform_2(%arg0: i32, %arg1: i32) -> (i32, i32) {
    %c0_i32 = arith.constant 0 : i32
    %c0_i32_0 = arith.constant 0 : i32
    return %c0_i32, %arg1 : i32, i32
  }
  func.func @transform_3(%arg0: i32, %arg1: i32) -> (i32, i32, i32, i32) {
    %c0_i32 = arith.constant 0 : i32
    %c0_i32_0 = arith.constant 0 : i32
    %c0_i32_1 = arith.constant 0 : i32
    return %arg0, %c0_i32, %c0_i32_0, %arg1 : i32, i32, i32, i32
  }
}

module attributes {stable_mosaic.version = 11 : i64} {
  func.func @_mm_kernel(%arg0: i32, %arg1: i32, %arg2: i32, %arg3: memref<256x64xbf16, #tpu.memory_space<vmem>>, %arg4: memref<64x256xbf16, #tpu.memory_space<vmem>>, %arg5: memref<1x256xf32, #tpu.memory_space<vmem>>, %arg6: memref<256x256xbf16, #tpu.memory_space<vmem>>, %arg7: memref<256x256xf32, #tpu.memory_space<vmem>>) attributes {dimension_semantics = [#tpu.dimension_semantics<parallel>, #tpu.dimension_semantics<parallel>, #tpu.dimension_semantics<arbitrary>], iteration_bounds = array<i64: 2, 1, 1>, scalar_prefetch = 0 : i64, scratch_operands = 1 : i64, tpu.core_type = #tpu.core_type<tc>, window_params = [{transform_indices = @transform_0, window_bounds = array<i64: 256, 64>}, {transform_indices = @transform_1, window_bounds = array<i64: 64, 256>}, {transform_indices = @transform_2, window_bounds = array<i64: 1, 256>}, {transform_indices = @transform_3, window_bounds = array<i64: 256, 256>}]} {
    %c0_i32 = arith.constant 0 : i32
    %0 = arith.cmpi eq, %arg2, %c0_i32 : i32
    %1 = arith.extui %0 : i1 to i32
    %c0_i32_0 = arith.constant 0 : i32
    %2 = arith.cmpi ne, %1, %c0_i32_0 : i32
    scf.if %2 {
      %cst_10 = arith.constant 0.000000e+00 : f32
      %12 = vector.broadcast %cst_10 : f32 to vector<256x256xf32>
      %c0_11 = arith.constant 0 : index
      %c0_12 = arith.constant 0 : index
      %13 = vector.load %arg7[%c0_11, %c0_12] : memref<256x256xf32, #tpu.memory_space<vmem>>, vector<256x256xf32>
      tpu.vector_store %arg7[%c0_11, %c0_12], %12 {strides = array<i32>} : memref<256x256xf32, #tpu.memory_space<vmem>>, vector<256x256xf32>,
    } else {
    }
    %c0 = arith.constant 0 : index
    %c0_1 = arith.constant 0 : index
    %3 = vector.load %arg7[%c0, %c0_1] : memref<256x256xf32, #tpu.memory_space<vmem>>, vector<256x256xf32>
    %c0_2 = arith.constant 0 : index
    %c0_3 = arith.constant 0 : index
    %4 = vector.load %arg3[%c0_2, %c0_3] : memref<256x64xbf16, #tpu.memory_space<vmem>>, vector<256x64xbf16>
    %c0_4 = arith.constant 0 : index
    %c0_5 = arith.constant 0 : index
    %5 = vector.load %arg4[%c0_4, %c0_5] : memref<64x256xbf16, #tpu.memory_space<vmem>>, vector<64x256xbf16>
    %cst = arith.constant dense<0.000000e+00> : vector<256x256xf32>
    %6 = tpu.matmul %4, %5, %cst {dimension_numbers = #tpu.dot_dimension_numbers<[1], [0], [0], [1], [0, 0, 1, 1], [], []>} : vector<256x64xbf16>, vector<64x256xbf16>, vector<256x256xf32> -> vector<256x256xf32>
    %7 = arith.addf %3, %6 : vector<256x256xf32>
    %c0_6 = arith.constant 0 : index
    %c0_7 = arith.constant 0 : index
    %8 = vector.load %arg7[%c0_6, %c0_7] : memref<256x256xf32, #tpu.memory_space<vmem>>, vector<256x256xf32>
    tpu.vector_store %arg7[%c0_6, %c0_7], %7 {strides = array<i32>} : memref<256x256xf32, #tpu.memory_space<vmem>>, vector<256x256xf32>,
    %c0_i32_8 = arith.constant 0 : i32
    %9 = arith.cmpi eq, %arg2, %c0_i32_8 : i32
    %10 = arith.extui %9 : i1 to i32
    %c0_i32_9 = arith.constant 0 : i32
    %11 = arith.cmpi ne, %10, %c0_i32_9 : i32
    scf.if %11 {
      %c0_10 = arith.constant 0 : index
      %c0_11 = arith.constant 0 : index
      %12 = vector.load %arg7[%c0_10, %c0_11] : memref<256x256xf32, #tpu.memory_space<vmem>>, vector<256x256xf32>
      %c0_12 = arith.constant 0 : index
      %c0_13 = arith.constant 0 : index
      %13 = vector.load %arg5[%c0_12, %c0_13] : memref<1x256xf32, #tpu.memory_space<vmem>>, vector<1x256xf32>
      %14 = vector.broadcast %13 : vector<1x256xf32> to vector<256x256xf32>
      %15 = arith.addf %12, %14 : vector<256x256xf32>
      %16 = arith.truncf %15 : vector<256x256xf32> to vector<256x256xbf16>
      %c0_14 = arith.constant 0 : index
      %c0_15 = arith.constant 0 : index
      %17 = vector.load %arg6[%c0_14, %c0_15] : memref<256x256xbf16, #tpu.memory_space<vmem>>, vector<256x256xbf16>
      tpu.vector_store %arg6[%c0_14, %c0_15], %16 {strides = array<i32>} : memref<256x256xbf16, #tpu.memory_space<vmem>>, vector<256x256xbf16>,
    } else {
    }
    return
  }
  func.func @transform_0(%arg0: i32, %arg1: i32, %arg2: i32) -> (i32, i32) {
    %c0_i32 = arith.constant 0 : i32
    return %arg0, %arg2 : i32, i32
  }
  func.func @transform_1(%arg0: i32, %arg1: i32, %arg2: i32) -> (i32, i32) {
    %c0_i32 = arith.constant 0 : i32
    return %arg2, %arg1 : i32, i32
  }
  func.func @transform_2(%arg0: i32, %arg1: i32, %arg2: i32) -> (i32, i32) {
    %c0_i32 = arith.constant 0 : i32
    %c0_i32_0 = arith.constant 0 : i32
    return %c0_i32, %arg1 : i32, i32
  }
  func.func @transform_3(%arg0: i32, %arg1: i32, %arg2: i32) -> (i32, i32) {
    %c0_i32 = arith.constant 0 : i32
    return %arg0, %arg1 : i32, i32
  }
}

module attributes {stable_mosaic.version = 11 : i64} {
  func.func @_mm_res_kernel(%arg0: i32, %arg1: i32, %arg2: i32, %arg3: memref<256x64xbf16, #tpu.memory_space<vmem>>, %arg4: memref<64x256xbf16, #tpu.memory_space<vmem>>, %arg5: memref<1x256xf32, #tpu.memory_space<vmem>>, %arg6: memref<256x256xbf16, #tpu.memory_space<vmem>>, %arg7: memref<256x256xbf16, #tpu.memory_space<vmem>>, %arg8: memref<256x256xf32, #tpu.memory_space<vmem>>) attributes {dimension_semantics = [#tpu.dimension_semantics<parallel>, #tpu.dimension_semantics<parallel>, #tpu.dimension_semantics<arbitrary>], iteration_bounds = array<i64: 2, 1, 1>, scalar_prefetch = 0 : i64, scratch_operands = 1 : i64, tpu.core_type = #tpu.core_type<tc>, window_params = [{transform_indices = @transform_0, window_bounds = array<i64: 256, 64>}, {transform_indices = @transform_1, window_bounds = array<i64: 64, 256>}, {transform_indices = @transform_2, window_bounds = array<i64: 1, 256>}, {transform_indices = @transform_3, window_bounds = array<i64: 256, 256>}, {transform_indices = @transform_4, window_bounds = array<i64: 256, 256>}]} {
    %c0_i32 = arith.constant 0 : i32
    %0 = arith.cmpi eq, %arg2, %c0_i32 : i32
    %1 = arith.extui %0 : i1 to i32
    %c0_i32_0 = arith.constant 0 : i32
    %2 = arith.cmpi ne, %1, %c0_i32_0 : i32
    scf.if %2 {
      %cst_10 = arith.constant 0.000000e+00 : f32
      %12 = vector.broadcast %cst_10 : f32 to vector<256x256xf32>
      %c0_11 = arith.constant 0 : index
      %c0_12 = arith.constant 0 : index
      %13 = vector.load %arg8[%c0_11, %c0_12] : memref<256x256xf32, #tpu.memory_space<vmem>>, vector<256x256xf32>
      tpu.vector_store %arg8[%c0_11, %c0_12], %12 {strides = array<i32>} : memref<256x256xf32, #tpu.memory_space<vmem>>, vector<256x256xf32>,
    } else {
    }
    %c0 = arith.constant 0 : index
    %c0_1 = arith.constant 0 : index
    %3 = vector.load %arg8[%c0, %c0_1] : memref<256x256xf32, #tpu.memory_space<vmem>>, vector<256x256xf32>
    %c0_2 = arith.constant 0 : index
    %c0_3 = arith.constant 0 : index
    %4 = vector.load %arg3[%c0_2, %c0_3] : memref<256x64xbf16, #tpu.memory_space<vmem>>, vector<256x64xbf16>
    %c0_4 = arith.constant 0 : index
    %c0_5 = arith.constant 0 : index
    %5 = vector.load %arg4[%c0_4, %c0_5] : memref<64x256xbf16, #tpu.memory_space<vmem>>, vector<64x256xbf16>
    %cst = arith.constant dense<0.000000e+00> : vector<256x256xf32>
    %6 = tpu.matmul %4, %5, %cst {dimension_numbers = #tpu.dot_dimension_numbers<[1], [0], [0], [1], [0, 0, 1, 1], [], []>} : vector<256x64xbf16>, vector<64x256xbf16>, vector<256x256xf32> -> vector<256x256xf32>
    %7 = arith.addf %3, %6 : vector<256x256xf32>
    %c0_6 = arith.constant 0 : index
    %c0_7 = arith.constant 0 : index
    %8 = vector.load %arg8[%c0_6, %c0_7] : memref<256x256xf32, #tpu.memory_space<vmem>>, vector<256x256xf32>
    tpu.vector_store %arg8[%c0_6, %c0_7], %7 {strides = array<i32>} : memref<256x256xf32, #tpu.memory_space<vmem>>, vector<256x256xf32>,
    %c0_i32_8 = arith.constant 0 : i32
    %9 = arith.cmpi eq, %arg2, %c0_i32_8 : i32
    %10 = arith.extui %9 : i1 to i32
    %c0_i32_9 = arith.constant 0 : i32
    %11 = arith.cmpi ne, %10, %c0_i32_9 : i32
    scf.if %11 {
      %c0_10 = arith.constant 0 : index
      %c0_11 = arith.constant 0 : index
      %12 = vector.load %arg8[%c0_10, %c0_11] : memref<256x256xf32, #tpu.memory_space<vmem>>, vector<256x256xf32>
      %c0_12 = arith.constant 0 : index
      %c0_13 = arith.constant 0 : index
      %13 = vector.load %arg5[%c0_12, %c0_13] : memref<1x256xf32, #tpu.memory_space<vmem>>, vector<1x256xf32>
      %14 = vector.broadcast %13 : vector<1x256xf32> to vector<256x256xf32>
      %15 = arith.addf %12, %14 : vector<256x256xf32>
      %c0_14 = arith.constant 0 : index
      %c0_15 = arith.constant 0 : index
      %16 = vector.load %arg6[%c0_14, %c0_15] : memref<256x256xbf16, #tpu.memory_space<vmem>>, vector<256x256xbf16>
      %17 = arith.extf %16 : vector<256x256xbf16> to vector<256x256xf32>
      %18 = arith.addf %15, %17 : vector<256x256xf32>
      %cst_16 = arith.constant 0.000000e+00 : f32
      %19 = vector.broadcast %cst_16 : f32 to vector<256x256xf32>
      %20 = arith.maximumf %18, %19 : vector<256x256xf32>
      %21 = arith.truncf %20 : vector<256x256xf32> to vector<256x256xbf16>
      %c0_17 = arith.constant 0 : index
      %c0_18 = arith.constant 0 : index
      %22 = vector.load %arg7[%c0_17, %c0_18] : memref<256x256xbf16, #tpu.memory_space<vmem>>, vector<256x256xbf16>
      tpu.vector_store %arg7[%c0_17, %c0_18], %21 {strides = array<i32>} : memref<256x256xbf16, #tpu.memory_space<vmem>>, vector<256x256xbf16>,
    } else {
    }
    return
  }
  func.func @transform_0(%arg0: i32, %arg1: i32, %arg2: i32) -> (i32, i32) {
    %c0_i32 = arith.constant 0 : i32
    return %arg0, %arg2 : i32, i32
  }
  func.func @transform_1(%arg0: i32, %arg1: i32, %arg2: i32) -> (i32, i32) {
    %c0_i32 = arith.constant 0 : i32
    return %arg2, %arg1 : i32, i32
  }
  func.func @transform_2(%arg0: i32, %arg1: i32, %arg2: i32) -> (i32, i32) {
    %c0_i32 = arith.constant 0 : i32
    %c0_i32_0 = arith.constant 0 : i32
    return %c0_i32, %arg1 : i32, i32
  }
  func.func @transform_3(%arg0: i32, %arg1: i32, %arg2: i32) -> (i32, i32) {
    %c0_i32 = arith.constant 0 : i32
    return %arg0, %arg1 : i32, i32
  }
  func.func @transform_4(%arg0: i32, %arg1: i32, %arg2: i32) -> (i32, i32) {
    %c0_i32 = arith.constant 0 : i32
    return %arg0, %arg1 : i32, i32
  }
}

module attributes {stable_mosaic.version = 11 : i64} {
  func.func @_mm_kernel(%arg0: i32, %arg1: i32, %arg2: i32, %arg3: memref<256x256xbf16, #tpu.memory_space<vmem>>, %arg4: memref<256x64xbf16, #tpu.memory_space<vmem>>, %arg5: memref<1x64xf32, #tpu.memory_space<vmem>>, %arg6: memref<256x64xbf16, #tpu.memory_space<vmem>>, %arg7: memref<256x64xf32, #tpu.memory_space<vmem>>) attributes {dimension_semantics = [#tpu.dimension_semantics<parallel>, #tpu.dimension_semantics<parallel>, #tpu.dimension_semantics<arbitrary>], iteration_bounds = array<i64: 2, 1, 1>, scalar_prefetch = 0 : i64, scratch_operands = 1 : i64, tpu.core_type = #tpu.core_type<tc>, window_params = [{transform_indices = @transform_0, window_bounds = array<i64: 256, 256>}, {transform_indices = @transform_1, window_bounds = array<i64: 256, 64>}, {transform_indices = @transform_2, window_bounds = array<i64: 1, 64>}, {transform_indices = @transform_3, window_bounds = array<i64: 256, 64>}]} {
    %c0_i32 = arith.constant 0 : i32
    %0 = arith.cmpi eq, %arg2, %c0_i32 : i32
    %1 = arith.extui %0 : i1 to i32
    %c0_i32_0 = arith.constant 0 : i32
    %2 = arith.cmpi ne, %1, %c0_i32_0 : i32
    scf.if %2 {
      %cst_10 = arith.constant 0.000000e+00 : f32
      %12 = vector.broadcast %cst_10 : f32 to vector<256x64xf32>
      %c0_11 = arith.constant 0 : index
      %c0_12 = arith.constant 0 : index
      %13 = vector.load %arg7[%c0_11, %c0_12] : memref<256x64xf32, #tpu.memory_space<vmem>>, vector<256x64xf32>
      tpu.vector_store %arg7[%c0_11, %c0_12], %12 {strides = array<i32>} : memref<256x64xf32, #tpu.memory_space<vmem>>, vector<256x64xf32>,
    } else {
    }
    %c0 = arith.constant 0 : index
    %c0_1 = arith.constant 0 : index
    %3 = vector.load %arg7[%c0, %c0_1] : memref<256x64xf32, #tpu.memory_space<vmem>>, vector<256x64xf32>
    %c0_2 = arith.constant 0 : index
    %c0_3 = arith.constant 0 : index
    %4 = vector.load %arg3[%c0_2, %c0_3] : memref<256x256xbf16, #tpu.memory_space<vmem>>, vector<256x256xbf16>
    %c0_4 = arith.constant 0 : index
    %c0_5 = arith.constant 0 : index
    %5 = vector.load %arg4[%c0_4, %c0_5] : memref<256x64xbf16, #tpu.memory_space<vmem>>, vector<256x64xbf16>
    %cst = arith.constant dense<0.000000e+00> : vector<256x64xf32>
    %6 = tpu.matmul %4, %5, %cst {dimension_numbers = #tpu.dot_dimension_numbers<[1], [0], [0], [1], [0, 0, 1, 1], [], []>} : vector<256x256xbf16>, vector<256x64xbf16>, vector<256x64xf32> -> vector<256x64xf32>
    %7 = arith.addf %3, %6 : vector<256x64xf32>
    %c0_6 = arith.constant 0 : index
    %c0_7 = arith.constant 0 : index
    %8 = vector.load %arg7[%c0_6, %c0_7] : memref<256x64xf32, #tpu.memory_space<vmem>>, vector<256x64xf32>
    tpu.vector_store %arg7[%c0_6, %c0_7], %7 {strides = array<i32>} : memref<256x64xf32, #tpu.memory_space<vmem>>, vector<256x64xf32>,
    %c0_i32_8 = arith.constant 0 : i32
    %9 = arith.cmpi eq, %arg2, %c0_i32_8 : i32
    %10 = arith.extui %9 : i1 to i32
    %c0_i32_9 = arith.constant 0 : i32
    %11 = arith.cmpi ne, %10, %c0_i32_9 : i32
    scf.if %11 {
      %c0_10 = arith.constant 0 : index
      %c0_11 = arith.constant 0 : index
      %12 = vector.load %arg7[%c0_10, %c0_11] : memref<256x64xf32, #tpu.memory_space<vmem>>, vector<256x64xf32>
      %c0_12 = arith.constant 0 : index
      %c0_13 = arith.constant 0 : index
      %13 = vector.load %arg5[%c0_12, %c0_13] : memref<1x64xf32, #tpu.memory_space<vmem>>, vector<1x64xf32>
      %14 = vector.broadcast %13 : vector<1x64xf32> to vector<256x64xf32>
      %15 = arith.addf %12, %14 : vector<256x64xf32>
      %cst_14 = arith.constant 0.000000e+00 : f32
      %16 = vector.broadcast %cst_14 : f32 to vector<256x64xf32>
      %17 = arith.maximumf %15, %16 : vector<256x64xf32>
      %18 = arith.truncf %17 : vector<256x64xf32> to vector<256x64xbf16>
      %c0_15 = arith.constant 0 : index
      %c0_16 = arith.constant 0 : index
      %19 = vector.load %arg6[%c0_15, %c0_16] : memref<256x64xbf16, #tpu.memory_space<vmem>>, vector<256x64xbf16>
      tpu.vector_store %arg6[%c0_15, %c0_16], %18 {strides = array<i32>} : memref<256x64xbf16, #tpu.memory_space<vmem>>, vector<256x64xbf16>,
    } else {
    }
    return
  }
  func.func @transform_0(%arg0: i32, %arg1: i32, %arg2: i32) -> (i32, i32) {
    %c0_i32 = arith.constant 0 : i32
    return %arg0, %arg2 : i32, i32
  }
  func.func @transform_1(%arg0: i32, %arg1: i32, %arg2: i32) -> (i32, i32) {
    %c0_i32 = arith.constant 0 : i32
    return %arg2, %arg1 : i32, i32
  }
  func.func @transform_2(%arg0: i32, %arg1: i32, %arg2: i32) -> (i32, i32) {
    %c0_i32 = arith.constant 0 : i32
    %c0_i32_0 = arith.constant 0 : i32
    return %c0_i32, %arg1 : i32, i32
  }
  func.func @transform_3(%arg0: i32, %arg1: i32, %arg2: i32) -> (i32, i32) {
    %c0_i32 = arith.constant 0 : i32
    return %arg0, %arg1 : i32, i32
  }
}

</mosaic_0001>

<llo_original>
// kernel: _lambda_.7
$region0: #{_lambda_.7}
  #allocation0 [shape = 'u32[]', space=smem, size = 0x4, offset = 0x4, fixed_abs, tag = 'smem constant byte address 0x4 - core index']
  #allocation1 [shape = 'u32[72,128]{1,0:T(1,128)}', space=vmem, size = 0x9000, scoped, tag = 'internal scratch']
  #allocation2 [shape = 'f32[256,64]{1,0:T(8,128)}', space=vmem, size = 0x20000, scoped, tag = 'scratch operand']
  %s0 = inlined_call_operand.vmem [shape: bf16[512,64], index: 0, kind: input, shape index: {}]
  %s1 = inlined_call_operand.vmem [shape: bf16[64,64], index: 1, kind: input, shape index: {}]
  %s2 = inlined_call_operand.vmem [shape: f32[1,64], index: 2, kind: input, shape index: {}]
  %s3 = inlined_call_operand.vmem [shape: bf16[512,64], index: 3, kind: output, shape index: {}]
  %s4 = sld [smem:[#allocation0]]
  $region53: #{_lambda_.7} parent=0
    _
  %s6 = ssub.s32 1, %s4
  %s7 = scalar_select 0, %s6, %s4
  loop: start=0, step=1, limit=4
  $region2: #{_lambda_.7} parent=0 // loop_pre_header
    _
  $region3: #{_lambda_.7} parent=0 // loop_header
    %s9 = sphi 0, %s13
    %p10 = scmp.ge.s32.totalorder %s9, 4
    %s16 = sphi 0, %s35
    %s17 = sphi 0, %s31
    %s18 = sphi 0, %s27
    %s19 = sphi 0, %s16
    %s20 = sphi 0, %s17
    %s21 = sphi 0, %s18
    %s22 = sphi 0, %s19
    %s23 = sphi 0, %s20
    %s24 = sphi 0, %s21
    %s40 = sphi 0, %s42
    %s43 = sphi 0, %s40
    %s44 = sphi 0, %s43
    %s60 = sphi 0, %s44
    %s68 = sphi 0, %s70
    %s71 = sphi 0, %s68
    %s72 = sphi 0, %s71
    %s88 = sphi 0, %s72
    %s94 = sphi 0, %s96
    %s97 = sphi 0, %s94
    %s98 = sphi 0, %s97
    %s114 = sphi 0, %s98
    %s122 = sphi 0, %s124
    %s125 = sphi 0, %s122
    %s126 = sphi 0, %s125
    %s142 = sphi 0, %s126
  $region4: #{_lambda_.7} parent=0 // loop_header_branch
    %12 = sbr.rel (%p10) target = $region8
  $region5: #{_lambda_.7} parent=0 // loop_body
    %s14 = ssub.s32 %s9, 1
    %s15 = ssub.s32 %s9, 2
    %s25 = sadd.s32 1, %s18
    %p26 = scmp.ge.s32.totalorder %s25, 1
    %s27 = scalar_select %p26, 0, %s25
    %s28 = sadd.s32 1, %s17
    %s29 = scalar_select %p26, %s28, %s17
    %p30 = scmp.ge.s32.totalorder %s29, 1
    %s31 = scalar_select %p30, 0, %s29
    %s32 = sadd.s32 1, %s16
    %s33 = scalar_select %p30, %s32, %s16
    %p34 = scmp.ge.s32.totalorder %s33, 2
    %s35 = scalar_select %p34, 0, %s33
    %s36 = ssub.s32 %s16, %s35
    %s37 = ssub.s32 %s18, %s27
    %s38 = sor.u32 %s36, %s37
    %p39 = scmp.eq.s32.totalorder %s38, 0
    %s41 = sadd.s32 %s40, 1
    %s42 = scalar_select %p39, %s40, %s41
    %p45 = pneg %p39
    %p46 = scmp.eq.s32.totalorder %s9, 1
    %p47 = por %p45, %p46
    %p48 = scmp.ne.s32.totalorder %s40, %s43
    %p49 = scmp.eq.s32.totalorder %s9, 0
    %p50 = por %p48, %p49
    %p51 = scmp.ne.s32.totalorder %s40, %s43
    %p52 = scmp.eq.s32.totalorder %s14, 1
    %p53 = por %p51, %p52
    %p54 = scmp.ne.s32.totalorder %s43, %s44
    %p55 = scmp.eq.s32.totalorder %s14, 0
    %p56 = por %p54, %p55
    %p57 = scmp.ne.s32.totalorder %s43, %s44
    %p58 = scmp.eq.s32.totalorder %s15, 1
    %p59 = por %p57, %p58
    %p61 = scmp.ne.s32.totalorder %s44, %s60
    %p62 = scmp.eq.s32.totalorder %s15, 0
    %p63 = por %p61, %p62
    %s64 = ssub.s32 %s18, %s27
    %s65 = ssub.s32 %s17, %s31
    %s66 = sor.u32 %s64, %s65
    %p67 = scmp.eq.s32.totalorder %s66, 0
    %s69 = sadd.s32 %s68, 1
    %s70 = scalar_select %p67, %s68, %s69
    %p73 = pneg %p67
    %p74 = scmp.eq.s32.totalorder %s9, 1
    %p75 = por %p73, %p74
    %p76 = scmp.ne.s32.totalorder %s68, %s71
    %p77 = scmp.eq.s32.totalorder %s9, 0
    %p78 = por %p76, %p77
    %p79 = scmp.ne.s32.totalorder %s68, %s71
    %p80 = scmp.eq.s32.totalorder %s14, 1
    %p81 = por %p79, %p80
    %p82 = scmp.ne.s32.totalorder %s71, %s72
    %p83 = scmp.eq.s32.totalorder %s14, 0
    %p84 = por %p82, %p83
    %p85 = scmp.ne.s32.totalorder %s71, %s72
    %p86 = scmp.eq.s32.totalorder %s15, 1
    %p87 = por %p85, %p86
    %p89 = scmp.ne.s32.totalorder %s72, %s88
    %p90 = scmp.eq.s32.totalorder %s15, 0
    %p91 = por %p89, %p90
    %s92 = ssub.s32 %s17, %s31
    %p93 = scmp.eq.s32.totalorder %s92, 0
    %s95 = sadd.s32 %s94, 1
    %s96 = scalar_select %p93, %s94, %s95
    %p99 = pneg %p93
    %p100 = scmp.eq.s32.totalorder %s9, 1
    %p101 = por %p99, %p100
    %p102 = scmp.ne.s32.totalorder %s94, %s97
    %p103 = scmp.eq.s32.totalorder %s9, 0
    %p104 = por %p102, %p103
    %p105 = scmp.ne.s32.totalorder %s94, %s97
    %p106 = scmp.eq.s32.totalorder %s14, 1
    %p107 = por %p105, %p106
    %p108 = scmp.ne.s32.totalorder %s97, %s98
    %p109 = scmp.eq.s32.totalorder %s14, 0
    %p110 = por %p108, %p109
    %p111 = scmp.ne.s32.totalorder %s97, %s98
    %p112 = scmp.eq.s32.totalorder %s15, 1
    %p113 = por %p111, %p112
    %p115 = scmp.ne.s32.totalorder %s98, %s114
    %p116 = scmp.eq.s32.totalorder %s15, 0
    %p117 = por %p115, %p116
    %s118 = ssub.s32 %s16, %s35
    %s119 = ssub.s32 %s17, %s31
    %s120 = sor.u32 %s118, %s119
    %p121 = scmp.eq.s32.totalorder %s120, 0
    %s123 = sadd.s32 %s122, 1
    %s124 = scalar_select %p121, %s122, %s123
    %p127 = pneg %p121
    %p128 = scmp.eq.s32.totalorder %s9, 1
    %p129 = por %p127, %p128
    %p130 = scmp.ne.s32.totalorder %s122, %s125
    %p131 = scmp.eq.s32.totalorder %s9, 0
    %p132 = por %p130, %p131
    %p133 = scmp.ne.s32.totalorder %s122, %s125
    %p134 = scmp.eq.s32.totalorder %s14, 1
    %p135 = por %p133, %p134
    %p136 = scmp.ne.s32.totalorder %s125, %s126
    %p137 = scmp.eq.s32.totalorder %s14, 0
    %p138 = por %p136, %p137
    %p139 = scmp.ne.s32.totalorder %s125, %s126
    %p140 = scmp.eq.s32.totalorder %s15, 1
    %p141 = por %p139, %p140
    %p143 = scmp.ne.s32.totalorder %s126, %s142
    %p144 = scmp.eq.s32.totalorder %s15, 0
    %p145 = por %p143, %p144
    %p146 = scmp.le.s32.totalorder 1, %s9
    %p147 = scmp.lt.s32.totalorder %s9, 3
    %p148 = pnand %p146, %p147
    %p149 = pneg %p148
    // Predicated region
    $region9: #{_lambda_.7} parent=5 // pred_check
      _
    $region10: #{_lambda_.7} parent=5 // pred_check_branch
      %151 = sbr.rel (%p148) target = $region12
    $region11: #{_lambda_.7} parent=5 // pred_region
      %s152 = ssub.s32 %s9, 1
      // Predicated region
      $region13: #{_lambda_.7} parent=11 // pred_check
        %p153 = pneg %p84
      $region14: #{_lambda_.7} parent=11 // pred_check_branch
        %155 = sbr.rel (%p153) target = $region16
      $region15: #{_lambda_.7} parent=11 // pred_region
        %s156 = smul.u32 8, %s21
        %p157 = scmp.lt.s32.totalorder %s156, 7
        %s158 = scalar_select %p157, %s156, 7
        %p159 = scmp.lt.s32.totalorder %s20, 0
        %s160 = scalar_select %p159, %s20, 0
        %s161 = sadd.s32 %s160, %s158
        %s162 = smul.addr %s161, 4
        %s163 = scalar_lea.vmem %s1, %s162
        %s164 = smul.u32 8, %s21
      $region16: #{_lambda_.7} parent=11 // pred_fallthru
        _
      // Predicated region
      $region17: #{_lambda_.7} parent=11 // pred_check
        %p165 = pneg %p110
      $region18: #{_lambda_.7} parent=11 // pred_check_branch
        %167 = sbr.rel (%p165) target = $region20
      $region19: #{_lambda_.7} parent=11 // pred_region
        %p168 = scmp.lt.s32.totalorder %s20, 0
        %s169 = scalar_select %p168, %s20, 0
        %s170 = scalar_lea.vmem %s2, %s169
      $region20: #{_lambda_.7} parent=11 // pred_fallthru
        _
    $region12: #{_lambda_.7} parent=5 // pred_fallthru
      _
    %p171 = scmp.lt.s32.totalorder %s9, 2
    // Predicated region
    $region21: #{_lambda_.7} parent=5 // pred_check
      %p172 = pneg %p171
    $region22: #{_lambda_.7} parent=5 // pred_check_branch
      %174 = sbr.rel (%p172) target = $region24
    $region23: #{_lambda_.7} parent=5 // pred_region
      // Predicated region
      $region25: #{_lambda_.7} parent=23 // pred_check
        %p175 = pneg %p50
      $region26: #{_lambda_.7} parent=23 // pred_check_branch
        %177 = sbr.rel (%p175) target = $region28
      $region27: #{_lambda_.7} parent=23 // pred_region
        %s178 = smul.u32 32, %s16
        %p179 = scmp.lt.s32.totalorder %s178, 63
        %s180 = scalar_select %p179, %s178, 63
        %p181 = scmp.lt.s32.totalorder %s18, 0
        %s182 = scalar_select %p181, %s18, 0
        %s183 = sadd.s32 %s182, %s180
        %s184 = smul.addr %s183, 4
        %s185 = scalar_lea.vmem %s0, %s184
        %s186 = smul.u32 32, %s16
      $region28: #{_lambda_.7} parent=23 // pred_fallthru
        _
    $region24: #{_lambda_.7} parent=5 // pred_fallthru
      _
    %p187 = scmp.le.s32.totalorder 1, %s9
    %p188 = scmp.lt.s32.totalorder %s9, 3
    %p189 = pnand %p187, %p188
    %p190 = pneg %p189
    // Predicated region
    $region29: #{_lambda_.7} parent=5 // pred_check
      _
    $region30: #{_lambda_.7} parent=5 // pred_check_branch
      %192 = sbr.rel (%p189) target = $region32
    $region31: #{_lambda_.7} parent=5 // pred_region
      %s193 = ssub.s32 %s9, 1
      %s194 = smul.u32 32, %s19
      %p195 = scmp.lt.s32.totalorder %s194, 63
      %s196 = scalar_select %p195, %s194, 63
      %p197 = scmp.lt.s32.totalorder %s21, 0
      %s198 = scalar_select %p197, %s21, 0
      %s199 = sadd.s32 %s198, %s196
      %s200 = smul.addr %s199, 4
      %s201 = scalar_lea.vmem %s0, %s200
      %p202 = pneg %p56
      %p203 = pneg %p53
      %s204 = smul.u32 8, %s21
      %p205 = scmp.lt.s32.totalorder %s204, 7
      %s206 = scalar_select %p205, %s204, 7
      %p207 = scmp.lt.s32.totalorder %s20, 0
      %s208 = scalar_select %p207, %s20, 0
      %s209 = sadd.s32 %s208, %s206
      %s210 = smul.addr %s209, 4
      %s211 = scalar_lea.vmem %s1, %s210
      %p212 = pneg %p84
      %p213 = pneg %p81
      %p214 = scmp.lt.s32.totalorder %s20, 0
      %s215 = scalar_select %p214, %s20, 0
      %s216 = scalar_lea.vmem %s2, %s215
      %p217 = pneg %p110
      %p218 = pneg %p107
      %p219 = pneg %p138
      %p220 = pneg %p135
      %s221 = smul.u32 32, %s19
      %p222 = scmp.lt.s32.totalorder %s221, 63
      %s223 = scalar_select %p222, %s221, 63
      %p224 = scmp.lt.s32.totalorder %s20, 0
      %s225 = scalar_select %p224, %s20, 0
      %s226 = sadd.s32 %s225, %s223
      %s227 = smul.addr %s226, 4
      %s228 = scalar_lea.vmem %s3, %s227
      %s229 = smul.u32 32, %s19
      %p230 = scmp.lt.s32.totalorder %s229, 63
      %s231 = scalar_select %p230, %s229, 63
      %p232 = scmp.lt.s32.totalorder %s21, 0
      %s233 = scalar_select %p232, %s21, 0
      %s234 = sadd.s32 %s233, %s231
      %s235 = smul.addr %s234, 4
      %s236 = scalar_lea.vmem %s0, %s235
      %s237 = smul.u32 32, %s19
      %s238 = smul.u32 8, %s21
      %p239 = scmp.lt.s32.totalorder %s238, 7
      %s240 = scalar_select %p239, %s238, 7
      %p241 = scmp.lt.s32.totalorder %s20, 0
      %s242 = scalar_select %p241, %s20, 0
      %s243 = sadd.s32 %s242, %s240
      %s244 = smul.addr %s243, 4
      %s245 = scalar_lea.vmem %s1, %s244
      %s246 = smul.u32 8, %s21
      %p247 = scmp.lt.s32.totalorder %s20, 0
      %s248 = scalar_select %p247, %s20, 0
      %s249 = scalar_lea.vmem %s2, %s248
      %s250 = smul.u32 32, %s19
      %p251 = scmp.lt.s32.totalorder %s250, 63
      %s252 = scalar_select %p251, %s250, 63
      %p253 = scmp.lt.s32.totalorder %s20, 0
      %s254 = scalar_select %p253, %s20, 0
      %s255 = sadd.s32 %s254, %s252
      %s256 = smul.addr %s255, 4
      %s257 = scalar_lea.vmem %s3, %s256
      %s258 = smul.u32 32, %s19
      %p260 = scmp.eq.s32.totalorder %s21, 0
      // Predicated region
      $region33: #{_lambda_.7} parent=31 // pred_check
        %p261 = pneg %p260
      $region34: #{_lambda_.7} parent=31 // pred_check_branch
        %263 = sbr.rel (%p261) target = $region36
      $region35: #{_lambda_.7} parent=31 // pred_region
        %vm264 = vcmask 523264
        %265 = vst.msk [vmem:[#allocation2] sm:$0xff] %vm264, 0.0
        %266 = vst.msk [vmem:[#allocation2 + $0x8] sm:$0xff] %vm264, 0.0
        %267 = vst.msk [vmem:[#allocation2 + $0x10] sm:$0xff] %vm264, 0.0
        %268 = vst.msk [vmem:[#allocation2 + $0x18] sm:$0xff] %vm264, 0.0
        %269 = vst.msk [vmem:[#allocation2 + $0x20] sm:$0xff] %vm264, 0.0
        %270 = vst.msk [vmem:[#allocation2 + $0x28] sm:$0xff] %vm264, 0.0
        %271 = vst.msk [vmem:[#allocation2 + $0x30] sm:$0xff] %vm264, 0.0
        %272 = vst.msk [vmem:[#allocation2 + $0x38] sm:$0xff] %vm264, 0.0
        %273 = vst.msk [vmem:[#allocation2 + $0x40] sm:$0xff] %vm264, 0.0
        %274 = vst.msk [vmem:[#allocation2 + $0x48] sm:$0xff] %vm264, 0.0
        %275 = vst.msk [vmem:[#allocation2 + $0x50] sm:$0xff] %vm264, 0.0
        %276 = vst.msk [vmem:[#allocation2 + $0x58] sm:$0xff] %vm264, 0.0
        %277 = vst.msk [vmem:[#allocation2 + $0x60] sm:$0xff] %vm264, 0.0
        %278 = vst.msk [vmem:[#allocation2 + $0x68] sm:$0xff] %vm264, 0.0
        %279 = vst.msk [vmem:[#allocation2 + $0x70] sm:$0xff] %vm264, 0.0
        %280 = vst.msk [vmem:[#allocation2 + $0x78] sm:$0xff] %vm264, 0.0
        %281 = vst.msk [vmem:[#allocation2 + $0x80] sm:$0xff] %vm264, 0.0
        %282 = vst.msk [vmem:[#allocation2 + $0x88] sm:$0xff] %vm264, 0.0
        %283 = vst.msk [vmem:[#allocation2 + $0x90] sm:$0xff] %vm264, 0.0
        %284 = vst.msk [vmem:[#allocation2 + $0x98] sm:$0xff] %vm264, 0.0
        %285 = vst.msk [vmem:[#allocation2 + $0xa0] sm:$0xff] %vm264, 0.0
        %286 = vst.msk [vmem:[#allocation2 + $0xa8] sm:$0xff] %vm264, 0.0
        %287 = vst.msk [vmem:[#allocation2 + $0xb0] sm:$0xff] %vm264, 0.0
        %288 = vst.msk [vmem:[#allocation2 + $0xb8] sm:$0xff] %vm264, 0.0
        %289 = vst.msk [vmem:[#allocation2 + $0xc0] sm:$0xff] %vm264, 0.0
        %290 = vst.msk [vmem:[#allocation2 + $0xc8] sm:$0xff] %vm264, 0.0
        %291 = vst.msk [vmem:[#allocation2 + $0xd0] sm:$0xff] %vm264, 0.0
        %292 = vst.msk [vmem:[#allocation2 + $0xd8] sm:$0xff] %vm264, 0.0
        %293 = vst.msk [vmem:[#allocation2 + $0xe0] sm:$0xff] %vm264, 0.0
        %294 = vst.msk [vmem:[#allocation2 + $0xe8] sm:$0xff] %vm264, 0.0
        %295 = vst.msk [vmem:[#allocation2 + $0xf0] sm:$0xff] %vm264, 0.0
        %296 = vst.msk [vmem:[#allocation2 + $0xf8] sm:$0xff] %vm264, 0.0
      $region36: #{_lambda_.7} parent=31 // pred_fallthru
        _
      %v297 = vld [vmem:[#allocation2] sm:$0xff]
      %v298 = vld [vmem:[#allocation2 + $0x8] sm:$0xff]
      %v299 = vld [vmem:[#allocation2 + $0x10] sm:$0xff]
      %v300 = vld [vmem:[#allocation2 + $0x18] sm:$0xff]
      %v301 = vld [vmem:[#allocation2 + $0x20] sm:$0xff]
      %v302 = vld [vmem:[#allocation2 + $0x28] sm:$0xff]
      %v303 = vld [vmem:[#allocation2 + $0x30] sm:$0xff]
      %v304 = vld [vmem:[#allocation2 + $0x38] sm:$0xff]
      %v305 = vld [vmem:[#allocation2 + $0x40] sm:$0xff]
      %v306 = vld [vmem:[#allocation2 + $0x48] sm:$0xff]
      %v307 = vld [vmem:[#allocation2 + $0x50] sm:$0xff]
      %v308 = vld [vmem:[#allocation2 + $0x58] sm:$0xff]
      %v309 = vld [vmem:[#allocation2 + $0x60] sm:$0xff]
      %v310 = vld [vmem:[#allocation2 + $0x68] sm:$0xff]
      %v311 = vld [vmem:[#allocation2 + $0x70] sm:$0xff]
      %v312 = vld [vmem:[#allocation2 + $0x78] sm:$0xff]
      %v313 = vld [vmem:[#allocation2 + $0x80] sm:$0xff]
      %v314 = vld [vmem:[#allocation2 + $0x88] sm:$0xff]
      %v315 = vld [vmem:[#allocation2 + $0x90] sm:$0xff]
      %v316 = vld [vmem:[#allocation2 + $0x98] sm:$0xff]
      %v317 = vld [vmem:[#allocation2 + $0xa0] sm:$0xff]
      %v318 = vld [vmem:[#allocation2 + $0xa8] sm:$0xff]
      %v319 = vld [vmem:[#allocation2 + $0xb0] sm:$0xff]
      %v320 = vld [vmem:[#allocation2 + $0xb8] sm:$0xff]
      %v321 = vld [vmem:[#allocation2 + $0xc0] sm:$0xff]
      %v322 = vld [vmem:[#allocation2 + $0xc8] sm:$0xff]
      %v323 = vld [vmem:[#allocation2 + $0xd0] sm:$0xff]
      %v324 = vld [vmem:[#allocation2 + $0xd8] sm:$0xff]
      %v325 = vld [vmem:[#allocation2 + $0xe0] sm:$0xff]
      %v326 = vld [vmem:[#allocation2 + $0xe8] sm:$0xff]
      %v327 = vld [vmem:[#allocation2 + $0xf0] sm:$0xff]
      %v328 = vld [vmem:[#allocation2 + $0xf8] sm:$0xff]
      %v329 = vld [vmem:[%s236] sm:$0xf]
      %v330 = vld [vmem:[%s236 + $0x4] sm:$0xf]
      %v331 = vld [vmem:[%s236 + $0x8] sm:$0xf]
      %v332 = vld [vmem:[%s236 + $0xc] sm:$0xf]
      %v333 = vld [vmem:[%s236 + $0x10] sm:$0xf]
      %v334 = vld [vmem:[%s236 + $0x14] sm:$0xf]
      %v335 = vld [vmem:[%s236 + $0x18] sm:$0xf]
      %v336 = vld [vmem:[%s236 + $0x1c] sm:$0xf]
      %v337 = vld [vmem:[%s236 + $0x20] sm:$0xf]
      %v338 = vld [vmem:[%s236 + $0x24] sm:$0xf]
      %v339 = vld [vmem:[%s236 + $0x28] sm:$0xf]
      %v340 = vld [vmem:[%s236 + $0x2c] sm:$0xf]
      %v341 = vld [vmem:[%s236 + $0x30] sm:$0xf]
      %v342 = vld [vmem:[%s236 + $0x34] sm:$0xf]
      %v343 = vld [vmem:[%s236 + $0x38] sm:$0xf]
      %v344 = vld [vmem:[%s236 + $0x3c] sm:$0xf]
      %v345 = vld [vmem:[%s236 + $0x40] sm:$0xf]
      %v346 = vld [vmem:[%s236 + $0x44] sm:$0xf]
      %v347 = vld [vmem:[%s236 + $0x48] sm:$0xf]
      %v348 = vld [vmem:[%s236 + $0x4c] sm:$0xf]
      %v349 = vld [vmem:[%s236 + $0x50] sm:$0xf]
      %v350 = vld [vmem:[%s236 + $0x54] sm:$0xf]
      %v351 = vld [vmem:[%s236 + $0x58] sm:$0xf]
      %v352 = vld [vmem:[%s236 + $0x5c] sm:$0xf]
      %v353 = vld [vmem:[%s236 + $0x60] sm:$0xf]
      %v354 = vld [vmem:[%s236 + $0x64] sm:$0xf]
      %v355 = vld [vmem:[%s236 + $0x68] sm:$0xf]
      %v356 = vld [vmem:[%s236 + $0x6c] sm:$0xf]
      %v357 = vld [vmem:[%s236 + $0x70] sm:$0xf]
      %v358 = vld [vmem:[%s236 + $0x74] sm:$0xf]
      %v359 = vld [vmem:[%s236 + $0x78] sm:$0xf]
      %v360 = vld [vmem:[%s236 + $0x7c] sm:$0xf]
      %v361 = vld [vmem:[%s245] sm:$0xf]
      %v362 = vld [vmem:[%s245 + $0x4] sm:$0xf]
      %v363 = vld [vmem:[%s245 + $0x8] sm:$0xf]
      %v364 = vld [vmem:[%s245 + $0xc] sm:$0xf]
      %v365 = vld [vmem:[%s245 + $0x10] sm:$0xf]
      %v366 = vld [vmem:[%s245 + $0x14] sm:$0xf]
      %v367 = vld [vmem:[%s245 + $0x18] sm:$0xf]
      %v368 = vld [vmem:[%s245 + $0x1c] sm:$0xf]
      %v401 = vunpack.c.l.b16 %v329
      %v402 = vunpack.c.l.b16 %v330
      %v403 = vunpack.c.l.b16 %v331
      %v404 = vunpack.c.l.b16 %v332
      %v405 = vunpack.c.l.b16 %v333
      %v406 = vunpack.c.l.b16 %v334
      %v407 = vunpack.c.l.b16 %v335
      %v408 = vunpack.c.l.b16 %v336
      %v409 = vunpack.c.l.b16 %v337
      %v410 = vunpack.c.l.b16 %v338
      %v411 = vunpack.c.l.b16 %v339
      %v412 = vunpack.c.l.b16 %v340
      %v413 = vunpack.c.l.b16 %v341
      %v414 = vunpack.c.l.b16 %v342
      %v415 = vunpack.c.l.b16 %v343
      %v416 = vunpack.c.l.b16 %v344
      %v417 = vunpack.c.l.b16 %v345
      %v418 = vunpack.c.l.b16 %v346
      %v419 = vunpack.c.l.b16 %v347
      %v420 = vunpack.c.l.b16 %v348
      %v421 = vunpack.c.l.b16 %v349
      %v422 = vunpack.c.l.b16 %v350
      %v423 = vunpack.c.l.b16 %v351
      %v424 = vunpack.c.l.b16 %v352
      %v425 = vunpack.c.l.b16 %v353
      %v426 = vunpack.c.l.b16 %v354
      %v427 = vunpack.c.l.b16 %v355
      %v428 = vunpack.c.l.b16 %v356
      %v429 = vunpack.c.l.b16 %v357
      %v430 = vunpack.c.l.b16 %v358
      %v431 = vunpack.c.l.b16 %v359
      %v432 = vunpack.c.l.b16 %v360
      %v433 = vpack.c.b16 %v402, %v401
      %v434 = vpack.c.b16 %v404, %v403
      %v435 = vpack.c.b16 %v406, %v405
      %v436 = vpack.c.b16 %v408, %v407
      %v437 = vpack.c.b16 %v410, %v409
      %v438 = vpack.c.b16 %v412, %v411
      %v439 = vpack.c.b16 %v414, %v413
      %v440 = vpack.c.b16 %v416, %v415
      %v441 = vpack.c.b16 %v418, %v417
      %v442 = vpack.c.b16 %v420, %v419
      %v443 = vpack.c.b16 %v422, %v421
      %v444 = vpack.c.b16 %v424, %v423
      %v445 = vpack.c.b16 %v426, %v425
      %v446 = vpack.c.b16 %v428, %v427
      %v447 = vpack.c.b16 %v430, %v429
      %v448 = vpack.c.b16 %v432, %v431
      %v457 = vunpack.c.l.b16 %v361
      %v458 = vunpack.c.l.b16 %v362
      %v459 = vunpack.c.l.b16 %v363
      %v460 = vunpack.c.l.b16 %v364
      %v461 = vunpack.c.l.b16 %v365
      %v462 = vunpack.c.l.b16 %v366
      %v463 = vunpack.c.l.b16 %v367
      %v464 = vunpack.c.l.b16 %v368
      %v465 = vpack.c.b16 %v458, %v457
      %v466 = vpack.c.b16 %v460, %v459
      %v467 = vpack.c.b16 %v462, %v461
      %v468 = vpack.c.b16 %v464, %v463
      %vm473 = vcmask 523264
      %v475 = vsel %vm473, %v433, 0
      %v478 = vsel %vm473, %v434, 0
      %v481 = vsel %vm473, %v435, 0
      %v484 = vsel %vm473, %v436, 0
      %v487 = vsel %vm473, %v437, 0
      %v490 = vsel %vm473, %v438, 0
      %v493 = vsel %vm473, %v439, 0
      %v496 = vsel %vm473, %v440, 0
      %v499 = vsel %vm473, %v441, 0
      %v502 = vsel %vm473, %v442, 0
      %v505 = vsel %vm473, %v443, 0
      %v508 = vsel %vm473, %v444, 0
      %v511 = vsel %vm473, %v445, 0
      %v514 = vsel %vm473, %v446, 0
      %v517 = vsel %vm473, %v447, 0
      %v520 = vsel %vm473, %v448, 0
      %522 = vmatpush.bf16.msra.mxu0 0
      %523 = vmatpush.bf16.msra.mxu0 0
      %524 = vmatpush.bf16.msra.mxu0 0
      %525 = vmatpush.bf16.msra.mxu0 0
      %526 = vmatpush.bf16.msra.mxu0 %v468
      %527 = vmatpush.bf16.msra.mxu0 %v467
      %528 = vmatpush.bf16.msra.mxu0 %v466
      %529 = vmatpush.bf16.msra.mxu0 %v465
      %530 = vmatmul.bf16.gmra.mxu0 %v475
      %v531 = vpop.f32.mrf.mxu0
      %v532 = vadd.f32 0.0, %v531
      %v533 = vpop.f32.mrf.mxu0
      %v534 = vadd.f32 0.0, %v533
      %535 = vmatmul.bf16.gmra.mxu0 %v478
      %v536 = vpop.f32.mrf.mxu0
      %v537 = vadd.f32 0.0, %v536
      %v538 = vpop.f32.mrf.mxu0
      %v539 = vadd.f32 0.0, %v538
      %540 = vmatmul.bf16.gmra.mxu0 %v481
      %v541 = vpop.f32.mrf.mxu0
      %v542 = vadd.f32 0.0, %v541
      %v543 = vpop.f32.mrf.mxu0
      %v544 = vadd.f32 0.0, %v543
      %545 = vmatmul.bf16.gmra.mxu0 %v484
      %v546 = vpop.f32.mrf.mxu0
      %v547 = vadd.f32 0.0, %v546
      %v548 = vpop.f32.mrf.mxu0
      %v549 = vadd.f32 0.0, %v548
      %550 = vmatmul.bf16.gmra.mxu0 %v487
      %v551 = vpop.f32.mrf.mxu0
      %v552 = vadd.f32 0.0, %v551
      %v553 = vpop.f32.mrf.mxu0
      %v554 = vadd.f32 0.0, %v553
      %555 = vmatmul.bf16.gmra.mxu0 %v490
      %v556 = vpop.f32.mrf.mxu0
      %v557 = vadd.f32 0.0, %v556
      %v558 = vpop.f32.mrf.mxu0
      %v559 = vadd.f32 0.0, %v558
      %560 = vmatmul.bf16.gmra.mxu0 %v493
      %v561 = vpop.f32.mrf.mxu0
      %v562 = vadd.f32 0.0, %v561
      %v563 = vpop.f32.mrf.mxu0
      %v564 = vadd.f32 0.0, %v563
      %565 = vmatmul.bf16.gmra.mxu0 %v496
      %v566 = vpop.f32.mrf.mxu0
      %v567 = vadd.f32 0.0, %v566
      %v568 = vpop.f32.mrf.mxu0
      %v569 = vadd.f32 0.0, %v568
      %570 = vmatmul.bf16.gmra.mxu0 %v499
      %v571 = vpop.f32.mrf.mxu0
      %v572 = vadd.f32 0.0, %v571
      %v573 = vpop.f32.mrf.mxu0
      %v574 = vadd.f32 0.0, %v573
      %575 = vmatmul.bf16.gmra.mxu0 %v502
      %v576 = vpop.f32.mrf.mxu0
      %v577 = vadd.f32 0.0, %v576
      %v578 = vpop.f32.mrf.mxu0
      %v579 = vadd.f32 0.0, %v578
      %580 = vmatmul.bf16.gmra.mxu0 %v505
      %v581 = vpop.f32.mrf.mxu0
      %v582 = vadd.f32 0.0, %v581
      %v583 = vpop.f32.mrf.mxu0
      %v584 = vadd.f32 0.0, %v583
      %585 = vmatmul.bf16.gmra.mxu0 %v508
      %v586 = vpop.f32.mrf.mxu0
      %v587 = vadd.f32 0.0, %v586
      %v588 = vpop.f32.mrf.mxu0
      %v589 = vadd.f32 0.0, %v588
      %590 = vmatmul.bf16.gmra.mxu0 %v511
      %v591 = vpop.f32.mrf.mxu0
      %v592 = vadd.f32 0.0, %v591
      %v593 = vpop.f32.mrf.mxu0
      %v594 = vadd.f32 0.0, %v593
      %595 = vmatmul.bf16.gmra.mxu0 %v514
      %v596 = vpop.f32.mrf.mxu0
      %v597 = vadd.f32 0.0, %v596
      %v598 = vpop.f32.mrf.mxu0
      %v599 = vadd.f32 0.0, %v598
      %600 = vmatmul.bf16.gmra.mxu0 %v517
      %v601 = vpop.f32.mrf.mxu0
      %v602 = vadd.f32 0.0, %v601
      %v603 = vpop.f32.mrf.mxu0
      %v604 = vadd.f32 0.0, %v603
      %605 = vmatmul.bf16.gmra.mxu0 %v520
      %v606 = vpop.f32.mrf.mxu0
      %v607 = vadd.f32 0.0, %v606
      %v608 = vpop.f32.mrf.mxu0
      %v609 = vadd.f32 0.0, %v608
      %610 = vdwg.mxu0
      %v611 = vadd.f32 %v297, %v532
      %v612 = vadd.f32 %v298, %v534
      %v613 = vadd.f32 %v299, %v537
      %v614 = vadd.f32 %v300, %v539
      %v615 = vadd.f32 %v301, %v542
      %v616 = vadd.f32 %v302, %v544
      %v617 = vadd.f32 %v303, %v547
      %v618 = vadd.f32 %v304, %v549
      %v619 = vadd.f32 %v305, %v552
      %v620 = vadd.f32 %v306, %v554
      %v621 = vadd.f32 %v307, %v557
      %v622 = vadd.f32 %v308, %v559
      %v623 = vadd.f32 %v309, %v562
      %v624 = vadd.f32 %v310, %v564
      %v625 = vadd.f32 %v311, %v567
      %v626 = vadd.f32 %v312, %v569
      %v627 = vadd.f32 %v313, %v572
      %v628 = vadd.f32 %v314, %v574
      %v629 = vadd.f32 %v315, %v577
      %v630 = vadd.f32 %v316, %v579
      %v631 = vadd.f32 %v317, %v582
      %v632 = vadd.f32 %v318, %v584
      %v633 = vadd.f32 %v319, %v587
      %v634 = vadd.f32 %v320, %v589
      %v635 = vadd.f32 %v321, %v592
      %v636 = vadd.f32 %v322, %v594
      %v637 = vadd.f32 %v323, %v597
      %v638 = vadd.f32 %v324, %v599
      %v639 = vadd.f32 %v325, %v602
      %v640 = vadd.f32 %v326, %v604
      %v641 = vadd.f32 %v327, %v607
      %v642 = vadd.f32 %v328, %v609
      %643 = vst.msk [vmem:[#allocation2] sm:$0xff] %vm473, %v611
      %644 = vst.msk [vmem:[#allocation2 + $0x8] sm:$0xff] %vm473, %v612
      %645 = vst.msk [vmem:[#allocation2 + $0x10] sm:$0xff] %vm473, %v613
      %646 = vst.msk [vmem:[#allocation2 + $0x18] sm:$0xff] %vm473, %v614
      %647 = vst.msk [vmem:[#allocation2 + $0x20] sm:$0xff] %vm473, %v615
      %648 = vst.msk [vmem:[#allocation2 + $0x28] sm:$0xff] %vm473, %v616
      %649 = vst.msk [vmem:[#allocation2 + $0x30] sm:$0xff] %vm473, %v617
      %650 = vst.msk [vmem:[#allocation2 + $0x38] sm:$0xff] %vm473, %v618
      %651 = vst.msk [vmem:[#allocation2 + $0x40] sm:$0xff] %vm473, %v619
      %652 = vst.msk [vmem:[#allocation2 + $0x48] sm:$0xff] %vm473, %v620
      %653 = vst.msk [vmem:[#allocation2 + $0x50] sm:$0xff] %vm473, %v621
      %654 = vst.msk [vmem:[#allocation2 + $0x58] sm:$0xff] %vm473, %v622
      %655 = vst.msk [vmem:[#allocation2 + $0x60] sm:$0xff] %vm473, %v623
      %656 = vst.msk [vmem:[#allocation2 + $0x68] sm:$0xff] %vm473, %v624
      %657 = vst.msk [vmem:[#allocation2 + $0x70] sm:$0xff] %vm473, %v625
      %658 = vst.msk [vmem:[#allocation2 + $0x78] sm:$0xff] %vm473, %v626
      %659 = vst.msk [vmem:[#allocation2 + $0x80] sm:$0xff] %vm473, %v627
      %660 = vst.msk [vmem:[#allocation2 + $0x88] sm:$0xff] %vm473, %v628
      %661 = vst.msk [vmem:[#allocation2 + $0x90] sm:$0xff] %vm473, %v629
      %662 = vst.msk [vmem:[#allocation2 + $0x98] sm:$0xff] %vm473, %v630
      %663 = vst.msk [vmem:[#allocation2 + $0xa0] sm:$0xff] %vm473, %v631
      %664 = vst.msk [vmem:[#allocation2 + $0xa8] sm:$0xff] %vm473, %v632
      %665 = vst.msk [vmem:[#allocation2 + $0xb0] sm:$0xff] %vm473, %v633
      %666 = vst.msk [vmem:[#allocation2 + $0xb8] sm:$0xff] %vm473, %v634
      %667 = vst.msk [vmem:[#allocation2 + $0xc0] sm:$0xff] %vm473, %v635
      %668 = vst.msk [vmem:[#allocation2 + $0xc8] sm:$0xff] %vm473, %v636
      %669 = vst.msk [vmem:[#allocation2 + $0xd0] sm:$0xff] %vm473, %v637
      %670 = vst.msk [vmem:[#allocation2 + $0xd8] sm:$0xff] %vm473, %v638
      %671 = vst.msk [vmem:[#allocation2 + $0xe0] sm:$0xff] %vm473, %v639
      %672 = vst.msk [vmem:[#allocation2 + $0xe8] sm:$0xff] %vm473, %v640
      %673 = vst.msk [vmem:[#allocation2 + $0xf0] sm:$0xff] %vm473, %v641
      %674 = vst.msk [vmem:[#allocation2 + $0xf8] sm:$0xff] %vm473, %v642
      // Predicated region
      $region37: #{_lambda_.7} parent=31 // pred_check
        %p675 = pneg %p260
      $region38: #{_lambda_.7} parent=31 // pred_check_branch
        %677 = sbr.rel (%p675) target = $region40
      $region39: #{_lambda_.7} parent=31 // pred_region
        %v678 = vld [vmem:[#allocation2] sm:$0xff]
        %v679 = vld [vmem:[#allocation2 + $0x8] sm:$0xff]
        %v680 = vld [vmem:[#allocation2 + $0x10] sm:$0xff]
        %v681 = vld [vmem:[#allocation2 + $0x18] sm:$0xff]
        %v682 = vld [vmem:[#allocation2 + $0x20] sm:$0xff]
        %v683 = vld [vmem:[#allocation2 + $0x28] sm:$0xff]
        %v684 = vld [vmem:[#allocation2 + $0x30] sm:$0xff]
        %v685 = vld [vmem:[#allocation2 + $0x38] sm:$0xff]
        %v686 = vld [vmem:[#allocation2 + $0x40] sm:$0xff]
        %v687 = vld [vmem:[#allocation2 + $0x48] sm:$0xff]
        %v688 = vld [vmem:[#allocation2 + $0x50] sm:$0xff]
        %v689 = vld [vmem:[#allocation2 + $0x58] sm:$0xff]
        %v690 = vld [vmem:[#allocation2 + $0x60] sm:$0xff]
        %v691 = vld [vmem:[#allocation2 + $0x68] sm:$0xff]
        %v692 = vld [vmem:[#allocation2 + $0x70] sm:$0xff]
        %v693 = vld [vmem:[#allocation2 + $0x78] sm:$0xff]
        %v694 = vld [vmem:[#allocation2 + $0x80] sm:$0xff]
        %v695 = vld [vmem:[#allocation2 + $0x88] sm:$0xff]
        %v696 = vld [vmem:[#allocation2 + $0x90] sm:$0xff]
        %v697 = vld [vmem:[#allocation2 + $0x98] sm:$0xff]
        %v698 = vld [vmem:[#allocation2 + $0xa0] sm:$0xff]
        %v699 = vld [vmem:[#allocation2 + $0xa8] sm:$0xff]
        %v700 = vld [vmem:[#allocation2 + $0xb0] sm:$0xff]
        %v701 = vld [vmem:[#allocation2 + $0xb8] sm:$0xff]
        %v702 = vld [vmem:[#allocation2 + $0xc0] sm:$0xff]
        %v703 = vld [vmem:[#allocation2 + $0xc8] sm:$0xff]
        %v704 = vld [vmem:[#allocation2 + $0xd0] sm:$0xff]
        %v705 = vld [vmem:[#allocation2 + $0xd8] sm:$0xff]
        %v706 = vld [vmem:[#allocation2 + $0xe0] sm:$0xff]
        %v707 = vld [vmem:[#allocation2 + $0xe8] sm:$0xff]
        %v708 = vld [vmem:[#allocation2 + $0xf0] sm:$0xff]
        %v709 = vld [vmem:[#allocation2 + $0xf8] sm:$0xff]
        %v710 = vld [vmem:[%s249] sm:$0x1]
        %v712 = vperm.slane %v710, 0
        %v714 = vadd.f32 %v678, %v712
        %v715 = vadd.f32 %v679, %v712
        %v716 = vadd.f32 %v680, %v712
        %v717 = vadd.f32 %v681, %v712
        %v718 = vadd.f32 %v682, %v712
        %v719 = vadd.f32 %v683, %v712
        %v720 = vadd.f32 %v684, %v712
        %v721 = vadd.f32 %v685, %v712
        %v722 = vadd.f32 %v686, %v712
        %v723 = vadd.f32 %v687, %v712
        %v724 = vadd.f32 %v688, %v712
        %v725 = vadd.f32 %v689, %v712
        %v726 = vadd.f32 %v690, %v712
        %v727 = vadd.f32 %v691, %v712
        %v728 = vadd.f32 %v692, %v712
        %v729 = vadd.f32 %v693, %v712
        %v730 = vadd.f32 %v694, %v712
        %v731 = vadd.f32 %v695, %v712
        %v732 = vadd.f32 %v696, %v712
        %v733 = vadd.f32 %v697, %v712
        %v734 = vadd.f32 %v698, %v712
        %v735 = vadd.f32 %v699, %v712
        %v736 = vadd.f32 %v700, %v712
        %v737 = vadd.f32 %v701, %v712
        %v738 = vadd.f32 %v702, %v712
        %v739 = vadd.f32 %v703, %v712
        %v740 = vadd.f32 %v704, %v712
        %v741 = vadd.f32 %v705, %v712
        %v742 = vadd.f32 %v706, %v712
        %v743 = vadd.f32 %v707, %v712
        %v744 = vadd.f32 %v708, %v712
        %v745 = vadd.f32 %v709, %v712
        %v746 = vmax.f32 %v714, 0.0
        %v747 = vmax.f32 %v715, 0.0
        %v748 = vmax.f32 %v716, 0.0
        %v749 = vmax.f32 %v717, 0.0
        %v750 = vmax.f32 %v718, 0.0
        %v751 = vmax.f32 %v719, 0.0
        %v752 = vmax.f32 %v720, 0.0
        %v753 = vmax.f32 %v721, 0.0
        %v754 = vmax.f32 %v722, 0.0
        %v755 = vmax.f32 %v723, 0.0
        %v756 = vmax.f32 %v724, 0.0
        %v757 = vmax.f32 %v725, 0.0
        %v758 = vmax.f32 %v726, 0.0
        %v759 = vmax.f32 %v727, 0.0
        %v760 = vmax.f32 %v728, 0.0
        %v761 = vmax.f32 %v729, 0.0
        %v762 = vmax.f32 %v730, 0.0
        %v763 = vmax.f32 %v731, 0.0
        %v764 = vmax.f32 %v732, 0.0
        %v765 = vmax.f32 %v733, 0.0
        %v766 = vmax.f32 %v734, 0.0
        %v767 = vmax.f32 %v735, 0.0
        %v768 = vmax.f32 %v736, 0.0
        %v769 = vmax.f32 %v737, 0.0
        %v770 = vmax.f32 %v738, 0.0
        %v771 = vmax.f32 %v739, 0.0
        %v772 = vmax.f32 %v740, 0.0
        %v773 = vmax.f32 %v741, 0.0
        %v774 = vmax.f32 %v742, 0.0
        %v775 = vmax.f32 %v743, 0.0
        %v776 = vmax.f32 %v744, 0.0
        %v777 = vmax.f32 %v745, 0.0
        %v778 = vpack.c.bf16 %v746, %v746
        %v779 = vpack.c.bf16 %v747, %v747
        %v780 = vpack.c.bf16 %v748, %v748
        %v781 = vpack.c.bf16 %v749, %v749
        %v782 = vpack.c.bf16 %v750, %v750
        %v783 = vpack.c.bf16 %v751, %v751
        %v784 = vpack.c.bf16 %v752, %v752
        %v785 = vpack.c.bf16 %v753, %v753
        %v786 = vpack.c.bf16 %v754, %v754
        %v787 = vpack.c.bf16 %v755, %v755
        %v788 = vpack.c.bf16 %v756, %v756
        %v789 = vpack.c.bf16 %v757, %v757
        %v790 = vpack.c.bf16 %v758, %v758
        %v791 = vpack.c.bf16 %v759, %v759
        %v792 = vpack.c.bf16 %v760, %v760
        %v793 = vpack.c.bf16 %v761, %v761
        %v794 = vpack.c.bf16 %v762, %v762
        %v795 = vpack.c.bf16 %v763, %v763
        %v796 = vpack.c.bf16 %v764, %v764
        %v797 = vpack.c.bf16 %v765, %v765
        %v798 = vpack.c.bf16 %v766, %v766
        %v799 = vpack.c.bf16 %v767, %v767
        %v800 = vpack.c.bf16 %v768, %v768
        %v801 = vpack.c.bf16 %v769, %v769
        %v802 = vpack.c.bf16 %v770, %v770
        %v803 = vpack.c.bf16 %v771, %v771
        %v804 = vpack.c.bf16 %v772, %v772
        %v805 = vpack.c.bf16 %v773, %v773
        %v806 = vpack.c.bf16 %v774, %v774
        %v807 = vpack.c.bf16 %v775, %v775
        %v808 = vpack.c.bf16 %v776, %v776
        %v809 = vpack.c.bf16 %v777, %v777
        %vm810 = vcmask 519168
        %811 = vst.msk [vmem:[%s257] sm:$0xf] %vm810, %v778
        %812 = vst.msk [vmem:[%s257 + $0x4] sm:$0xf] %vm810, %v779
        %813 = vst.msk [vmem:[%s257 + $0x8] sm:$0xf] %vm810, %v780
        %814 = vst.msk [vmem:[%s257 + $0xc] sm:$0xf] %vm810, %v781
        %815 = vst.msk [vmem:[%s257 + $0x10] sm:$0xf] %vm810, %v782
        %816 = vst.msk [vmem:[%s257 + $0x14] sm:$0xf] %vm810, %v783
        %817 = vst.msk [vmem:[%s257 + $0x18] sm:$0xf] %vm810, %v784
        %818 = vst.msk [vmem:[%s257 + $0x1c] sm:$0xf] %vm810, %v785
        %819 = vst.msk [vmem:[%s257 + $0x20] sm:$0xf] %vm810, %v786
        %820 = vst.msk [vmem:[%s257 + $0x24] sm:$0xf] %vm810, %v787
        %821 = vst.msk [vmem:[%s257 + $0x28] sm:$0xf] %vm810, %v788
        %822 = vst.msk [vmem:[%s257 + $0x2c] sm:$0xf] %vm810, %v789
        %823 = vst.msk [vmem:[%s257 + $0x30] sm:$0xf] %vm810, %v790
        %824 = vst.msk [vmem:[%s257 + $0x34] sm:$0xf] %vm810, %v791
        %825 = vst.msk [vmem:[%s257 + $0x38] sm:$0xf] %vm810, %v792
        %826 = vst.msk [vmem:[%s257 + $0x3c] sm:$0xf] %vm810, %v793
        %827 = vst.msk [vmem:[%s257 + $0x40] sm:$0xf] %vm810, %v794
        %828 = vst.msk [vmem:[%s257 + $0x44] sm:$0xf] %vm810, %v795
        %829 = vst.msk [vmem:[%s257 + $0x48] sm:$0xf] %vm810, %v796
        %830 = vst.msk [vmem:[%s257 + $0x4c] sm:$0xf] %vm810, %v797
        %831 = vst.msk [vmem:[%s257 + $0x50] sm:$0xf] %vm810, %v798
        %832 = vst.msk [vmem:[%s257 + $0x54] sm:$0xf] %vm810, %v799
        %833 = vst.msk [vmem:[%s257 + $0x58] sm:$0xf] %vm810, %v800
        %834 = vst.msk [vmem:[%s257 + $0x5c] sm:$0xf] %vm810, %v801
        %835 = vst.msk [vmem:[%s257 + $0x60] sm:$0xf] %vm810, %v802
        %836 = vst.msk [vmem:[%s257 + $0x64] sm:$0xf] %vm810, %v803
        %837 = vst.msk [vmem:[%s257 + $0x68] sm:$0xf] %vm810, %v804
        %838 = vst.msk [vmem:[%s257 + $0x6c] sm:$0xf] %vm810, %v805
        %839 = vst.msk [vmem:[%s257 + $0x70] sm:$0xf] %vm810, %v806
        %840 = vst.msk [vmem:[%s257 + $0x74] sm:$0xf] %vm810, %v807
        %841 = vst.msk [vmem:[%s257 + $0x78] sm:$0xf] %vm810, %v808
        %842 = vst.msk [vmem:[%s257 + $0x7c] sm:$0xf] %vm810, %v809
      $region40: #{_lambda_.7} parent=31 // pred_fallthru
        _
      %s843 = smul.u32 32, %s19
      %p844 = scmp.lt.s32.totalorder %s843, 63
      %s845 = scalar_select %p844, %s843, 63
      %p846 = scmp.lt.s32.totalorder %s20, 0
      %s847 = scalar_select %p846, %s20, 0
      %s848 = sadd.s32 %s847, %s845
      %s849 = smul.addr %s848, 4
      %s850 = scalar_lea.vmem %s3, %s849
      // Predicated region
      $region41: #{_lambda_.7} parent=31 // pred_check
        %p851 = pneg %p135
      $region42: #{_lambda_.7} parent=31 // pred_check_branch
        %853 = sbr.rel (%p851) target = $region44
      $region43: #{_lambda_.7} parent=31 // pred_region
        %s854 = smul.u32 32, %s19
      $region44: #{_lambda_.7} parent=31 // pred_fallthru
        _
    $region32: #{_lambda_.7} parent=5 // pred_fallthru
      _
    %p855 = scmp.le.s32.totalorder 2, %s9
    // Predicated region
    $region45: #{_lambda_.7} parent=5 // pred_check
      %p856 = pneg %p855
    $region46: #{_lambda_.7} parent=5 // pred_check_branch
      %858 = sbr.rel (%p856) target = $region48
    $region47: #{_lambda_.7} parent=5 // pred_region
      %s859 = ssub.s32 %s9, 2
      // Predicated region
      $region49: #{_lambda_.7} parent=47 // pred_check
        %p860 = pneg %p141
      $region50: #{_lambda_.7} parent=47 // pred_check_branch
        %862 = sbr.rel (%p860) target = $region52
      $region51: #{_lambda_.7} parent=47 // pred_region
        %s863 = smul.u32 32, %s22
        %p864 = scmp.lt.s32.totalorder %s863, 63
        %s865 = scalar_select %p864, %s863, 63
        %p866 = scmp.lt.s32.totalorder %s23, 0
        %s867 = scalar_select %p866, %s23, 0
        %s868 = sadd.s32 %s867, %s865
        %s869 = smul.addr %s868, 4
        %s870 = scalar_lea.vmem %s3, %s869
      $region52: #{_lambda_.7} parent=47 // pred_fallthru
        _
    $region48: #{_lambda_.7} parent=5 // pred_fallthru
      _
  $region6: #{_lambda_.7} parent=0 // loop_footer
    %s13 = sadd.s32 1, %s9
  $region7: #{_lambda_.7} parent=0 // loop_footer_branch
    %8 = sbr.rel target = $region3
  $region8: #{_lambda_.7} parent=0 // loop_exit
    _

// kernel: _lambda_.9
$region0: #{_lambda_.9}
  #allocation0 [shape = 'u32[]', space=smem, size = 0x4, offset = 0x4, fixed_abs, tag = 'smem constant byte address 0x4 - core index']
  #allocation1 [shape = 'u32[72,128]{1,0:T(1,128)}', space=vmem, size = 0x9000, scoped, tag = 'internal scratch']
  #allocation2 [shape = 'f32[256,256]{1,0:T(8,128)}', space=vmem, size = 0x40000, scoped, tag = 'scratch operand']
  %s0 = inlined_call_operand.vmem [shape: bf16[512,64], index: 0, kind: input, shape index: {}]
  %s1 = inlined_call_operand.vmem [shape: bf16[64,256], index: 1, kind: input, shape index: {}]
  %s2 = inlined_call_operand.vmem [shape: f32[1,256], index: 2, kind: input, shape index: {}]
  %s3 = inlined_call_operand.vmem [shape: bf16[512,256], index: 3, kind: output, shape index: {}]
  %s4 = sld [smem:[#allocation0]]
  $region53: #{_lambda_.9} parent=0
    _
  %s6 = ssub.s32 1, %s4
  %s7 = scalar_select 0, %s6, %s4
  loop: start=0, step=1, limit=4
  $region2: #{_lambda_.9} parent=0 // loop_pre_header
    _
  $region3: #{_lambda_.9} parent=0 // loop_header
    %s9 = sphi 0, %s13
    %p10 = scmp.ge.s32.totalorder %s9, 4
    %s16 = sphi 0, %s35
    %s17 = sphi 0, %s31
    %s18 = sphi 0, %s27
    %s19 = sphi 0, %s16
    %s20 = sphi 0, %s17
    %s21 = sphi 0, %s18
    %s22 = sphi 0, %s19
    %s23 = sphi 0, %s20
    %s24 = sphi 0, %s21
    %s40 = sphi 0, %s42
    %s43 = sphi 0, %s40
    %s44 = sphi 0, %s43
    %s60 = sphi 0, %s44
    %s68 = sphi 0, %s70
    %s71 = sphi 0, %s68
    %s72 = sphi 0, %s71
    %s88 = sphi 0, %s72
    %s94 = sphi 0, %s96
    %s97 = sphi 0, %s94
    %s98 = sphi 0, %s97
    %s114 = sphi 0, %s98
    %s122 = sphi 0, %s124
    %s125 = sphi 0, %s122
    %s126 = sphi 0, %s125
    %s142 = sphi 0, %s126
  $region4: #{_lambda_.9} parent=0 // loop_header_branch
    %12 = sbr.rel (%p10) target = $region8
  $region5: #{_lambda_.9} parent=0 // loop_body
    %s14 = ssub.s32 %s9, 1
    %s15 = ssub.s32 %s9, 2
    %s25 = sadd.s32 1, %s18
    %p26 = scmp.ge.s32.totalorder %s25, 1
    %s27 = scalar_select %p26, 0, %s25
    %s28 = sadd.s32 1, %s17
    %s29 = scalar_select %p26, %s28, %s17
    %p30 = scmp.ge.s32.totalorder %s29, 1
    %s31 = scalar_select %p30, 0, %s29
    %s32 = sadd.s32 1, %s16
    %s33 = scalar_select %p30, %s32, %s16
    %p34 = scmp.ge.s32.totalorder %s33, 2
    %s35 = scalar_select %p34, 0, %s33
    %s36 = ssub.s32 %s16, %s35
    %s37 = ssub.s32 %s18, %s27
    %s38 = sor.u32 %s36, %s37
    %p39 = scmp.eq.s32.totalorder %s38, 0
    %s41 = sadd.s32 %s40, 1
    %s42 = scalar_select %p39, %s40, %s41
    %p45 = pneg %p39
    %p46 = scmp.eq.s32.totalorder %s9, 1
    %p47 = por %p45, %p46
    %p48 = scmp.ne.s32.totalorder %s40, %s43
    %p49 = scmp.eq.s32.totalorder %s9, 0
    %p50 = por %p48, %p49
    %p51 = scmp.ne.s32.totalorder %s40, %s43
    %p52 = scmp.eq.s32.totalorder %s14, 1
    %p53 = por %p51, %p52
    %p54 = scmp.ne.s32.totalorder %s43, %s44
    %p55 = scmp.eq.s32.totalorder %s14, 0
    %p56 = por %p54, %p55
    %p57 = scmp.ne.s32.totalorder %s43, %s44
    %p58 = scmp.eq.s32.totalorder %s15, 1
    %p59 = por %p57, %p58
    %p61 = scmp.ne.s32.totalorder %s44, %s60
    %p62 = scmp.eq.s32.totalorder %s15, 0
    %p63 = por %p61, %p62
    %s64 = ssub.s32 %s18, %s27
    %s65 = ssub.s32 %s17, %s31
    %s66 = sor.u32 %s64, %s65
    %p67 = scmp.eq.s32.totalorder %s66, 0
    %s69 = sadd.s32 %s68, 1
    %s70 = scalar_select %p67, %s68, %s69
    %p73 = pneg %p67
    %p74 = scmp.eq.s32.totalorder %s9, 1
    %p75 = por %p73, %p74
    %p76 = scmp.ne.s32.totalorder %s68, %s71
    %p77 = scmp.eq.s32.totalorder %s9, 0
    %p78 = por %p76, %p77
    %p79 = scmp.ne.s32.totalorder %s68, %s71
    %p80 = scmp.eq.s32.totalorder %s14, 1
    %p81 = por %p79, %p80
    %p82 = scmp.ne.s32.totalorder %s71, %s72
    %p83 = scmp.eq.s32.totalorder %s14, 0
    %p84 = por %p82, %p83
    %p85 = scmp.ne.s32.totalorder %s71, %s72
    %p86 = scmp.eq.s32.totalorder %s15, 1
    %p87 = por %p85, %p86
    %p89 = scmp.ne.s32.totalorder %s72, %s88
    %p90 = scmp.eq.s32.totalorder %s15, 0
    %p91 = por %p89, %p90
    %s92 = ssub.s32 %s17, %s31
    %p93 = scmp.eq.s32.totalorder %s92, 0
    %s95 = sadd.s32 %s94, 1
    %s96 = scalar_select %p93, %s94, %s95
    %p99 = pneg %p93
    %p100 = scmp.eq.s32.totalorder %s9, 1
    %p101 = por %p99, %p100
    %p102 = scmp.ne.s32.totalorder %s94, %s97
    %p103 = scmp.eq.s32.totalorder %s9, 0
    %p104 = por %p102, %p103
    %p105 = scmp.ne.s32.totalorder %s94, %s97
    %p106 = scmp.eq.s32.totalorder %s14, 1
    %p107 = por %p105, %p106
    %p108 = scmp.ne.s32.totalorder %s97, %s98
    %p109 = scmp.eq.s32.totalorder %s14, 0
    %p110 = por %p108, %p109
    %p111 = scmp.ne.s32.totalorder %s97, %s98
    %p112 = scmp.eq.s32.totalorder %s15, 1
    %p113 = por %p111, %p112
    %p115 = scmp.ne.s32.totalorder %s98, %s114
    %p116 = scmp.eq.s32.totalorder %s15, 0
    %p117 = por %p115, %p116
    %s118 = ssub.s32 %s16, %s35
    %s119 = ssub.s32 %s17, %s31
    %s120 = sor.u32 %s118, %s119
    %p121 = scmp.eq.s32.totalorder %s120, 0
    %s123 = sadd.s32 %s122, 1
    %s124 = scalar_select %p121, %s122, %s123
    %p127 = pneg %p121
    %p128 = scmp.eq.s32.totalorder %s9, 1
    %p129 = por %p127, %p128
    %p130 = scmp.ne.s32.totalorder %s122, %s125
    %p131 = scmp.eq.s32.totalorder %s9, 0
    %p132 = por %p130, %p131
    %p133 = scmp.ne.s32.totalorder %s122, %s125
    %p134 = scmp.eq.s32.totalorder %s14, 1
    %p135 = por %p133, %p134
    %p136 = scmp.ne.s32.totalorder %s125, %s126
    %p137 = scmp.eq.s32.totalorder %s14, 0
    %p138 = por %p136, %p137
    %p139 = scmp.ne.s32.totalorder %s125, %s126
    %p140 = scmp.eq.s32.totalorder %s15, 1
    %p141 = por %p139, %p140
    %p143 = scmp.ne.s32.totalorder %s126, %s142
    %p144 = scmp.eq.s32.totalorder %s15, 0
    %p145 = por %p143, %p144
    %p146 = scmp.le.s32.totalorder 1, %s9
    %p147 = scmp.lt.s32.totalorder %s9, 3
    %p148 = pnand %p146, %p147
    %p149 = pneg %p148
    // Predicated region
    $region9: #{_lambda_.9} parent=5 // pred_check
      _
    $region10: #{_lambda_.9} parent=5 // pred_check_branch
      %151 = sbr.rel (%p148) target = $region12
    $region11: #{_lambda_.9} parent=5 // pred_region
      %s152 = ssub.s32 %s9, 1
      // Predicated region
      $region13: #{_lambda_.9} parent=11 // pred_check
        %p153 = pneg %p84
      $region14: #{_lambda_.9} parent=11 // pred_check_branch
        %155 = sbr.rel (%p153) target = $region16
      $region15: #{_lambda_.9} parent=11 // pred_region
        %s156 = smul.u32 8, %s21
        %s157 = smul.u32 2, %s20
        %p158 = scmp.lt.s32.totalorder %s156, 7
        %s159 = scalar_select %p158, %s156, 7
        %p160 = scmp.lt.s32.totalorder %s157, 1
        %s161 = scalar_select %p160, %s157, 1
        %s162 = smul.addr %s159, 2
        %s163 = sadd.s32 %s161, %s162
        %s164 = smul.addr %s163, 4
        %s165 = scalar_lea.vmem %s1, %s164
        %s166 = smul.u32 8, %s21
        %s167 = smul.u32 2, %s20
      $region16: #{_lambda_.9} parent=11 // pred_fallthru
        _
      // Predicated region
      $region17: #{_lambda_.9} parent=11 // pred_check
        %p168 = pneg %p110
      $region18: #{_lambda_.9} parent=11 // pred_check_branch
        %170 = sbr.rel (%p168) target = $region20
      $region19: #{_lambda_.9} parent=11 // pred_region
        %s171 = smul.u32 2, %s20
        %p172 = scmp.lt.s32.totalorder %s171, 1
        %s173 = scalar_select %p172, %s171, 1
        %s174 = scalar_lea.vmem %s2, %s173
        %s175 = smul.u32 2, %s20
      $region20: #{_lambda_.9} parent=11 // pred_fallthru
        _
    $region12: #{_lambda_.9} parent=5 // pred_fallthru
      _
    %p176 = scmp.lt.s32.totalorder %s9, 2
    // Predicated region
    $region21: #{_lambda_.9} parent=5 // pred_check
      %p177 = pneg %p176
    $region22: #{_lambda_.9} parent=5 // pred_check_branch
      %179 = sbr.rel (%p177) target = $region24
    $region23: #{_lambda_.9} parent=5 // pred_region
      // Predicated region
      $region25: #{_lambda_.9} parent=23 // pred_check
        %p180 = pneg %p50
      $region26: #{_lambda_.9} parent=23 // pred_check_branch
        %182 = sbr.rel (%p180) target = $region28
      $region27: #{_lambda_.9} parent=23 // pred_region
        %s183 = smul.u32 32, %s16
        %p184 = scmp.lt.s32.totalorder %s183, 63
        %s185 = scalar_select %p184, %s183, 63
        %p186 = scmp.lt.s32.totalorder %s18, 0
        %s187 = scalar_select %p186, %s18, 0
        %s188 = sadd.s32 %s187, %s185
        %s189 = smul.addr %s188, 4
        %s190 = scalar_lea.vmem %s0, %s189
        %s191 = smul.u32 32, %s16
      $region28: #{_lambda_.9} parent=23 // pred_fallthru
        _
    $region24: #{_lambda_.9} parent=5 // pred_fallthru
      _
    %p192 = scmp.le.s32.totalorder 1, %s9
    %p193 = scmp.lt.s32.totalorder %s9, 3
    %p194 = pnand %p192, %p193
    %p195 = pneg %p194
    // Predicated region
    $region29: #{_lambda_.9} parent=5 // pred_check
      _
    $region30: #{_lambda_.9} parent=5 // pred_check_branch
      %197 = sbr.rel (%p194) target = $region32
    $region31: #{_lambda_.9} parent=5 // pred_region
      %s198 = ssub.s32 %s9, 1
      %s199 = smul.u32 32, %s19
      %p200 = scmp.lt.s32.totalorder %s199, 63
      %s201 = scalar_select %p200, %s199, 63
      %p202 = scmp.lt.s32.totalorder %s21, 0
      %s203 = scalar_select %p202, %s21, 0
      %s204 = sadd.s32 %s203, %s201
      %s205 = smul.addr %s204, 4
      %s206 = scalar_lea.vmem %s0, %s205
      %p207 = pneg %p56
      %p208 = pneg %p53
      %s209 = smul.u32 8, %s21
      %s210 = smul.u32 2, %s20
      %p211 = scmp.lt.s32.totalorder %s209, 7
      %s212 = scalar_select %p211, %s209, 7
      %p213 = scmp.lt.s32.totalorder %s210, 1
      %s214 = scalar_select %p213, %s210, 1
      %s215 = smul.addr %s212, 2
      %s216 = sadd.s32 %s214, %s215
      %s217 = smul.addr %s216, 4
      %s218 = scalar_lea.vmem %s1, %s217
      %p219 = pneg %p84
      %p220 = pneg %p81
      %s221 = smul.u32 2, %s20
      %p222 = scmp.lt.s32.totalorder %s221, 1
      %s223 = scalar_select %p222, %s221, 1
      %s224 = scalar_lea.vmem %s2, %s223
      %p225 = pneg %p110
      %p226 = pneg %p107
      %p227 = pneg %p138
      %p228 = pneg %p135
      %s229 = smul.u32 32, %s19
      %s230 = smul.u32 2, %s20
      %p231 = scmp.lt.s32.totalorder %s229, 63
      %s232 = scalar_select %p231, %s229, 63
      %p233 = scmp.lt.s32.totalorder %s230, 1
      %s234 = scalar_select %p233, %s230, 1
      %s235 = smul.addr %s232, 2
      %s236 = sadd.s32 %s234, %s235
      %s237 = smul.addr %s236, 4
      %s238 = scalar_lea.vmem %s3, %s237
      %s239 = smul.u32 32, %s19
      %p240 = scmp.lt.s32.totalorder %s239, 63
      %s241 = scalar_select %p240, %s239, 63
      %p242 = scmp.lt.s32.totalorder %s21, 0
      %s243 = scalar_select %p242, %s21, 0
      %s244 = sadd.s32 %s243, %s241
      %s245 = smul.addr %s244, 4
      %s246 = scalar_lea.vmem %s0, %s245
      %s247 = smul.u32 32, %s19
      %s248 = smul.u32 8, %s21
      %s249 = smul.u32 2, %s20
      %p250 = scmp.lt.s32.totalorder %s248, 7
      %s251 = scalar_select %p250, %s248, 7
      %p252 = scmp.lt.s32.totalorder %s249, 1
      %s253 = scalar_select %p252, %s249, 1
      %s254 = smul.addr %s251, 2
      %s255 = sadd.s32 %s253, %s254
      %s256 = smul.addr %s255, 4
      %s257 = scalar_lea.vmem %s1, %s256
      %s258 = smul.u32 8, %s21
      %s259 = smul.u32 2, %s20
      %s260 = smul.u32 2, %s20
      %p261 = scmp.lt.s32.totalorder %s260, 1
      %s262 = scalar_select %p261, %s260, 1
      %s263 = scalar_lea.vmem %s2, %s262
      %s264 = smul.u32 2, %s20
      %s265 = smul.u32 32, %s19
      %s266 = smul.u32 2, %s20
      %p267 = scmp.lt.s32.totalorder %s265, 63
      %s268 = scalar_select %p267, %s265, 63
      %p269 = scmp.lt.s32.totalorder %s266, 1
      %s270 = scalar_select %p269, %s266, 1
      %s271 = smul.addr %s268, 2
      %s272 = sadd.s32 %s270, %s271
      %s273 = smul.addr %s272, 4
      %s274 = scalar_lea.vmem %s3, %s273
      %s275 = smul.u32 32, %s19
      %s276 = smul.u32 2, %s20
      %p278 = scmp.eq.s32.totalorder %s21, 0
      // Predicated region
      $region33: #{_lambda_.9} parent=31 // pred_check
        %p279 = pneg %p278
      $region34: #{_lambda_.9} parent=31 // pred_check_branch
        %281 = sbr.rel (%p279) target = $region36
      $region35: #{_lambda_.9} parent=31 // pred_region
        %282 = vst [vmem:[#allocation2] sm:$0xff] 0.0
        %283 = vst [vmem:[#allocation2 + $0x8] sm:$0xff] 0.0
        %284 = vst [vmem:[#allocation2 + $0x10] sm:$0xff] 0.0
        %285 = vst [vmem:[#allocation2 + $0x18] sm:$0xff] 0.0
        %286 = vst [vmem:[#allocation2 + $0x20] sm:$0xff] 0.0
        %287 = vst [vmem:[#allocation2 + $0x28] sm:$0xff] 0.0
        %288 = vst [vmem:[#allocation2 + $0x30] sm:$0xff] 0.0
        %289 = vst [vmem:[#allocation2 + $0x38] sm:$0xff] 0.0
        %290 = vst [vmem:[#allocation2 + $0x40] sm:$0xff] 0.0
        %291 = vst [vmem:[#allocation2 + $0x48] sm:$0xff] 0.0
        %292 = vst [vmem:[#allocation2 + $0x50] sm:$0xff] 0.0
        %293 = vst [vmem:[#allocation2 + $0x58] sm:$0xff] 0.0
        %294 = vst [vmem:[#allocation2 + $0x60] sm:$0xff] 0.0
        %295 = vst [vmem:[#allocation2 + $0x68] sm:$0xff] 0.0
        %296 = vst [vmem:[#allocation2 + $0x70] sm:$0xff] 0.0
        %297 = vst [vmem:[#allocation2 + $0x78] sm:$0xff] 0.0
        %298 = vst [vmem:[#allocation2 + $0x80] sm:$0xff] 0.0
        %299 = vst [vmem:[#allocation2 + $0x88] sm:$0xff] 0.0
        %300 = vst [vmem:[#allocation2 + $0x90] sm:$0xff] 0.0
        %301 = vst [vmem:[#allocation2 + $0x98] sm:$0xff] 0.0
        %302 = vst [vmem:[#allocation2 + $0xa0] sm:$0xff] 0.0
        %303 = vst [vmem:[#allocation2 + $0xa8] sm:$0xff] 0.0
        %304 = vst [vmem:[#allocation2 + $0xb0] sm:$0xff] 0.0
        %305 = vst [vmem:[#allocation2 + $0xb8] sm:$0xff] 0.0
        %306 = vst [vmem:[#allocation2 + $0xc0] sm:$0xff] 0.0
        %307 = vst [vmem:[#allocation2 + $0xc8] sm:$0xff] 0.0
        %308 = vst [vmem:[#allocation2 + $0xd0] sm:$0xff] 0.0
        %309 = vst [vmem:[#allocation2 + $0xd8] sm:$0xff] 0.0
        %310 = vst [vmem:[#allocation2 + $0xe0] sm:$0xff] 0.0
        %311 = vst [vmem:[#allocation2 + $0xe8] sm:$0xff] 0.0
        %312 = vst [vmem:[#allocation2 + $0xf0] sm:$0xff] 0.0
        %313 = vst [vmem:[#allocation2 + $0xf8] sm:$0xff] 0.0
        %314 = vst [vmem:[#allocation2 + $0x100] sm:$0xff] 0.0
        %315 = vst [vmem:[#allocation2 + $0x108] sm:$0xff] 0.0
        %316 = vst [vmem:[#allocation2 + $0x110] sm:$0xff] 0.0
        %317 = vst [vmem:[#allocation2 + $0x118] sm:$0xff] 0.0
        %318 = vst [vmem:[#allocation2 + $0x120] sm:$0xff] 0.0
        %319 = vst [vmem:[#allocation2 + $0x128] sm:$0xff] 0.0
        %320 = vst [vmem:[#allocation2 + $0x130] sm:$0xff] 0.0
        %321 = vst [vmem:[#allocation2 + $0x138] sm:$0xff] 0.0
        %322 = vst [vmem:[#allocation2 + $0x140] sm:$0xff] 0.0
        %323 = vst [vmem:[#allocation2 + $0x148] sm:$0xff] 0.0
        %324 = vst [vmem:[#allocation2 + $0x150] sm:$0xff] 0.0
        %325 = vst [vmem:[#allocation2 + $0x158] sm:$0xff] 0.0
        %326 = vst [vmem:[#allocation2 + $0x160] sm:$0xff] 0.0
        %327 = vst [vmem:[#allocation2 + $0x168] sm:$0xff] 0.0
        %328 = vst [vmem:[#allocation2 + $0x170] sm:$0xff] 0.0
        %329 = vst [vmem:[#allocation2 + $0x178] sm:$0xff] 0.0
        %330 = vst [vmem:[#allocation2 + $0x180] sm:$0xff] 0.0
        %331 = vst [vmem:[#allocation2 + $0x188] sm:$0xff] 0.0
        %332 = vst [vmem:[#allocation2 + $0x190] sm:$0xff] 0.0
        %333 = vst [vmem:[#allocation2 + $0x198] sm:$0xff] 0.0
        %334 = vst [vmem:[#allocation2 + $0x1a0] sm:$0xff] 0.0
        %335 = vst [vmem:[#allocation2 + $0x1a8] sm:$0xff] 0.0
        %336 = vst [vmem:[#allocation2 + $0x1b0] sm:$0xff] 0.0
        %337 = vst [vmem:[#allocation2 + $0x1b8] sm:$0xff] 0.0
        %338 = vst [vmem:[#allocation2 + $0x1c0] sm:$0xff] 0.0
        %339 = vst [vmem:[#allocation2 + $0x1c8] sm:$0xff] 0.0
        %340 = vst [vmem:[#allocation2 + $0x1d0] sm:$0xff] 0.0
        %341 = vst [vmem:[#allocation2 + $0x1d8] sm:$0xff] 0.0
        %342 = vst [vmem:[#allocation2 + $0x1e0] sm:$0xff] 0.0
        %343 = vst [vmem:[#allocation2 + $0x1e8] sm:$0xff] 0.0
        %344 = vst [vmem:[#allocation2 + $0x1f0] sm:$0xff] 0.0
        %345 = vst [vmem:[#allocation2 + $0x1f8] sm:$0xff] 0.0
      $region36: #{_lambda_.9} parent=31 // pred_fallthru
        _
      %v346 = vld [vmem:[#allocation2] sm:$0xff]
      %v347 = vld [vmem:[#allocation2 + $0x8] sm:$0xff]
      %v348 = vld [vmem:[#allocation2 + $0x10] sm:$0xff]
      %v349 = vld [vmem:[#allocation2 + $0x18] sm:$0xff]
      %v350 = vld [vmem:[#allocation2 + $0x20] sm:$0xff]
      %v351 = vld [vmem:[#allocation2 + $0x28] sm:$0xff]
      %v352 = vld [vmem:[#allocation2 + $0x30] sm:$0xff]
      %v353 = vld [vmem:[#allocation2 + $0x38] sm:$0xff]
      %v354 = vld [vmem:[#allocation2 + $0x40] sm:$0xff]
      %v355 = vld [vmem:[#allocation2 + $0x48] sm:$0xff]
      %v356 = vld [vmem:[#allocation2 + $0x50] sm:$0xff]
      %v357 = vld [vmem:[#allocation2 + $0x58] sm:$0xff]
      %v358 = vld [vmem:[#allocation2 + $0x60] sm:$0xff]
      %v359 = vld [vmem:[#allocation2 + $0x68] sm:$0xff]
      %v360 = vld [vmem:[#allocation2 + $0x70] sm:$0xff]
      %v361 = vld [vmem:[#allocation2 + $0x78] sm:$0xff]
      %v362 = vld [vmem:[#allocation2 + $0x80] sm:$0xff]
      %v363 = vld [vmem:[#allocation2 + $0x88] sm:$0xff]
      %v364 = vld [vmem:[#allocation2 + $0x90] sm:$0xff]
      %v365 = vld [vmem:[#allocation2 + $0x98] sm:$0xff]
      %v366 = vld [vmem:[#allocation2 + $0xa0] sm:$0xff]
      %v367 = vld [vmem:[#allocation2 + $0xa8] sm:$0xff]
      %v368 = vld [vmem:[#allocation2 + $0xb0] sm:$0xff]
      %v369 = vld [vmem:[#allocation2 + $0xb8] sm:$0xff]
      %v370 = vld [vmem:[#allocation2 + $0xc0] sm:$0xff]
      %v371 = vld [vmem:[#allocation2 + $0xc8] sm:$0xff]
      %v372 = vld [vmem:[#allocation2 + $0xd0] sm:$0xff]
      %v373 = vld [vmem:[#allocation2 + $0xd8] sm:$0xff]
      %v374 = vld [vmem:[#allocation2 + $0xe0] sm:$0xff]
      %v375 = vld [vmem:[#allocation2 + $0xe8] sm:$0xff]
      %v376 = vld [vmem:[#allocation2 + $0xf0] sm:$0xff]
      %v377 = vld [vmem:[#allocation2 + $0xf8] sm:$0xff]
      %v378 = vld [vmem:[#allocation2 + $0x100] sm:$0xff]
      %v379 = vld [vmem:[#allocation2 + $0x108] sm:$0xff]
      %v380 = vld [vmem:[#allocation2 + $0x110] sm:$0xff]
      %v381 = vld [vmem:[#allocation2 + $0x118] sm:$0xff]
      %v382 = vld [vmem:[#allocation2 + $0x120] sm:$0xff]
      %v383 = vld [vmem:[#allocation2 + $0x128] sm:$0xff]
      %v384 = vld [vmem:[#allocation2 + $0x130] sm:$0xff]
      %v385 = vld [vmem:[#allocation2 + $0x138] sm:$0xff]
      %v386 = vld [vmem:[#allocation2 + $0x140] sm:$0xff]
      %v387 = vld [vmem:[#allocation2 + $0x148] sm:$0xff]
      %v388 = vld [vmem:[#allocation2 + $0x150] sm:$0xff]
      %v389 = vld [vmem:[#allocation2 + $0x158] sm:$0xff]
      %v390 = vld [vmem:[#allocation2 + $0x160] sm:$0xff]
      %v391 = vld [vmem:[#allocation2 + $0x168] sm:$0xff]
      %v392 = vld [vmem:[#allocation2 + $0x170] sm:$0xff]
      %v393 = vld [vmem:[#allocation2 + $0x178] sm:$0xff]
      %v394 = vld [vmem:[#allocation2 + $0x180] sm:$0xff]
      %v395 = vld [vmem:[#allocation2 + $0x188] sm:$0xff]
      %v396 = vld [vmem:[#allocation2 + $0x190] sm:$0xff]
      %v397 = vld [vmem:[#allocation2 + $0x198] sm:$0xff]
      %v398 = vld [vmem:[#allocation2 + $0x1a0] sm:$0xff]
      %v399 = vld [vmem:[#allocation2 + $0x1a8] sm:$0xff]
      %v400 = vld [vmem:[#allocation2 + $0x1b0] sm:$0xff]
      %v401 = vld [vmem:[#allocation2 + $0x1b8] sm:$0xff]
      %v402 = vld [vmem:[#allocation2 + $0x1c0] sm:$0xff]
      %v403 = vld [vmem:[#allocation2 + $0x1c8] sm:$0xff]
      %v404 = vld [vmem:[#allocation2 + $0x1d0] sm:$0xff]
      %v405 = vld [vmem:[#allocation2 + $0x1d8] sm:$0xff]
      %v406 = vld [vmem:[#allocation2 + $0x1e0] sm:$0xff]
      %v407 = vld [vmem:[#allocation2 + $0x1e8] sm:$0xff]
      %v408 = vld [vmem:[#allocation2 + $0x1f0] sm:$0xff]
      %v409 = vld [vmem:[#allocation2 + $0x1f8] sm:$0xff]
      %v410 = vld [vmem:[%s246] sm:$0xf]
      %v411 = vld [vmem:[%s246 + $0x4] sm:$0xf]
      %v412 = vld [vmem:[%s246 + $0x8] sm:$0xf]
      %v413 = vld [vmem:[%s246 + $0xc] sm:$0xf]
      %v414 = vld [vmem:[%s246 + $0x10] sm:$0xf]
      %v415 = vld [vmem:[%s246 + $0x14] sm:$0xf]
      %v416 = vld [vmem:[%s246 + $0x18] sm:$0xf]
      %v417 = vld [vmem:[%s246 + $0x1c] sm:$0xf]
      %v418 = vld [vmem:[%s246 + $0x20] sm:$0xf]
      %v419 = vld [vmem:[%s246 + $0x24] sm:$0xf]
      %v420 = vld [vmem:[%s246 + $0x28] sm:$0xf]
      %v421 = vld [vmem:[%s246 + $0x2c] sm:$0xf]
      %v422 = vld [vmem:[%s246 + $0x30] sm:$0xf]
      %v423 = vld [vmem:[%s246 + $0x34] sm:$0xf]
      %v424 = vld [vmem:[%s246 + $0x38] sm:$0xf]
      %v425 = vld [vmem:[%s246 + $0x3c] sm:$0xf]
      %v426 = vld [vmem:[%s246 + $0x40] sm:$0xf]
      %v427 = vld [vmem:[%s246 + $0x44] sm:$0xf]
      %v428 = vld [vmem:[%s246 + $0x48] sm:$0xf]
      %v429 = vld [vmem:[%s246 + $0x4c] sm:$0xf]
      %v430 = vld [vmem:[%s246 + $0x50] sm:$0xf]
      %v431 = vld [vmem:[%s246 + $0x54] sm:$0xf]
      %v432 = vld [vmem:[%s246 + $0x58] sm:$0xf]
      %v433 = vld [vmem:[%s246 + $0x5c] sm:$0xf]
      %v434 = vld [vmem:[%s246 + $0x60] sm:$0xf]
      %v435 = vld [vmem:[%s246 + $0x64] sm:$0xf]
      %v436 = vld [vmem:[%s246 + $0x68] sm:$0xf]
      %v437 = vld [vmem:[%s246 + $0x6c] sm:$0xf]
      %v438 = vld [vmem:[%s246 + $0x70] sm:$0xf]
      %v439 = vld [vmem:[%s246 + $0x74] sm:$0xf]
      %v440 = vld [vmem:[%s246 + $0x78] sm:$0xf]
      %v441 = vld [vmem:[%s246 + $0x7c] sm:$0xf]
      %v442 = vld [vmem:[%s257] sm:$0xff]
      %v443 = vld [vmem:[%s257 + $0x8] sm:$0xff]
      %v444 = vld [vmem:[%s257 + $0x10] sm:$0xff]
      %v445 = vld [vmem:[%s257 + $0x18] sm:$0xff]
      %v446 = vld [vmem:[%s257 + $0x20] sm:$0xff]
      %v447 = vld [vmem:[%s257 + $0x28] sm:$0xff]
      %v448 = vld [vmem:[%s257 + $0x30] sm:$0xff]
      %v449 = vld [vmem:[%s257 + $0x38] sm:$0xff]
      %v482 = vunpack.c.l.b16 %v410
      %v483 = vunpack.c.l.b16 %v411
      %v484 = vunpack.c.l.b16 %v412
      %v485 = vunpack.c.l.b16 %v413
      %v486 = vunpack.c.l.b16 %v414
      %v487 = vunpack.c.l.b16 %v415
      %v488 = vunpack.c.l.b16 %v416
      %v489 = vunpack.c.l.b16 %v417
      %v490 = vunpack.c.l.b16 %v418
      %v491 = vunpack.c.l.b16 %v419
      %v492 = vunpack.c.l.b16 %v420
      %v493 = vunpack.c.l.b16 %v421
      %v494 = vunpack.c.l.b16 %v422
      %v495 = vunpack.c.l.b16 %v423
      %v496 = vunpack.c.l.b16 %v424
      %v497 = vunpack.c.l.b16 %v425
      %v498 = vunpack.c.l.b16 %v426
      %v499 = vunpack.c.l.b16 %v427
      %v500 = vunpack.c.l.b16 %v428
      %v501 = vunpack.c.l.b16 %v429
      %v502 = vunpack.c.l.b16 %v430
      %v503 = vunpack.c.l.b16 %v431
      %v504 = vunpack.c.l.b16 %v432
      %v505 = vunpack.c.l.b16 %v433
      %v506 = vunpack.c.l.b16 %v434
      %v507 = vunpack.c.l.b16 %v435
      %v508 = vunpack.c.l.b16 %v436
      %v509 = vunpack.c.l.b16 %v437
      %v510 = vunpack.c.l.b16 %v438
      %v511 = vunpack.c.l.b16 %v439
      %v512 = vunpack.c.l.b16 %v440
      %v513 = vunpack.c.l.b16 %v441
      %v514 = vpack.c.b16 %v483, %v482
      %v515 = vpack.c.b16 %v485, %v484
      %v516 = vpack.c.b16 %v487, %v486
      %v517 = vpack.c.b16 %v489, %v488
      %v518 = vpack.c.b16 %v491, %v490
      %v519 = vpack.c.b16 %v493, %v492
      %v520 = vpack.c.b16 %v495, %v494
      %v521 = vpack.c.b16 %v497, %v496
      %v522 = vpack.c.b16 %v499, %v498
      %v523 = vpack.c.b16 %v501, %v500
      %v524 = vpack.c.b16 %v503, %v502
      %v525 = vpack.c.b16 %v505, %v504
      %v526 = vpack.c.b16 %v507, %v506
      %v527 = vpack.c.b16 %v509, %v508
      %v528 = vpack.c.b16 %v511, %v510
      %v529 = vpack.c.b16 %v513, %v512
      %v538 = vunpack.c.l.b16 %v442
      %v539 = vunpack.c.h.b16 %v442
      %v540 = vunpack.c.l.b16 %v443
      %v541 = vunpack.c.h.b16 %v443
      %v542 = vunpack.c.l.b16 %v444
      %v543 = vunpack.c.h.b16 %v444
      %v544 = vunpack.c.l.b16 %v445
      %v545 = vunpack.c.h.b16 %v445
      %v546 = vunpack.c.l.b16 %v446
      %v547 = vunpack.c.h.b16 %v446
      %v548 = vunpack.c.l.b16 %v447
      %v549 = vunpack.c.h.b16 %v447
      %v550 = vunpack.c.l.b16 %v448
      %v551 = vunpack.c.h.b16 %v448
      %v552 = vunpack.c.l.b16 %v449
      %v553 = vunpack.c.h.b16 %v449
      %v554 = vpack.c.b16 %v540, %v538
      %v555 = vpack.c.b16 %v541, %v539
      %v556 = vpack.c.b16 %v544, %v542
      %v557 = vpack.c.b16 %v545, %v543
      %v558 = vpack.c.b16 %v548, %v546
      %v559 = vpack.c.b16 %v549, %v547
      %v560 = vpack.c.b16 %v552, %v550
      %v561 = vpack.c.b16 %v553, %v551
      %vm570 = vcmask 523264
      %v572 = vsel %vm570, %v514, 0
      %v575 = vsel %vm570, %v515, 0
      %v578 = vsel %vm570, %v516, 0
      %v581 = vsel %vm570, %v517, 0
      %v584 = vsel %vm570, %v518, 0
      %v587 = vsel %vm570, %v519, 0
      %v590 = vsel %vm570, %v520, 0
      %v593 = vsel %vm570, %v521, 0
      %v596 = vsel %vm570, %v522, 0
      %v599 = vsel %vm570, %v523, 0
      %v602 = vsel %vm570, %v524, 0
      %v605 = vsel %vm570, %v525, 0
      %v608 = vsel %vm570, %v526, 0
      %v611 = vsel %vm570, %v527, 0
      %v614 = vsel %vm570, %v528, 0
      %v617 = vsel %vm570, %v529, 0
      %619 = vmatpush.bf16.msra.mxu0 0
      %620 = vmatpush.bf16.msra.mxu0 0
      %621 = vmatpush.bf16.msra.mxu0 0
      %622 = vmatpush.bf16.msra.mxu0 0
      %623 = vmatpush.bf16.msra.mxu0 %v560
      %624 = vmatpush.bf16.msra.mxu0 %v558
      %625 = vmatpush.bf16.msra.mxu0 %v556
      %626 = vmatpush.bf16.msra.mxu0 %v554
      %627 = vmatmul.bf16.gmra.mxu0 %v572
      %v628 = vpop.f32.mrf.mxu0
      %v629 = vadd.f32 0.0, %v628
      %v630 = vpop.f32.mrf.mxu0
      %v631 = vadd.f32 0.0, %v630
      %632 = vmatmul.bf16.gmra.mxu0 %v575
      %v633 = vpop.f32.mrf.mxu0
      %v634 = vadd.f32 0.0, %v633
      %v635 = vpop.f32.mrf.mxu0
      %v636 = vadd.f32 0.0, %v635
      %637 = vmatmul.bf16.gmra.mxu0 %v578
      %v638 = vpop.f32.mrf.mxu0
      %v639 = vadd.f32 0.0, %v638
      %v640 = vpop.f32.mrf.mxu0
      %v641 = vadd.f32 0.0, %v640
      %642 = vmatmul.bf16.gmra.mxu0 %v581
      %v643 = vpop.f32.mrf.mxu0
      %v644 = vadd.f32 0.0, %v643
      %v645 = vpop.f32.mrf.mxu0
      %v646 = vadd.f32 0.0, %v645
      %647 = vmatmul.bf16.gmra.mxu0 %v584
      %v648 = vpop.f32.mrf.mxu0
      %v649 = vadd.f32 0.0, %v648
      %v650 = vpop.f32.mrf.mxu0
      %v651 = vadd.f32 0.0, %v650
      %652 = vmatmul.bf16.gmra.mxu0 %v587
      %v653 = vpop.f32.mrf.mxu0
      %v654 = vadd.f32 0.0, %v653
      %v655 = vpop.f32.mrf.mxu0
      %v656 = vadd.f32 0.0, %v655
      %657 = vmatmul.bf16.gmra.mxu0 %v590
      %v658 = vpop.f32.mrf.mxu0
      %v659 = vadd.f32 0.0, %v658
      %v660 = vpop.f32.mrf.mxu0
      %v661 = vadd.f32 0.0, %v660
      %662 = vmatmul.bf16.gmra.mxu0 %v593
      %v663 = vpop.f32.mrf.mxu0
      %v664 = vadd.f32 0.0, %v663
      %v665 = vpop.f32.mrf.mxu0
      %v666 = vadd.f32 0.0, %v665
      %667 = vmatmul.bf16.gmra.mxu0 %v596
      %v668 = vpop.f32.mrf.mxu0
      %v669 = vadd.f32 0.0, %v668
      %v670 = vpop.f32.mrf.mxu0
      %v671 = vadd.f32 0.0, %v670
      %672 = vmatmul.bf16.gmra.mxu0 %v599
      %v673 = vpop.f32.mrf.mxu0
      %v674 = vadd.f32 0.0, %v673
      %v675 = vpop.f32.mrf.mxu0
      %v676 = vadd.f32 0.0, %v675
      %677 = vmatmul.bf16.gmra.mxu0 %v602
      %v678 = vpop.f32.mrf.mxu0
      %v679 = vadd.f32 0.0, %v678
      %v680 = vpop.f32.mrf.mxu0
      %v681 = vadd.f32 0.0, %v680
      %682 = vmatmul.bf16.gmra.mxu0 %v605
      %v683 = vpop.f32.mrf.mxu0
      %v684 = vadd.f32 0.0, %v683
      %v685 = vpop.f32.mrf.mxu0
      %v686 = vadd.f32 0.0, %v685
      %687 = vmatmul.bf16.gmra.mxu0 %v608
      %v688 = vpop.f32.mrf.mxu0
      %v689 = vadd.f32 0.0, %v688
      %v690 = vpop.f32.mrf.mxu0
      %v691 = vadd.f32 0.0, %v690
      %692 = vmatmul.bf16.gmra.mxu0 %v611
      %v693 = vpop.f32.mrf.mxu0
      %v694 = vadd.f32 0.0, %v693
      %v695 = vpop.f32.mrf.mxu0
      %v696 = vadd.f32 0.0, %v695
      %697 = vmatmul.bf16.gmra.mxu0 %v614
      %v698 = vpop.f32.mrf.mxu0
      %v699 = vadd.f32 0.0, %v698
      %v700 = vpop.f32.mrf.mxu0
      %v701 = vadd.f32 0.0, %v700
      %702 = vmatmul.bf16.gmra.mxu0 %v617
      %v703 = vpop.f32.mrf.mxu0
      %v704 = vadd.f32 0.0, %v703
      %v705 = vpop.f32.mrf.mxu0
      %v706 = vadd.f32 0.0, %v705
      %707 = vdwg.mxu0
      %708 = vmatpush.bf16.msra.mxu0 0
      %709 = vmatpush.bf16.msra.mxu0 0
      %710 = vmatpush.bf16.msra.mxu0 0
      %711 = vmatpush.bf16.msra.mxu0 0
      %712 = vmatpush.bf16.msra.mxu0 %v561
      %713 = vmatpush.bf16.msra.mxu0 %v559
      %714 = vmatpush.bf16.msra.mxu0 %v557
      %715 = vmatpush.bf16.msra.mxu0 %v555
      %716 = vmatmul.bf16.gmra.mxu0 %v572
      %v717 = vpop.f32.mrf.mxu0
      %v718 = vadd.f32 0.0, %v717
      %v719 = vpop.f32.mrf.mxu0
      %v720 = vadd.f32 0.0, %v719
      %721 = vmatmul.bf16.gmra.mxu0 %v575
      %v722 = vpop.f32.mrf.mxu0
      %v723 = vadd.f32 0.0, %v722
      %v724 = vpop.f32.mrf.mxu0
      %v725 = vadd.f32 0.0, %v724
      %726 = vmatmul.bf16.gmra.mxu0 %v578
      %v727 = vpop.f32.mrf.mxu0
      %v728 = vadd.f32 0.0, %v727
      %v729 = vpop.f32.mrf.mxu0
      %v730 = vadd.f32 0.0, %v729
      %731 = vmatmul.bf16.gmra.mxu0 %v581
      %v732 = vpop.f32.mrf.mxu0
      %v733 = vadd.f32 0.0, %v732
      %v734 = vpop.f32.mrf.mxu0
      %v735 = vadd.f32 0.0, %v734
      %736 = vmatmul.bf16.gmra.mxu0 %v584
      %v737 = vpop.f32.mrf.mxu0
      %v738 = vadd.f32 0.0, %v737
      %v739 = vpop.f32.mrf.mxu0
      %v740 = vadd.f32 0.0, %v739
      %741 = vmatmul.bf16.gmra.mxu0 %v587
      %v742 = vpop.f32.mrf.mxu0
      %v743 = vadd.f32 0.0, %v742
      %v744 = vpop.f32.mrf.mxu0
      %v745 = vadd.f32 0.0, %v744
      %746 = vmatmul.bf16.gmra.mxu0 %v590
      %v747 = vpop.f32.mrf.mxu0
      %v748 = vadd.f32 0.0, %v747
      %v749 = vpop.f32.mrf.mxu0
      %v750 = vadd.f32 0.0, %v749
      %751 = vmatmul.bf16.gmra.mxu0 %v593
      %v752 = vpop.f32.mrf.mxu0
      %v753 = vadd.f32 0.0, %v752
      %v754 = vpop.f32.mrf.mxu0
      %v755 = vadd.f32 0.0, %v754
      %756 = vmatmul.bf16.gmra.mxu0 %v596
      %v757 = vpop.f32.mrf.mxu0
      %v758 = vadd.f32 0.0, %v757
      %v759 = vpop.f32.mrf.mxu0
      %v760 = vadd.f32 0.0, %v759
      %761 = vmatmul.bf16.gmra.mxu0 %v599
      %v762 = vpop.f32.mrf.mxu0
      %v763 = vadd.f32 0.0, %v762
      %v764 = vpop.f32.mrf.mxu0
      %v765 = vadd.f32 0.0, %v764
      %766 = vmatmul.bf16.gmra.mxu0 %v602
      %v767 = vpop.f32.mrf.mxu0
      %v768 = vadd.f32 0.0, %v767
      %v769 = vpop.f32.mrf.mxu0
      %v770 = vadd.f32 0.0, %v769
      %771 = vmatmul.bf16.gmra.mxu0 %v605
      %v772 = vpop.f32.mrf.mxu0
      %v773 = vadd.f32 0.0, %v772
      %v774 = vpop.f32.mrf.mxu0
      %v775 = vadd.f32 0.0, %v774
      %776 = vmatmul.bf16.gmra.mxu0 %v608
      %v777 = vpop.f32.mrf.mxu0
      %v778 = vadd.f32 0.0, %v777
      %v779 = vpop.f32.mrf.mxu0
      %v780 = vadd.f32 0.0, %v779
      %781 = vmatmul.bf16.gmra.mxu0 %v611
      %v782 = vpop.f32.mrf.mxu0
      %v783 = vadd.f32 0.0, %v782
      %v784 = vpop.f32.mrf.mxu0
      %v785 = vadd.f32 0.0, %v784
      %786 = vmatmul.bf16.gmra.mxu0 %v614
      %v787 = vpop.f32.mrf.mxu0
      %v788 = vadd.f32 0.0, %v787
      %v789 = vpop.f32.mrf.mxu0
      %v790 = vadd.f32 0.0, %v789
      %791 = vmatmul.bf16.gmra.mxu0 %v617
      %v792 = vpop.f32.mrf.mxu0
      %v793 = vadd.f32 0.0, %v792
      %v794 = vpop.f32.mrf.mxu0
      %v795 = vadd.f32 0.0, %v794
      %796 = vdwg.mxu0
      %v797 = vadd.f32 %v346, %v629
      %v798 = vadd.f32 %v347, %v718
      %v799 = vadd.f32 %v348, %v631
      %v800 = vadd.f32 %v349, %v720
      %v801 = vadd.f32 %v350, %v634
      %v802 = vadd.f32 %v351, %v723
      %v803 = vadd.f32 %v352, %v636
      %v804 = vadd.f32 %v353, %v725
      %v805 = vadd.f32 %v354, %v639
      %v806 = vadd.f32 %v355, %v728
      %v807 = vadd.f32 %v356, %v641
      %v808 = vadd.f32 %v357, %v730
      %v809 = vadd.f32 %v358, %v644
      %v810 = vadd.f32 %v359, %v733
      %v811 = vadd.f32 %v360, %v646
      %v812 = vadd.f32 %v361, %v735
      %v813 = vadd.f32 %v362, %v649
      %v814 = vadd.f32 %v363, %v738
      %v815 = vadd.f32 %v364, %v651
      %v816 = vadd.f32 %v365, %v740
      %v817 = vadd.f32 %v366, %v654
      %v818 = vadd.f32 %v367, %v743
      %v819 = vadd.f32 %v368, %v656
      %v820 = vadd.f32 %v369, %v745
      %v821 = vadd.f32 %v370, %v659
      %v822 = vadd.f32 %v371, %v748
      %v823 = vadd.f32 %v372, %v661
      %v824 = vadd.f32 %v373, %v750
      %v825 = vadd.f32 %v374, %v664
      %v826 = vadd.f32 %v375, %v753
      %v827 = vadd.f32 %v376, %v666
      %v828 = vadd.f32 %v377, %v755
      %v829 = vadd.f32 %v378, %v669
      %v830 = vadd.f32 %v379, %v758
      %v831 = vadd.f32 %v380, %v671
      %v832 = vadd.f32 %v381, %v760
      %v833 = vadd.f32 %v382, %v674
      %v834 = vadd.f32 %v383, %v763
      %v835 = vadd.f32 %v384, %v676
      %v836 = vadd.f32 %v385, %v765
      %v837 = vadd.f32 %v386, %v679
      %v838 = vadd.f32 %v387, %v768
      %v839 = vadd.f32 %v388, %v681
      %v840 = vadd.f32 %v389, %v770
      %v841 = vadd.f32 %v390, %v684
      %v842 = vadd.f32 %v391, %v773
      %v843 = vadd.f32 %v392, %v686
      %v844 = vadd.f32 %v393, %v775
      %v845 = vadd.f32 %v394, %v689
      %v846 = vadd.f32 %v395, %v778
      %v847 = vadd.f32 %v396, %v691
      %v848 = vadd.f32 %v397, %v780
      %v849 = vadd.f32 %v398, %v694
      %v850 = vadd.f32 %v399, %v783
      %v851 = vadd.f32 %v400, %v696
      %v852 = vadd.f32 %v401, %v785
      %v853 = vadd.f32 %v402, %v699
      %v854 = vadd.f32 %v403, %v788
      %v855 = vadd.f32 %v404, %v701
      %v856 = vadd.f32 %v405, %v790
      %v857 = vadd.f32 %v406, %v704
      %v858 = vadd.f32 %v407, %v793
      %v859 = vadd.f32 %v408, %v706
      %v860 = vadd.f32 %v409, %v795
      %861 = vst [vmem:[#allocation2] sm:$0xff] %v797
      %862 = vst [vmem:[#allocation2 + $0x8] sm:$0xff] %v798
      %863 = vst [vmem:[#allocation2 + $0x10] sm:$0xff] %v799
      %864 = vst [vmem:[#allocation2 + $0x18] sm:$0xff] %v800
      %865 = vst [vmem:[#allocation2 + $0x20] sm:$0xff] %v801
      %866 = vst [vmem:[#allocation2 + $0x28] sm:$0xff] %v802
      %867 = vst [vmem:[#allocation2 + $0x30] sm:$0xff] %v803
      %868 = vst [vmem:[#allocation2 + $0x38] sm:$0xff] %v804
      %869 = vst [vmem:[#allocation2 + $0x40] sm:$0xff] %v805
      %870 = vst [vmem:[#allocation2 + $0x48] sm:$0xff] %v806
      %871 = vst [vmem:[#allocation2 + $0x50] sm:$0xff] %v807
      %872 = vst [vmem:[#allocation2 + $0x58] sm:$0xff] %v808
      %873 = vst [vmem:[#allocation2 + $0x60] sm:$0xff] %v809
      %874 = vst [vmem:[#allocation2 + $0x68] sm:$0xff] %v810
      %875 = vst [vmem:[#allocation2 + $0x70] sm:$0xff] %v811
      %876 = vst [vmem:[#allocation2 + $0x78] sm:$0xff] %v812
      %877 = vst [vmem:[#allocation2 + $0x80] sm:$0xff] %v813
      %878 = vst [vmem:[#allocation2 + $0x88] sm:$0xff] %v814
      %879 = vst [vmem:[#allocation2 + $0x90] sm:$0xff] %v815
      %880 = vst [vmem:[#allocation2 + $0x98] sm:$0xff] %v816
      %881 = vst [vmem:[#allocation2 + $0xa0] sm:$0xff] %v817
      %882 = vst [vmem:[#allocation2 + $0xa8] sm:$0xff] %v818
      %883 = vst [vmem:[#allocation2 + $0xb0] sm:$0xff] %v819
      %884 = vst [vmem:[#allocation2 + $0xb8] sm:$0xff] %v820
      %885 = vst [vmem:[#allocation2 + $0xc0] sm:$0xff] %v821
      %886 = vst [vmem:[#allocation2 + $0xc8] sm:$0xff] %v822
      %887 = vst [vmem:[#allocation2 + $0xd0] sm:$0xff] %v823
      %888 = vst [vmem:[#allocation2 + $0xd8] sm:$0xff] %v824
      %889 = vst [vmem:[#allocation2 + $0xe0] sm:$0xff] %v825
      %890 = vst [vmem:[#allocation2 + $0xe8] sm:$0xff] %v826
      %891 = vst [vmem:[#allocation2 + $0xf0] sm:$0xff] %v827
      %892 = vst [vmem:[#allocation2 + $0xf8] sm:$0xff] %v828
      %893 = vst [vmem:[#allocation2 + $0x100] sm:$0xff] %v829
      %894 = vst [vmem:[#allocation2 + $0x108] sm:$0xff] %v830
      %895 = vst [vmem:[#allocation2 + $0x110] sm:$0xff] %v831
      %896 = vst [vmem:[#allocation2 + $0x118] sm:$0xff] %v832
      %897 = vst [vmem:[#allocation2 + $0x120] sm:$0xff] %v833
      %898 = vst [vmem:[#allocation2 + $0x128] sm:$0xff] %v834
      %899 = vst [vmem:[#allocation2 + $0x130] sm:$0xff] %v835
      %900 = vst [vmem:[#allocation2 + $0x138] sm:$0xff] %v836
      %901 = vst [vmem:[#allocation2 + $0x140] sm:$0xff] %v837
      %902 = vst [vmem:[#allocation2 + $0x148] sm:$0xff] %v838
      %903 = vst [vmem:[#allocation2 + $0x150] sm:$0xff] %v839
      %904 = vst [vmem:[#allocation2 + $0x158] sm:$0xff] %v840
      %905 = vst [vmem:[#allocation2 + $0x160] sm:$0xff] %v841
      %906 = vst [vmem:[#allocation2 + $0x168] sm:$0xff] %v842
      %907 = vst [vmem:[#allocation2 + $0x170] sm:$0xff] %v843
      %908 = vst [vmem:[#allocation2 + $0x178] sm:$0xff] %v844
      %909 = vst [vmem:[#allocation2 + $0x180] sm:$0xff] %v845
      %910 = vst [vmem:[#allocation2 + $0x188] sm:$0xff] %v846
      %911 = vst [vmem:[#allocation2 + $0x190] sm:$0xff] %v847
      %912 = vst [vmem:[#allocation2 + $0x198] sm:$0xff] %v848
      %913 = vst [vmem:[#allocation2 + $0x1a0] sm:$0xff] %v849
      %914 = vst [vmem:[#allocation2 + $0x1a8] sm:$0xff] %v850
      %915 = vst [vmem:[#allocation2 + $0x1b0] sm:$0xff] %v851
      %916 = vst [vmem:[#allocation2 + $0x1b8] sm:$0xff] %v852
      %917 = vst [vmem:[#allocation2 + $0x1c0] sm:$0xff] %v853
      %918 = vst [vmem:[#allocation2 + $0x1c8] sm:$0xff] %v854
      %919 = vst [vmem:[#allocation2 + $0x1d0] sm:$0xff] %v855
      %920 = vst [vmem:[#allocation2 + $0x1d8] sm:$0xff] %v856
      %921 = vst [vmem:[#allocation2 + $0x1e0] sm:$0xff] %v857
      %922 = vst [vmem:[#allocation2 + $0x1e8] sm:$0xff] %v858
      %923 = vst [vmem:[#allocation2 + $0x1f0] sm:$0xff] %v859
      %924 = vst [vmem:[#allocation2 + $0x1f8] sm:$0xff] %v860
      // Predicated region
      $region37: #{_lambda_.9} parent=31 // pred_check
        %p925 = pneg %p278
      $region38: #{_lambda_.9} parent=31 // pred_check_branch
        %927 = sbr.rel (%p925) target = $region40
      $region39: #{_lambda_.9} parent=31 // pred_region
        %v928 = vld [vmem:[#allocation2] sm:$0xff]
        %v929 = vld [vmem:[#allocation2 + $0x8] sm:$0xff]
        %v930 = vld [vmem:[#allocation2 + $0x10] sm:$0xff]
        %v931 = vld [vmem:[#allocation2 + $0x18] sm:$0xff]
        %v932 = vld [vmem:[#allocation2 + $0x20] sm:$0xff]
        %v933 = vld [vmem:[#allocation2 + $0x28] sm:$0xff]
        %v934 = vld [vmem:[#allocation2 + $0x30] sm:$0xff]
        %v935 = vld [vmem:[#allocation2 + $0x38] sm:$0xff]
        %v936 = vld [vmem:[#allocation2 + $0x40] sm:$0xff]
        %v937 = vld [vmem:[#allocation2 + $0x48] sm:$0xff]
        %v938 = vld [vmem:[#allocation2 + $0x50] sm:$0xff]
        %v939 = vld [vmem:[#allocation2 + $0x58] sm:$0xff]
        %v940 = vld [vmem:[#allocation2 + $0x60] sm:$0xff]
        %v941 = vld [vmem:[#allocation2 + $0x68] sm:$0xff]
        %v942 = vld [vmem:[#allocation2 + $0x70] sm:$0xff]
        %v943 = vld [vmem:[#allocation2 + $0x78] sm:$0xff]
        %v944 = vld [vmem:[#allocation2 + $0x80] sm:$0xff]
        %v945 = vld [vmem:[#allocation2 + $0x88] sm:$0xff]
        %v946 = vld [vmem:[#allocation2 + $0x90] sm:$0xff]
        %v947 = vld [vmem:[#allocation2 + $0x98] sm:$0xff]
        %v948 = vld [vmem:[#allocation2 + $0xa0] sm:$0xff]
        %v949 = vld [vmem:[#allocation2 + $0xa8] sm:$0xff]
        %v950 = vld [vmem:[#allocation2 + $0xb0] sm:$0xff]
        %v951 = vld [vmem:[#allocation2 + $0xb8] sm:$0xff]
        %v952 = vld [vmem:[#allocation2 + $0xc0] sm:$0xff]
        %v953 = vld [vmem:[#allocation2 + $0xc8] sm:$0xff]
        %v954 = vld [vmem:[#allocation2 + $0xd0] sm:$0xff]
        %v955 = vld [vmem:[#allocation2 + $0xd8] sm:$0xff]
        %v956 = vld [vmem:[#allocation2 + $0xe0] sm:$0xff]
        %v957 = vld [vmem:[#allocation2 + $0xe8] sm:$0xff]
        %v958 = vld [vmem:[#allocation2 + $0xf0] sm:$0xff]
        %v959 = vld [vmem:[#allocation2 + $0xf8] sm:$0xff]
        %v960 = vld [vmem:[#allocation2 + $0x100] sm:$0xff]
        %v961 = vld [vmem:[#allocation2 + $0x108] sm:$0xff]
        %v962 = vld [vmem:[#allocation2 + $0x110] sm:$0xff]
        %v963 = vld [vmem:[#allocation2 + $0x118] sm:$0xff]
        %v964 = vld [vmem:[#allocation2 + $0x120] sm:$0xff]
        %v965 = vld [vmem:[#allocation2 + $0x128] sm:$0xff]
        %v966 = vld [vmem:[#allocation2 + $0x130] sm:$0xff]
        %v967 = vld [vmem:[#allocation2 + $0x138] sm:$0xff]
        %v968 = vld [vmem:[#allocation2 + $0x140] sm:$0xff]
        %v969 = vld [vmem:[#allocation2 + $0x148] sm:$0xff]
        %v970 = vld [vmem:[#allocation2 + $0x150] sm:$0xff]
        %v971 = vld [vmem:[#allocation2 + $0x158] sm:$0xff]
        %v972 = vld [vmem:[#allocation2 + $0x160] sm:$0xff]
        %v973 = vld [vmem:[#allocation2 + $0x168] sm:$0xff]
        %v974 = vld [vmem:[#allocation2 + $0x170] sm:$0xff]
        %v975 = vld [vmem:[#allocation2 + $0x178] sm:$0xff]
        %v976 = vld [vmem:[#allocation2 + $0x180] sm:$0xff]
        %v977 = vld [vmem:[#allocation2 + $0x188] sm:$0xff]
        %v978 = vld [vmem:[#allocation2 + $0x190] sm:$0xff]
        %v979 = vld [vmem:[#allocation2 + $0x198] sm:$0xff]
        %v980 = vld [vmem:[#allocation2 + $0x1a0] sm:$0xff]
        %v981 = vld [vmem:[#allocation2 + $0x1a8] sm:$0xff]
        %v982 = vld [vmem:[#allocation2 + $0x1b0] sm:$0xff]
        %v983 = vld [vmem:[#allocation2 + $0x1b8] sm:$0xff]
        %v984 = vld [vmem:[#allocation2 + $0x1c0] sm:$0xff]
        %v985 = vld [vmem:[#allocation2 + $0x1c8] sm:$0xff]
        %v986 = vld [vmem:[#allocation2 + $0x1d0] sm:$0xff]
        %v987 = vld [vmem:[#allocation2 + $0x1d8] sm:$0xff]
        %v988 = vld [vmem:[#allocation2 + $0x1e0] sm:$0xff]
        %v989 = vld [vmem:[#allocation2 + $0x1e8] sm:$0xff]
        %v990 = vld [vmem:[#allocation2 + $0x1f0] sm:$0xff]
        %v991 = vld [vmem:[#allocation2 + $0x1f8] sm:$0xff]
        %v992 = vld [vmem:[%s263] sm:$0x3]
        %v994 = vperm.slane %v992, 0
        %v995 = vperm.slane %v992, 1
        %v998 = vadd.f32 %v928, %v994
        %v999 = vadd.f32 %v929, %v995
        %v1000 = vadd.f32 %v930, %v994
        %v1001 = vadd.f32 %v931, %v995
        %v1002 = vadd.f32 %v932, %v994
        %v1003 = vadd.f32 %v933, %v995
        %v1004 = vadd.f32 %v934, %v994
        %v1005 = vadd.f32 %v935, %v995
        %v1006 = vadd.f32 %v936, %v994
        %v1007 = vadd.f32 %v937, %v995
        %v1008 = vadd.f32 %v938, %v994
        %v1009 = vadd.f32 %v939, %v995
        %v1010 = vadd.f32 %v940, %v994
        %v1011 = vadd.f32 %v941, %v995
        %v1012 = vadd.f32 %v942, %v994
        %v1013 = vadd.f32 %v943, %v995
        %v1014 = vadd.f32 %v944, %v994
        %v1015 = vadd.f32 %v945, %v995
        %v1016 = vadd.f32 %v946, %v994
        %v1017 = vadd.f32 %v947, %v995
        %v1018 = vadd.f32 %v948, %v994
        %v1019 = vadd.f32 %v949, %v995
        %v1020 = vadd.f32 %v950, %v994
        %v1021 = vadd.f32 %v951, %v995
        %v1022 = vadd.f32 %v952, %v994
        %v1023 = vadd.f32 %v953, %v995
        %v1024 = vadd.f32 %v954, %v994
        %v1025 = vadd.f32 %v955, %v995
        %v1026 = vadd.f32 %v956, %v994
        %v1027 = vadd.f32 %v957, %v995
        %v1028 = vadd.f32 %v958, %v994
        %v1029 = vadd.f32 %v959, %v995
        %v1030 = vadd.f32 %v960, %v994
        %v1031 = vadd.f32 %v961, %v995
        %v1032 = vadd.f32 %v962, %v994
        %v1033 = vadd.f32 %v963, %v995
        %v1034 = vadd.f32 %v964, %v994
        %v1035 = vadd.f32 %v965, %v995
        %v1036 = vadd.f32 %v966, %v994
        %v1037 = vadd.f32 %v967, %v995
        %v1038 = vadd.f32 %v968, %v994
        %v1039 = vadd.f32 %v969, %v995
        %v1040 = vadd.f32 %v970, %v994
        %v1041 = vadd.f32 %v971, %v995
        %v1042 = vadd.f32 %v972, %v994
        %v1043 = vadd.f32 %v973, %v995
        %v1044 = vadd.f32 %v974, %v994
        %v1045 = vadd.f32 %v975, %v995
        %v1046 = vadd.f32 %v976, %v994
        %v1047 = vadd.f32 %v977, %v995
        %v1048 = vadd.f32 %v978, %v994
        %v1049 = vadd.f32 %v979, %v995
        %v1050 = vadd.f32 %v980, %v994
        %v1051 = vadd.f32 %v981, %v995
        %v1052 = vadd.f32 %v982, %v994
        %v1053 = vadd.f32 %v983, %v995
        %v1054 = vadd.f32 %v984, %v994
        %v1055 = vadd.f32 %v985, %v995
        %v1056 = vadd.f32 %v986, %v994
        %v1057 = vadd.f32 %v987, %v995
        %v1058 = vadd.f32 %v988, %v994
        %v1059 = vadd.f32 %v989, %v995
        %v1060 = vadd.f32 %v990, %v994
        %v1061 = vadd.f32 %v991, %v995
        %v1062 = vpack.c.bf16 %v999, %v998
        %v1063 = vpack.c.bf16 %v1001, %v1000
        %v1064 = vpack.c.bf16 %v1003, %v1002
        %v1065 = vpack.c.bf16 %v1005, %v1004
        %v1066 = vpack.c.bf16 %v1007, %v1006
        %v1067 = vpack.c.bf16 %v1009, %v1008
        %v1068 = vpack.c.bf16 %v1011, %v1010
        %v1069 = vpack.c.bf16 %v1013, %v1012
        %v1070 = vpack.c.bf16 %v1015, %v1014
        %v1071 = vpack.c.bf16 %v1017, %v1016
        %v1072 = vpack.c.bf16 %v1019, %v1018
        %v1073 = vpack.c.bf16 %v1021, %v1020
        %v1074 = vpack.c.bf16 %v1023, %v1022
        %v1075 = vpack.c.bf16 %v1025, %v1024
        %v1076 = vpack.c.bf16 %v1027, %v1026
        %v1077 = vpack.c.bf16 %v1029, %v1028
        %v1078 = vpack.c.bf16 %v1031, %v1030
        %v1079 = vpack.c.bf16 %v1033, %v1032
        %v1080 = vpack.c.bf16 %v1035, %v1034
        %v1081 = vpack.c.bf16 %v1037, %v1036
        %v1082 = vpack.c.bf16 %v1039, %v1038
        %v1083 = vpack.c.bf16 %v1041, %v1040
        %v1084 = vpack.c.bf16 %v1043, %v1042
        %v1085 = vpack.c.bf16 %v1045, %v1044
        %v1086 = vpack.c.bf16 %v1047, %v1046
        %v1087 = vpack.c.bf16 %v1049, %v1048
        %v1088 = vpack.c.bf16 %v1051, %v1050
        %v1089 = vpack.c.bf16 %v1053, %v1052
        %v1090 = vpack.c.bf16 %v1055, %v1054
        %v1091 = vpack.c.bf16 %v1057, %v1056
        %v1092 = vpack.c.bf16 %v1059, %v1058
        %v1093 = vpack.c.bf16 %v1061, %v1060
        %1094 = vst [vmem:[%s274] sm:$0xff] %v1062
        %1095 = vst [vmem:[%s274 + $0x8] sm:$0xff] %v1063
        %1096 = vst [vmem:[%s274 + $0x10] sm:$0xff] %v1064
        %1097 = vst [vmem:[%s274 + $0x18] sm:$0xff] %v1065
        %1098 = vst [vmem:[%s274 + $0x20] sm:$0xff] %v1066
        %1099 = vst [vmem:[%s274 + $0x28] sm:$0xff] %v1067
        %1100 = vst [vmem:[%s274 + $0x30] sm:$0xff] %v1068
        %1101 = vst [vmem:[%s274 + $0x38] sm:$0xff] %v1069
        %1102 = vst [vmem:[%s274 + $0x40] sm:$0xff] %v1070
        %1103 = vst [vmem:[%s274 + $0x48] sm:$0xff] %v1071
        %1104 = vst [vmem:[%s274 + $0x50] sm:$0xff] %v1072
        %1105 = vst [vmem:[%s274 + $0x58] sm:$0xff] %v1073
        %1106 = vst [vmem:[%s274 + $0x60] sm:$0xff] %v1074
        %1107 = vst [vmem:[%s274 + $0x68] sm:$0xff] %v1075
        %1108 = vst [vmem:[%s274 + $0x70] sm:$0xff] %v1076
        %1109 = vst [vmem:[%s274 + $0x78] sm:$0xff] %v1077
        %1110 = vst [vmem:[%s274 + $0x80] sm:$0xff] %v1078
        %1111 = vst [vmem:[%s274 + $0x88] sm:$0xff] %v1079
        %1112 = vst [vmem:[%s274 + $0x90] sm:$0xff] %v1080
        %1113 = vst [vmem:[%s274 + $0x98] sm:$0xff] %v1081
        %1114 = vst [vmem:[%s274 + $0xa0] sm:$0xff] %v1082
        %1115 = vst [vmem:[%s274 + $0xa8] sm:$0xff] %v1083
        %1116 = vst [vmem:[%s274 + $0xb0] sm:$0xff] %v1084
        %1117 = vst [vmem:[%s274 + $0xb8] sm:$0xff] %v1085
        %1118 = vst [vmem:[%s274 + $0xc0] sm:$0xff] %v1086
        %1119 = vst [vmem:[%s274 + $0xc8] sm:$0xff] %v1087
        %1120 = vst [vmem:[%s274 + $0xd0] sm:$0xff] %v1088
        %1121 = vst [vmem:[%s274 + $0xd8] sm:$0xff] %v1089
        %1122 = vst [vmem:[%s274 + $0xe0] sm:$0xff] %v1090
        %1123 = vst [vmem:[%s274 + $0xe8] sm:$0xff] %v1091
        %1124 = vst [vmem:[%s274 + $0xf0] sm:$0xff] %v1092
        %1125 = vst [vmem:[%s274 + $0xf8] sm:$0xff] %v1093
      $region40: #{_lambda_.9} parent=31 // pred_fallthru
        _
      %s1126 = smul.u32 32, %s19
      %s1127 = smul.u32 2, %s20
      %p1128 = scmp.lt.s32.totalorder %s1126, 63
      %s1129 = scalar_select %p1128, %s1126, 63
      %p1130 = scmp.lt.s32.totalorder %s1127, 1
      %s1131 = scalar_select %p1130, %s1127, 1
      %s1132 = smul.addr %s1129, 2
      %s1133 = sadd.s32 %s1131, %s1132
      %s1134 = smul.addr %s1133, 4
      %s1135 = scalar_lea.vmem %s3, %s1134
      // Predicated region
      $region41: #{_lambda_.9} parent=31 // pred_check
        %p1136 = pneg %p135
      $region42: #{_lambda_.9} parent=31 // pred_check_branch
        %1138 = sbr.rel (%p1136) target = $region44
      $region43: #{_lambda_.9} parent=31 // pred_region
        %s1139 = smul.u32 32, %s19
        %s1140 = smul.u32 2, %s20
      $region44: #{_lambda_.9} parent=31 // pred_fallthru
        _
    $region32: #{_lambda_.9} parent=5 // pred_fallthru
      _
    %p1141 = scmp.le.s32.totalorder 2, %s9
    // Predicated region
    $region45: #{_lambda_.9} parent=5 // pred_check
      %p1142 = pneg %p1141
    $region46: #{_lambda_.9} parent=5 // pred_check_branch
      %1144 = sbr.rel (%p1142) target = $region48
    $region47: #{_lambda_.9} parent=5 // pred_region
      %s1145 = ssub.s32 %s9, 2
      // Predicated region
      $region49: #{_lambda_.9} parent=47 // pred_check
        %p1146 = pneg %p141
      $region50: #{_lambda_.9} parent=47 // pred_check_branch
        %1148 = sbr.rel (%p1146) target = $region52
      $region51: #{_lambda_.9} parent=47 // pred_region
        %s1149 = smul.u32 32, %s22
        %s1150 = smul.u32 2, %s23
        %p1151 = scmp.lt.s32.totalorder %s1149, 63
        %s1152 = scalar_select %p1151, %s1149, 63
        %p1153 = scmp.lt.s32.totalorder %s1150, 1
        %s1154 = scalar_select %p1153, %s1150, 1
        %s1155 = smul.addr %s1152, 2
        %s1156 = sadd.s32 %s1154, %s1155
        %s1157 = smul.addr %s1156, 4
        %s1158 = scalar_lea.vmem %s3, %s1157
      $region52: #{_lambda_.9} parent=47 // pred_fallthru
        _
    $region48: #{_lambda_.9} parent=5 // pred_fallthru
      _
  $region6: #{_lambda_.9} parent=0 // loop_footer
    %s13 = sadd.s32 1, %s9
  $region7: #{_lambda_.9} parent=0 // loop_footer_branch
    %8 = sbr.rel target = $region3
  $region8: #{_lambda_.9} parent=0 // loop_exit
    _

// kernel: _lambda_.10
$region0: #{_lambda_.10}
  #allocation0 [shape = 'u32[]', space=smem, size = 0x4, offset = 0x4, fixed_abs, tag = 'smem constant byte address 0x4 - core index']
  #allocation1 [shape = 'u32[72,128]{1,0:T(1,128)}', space=vmem, size = 0x9000, scoped, tag = 'internal scratch']
  #allocation2 [shape = 'f32[256,256]{1,0:T(8,128)}', space=vmem, size = 0x40000, scoped, tag = 'scratch operand']
  %s0 = inlined_call_operand.vmem [shape: bf16[512,64], index: 0, kind: input, shape index: {}]
  %s1 = inlined_call_operand.vmem [shape: bf16[64,256], index: 1, kind: input, shape index: {}]
  %s2 = inlined_call_operand.vmem [shape: f32[1,256], index: 2, kind: input, shape index: {}]
  %s3 = inlined_call_operand.vmem [shape: bf16[512,256], index: 3, kind: input, shape index: {}]
  %s4 = inlined_call_operand.vmem [shape: bf16[512,256], index: 4, kind: output, shape index: {}]
  %s5 = sld [smem:[#allocation0]]
  $region57: #{_lambda_.10} parent=0
    _
  %s7 = ssub.s32 1, %s5
  %s8 = scalar_select 0, %s7, %s5
  loop: start=0, step=1, limit=4
  $region2: #{_lambda_.10} parent=0 // loop_pre_header
    _
  $region3: #{_lambda_.10} parent=0 // loop_header
    %s10 = sphi 0, %s14
    %p11 = scmp.ge.s32.totalorder %s10, 4
    %s17 = sphi 0, %s36
    %s18 = sphi 0, %s32
    %s19 = sphi 0, %s28
    %s20 = sphi 0, %s17
    %s21 = sphi 0, %s18
    %s22 = sphi 0, %s19
    %s23 = sphi 0, %s20
    %s24 = sphi 0, %s21
    %s25 = sphi 0, %s22
    %s41 = sphi 0, %s43
    %s44 = sphi 0, %s41
    %s45 = sphi 0, %s44
    %s61 = sphi 0, %s45
    %s69 = sphi 0, %s71
    %s72 = sphi 0, %s69
    %s73 = sphi 0, %s72
    %s89 = sphi 0, %s73
    %s95 = sphi 0, %s97
    %s98 = sphi 0, %s95
    %s99 = sphi 0, %s98
    %s115 = sphi 0, %s99
    %s123 = sphi 0, %s125
    %s126 = sphi 0, %s123
    %s127 = sphi 0, %s126
    %s143 = sphi 0, %s127
    %s151 = sphi 0, %s153
    %s154 = sphi 0, %s151
    %s155 = sphi 0, %s154
    %s171 = sphi 0, %s155
  $region4: #{_lambda_.10} parent=0 // loop_header_branch
    %13 = sbr.rel (%p11) target = $region8
  $region5: #{_lambda_.10} parent=0 // loop_body
    %s15 = ssub.s32 %s10, 1
    %s16 = ssub.s32 %s10, 2
    %s26 = sadd.s32 1, %s19
    %p27 = scmp.ge.s32.totalorder %s26, 1
    %s28 = scalar_select %p27, 0, %s26
    %s29 = sadd.s32 1, %s18
    %s30 = scalar_select %p27, %s29, %s18
    %p31 = scmp.ge.s32.totalorder %s30, 1
    %s32 = scalar_select %p31, 0, %s30
    %s33 = sadd.s32 1, %s17
    %s34 = scalar_select %p31, %s33, %s17
    %p35 = scmp.ge.s32.totalorder %s34, 2
    %s36 = scalar_select %p35, 0, %s34
    %s37 = ssub.s32 %s17, %s36
    %s38 = ssub.s32 %s19, %s28
    %s39 = sor.u32 %s37, %s38
    %p40 = scmp.eq.s32.totalorder %s39, 0
    %s42 = sadd.s32 %s41, 1
    %s43 = scalar_select %p40, %s41, %s42
    %p46 = pneg %p40
    %p47 = scmp.eq.s32.totalorder %s10, 1
    %p48 = por %p46, %p47
    %p49 = scmp.ne.s32.totalorder %s41, %s44
    %p50 = scmp.eq.s32.totalorder %s10, 0
    %p51 = por %p49, %p50
    %p52 = scmp.ne.s32.totalorder %s41, %s44
    %p53 = scmp.eq.s32.totalorder %s15, 1
    %p54 = por %p52, %p53
    %p55 = scmp.ne.s32.totalorder %s44, %s45
    %p56 = scmp.eq.s32.totalorder %s15, 0
    %p57 = por %p55, %p56
    %p58 = scmp.ne.s32.totalorder %s44, %s45
    %p59 = scmp.eq.s32.totalorder %s16, 1
    %p60 = por %p58, %p59
    %p62 = scmp.ne.s32.totalorder %s45, %s61
    %p63 = scmp.eq.s32.totalorder %s16, 0
    %p64 = por %p62, %p63
    %s65 = ssub.s32 %s19, %s28
    %s66 = ssub.s32 %s18, %s32
    %s67 = sor.u32 %s65, %s66
    %p68 = scmp.eq.s32.totalorder %s67, 0
    %s70 = sadd.s32 %s69, 1
    %s71 = scalar_select %p68, %s69, %s70
    %p74 = pneg %p68
    %p75 = scmp.eq.s32.totalorder %s10, 1
    %p76 = por %p74, %p75
    %p77 = scmp.ne.s32.totalorder %s69, %s72
    %p78 = scmp.eq.s32.totalorder %s10, 0
    %p79 = por %p77, %p78
    %p80 = scmp.ne.s32.totalorder %s69, %s72
    %p81 = scmp.eq.s32.totalorder %s15, 1
    %p82 = por %p80, %p81
    %p83 = scmp.ne.s32.totalorder %s72, %s73
    %p84 = scmp.eq.s32.totalorder %s15, 0
    %p85 = por %p83, %p84
    %p86 = scmp.ne.s32.totalorder %s72, %s73
    %p87 = scmp.eq.s32.totalorder %s16, 1
    %p88 = por %p86, %p87
    %p90 = scmp.ne.s32.totalorder %s73, %s89
    %p91 = scmp.eq.s32.totalorder %s16, 0
    %p92 = por %p90, %p91
    %s93 = ssub.s32 %s18, %s32
    %p94 = scmp.eq.s32.totalorder %s93, 0
    %s96 = sadd.s32 %s95, 1
    %s97 = scalar_select %p94, %s95, %s96
    %p100 = pneg %p94
    %p101 = scmp.eq.s32.totalorder %s10, 1
    %p102 = por %p100, %p101
    %p103 = scmp.ne.s32.totalorder %s95, %s98
    %p104 = scmp.eq.s32.totalorder %s10, 0
    %p105 = por %p103, %p104
    %p106 = scmp.ne.s32.totalorder %s95, %s98
    %p107 = scmp.eq.s32.totalorder %s15, 1
    %p108 = por %p106, %p107
    %p109 = scmp.ne.s32.totalorder %s98, %s99
    %p110 = scmp.eq.s32.totalorder %s15, 0
    %p111 = por %p109, %p110
    %p112 = scmp.ne.s32.totalorder %s98, %s99
    %p113 = scmp.eq.s32.totalorder %s16, 1
    %p114 = por %p112, %p113
    %p116 = scmp.ne.s32.totalorder %s99, %s115
    %p117 = scmp.eq.s32.totalorder %s16, 0
    %p118 = por %p116, %p117
    %s119 = ssub.s32 %s17, %s36
    %s120 = ssub.s32 %s18, %s32
    %s121 = sor.u32 %s119, %s120
    %p122 = scmp.eq.s32.totalorder %s121, 0
    %s124 = sadd.s32 %s123, 1
    %s125 = scalar_select %p122, %s123, %s124
    %p128 = pneg %p122
    %p129 = scmp.eq.s32.totalorder %s10, 1
    %p130 = por %p128, %p129
    %p131 = scmp.ne.s32.totalorder %s123, %s126
    %p132 = scmp.eq.s32.totalorder %s10, 0
    %p133 = por %p131, %p132
    %p134 = scmp.ne.s32.totalorder %s123, %s126
    %p135 = scmp.eq.s32.totalorder %s15, 1
    %p136 = por %p134, %p135
    %p137 = scmp.ne.s32.totalorder %s126, %s127
    %p138 = scmp.eq.s32.totalorder %s15, 0
    %p139 = por %p137, %p138
    %p140 = scmp.ne.s32.totalorder %s126, %s127
    %p141 = scmp.eq.s32.totalorder %s16, 1
    %p142 = por %p140, %p141
    %p144 = scmp.ne.s32.totalorder %s127, %s143
    %p145 = scmp.eq.s32.totalorder %s16, 0
    %p146 = por %p144, %p145
    %s147 = ssub.s32 %s17, %s36
    %s148 = ssub.s32 %s18, %s32
    %s149 = sor.u32 %s147, %s148
    %p150 = scmp.eq.s32.totalorder %s149, 0
    %s152 = sadd.s32 %s151, 1
    %s153 = scalar_select %p150, %s151, %s152
    %p156 = pneg %p150
    %p157 = scmp.eq.s32.totalorder %s10, 1
    %p158 = por %p156, %p157
    %p159 = scmp.ne.s32.totalorder %s151, %s154
    %p160 = scmp.eq.s32.totalorder %s10, 0
    %p161 = por %p159, %p160
    %p162 = scmp.ne.s32.totalorder %s151, %s154
    %p163 = scmp.eq.s32.totalorder %s15, 1
    %p164 = por %p162, %p163
    %p165 = scmp.ne.s32.totalorder %s154, %s155
    %p166 = scmp.eq.s32.totalorder %s15, 0
    %p167 = por %p165, %p166
    %p168 = scmp.ne.s32.totalorder %s154, %s155
    %p169 = scmp.eq.s32.totalorder %s16, 1
    %p170 = por %p168, %p169
    %p172 = scmp.ne.s32.totalorder %s155, %s171
    %p173 = scmp.eq.s32.totalorder %s16, 0
    %p174 = por %p172, %p173
    %p175 = scmp.le.s32.totalorder 1, %s10
    %p176 = scmp.lt.s32.totalorder %s10, 3
    %p177 = pnand %p175, %p176
    %p178 = pneg %p177
    // Predicated region
    $region9: #{_lambda_.10} parent=5 // pred_check
      _
    $region10: #{_lambda_.10} parent=5 // pred_check_branch
      %180 = sbr.rel (%p177) target = $region12
    $region11: #{_lambda_.10} parent=5 // pred_region
      %s181 = ssub.s32 %s10, 1
      // Predicated region
      $region13: #{_lambda_.10} parent=11 // pred_check
        %p182 = pneg %p85
      $region14: #{_lambda_.10} parent=11 // pred_check_branch
        %184 = sbr.rel (%p182) target = $region16
      $region15: #{_lambda_.10} parent=11 // pred_region
        %s185 = smul.u32 8, %s22
        %s186 = smul.u32 2, %s21
        %p187 = scmp.lt.s32.totalorder %s185, 7
        %s188 = scalar_select %p187, %s185, 7
        %p189 = scmp.lt.s32.totalorder %s186, 1
        %s190 = scalar_select %p189, %s186, 1
        %s191 = smul.addr %s188, 2
        %s192 = sadd.s32 %s190, %s191
        %s193 = smul.addr %s192, 4
        %s194 = scalar_lea.vmem %s1, %s193
        %s195 = smul.u32 8, %s22
        %s196 = smul.u32 2, %s21
      $region16: #{_lambda_.10} parent=11 // pred_fallthru
        _
      // Predicated region
      $region17: #{_lambda_.10} parent=11 // pred_check
        %p197 = pneg %p111
      $region18: #{_lambda_.10} parent=11 // pred_check_branch
        %199 = sbr.rel (%p197) target = $region20
      $region19: #{_lambda_.10} parent=11 // pred_region
        %s200 = smul.u32 2, %s21
        %p201 = scmp.lt.s32.totalorder %s200, 1
        %s202 = scalar_select %p201, %s200, 1
        %s203 = scalar_lea.vmem %s2, %s202
        %s204 = smul.u32 2, %s21
      $region20: #{_lambda_.10} parent=11 // pred_fallthru
        _
    $region12: #{_lambda_.10} parent=5 // pred_fallthru
      _
    %p205 = scmp.lt.s32.totalorder %s10, 2
    // Predicated region
    $region21: #{_lambda_.10} parent=5 // pred_check
      %p206 = pneg %p205
    $region22: #{_lambda_.10} parent=5 // pred_check_branch
      %208 = sbr.rel (%p206) target = $region24
    $region23: #{_lambda_.10} parent=5 // pred_region
      // Predicated region
      $region25: #{_lambda_.10} parent=23 // pred_check
        %p209 = pneg %p51
      $region26: #{_lambda_.10} parent=23 // pred_check_branch
        %211 = sbr.rel (%p209) target = $region28
      $region27: #{_lambda_.10} parent=23 // pred_region
        %s212 = smul.u32 32, %s17
        %p213 = scmp.lt.s32.totalorder %s212, 63
        %s214 = scalar_select %p213, %s212, 63
        %p215 = scmp.lt.s32.totalorder %s19, 0
        %s216 = scalar_select %p215, %s19, 0
        %s217 = sadd.s32 %s216, %s214
        %s218 = smul.addr %s217, 4
        %s219 = scalar_lea.vmem %s0, %s218
        %s220 = smul.u32 32, %s17
      $region28: #{_lambda_.10} parent=23 // pred_fallthru
        _
      // Predicated region
      $region29: #{_lambda_.10} parent=23 // pred_check
        %p221 = pneg %p133
      $region30: #{_lambda_.10} parent=23 // pred_check_branch
        %223 = sbr.rel (%p221) target = $region32
      $region31: #{_lambda_.10} parent=23 // pred_region
        %s224 = smul.u32 32, %s17
        %s225 = smul.u32 2, %s18
        %p226 = scmp.lt.s32.totalorder %s224, 63
        %s227 = scalar_select %p226, %s224, 63
        %p228 = scmp.lt.s32.totalorder %s225, 1
        %s229 = scalar_select %p228, %s225, 1
        %s230 = smul.addr %s227, 2
        %s231 = sadd.s32 %s229, %s230
        %s232 = smul.addr %s231, 4
        %s233 = scalar_lea.vmem %s3, %s232
        %s234 = smul.u32 32, %s17
        %s235 = smul.u32 2, %s18
      $region32: #{_lambda_.10} parent=23 // pred_fallthru
        _
    $region24: #{_lambda_.10} parent=5 // pred_fallthru
      _
    %p236 = scmp.le.s32.totalorder 1, %s10
    %p237 = scmp.lt.s32.totalorder %s10, 3
    %p238 = pnand %p236, %p237
    %p239 = pneg %p238
    // Predicated region
    $region33: #{_lambda_.10} parent=5 // pred_check
      _
    $region34: #{_lambda_.10} parent=5 // pred_check_branch
      %241 = sbr.rel (%p238) target = $region36
    $region35: #{_lambda_.10} parent=5 // pred_region
      %s242 = ssub.s32 %s10, 1
      %s243 = smul.u32 32, %s20
      %p244 = scmp.lt.s32.totalorder %s243, 63
      %s245 = scalar_select %p244, %s243, 63
      %p246 = scmp.lt.s32.totalorder %s22, 0
      %s247 = scalar_select %p246, %s22, 0
      %s248 = sadd.s32 %s247, %s245
      %s249 = smul.addr %s248, 4
      %s250 = scalar_lea.vmem %s0, %s249
      %p251 = pneg %p57
      %p252 = pneg %p54
      %s253 = smul.u32 8, %s22
      %s254 = smul.u32 2, %s21
      %p255 = scmp.lt.s32.totalorder %s253, 7
      %s256 = scalar_select %p255, %s253, 7
      %p257 = scmp.lt.s32.totalorder %s254, 1
      %s258 = scalar_select %p257, %s254, 1
      %s259 = smul.addr %s256, 2
      %s260 = sadd.s32 %s258, %s259
      %s261 = smul.addr %s260, 4
      %s262 = scalar_lea.vmem %s1, %s261
      %p263 = pneg %p85
      %p264 = pneg %p82
      %s265 = smul.u32 2, %s21
      %p266 = scmp.lt.s32.totalorder %s265, 1
      %s267 = scalar_select %p266, %s265, 1
      %s268 = scalar_lea.vmem %s2, %s267
      %p269 = pneg %p111
      %p270 = pneg %p108
      %s271 = smul.u32 32, %s20
      %s272 = smul.u32 2, %s21
      %p273 = scmp.lt.s32.totalorder %s271, 63
      %s274 = scalar_select %p273, %s271, 63
      %p275 = scmp.lt.s32.totalorder %s272, 1
      %s276 = scalar_select %p275, %s272, 1
      %s277 = smul.addr %s274, 2
      %s278 = sadd.s32 %s276, %s277
      %s279 = smul.addr %s278, 4
      %s280 = scalar_lea.vmem %s3, %s279
      %p281 = pneg %p139
      %p282 = pneg %p136
      %p283 = pneg %p167
      %p284 = pneg %p164
      %s285 = smul.u32 32, %s20
      %s286 = smul.u32 2, %s21
      %p287 = scmp.lt.s32.totalorder %s285, 63
      %s288 = scalar_select %p287, %s285, 63
      %p289 = scmp.lt.s32.totalorder %s286, 1
      %s290 = scalar_select %p289, %s286, 1
      %s291 = smul.addr %s288, 2
      %s292 = sadd.s32 %s290, %s291
      %s293 = smul.addr %s292, 4
      %s294 = scalar_lea.vmem %s4, %s293
      %s295 = smul.u32 32, %s20
      %p296 = scmp.lt.s32.totalorder %s295, 63
      %s297 = scalar_select %p296, %s295, 63
      %p298 = scmp.lt.s32.totalorder %s22, 0
      %s299 = scalar_select %p298, %s22, 0
      %s300 = sadd.s32 %s299, %s297
      %s301 = smul.addr %s300, 4
      %s302 = scalar_lea.vmem %s0, %s301
      %s303 = smul.u32 32, %s20
      %s304 = smul.u32 8, %s22
      %s305 = smul.u32 2, %s21
      %p306 = scmp.lt.s32.totalorder %s304, 7
      %s307 = scalar_select %p306, %s304, 7
      %p308 = scmp.lt.s32.totalorder %s305, 1
      %s309 = scalar_select %p308, %s305, 1
      %s310 = smul.addr %s307, 2
      %s311 = sadd.s32 %s309, %s310
      %s312 = smul.addr %s311, 4
      %s313 = scalar_lea.vmem %s1, %s312
      %s314 = smul.u32 8, %s22
      %s315 = smul.u32 2, %s21
      %s316 = smul.u32 2, %s21
      %p317 = scmp.lt.s32.totalorder %s316, 1
      %s318 = scalar_select %p317, %s316, 1
      %s319 = scalar_lea.vmem %s2, %s318
      %s320 = smul.u32 2, %s21
      %s321 = smul.u32 32, %s20
      %s322 = smul.u32 2, %s21
      %p323 = scmp.lt.s32.totalorder %s321, 63
      %s324 = scalar_select %p323, %s321, 63
      %p325 = scmp.lt.s32.totalorder %s322, 1
      %s326 = scalar_select %p325, %s322, 1
      %s327 = smul.addr %s324, 2
      %s328 = sadd.s32 %s326, %s327
      %s329 = smul.addr %s328, 4
      %s330 = scalar_lea.vmem %s3, %s329
      %s331 = smul.u32 32, %s20
      %s332 = smul.u32 2, %s21
      %s333 = smul.u32 32, %s20
      %s334 = smul.u32 2, %s21
      %p335 = scmp.lt.s32.totalorder %s333, 63
      %s336 = scalar_select %p335, %s333, 63
      %p337 = scmp.lt.s32.totalorder %s334, 1
      %s338 = scalar_select %p337, %s334, 1
      %s339 = smul.addr %s336, 2
      %s340 = sadd.s32 %s338, %s339
      %s341 = smul.addr %s340, 4
      %s342 = scalar_lea.vmem %s4, %s341
      %s343 = smul.u32 32, %s20
      %s344 = smul.u32 2, %s21
      %p346 = scmp.eq.s32.totalorder %s22, 0
      // Predicated region
      $region37: #{_lambda_.10} parent=35 // pred_check
        %p347 = pneg %p346
      $region38: #{_lambda_.10} parent=35 // pred_check_branch
        %349 = sbr.rel (%p347) target = $region40
      $region39: #{_lambda_.10} parent=35 // pred_region
        %350 = vst [vmem:[#allocation2] sm:$0xff] 0.0
        %351 = vst [vmem:[#allocation2 + $0x8] sm:$0xff] 0.0
        %352 = vst [vmem:[#allocation2 + $0x10] sm:$0xff] 0.0
        %353 = vst [vmem:[#allocation2 + $0x18] sm:$0xff] 0.0
        %354 = vst [vmem:[#allocation2 + $0x20] sm:$0xff] 0.0
        %355 = vst [vmem:[#allocation2 + $0x28] sm:$0xff] 0.0
        %356 = vst [vmem:[#allocation2 + $0x30] sm:$0xff] 0.0
        %357 = vst [vmem:[#allocation2 + $0x38] sm:$0xff] 0.0
        %358 = vst [vmem:[#allocation2 + $0x40] sm:$0xff] 0.0
        %359 = vst [vmem:[#allocation2 + $0x48] sm:$0xff] 0.0
        %360 = vst [vmem:[#allocation2 + $0x50] sm:$0xff] 0.0
        %361 = vst [vmem:[#allocation2 + $0x58] sm:$0xff] 0.0
        %362 = vst [vmem:[#allocation2 + $0x60] sm:$0xff] 0.0
        %363 = vst [vmem:[#allocation2 + $0x68] sm:$0xff] 0.0
        %364 = vst [vmem:[#allocation2 + $0x70] sm:$0xff] 0.0
        %365 = vst [vmem:[#allocation2 + $0x78] sm:$0xff] 0.0
        %366 = vst [vmem:[#allocation2 + $0x80] sm:$0xff] 0.0
        %367 = vst [vmem:[#allocation2 + $0x88] sm:$0xff] 0.0
        %368 = vst [vmem:[#allocation2 + $0x90] sm:$0xff] 0.0
        %369 = vst [vmem:[#allocation2 + $0x98] sm:$0xff] 0.0
        %370 = vst [vmem:[#allocation2 + $0xa0] sm:$0xff] 0.0
        %371 = vst [vmem:[#allocation2 + $0xa8] sm:$0xff] 0.0
        %372 = vst [vmem:[#allocation2 + $0xb0] sm:$0xff] 0.0
        %373 = vst [vmem:[#allocation2 + $0xb8] sm:$0xff] 0.0
        %374 = vst [vmem:[#allocation2 + $0xc0] sm:$0xff] 0.0
        %375 = vst [vmem:[#allocation2 + $0xc8] sm:$0xff] 0.0
        %376 = vst [vmem:[#allocation2 + $0xd0] sm:$0xff] 0.0
        %377 = vst [vmem:[#allocation2 + $0xd8] sm:$0xff] 0.0
        %378 = vst [vmem:[#allocation2 + $0xe0] sm:$0xff] 0.0
        %379 = vst [vmem:[#allocation2 + $0xe8] sm:$0xff] 0.0
        %380 = vst [vmem:[#allocation2 + $0xf0] sm:$0xff] 0.0
        %381 = vst [vmem:[#allocation2 + $0xf8] sm:$0xff] 0.0
        %382 = vst [vmem:[#allocation2 + $0x100] sm:$0xff] 0.0
        %383 = vst [vmem:[#allocation2 + $0x108] sm:$0xff] 0.0
        %384 = vst [vmem:[#allocation2 + $0x110] sm:$0xff] 0.0
        %385 = vst [vmem:[#allocation2 + $0x118] sm:$0xff] 0.0
        %386 = vst [vmem:[#allocation2 + $0x120] sm:$0xff] 0.0
        %387 = vst [vmem:[#allocation2 + $0x128] sm:$0xff] 0.0
        %388 = vst [vmem:[#allocation2 + $0x130] sm:$0xff] 0.0
        %389 = vst [vmem:[#allocation2 + $0x138] sm:$0xff] 0.0
        %390 = vst [vmem:[#allocation2 + $0x140] sm:$0xff] 0.0
        %391 = vst [vmem:[#allocation2 + $0x148] sm:$0xff] 0.0
        %392 = vst [vmem:[#allocation2 + $0x150] sm:$0xff] 0.0
        %393 = vst [vmem:[#allocation2 + $0x158] sm:$0xff] 0.0
        %394 = vst [vmem:[#allocation2 + $0x160] sm:$0xff] 0.0
        %395 = vst [vmem:[#allocation2 + $0x168] sm:$0xff] 0.0
        %396 = vst [vmem:[#allocation2 + $0x170] sm:$0xff] 0.0
        %397 = vst [vmem:[#allocation2 + $0x178] sm:$0xff] 0.0
        %398 = vst [vmem:[#allocation2 + $0x180] sm:$0xff] 0.0
        %399 = vst [vmem:[#allocation2 + $0x188] sm:$0xff] 0.0
        %400 = vst [vmem:[#allocation2 + $0x190] sm:$0xff] 0.0
        %401 = vst [vmem:[#allocation2 + $0x198] sm:$0xff] 0.0
        %402 = vst [vmem:[#allocation2 + $0x1a0] sm:$0xff] 0.0
        %403 = vst [vmem:[#allocation2 + $0x1a8] sm:$0xff] 0.0
        %404 = vst [vmem:[#allocation2 + $0x1b0] sm:$0xff] 0.0
        %405 = vst [vmem:[#allocation2 + $0x1b8] sm:$0xff] 0.0
        %406 = vst [vmem:[#allocation2 + $0x1c0] sm:$0xff] 0.0
        %407 = vst [vmem:[#allocation2 + $0x1c8] sm:$0xff] 0.0
        %408 = vst [vmem:[#allocation2 + $0x1d0] sm:$0xff] 0.0
        %409 = vst [vmem:[#allocation2 + $0x1d8] sm:$0xff] 0.0
        %410 = vst [vmem:[#allocation2 + $0x1e0] sm:$0xff] 0.0
        %411 = vst [vmem:[#allocation2 + $0x1e8] sm:$0xff] 0.0
        %412 = vst [vmem:[#allocation2 + $0x1f0] sm:$0xff] 0.0
        %413 = vst [vmem:[#allocation2 + $0x1f8] sm:$0xff] 0.0
      $region40: #{_lambda_.10} parent=35 // pred_fallthru
        _
      %v414 = vld [vmem:[#allocation2] sm:$0xff]
      %v415 = vld [vmem:[#allocation2 + $0x8] sm:$0xff]
      %v416 = vld [vmem:[#allocation2 + $0x10] sm:$0xff]
      %v417 = vld [vmem:[#allocation2 + $0x18] sm:$0xff]
      %v418 = vld [vmem:[#allocation2 + $0x20] sm:$0xff]
      %v419 = vld [vmem:[#allocation2 + $0x28] sm:$0xff]
      %v420 = vld [vmem:[#allocation2 + $0x30] sm:$0xff]
      %v421 = vld [vmem:[#allocation2 + $0x38] sm:$0xff]
      %v422 = vld [vmem:[#allocation2 + $0x40] sm:$0xff]
      %v423 = vld [vmem:[#allocation2 + $0x48] sm:$0xff]
      %v424 = vld [vmem:[#allocation2 + $0x50] sm:$0xff]
      %v425 = vld [vmem:[#allocation2 + $0x58] sm:$0xff]
      %v426 = vld [vmem:[#allocation2 + $0x60] sm:$0xff]
      %v427 = vld [vmem:[#allocation2 + $0x68] sm:$0xff]
      %v428 = vld [vmem:[#allocation2 + $0x70] sm:$0xff]
      %v429 = vld [vmem:[#allocation2 + $0x78] sm:$0xff]
      %v430 = vld [vmem:[#allocation2 + $0x80] sm:$0xff]
      %v431 = vld [vmem:[#allocation2 + $0x88] sm:$0xff]
      %v432 = vld [vmem:[#allocation2 + $0x90] sm:$0xff]
      %v433 = vld [vmem:[#allocation2 + $0x98] sm:$0xff]
      %v434 = vld [vmem:[#allocation2 + $0xa0] sm:$0xff]
      %v435 = vld [vmem:[#allocation2 + $0xa8] sm:$0xff]
      %v436 = vld [vmem:[#allocation2 + $0xb0] sm:$0xff]
      %v437 = vld [vmem:[#allocation2 + $0xb8] sm:$0xff]
      %v438 = vld [vmem:[#allocation2 + $0xc0] sm:$0xff]
      %v439 = vld [vmem:[#allocation2 + $0xc8] sm:$0xff]
      %v440 = vld [vmem:[#allocation2 + $0xd0] sm:$0xff]
      %v441 = vld [vmem:[#allocation2 + $0xd8] sm:$0xff]
      %v442 = vld [vmem:[#allocation2 + $0xe0] sm:$0xff]
      %v443 = vld [vmem:[#allocation2 + $0xe8] sm:$0xff]
      %v444 = vld [vmem:[#allocation2 + $0xf0] sm:$0xff]
      %v445 = vld [vmem:[#allocation2 + $0xf8] sm:$0xff]
      %v446 = vld [vmem:[#allocation2 + $0x100] sm:$0xff]
      %v447 = vld [vmem:[#allocation2 + $0x108] sm:$0xff]
      %v448 = vld [vmem:[#allocation2 + $0x110] sm:$0xff]
      %v449 = vld [vmem:[#allocation2 + $0x118] sm:$0xff]
      %v450 = vld [vmem:[#allocation2 + $0x120] sm:$0xff]
      %v451 = vld [vmem:[#allocation2 + $0x128] sm:$0xff]
      %v452 = vld [vmem:[#allocation2 + $0x130] sm:$0xff]
      %v453 = vld [vmem:[#allocation2 + $0x138] sm:$0xff]
      %v454 = vld [vmem:[#allocation2 + $0x140] sm:$0xff]
      %v455 = vld [vmem:[#allocation2 + $0x148] sm:$0xff]
      %v456 = vld [vmem:[#allocation2 + $0x150] sm:$0xff]
      %v457 = vld [vmem:[#allocation2 + $0x158] sm:$0xff]
      %v458 = vld [vmem:[#allocation2 + $0x160] sm:$0xff]
      %v459 = vld [vmem:[#allocation2 + $0x168] sm:$0xff]
      %v460 = vld [vmem:[#allocation2 + $0x170] sm:$0xff]
      %v461 = vld [vmem:[#allocation2 + $0x178] sm:$0xff]
      %v462 = vld [vmem:[#allocation2 + $0x180] sm:$0xff]
      %v463 = vld [vmem:[#allocation2 + $0x188] sm:$0xff]
      %v464 = vld [vmem:[#allocation2 + $0x190] sm:$0xff]
      %v465 = vld [vmem:[#allocation2 + $0x198] sm:$0xff]
      %v466 = vld [vmem:[#allocation2 + $0x1a0] sm:$0xff]
      %v467 = vld [vmem:[#allocation2 + $0x1a8] sm:$0xff]
      %v468 = vld [vmem:[#allocation2 + $0x1b0] sm:$0xff]
      %v469 = vld [vmem:[#allocation2 + $0x1b8] sm:$0xff]
      %v470 = vld [vmem:[#allocation2 + $0x1c0] sm:$0xff]
      %v471 = vld [vmem:[#allocation2 + $0x1c8] sm:$0xff]
      %v472 = vld [vmem:[#allocation2 + $0x1d0] sm:$0xff]
      %v473 = vld [vmem:[#allocation2 + $0x1d8] sm:$0xff]
      %v474 = vld [vmem:[#allocation2 + $0x1e0] sm:$0xff]
      %v475 = vld [vmem:[#allocation2 + $0x1e8] sm:$0xff]
      %v476 = vld [vmem:[#allocation2 + $0x1f0] sm:$0xff]
      %v477 = vld [vmem:[#allocation2 + $0x1f8] sm:$0xff]
      %v478 = vld [vmem:[%s302] sm:$0xf]
      %v479 = vld [vmem:[%s302 + $0x4] sm:$0xf]
      %v480 = vld [vmem:[%s302 + $0x8] sm:$0xf]
      %v481 = vld [vmem:[%s302 + $0xc] sm:$0xf]
      %v482 = vld [vmem:[%s302 + $0x10] sm:$0xf]
      %v483 = vld [vmem:[%s302 + $0x14] sm:$0xf]
      %v484 = vld [vmem:[%s302 + $0x18] sm:$0xf]
      %v485 = vld [vmem:[%s302 + $0x1c] sm:$0xf]
      %v486 = vld [vmem:[%s302 + $0x20] sm:$0xf]
      %v487 = vld [vmem:[%s302 + $0x24] sm:$0xf]
      %v488 = vld [vmem:[%s302 + $0x28] sm:$0xf]
      %v489 = vld [vmem:[%s302 + $0x2c] sm:$0xf]
      %v490 = vld [vmem:[%s302 + $0x30] sm:$0xf]
      %v491 = vld [vmem:[%s302 + $0x34] sm:$0xf]
      %v492 = vld [vmem:[%s302 + $0x38] sm:$0xf]
      %v493 = vld [vmem:[%s302 + $0x3c] sm:$0xf]
      %v494 = vld [vmem:[%s302 + $0x40] sm:$0xf]
      %v495 = vld [vmem:[%s302 + $0x44] sm:$0xf]
      %v496 = vld [vmem:[%s302 + $0x48] sm:$0xf]
      %v497 = vld [vmem:[%s302 + $0x4c] sm:$0xf]
      %v498 = vld [vmem:[%s302 + $0x50] sm:$0xf]
      %v499 = vld [vmem:[%s302 + $0x54] sm:$0xf]
      %v500 = vld [vmem:[%s302 + $0x58] sm:$0xf]
      %v501 = vld [vmem:[%s302 + $0x5c] sm:$0xf]
      %v502 = vld [vmem:[%s302 + $0x60] sm:$0xf]
      %v503 = vld [vmem:[%s302 + $0x64] sm:$0xf]
      %v504 = vld [vmem:[%s302 + $0x68] sm:$0xf]
      %v505 = vld [vmem:[%s302 + $0x6c] sm:$0xf]
      %v506 = vld [vmem:[%s302 + $0x70] sm:$0xf]
      %v507 = vld [vmem:[%s302 + $0x74] sm:$0xf]
      %v508 = vld [vmem:[%s302 + $0x78] sm:$0xf]
      %v509 = vld [vmem:[%s302 + $0x7c] sm:$0xf]
      %v510 = vld [vmem:[%s313] sm:$0xff]
      %v511 = vld [vmem:[%s313 + $0x8] sm:$0xff]
      %v512 = vld [vmem:[%s313 + $0x10] sm:$0xff]
      %v513 = vld [vmem:[%s313 + $0x18] sm:$0xff]
      %v514 = vld [vmem:[%s313 + $0x20] sm:$0xff]
      %v515 = vld [vmem:[%s313 + $0x28] sm:$0xff]
      %v516 = vld [vmem:[%s313 + $0x30] sm:$0xff]
      %v517 = vld [vmem:[%s313 + $0x38] sm:$0xff]
      %v550 = vunpack.c.l.b16 %v478
      %v551 = vunpack.c.l.b16 %v479
      %v552 = vunpack.c.l.b16 %v480
      %v553 = vunpack.c.l.b16 %v481
      %v554 = vunpack.c.l.b16 %v482
      %v555 = vunpack.c.l.b16 %v483
      %v556 = vunpack.c.l.b16 %v484
      %v557 = vunpack.c.l.b16 %v485
      %v558 = vunpack.c.l.b16 %v486
      %v559 = vunpack.c.l.b16 %v487
      %v560 = vunpack.c.l.b16 %v488
      %v561 = vunpack.c.l.b16 %v489
      %v562 = vunpack.c.l.b16 %v490
      %v563 = vunpack.c.l.b16 %v491
      %v564 = vunpack.c.l.b16 %v492
      %v565 = vunpack.c.l.b16 %v493
      %v566 = vunpack.c.l.b16 %v494
      %v567 = vunpack.c.l.b16 %v495
      %v568 = vunpack.c.l.b16 %v496
      %v569 = vunpack.c.l.b16 %v497
      %v570 = vunpack.c.l.b16 %v498
      %v571 = vunpack.c.l.b16 %v499
      %v572 = vunpack.c.l.b16 %v500
      %v573 = vunpack.c.l.b16 %v501
      %v574 = vunpack.c.l.b16 %v502
      %v575 = vunpack.c.l.b16 %v503
      %v576 = vunpack.c.l.b16 %v504
      %v577 = vunpack.c.l.b16 %v505
      %v578 = vunpack.c.l.b16 %v506
      %v579 = vunpack.c.l.b16 %v507
      %v580 = vunpack.c.l.b16 %v508
      %v581 = vunpack.c.l.b16 %v509
      %v582 = vpack.c.b16 %v551, %v550
      %v583 = vpack.c.b16 %v553, %v552
      %v584 = vpack.c.b16 %v555, %v554
      %v585 = vpack.c.b16 %v557, %v556
      %v586 = vpack.c.b16 %v559, %v558
      %v587 = vpack.c.b16 %v561, %v560
      %v588 = vpack.c.b16 %v563, %v562
      %v589 = vpack.c.b16 %v565, %v564
      %v590 = vpack.c.b16 %v567, %v566
      %v591 = vpack.c.b16 %v569, %v568
      %v592 = vpack.c.b16 %v571, %v570
      %v593 = vpack.c.b16 %v573, %v572
      %v594 = vpack.c.b16 %v575, %v574
      %v595 = vpack.c.b16 %v577, %v576
      %v596 = vpack.c.b16 %v579, %v578
      %v597 = vpack.c.b16 %v581, %v580
      %v606 = vunpack.c.l.b16 %v510
      %v607 = vunpack.c.h.b16 %v510
      %v608 = vunpack.c.l.b16 %v511
      %v609 = vunpack.c.h.b16 %v511
      %v610 = vunpack.c.l.b16 %v512
      %v611 = vunpack.c.h.b16 %v512
      %v612 = vunpack.c.l.b16 %v513
      %v613 = vunpack.c.h.b16 %v513
      %v614 = vunpack.c.l.b16 %v514
      %v615 = vunpack.c.h.b16 %v514
      %v616 = vunpack.c.l.b16 %v515
      %v617 = vunpack.c.h.b16 %v515
      %v618 = vunpack.c.l.b16 %v516
      %v619 = vunpack.c.h.b16 %v516
      %v620 = vunpack.c.l.b16 %v517
      %v621 = vunpack.c.h.b16 %v517
      %v622 = vpack.c.b16 %v608, %v606
      %v623 = vpack.c.b16 %v609, %v607
      %v624 = vpack.c.b16 %v612, %v610
      %v625 = vpack.c.b16 %v613, %v611
      %v626 = vpack.c.b16 %v616, %v614
      %v627 = vpack.c.b16 %v617, %v615
      %v628 = vpack.c.b16 %v620, %v618
      %v629 = vpack.c.b16 %v621, %v619
      %vm638 = vcmask 523264
      %v640 = vsel %vm638, %v582, 0
      %v643 = vsel %vm638, %v583, 0
      %v646 = vsel %vm638, %v584, 0
      %v649 = vsel %vm638, %v585, 0
      %v652 = vsel %vm638, %v586, 0
      %v655 = vsel %vm638, %v587, 0
      %v658 = vsel %vm638, %v588, 0
      %v661 = vsel %vm638, %v589, 0
      %v664 = vsel %vm638, %v590, 0
      %v667 = vsel %vm638, %v591, 0
      %v670 = vsel %vm638, %v592, 0
      %v673 = vsel %vm638, %v593, 0
      %v676 = vsel %vm638, %v594, 0
      %v679 = vsel %vm638, %v595, 0
      %v682 = vsel %vm638, %v596, 0
      %v685 = vsel %vm638, %v597, 0
      %687 = vmatpush.bf16.msra.mxu0 0
      %688 = vmatpush.bf16.msra.mxu0 0
      %689 = vmatpush.bf16.msra.mxu0 0
      %690 = vmatpush.bf16.msra.mxu0 0
      %691 = vmatpush.bf16.msra.mxu0 %v628
      %692 = vmatpush.bf16.msra.mxu0 %v626
      %693 = vmatpush.bf16.msra.mxu0 %v624
      %694 = vmatpush.bf16.msra.mxu0 %v622
      %695 = vmatmul.bf16.gmra.mxu0 %v640
      %v696 = vpop.f32.mrf.mxu0
      %v697 = vadd.f32 0.0, %v696
      %v698 = vpop.f32.mrf.mxu0
      %v699 = vadd.f32 0.0, %v698
      %700 = vmatmul.bf16.gmra.mxu0 %v643
      %v701 = vpop.f32.mrf.mxu0
      %v702 = vadd.f32 0.0, %v701
      %v703 = vpop.f32.mrf.mxu0
      %v704 = vadd.f32 0.0, %v703
      %705 = vmatmul.bf16.gmra.mxu0 %v646
      %v706 = vpop.f32.mrf.mxu0
      %v707 = vadd.f32 0.0, %v706
      %v708 = vpop.f32.mrf.mxu0
      %v709 = vadd.f32 0.0, %v708
      %710 = vmatmul.bf16.gmra.mxu0 %v649
      %v711 = vpop.f32.mrf.mxu0
      %v712 = vadd.f32 0.0, %v711
      %v713 = vpop.f32.mrf.mxu0
      %v714 = vadd.f32 0.0, %v713
      %715 = vmatmul.bf16.gmra.mxu0 %v652
      %v716 = vpop.f32.mrf.mxu0
      %v717 = vadd.f32 0.0, %v716
      %v718 = vpop.f32.mrf.mxu0
      %v719 = vadd.f32 0.0, %v718
      %720 = vmatmul.bf16.gmra.mxu0 %v655
      %v721 = vpop.f32.mrf.mxu0
      %v722 = vadd.f32 0.0, %v721
      %v723 = vpop.f32.mrf.mxu0
      %v724 = vadd.f32 0.0, %v723
      %725 = vmatmul.bf16.gmra.mxu0 %v658
      %v726 = vpop.f32.mrf.mxu0
      %v727 = vadd.f32 0.0, %v726
      %v728 = vpop.f32.mrf.mxu0
      %v729 = vadd.f32 0.0, %v728
      %730 = vmatmul.bf16.gmra.mxu0 %v661
      %v731 = vpop.f32.mrf.mxu0
      %v732 = vadd.f32 0.0, %v731
      %v733 = vpop.f32.mrf.mxu0
      %v734 = vadd.f32 0.0, %v733
      %735 = vmatmul.bf16.gmra.mxu0 %v664
      %v736 = vpop.f32.mrf.mxu0
      %v737 = vadd.f32 0.0, %v736
      %v738 = vpop.f32.mrf.mxu0
      %v739 = vadd.f32 0.0, %v738
      %740 = vmatmul.bf16.gmra.mxu0 %v667
      %v741 = vpop.f32.mrf.mxu0
      %v742 = vadd.f32 0.0, %v741
      %v743 = vpop.f32.mrf.mxu0
      %v744 = vadd.f32 0.0, %v743
      %745 = vmatmul.bf16.gmra.mxu0 %v670
      %v746 = vpop.f32.mrf.mxu0
      %v747 = vadd.f32 0.0, %v746
      %v748 = vpop.f32.mrf.mxu0
      %v749 = vadd.f32 0.0, %v748
      %750 = vmatmul.bf16.gmra.mxu0 %v673
      %v751 = vpop.f32.mrf.mxu0
      %v752 = vadd.f32 0.0, %v751
      %v753 = vpop.f32.mrf.mxu0
      %v754 = vadd.f32 0.0, %v753
      %755 = vmatmul.bf16.gmra.mxu0 %v676
      %v756 = vpop.f32.mrf.mxu0
      %v757 = vadd.f32 0.0, %v756
      %v758 = vpop.f32.mrf.mxu0
      %v759 = vadd.f32 0.0, %v758
      %760 = vmatmul.bf16.gmra.mxu0 %v679
      %v761 = vpop.f32.mrf.mxu0
      %v762 = vadd.f32 0.0, %v761
      %v763 = vpop.f32.mrf.mxu0
      %v764 = vadd.f32 0.0, %v763
      %765 = vmatmul.bf16.gmra.mxu0 %v682
      %v766 = vpop.f32.mrf.mxu0
      %v767 = vadd.f32 0.0, %v766
      %v768 = vpop.f32.mrf.mxu0
      %v769 = vadd.f32 0.0, %v768
      %770 = vmatmul.bf16.gmra.mxu0 %v685
      %v771 = vpop.f32.mrf.mxu0
      %v772 = vadd.f32 0.0, %v771
      %v773 = vpop.f32.mrf.mxu0
      %v774 = vadd.f32 0.0, %v773
      %775 = vdwg.mxu0
      %776 = vmatpush.bf16.msra.mxu0 0
      %777 = vmatpush.bf16.msra.mxu0 0
      %778 = vmatpush.bf16.msra.mxu0 0
      %779 = vmatpush.bf16.msra.mxu0 0
      %780 = vmatpush.bf16.msra.mxu0 %v629
      %781 = vmatpush.bf16.msra.mxu0 %v627
      %782 = vmatpush.bf16.msra.mxu0 %v625
      %783 = vmatpush.bf16.msra.mxu0 %v623
      %784 = vmatmul.bf16.gmra.mxu0 %v640
      %v785 = vpop.f32.mrf.mxu0
      %v786 = vadd.f32 0.0, %v785
      %v787 = vpop.f32.mrf.mxu0
      %v788 = vadd.f32 0.0, %v787
      %789 = vmatmul.bf16.gmra.mxu0 %v643
      %v790 = vpop.f32.mrf.mxu0
      %v791 = vadd.f32 0.0, %v790
      %v792 = vpop.f32.mrf.mxu0
      %v793 = vadd.f32 0.0, %v792
      %794 = vmatmul.bf16.gmra.mxu0 %v646
      %v795 = vpop.f32.mrf.mxu0
      %v796 = vadd.f32 0.0, %v795
      %v797 = vpop.f32.mrf.mxu0
      %v798 = vadd.f32 0.0, %v797
      %799 = vmatmul.bf16.gmra.mxu0 %v649
      %v800 = vpop.f32.mrf.mxu0
      %v801 = vadd.f32 0.0, %v800
      %v802 = vpop.f32.mrf.mxu0
      %v803 = vadd.f32 0.0, %v802
      %804 = vmatmul.bf16.gmra.mxu0 %v652
      %v805 = vpop.f32.mrf.mxu0
      %v806 = vadd.f32 0.0, %v805
      %v807 = vpop.f32.mrf.mxu0
      %v808 = vadd.f32 0.0, %v807
      %809 = vmatmul.bf16.gmra.mxu0 %v655
      %v810 = vpop.f32.mrf.mxu0
      %v811 = vadd.f32 0.0, %v810
      %v812 = vpop.f32.mrf.mxu0
      %v813 = vadd.f32 0.0, %v812
      %814 = vmatmul.bf16.gmra.mxu0 %v658
      %v815 = vpop.f32.mrf.mxu0
      %v816 = vadd.f32 0.0, %v815
      %v817 = vpop.f32.mrf.mxu0
      %v818 = vadd.f32 0.0, %v817
      %819 = vmatmul.bf16.gmra.mxu0 %v661
      %v820 = vpop.f32.mrf.mxu0
      %v821 = vadd.f32 0.0, %v820
      %v822 = vpop.f32.mrf.mxu0
      %v823 = vadd.f32 0.0, %v822
      %824 = vmatmul.bf16.gmra.mxu0 %v664
      %v825 = vpop.f32.mrf.mxu0
      %v826 = vadd.f32 0.0, %v825
      %v827 = vpop.f32.mrf.mxu0
      %v828 = vadd.f32 0.0, %v827
      %829 = vmatmul.bf16.gmra.mxu0 %v667
      %v830 = vpop.f32.mrf.mxu0
      %v831 = vadd.f32 0.0, %v830
      %v832 = vpop.f32.mrf.mxu0
      %v833 = vadd.f32 0.0, %v832
      %834 = vmatmul.bf16.gmra.mxu0 %v670
      %v835 = vpop.f32.mrf.mxu0
      %v836 = vadd.f32 0.0, %v835
      %v837 = vpop.f32.mrf.mxu0
      %v838 = vadd.f32 0.0, %v837
      %839 = vmatmul.bf16.gmra.mxu0 %v673
      %v840 = vpop.f32.mrf.mxu0
      %v841 = vadd.f32 0.0, %v840
      %v842 = vpop.f32.mrf.mxu0
      %v843 = vadd.f32 0.0, %v842
      %844 = vmatmul.bf16.gmra.mxu0 %v676
      %v845 = vpop.f32.mrf.mxu0
      %v846 = vadd.f32 0.0, %v845
      %v847 = vpop.f32.mrf.mxu0
      %v848 = vadd.f32 0.0, %v847
      %849 = vmatmul.bf16.gmra.mxu0 %v679
      %v850 = vpop.f32.mrf.mxu0
      %v851 = vadd.f32 0.0, %v850
      %v852 = vpop.f32.mrf.mxu0
      %v853 = vadd.f32 0.0, %v852
      %854 = vmatmul.bf16.gmra.mxu0 %v682
      %v855 = vpop.f32.mrf.mxu0
      %v856 = vadd.f32 0.0, %v855
      %v857 = vpop.f32.mrf.mxu0
      %v858 = vadd.f32 0.0, %v857
      %859 = vmatmul.bf16.gmra.mxu0 %v685
      %v860 = vpop.f32.mrf.mxu0
      %v861 = vadd.f32 0.0, %v860
      %v862 = vpop.f32.mrf.mxu0
      %v863 = vadd.f32 0.0, %v862
      %864 = vdwg.mxu0
      %v865 = vadd.f32 %v414, %v697
      %v866 = vadd.f32 %v415, %v786
      %v867 = vadd.f32 %v416, %v699
      %v868 = vadd.f32 %v417, %v788
      %v869 = vadd.f32 %v418, %v702
      %v870 = vadd.f32 %v419, %v791
      %v871 = vadd.f32 %v420, %v704
      %v872 = vadd.f32 %v421, %v793
      %v873 = vadd.f32 %v422, %v707
      %v874 = vadd.f32 %v423, %v796
      %v875 = vadd.f32 %v424, %v709
      %v876 = vadd.f32 %v425, %v798
      %v877 = vadd.f32 %v426, %v712
      %v878 = vadd.f32 %v427, %v801
      %v879 = vadd.f32 %v428, %v714
      %v880 = vadd.f32 %v429, %v803
      %v881 = vadd.f32 %v430, %v717
      %v882 = vadd.f32 %v431, %v806
      %v883 = vadd.f32 %v432, %v719
      %v884 = vadd.f32 %v433, %v808
      %v885 = vadd.f32 %v434, %v722
      %v886 = vadd.f32 %v435, %v811
      %v887 = vadd.f32 %v436, %v724
      %v888 = vadd.f32 %v437, %v813
      %v889 = vadd.f32 %v438, %v727
      %v890 = vadd.f32 %v439, %v816
      %v891 = vadd.f32 %v440, %v729
      %v892 = vadd.f32 %v441, %v818
      %v893 = vadd.f32 %v442, %v732
      %v894 = vadd.f32 %v443, %v821
      %v895 = vadd.f32 %v444, %v734
      %v896 = vadd.f32 %v445, %v823
      %v897 = vadd.f32 %v446, %v737
      %v898 = vadd.f32 %v447, %v826
      %v899 = vadd.f32 %v448, %v739
      %v900 = vadd.f32 %v449, %v828
      %v901 = vadd.f32 %v450, %v742
      %v902 = vadd.f32 %v451, %v831
      %v903 = vadd.f32 %v452, %v744
      %v904 = vadd.f32 %v453, %v833
      %v905 = vadd.f32 %v454, %v747
      %v906 = vadd.f32 %v455, %v836
      %v907 = vadd.f32 %v456, %v749
      %v908 = vadd.f32 %v457, %v838
      %v909 = vadd.f32 %v458, %v752
      %v910 = vadd.f32 %v459, %v841
      %v911 = vadd.f32 %v460, %v754
      %v912 = vadd.f32 %v461, %v843
      %v913 = vadd.f32 %v462, %v757
      %v914 = vadd.f32 %v463, %v846
      %v915 = vadd.f32 %v464, %v759
      %v916 = vadd.f32 %v465, %v848
      %v917 = vadd.f32 %v466, %v762
      %v918 = vadd.f32 %v467, %v851
      %v919 = vadd.f32 %v468, %v764
      %v920 = vadd.f32 %v469, %v853
      %v921 = vadd.f32 %v470, %v767
      %v922 = vadd.f32 %v471, %v856
      %v923 = vadd.f32 %v472, %v769
      %v924 = vadd.f32 %v473, %v858
      %v925 = vadd.f32 %v474, %v772
      %v926 = vadd.f32 %v475, %v861
      %v927 = vadd.f32 %v476, %v774
      %v928 = vadd.f32 %v477, %v863
      %929 = vst [vmem:[#allocation2] sm:$0xff] %v865
      %930 = vst [vmem:[#allocation2 + $0x8] sm:$0xff] %v866
      %931 = vst [vmem:[#allocation2 + $0x10] sm:$0xff] %v867
      %932 = vst [vmem:[#allocation2 + $0x18] sm:$0xff] %v868
      %933 = vst [vmem:[#allocation2 + $0x20] sm:$0xff] %v869
      %934 = vst [vmem:[#allocation2 + $0x28] sm:$0xff] %v870
      %935 = vst [vmem:[#allocation2 + $0x30] sm:$0xff] %v871
      %936 = vst [vmem:[#allocation2 + $0x38] sm:$0xff] %v872
      %937 = vst [vmem:[#allocation2 + $0x40] sm:$0xff] %v873
      %938 = vst [vmem:[#allocation2 + $0x48] sm:$0xff] %v874
      %939 = vst [vmem:[#allocation2 + $0x50] sm:$0xff] %v875
      %940 = vst [vmem:[#allocation2 + $0x58] sm:$0xff] %v876
      %941 = vst [vmem:[#allocation2 + $0x60] sm:$0xff] %v877
      %942 = vst [vmem:[#allocation2 + $0x68] sm:$0xff] %v878
      %943 = vst [vmem:[#allocation2 + $0x70] sm:$0xff] %v879
      %944 = vst [vmem:[#allocation2 + $0x78] sm:$0xff] %v880
      %945 = vst [vmem:[#allocation2 + $0x80] sm:$0xff] %v881
      %946 = vst [vmem:[#allocation2 + $0x88] sm:$0xff] %v882
      %947 = vst [vmem:[#allocation2 + $0x90] sm:$0xff] %v883
      %948 = vst [vmem:[#allocation2 + $0x98] sm:$0xff] %v884
      %949 = vst [vmem:[#allocation2 + $0xa0] sm:$0xff] %v885
      %950 = vst [vmem:[#allocation2 + $0xa8] sm:$0xff] %v886
      %951 = vst [vmem:[#allocation2 + $0xb0] sm:$0xff] %v887
      %952 = vst [vmem:[#allocation2 + $0xb8] sm:$0xff] %v888
      %953 = vst [vmem:[#allocation2 + $0xc0] sm:$0xff] %v889
      %954 = vst [vmem:[#allocation2 + $0xc8] sm:$0xff] %v890
      %955 = vst [vmem:[#allocation2 + $0xd0] sm:$0xff] %v891
      %956 = vst [vmem:[#allocation2 + $0xd8] sm:$0xff] %v892
      %957 = vst [vmem:[#allocation2 + $0xe0] sm:$0xff] %v893
      %958 = vst [vmem:[#allocation2 + $0xe8] sm:$0xff] %v894
      %959 = vst [vmem:[#allocation2 + $0xf0] sm:$0xff] %v895
      %960 = vst [vmem:[#allocation2 + $0xf8] sm:$0xff] %v896
      %961 = vst [vmem:[#allocation2 + $0x100] sm:$0xff] %v897
      %962 = vst [vmem:[#allocation2 + $0x108] sm:$0xff] %v898
      %963 = vst [vmem:[#allocation2 + $0x110] sm:$0xff] %v899
      %964 = vst [vmem:[#allocation2 + $0x118] sm:$0xff] %v900
      %965 = vst [vmem:[#allocation2 + $0x120] sm:$0xff] %v901
      %966 = vst [vmem:[#allocation2 + $0x128] sm:$0xff] %v902
      %967 = vst [vmem:[#allocation2 + $0x130] sm:$0xff] %v903
      %968 = vst [vmem:[#allocation2 + $0x138] sm:$0xff] %v904
      %969 = vst [vmem:[#allocation2 + $0x140] sm:$0xff] %v905
      %970 = vst [vmem:[#allocation2 + $0x148] sm:$0xff] %v906
      %971 = vst [vmem:[#allocation2 + $0x150] sm:$0xff] %v907
      %972 = vst [vmem:[#allocation2 + $0x158] sm:$0xff] %v908
      %973 = vst [vmem:[#allocation2 + $0x160] sm:$0xff] %v909
      %974 = vst [vmem:[#allocation2 + $0x168] sm:$0xff] %v910
      %975 = vst [vmem:[#allocation2 + $0x170] sm:$0xff] %v911
      %976 = vst [vmem:[#allocation2 + $0x178] sm:$0xff] %v912
      %977 = vst [vmem:[#allocation2 + $0x180] sm:$0xff] %v913
      %978 = vst [vmem:[#allocation2 + $0x188] sm:$0xff] %v914
      %979 = vst [vmem:[#allocation2 + $0x190] sm:$0xff] %v915
      %980 = vst [vmem:[#allocation2 + $0x198] sm:$0xff] %v916
      %981 = vst [vmem:[#allocation2 + $0x1a0] sm:$0xff] %v917
      %982 = vst [vmem:[#allocation2 + $0x1a8] sm:$0xff] %v918
      %983 = vst [vmem:[#allocation2 + $0x1b0] sm:$0xff] %v919
      %984 = vst [vmem:[#allocation2 + $0x1b8] sm:$0xff] %v920
      %985 = vst [vmem:[#allocation2 + $0x1c0] sm:$0xff] %v921
      %986 = vst [vmem:[#allocation2 + $0x1c8] sm:$0xff] %v922
      %987 = vst [vmem:[#allocation2 + $0x1d0] sm:$0xff] %v923
      %988 = vst [vmem:[#allocation2 + $0x1d8] sm:$0xff] %v924
      %989 = vst [vmem:[#allocation2 + $0x1e0] sm:$0xff] %v925
      %990 = vst [vmem:[#allocation2 + $0x1e8] sm:$0xff] %v926
      %991 = vst [vmem:[#allocation2 + $0x1f0] sm:$0xff] %v927
      %992 = vst [vmem:[#allocation2 + $0x1f8] sm:$0xff] %v928
      // Predicated region
      $region41: #{_lambda_.10} parent=35 // pred_check
        %p993 = pneg %p346
      $region42: #{_lambda_.10} parent=35 // pred_check_branch
        %995 = sbr.rel (%p993) target = $region44
      $region43: #{_lambda_.10} parent=35 // pred_region
        %v996 = vld [vmem:[#allocation2] sm:$0xff]
        %v997 = vld [vmem:[#allocation2 + $0x8] sm:$0xff]
        %v998 = vld [vmem:[#allocation2 + $0x10] sm:$0xff]
        %v999 = vld [vmem:[#allocation2 + $0x18] sm:$0xff]
        %v1000 = vld [vmem:[#allocation2 + $0x20] sm:$0xff]
        %v1001 = vld [vmem:[#allocation2 + $0x28] sm:$0xff]
        %v1002 = vld [vmem:[#allocation2 + $0x30] sm:$0xff]
        %v1003 = vld [vmem:[#allocation2 + $0x38] sm:$0xff]
        %v1004 = vld [vmem:[#allocation2 + $0x40] sm:$0xff]
        %v1005 = vld [vmem:[#allocation2 + $0x48] sm:$0xff]
        %v1006 = vld [vmem:[#allocation2 + $0x50] sm:$0xff]
        %v1007 = vld [vmem:[#allocation2 + $0x58] sm:$0xff]
        %v1008 = vld [vmem:[#allocation2 + $0x60] sm:$0xff]
        %v1009 = vld [vmem:[#allocation2 + $0x68] sm:$0xff]
        %v1010 = vld [vmem:[#allocation2 + $0x70] sm:$0xff]
        %v1011 = vld [vmem:[#allocation2 + $0x78] sm:$0xff]
        %v1012 = vld [vmem:[#allocation2 + $0x80] sm:$0xff]
        %v1013 = vld [vmem:[#allocation2 + $0x88] sm:$0xff]
        %v1014 = vld [vmem:[#allocation2 + $0x90] sm:$0xff]
        %v1015 = vld [vmem:[#allocation2 + $0x98] sm:$0xff]
        %v1016 = vld [vmem:[#allocation2 + $0xa0] sm:$0xff]
        %v1017 = vld [vmem:[#allocation2 + $0xa8] sm:$0xff]
        %v1018 = vld [vmem:[#allocation2 + $0xb0] sm:$0xff]
        %v1019 = vld [vmem:[#allocation2 + $0xb8] sm:$0xff]
        %v1020 = vld [vmem:[#allocation2 + $0xc0] sm:$0xff]
        %v1021 = vld [vmem:[#allocation2 + $0xc8] sm:$0xff]
        %v1022 = vld [vmem:[#allocation2 + $0xd0] sm:$0xff]
        %v1023 = vld [vmem:[#allocation2 + $0xd8] sm:$0xff]
        %v1024 = vld [vmem:[#allocation2 + $0xe0] sm:$0xff]
        %v1025 = vld [vmem:[#allocation2 + $0xe8] sm:$0xff]
        %v1026 = vld [vmem:[#allocation2 + $0xf0] sm:$0xff]
        %v1027 = vld [vmem:[#allocation2 + $0xf8] sm:$0xff]
        %v1028 = vld [vmem:[#allocation2 + $0x100] sm:$0xff]
        %v1029 = vld [vmem:[#allocation2 + $0x108] sm:$0xff]
        %v1030 = vld [vmem:[#allocation2 + $0x110] sm:$0xff]
        %v1031 = vld [vmem:[#allocation2 + $0x118] sm:$0xff]
        %v1032 = vld [vmem:[#allocation2 + $0x120] sm:$0xff]
        %v1033 = vld [vmem:[#allocation2 + $0x128] sm:$0xff]
        %v1034 = vld [vmem:[#allocation2 + $0x130] sm:$0xff]
        %v1035 = vld [vmem:[#allocation2 + $0x138] sm:$0xff]
        %v1036 = vld [vmem:[#allocation2 + $0x140] sm:$0xff]
        %v1037 = vld [vmem:[#allocation2 + $0x148] sm:$0xff]
        %v1038 = vld [vmem:[#allocation2 + $0x150] sm:$0xff]
        %v1039 = vld [vmem:[#allocation2 + $0x158] sm:$0xff]
        %v1040 = vld [vmem:[#allocation2 + $0x160] sm:$0xff]
        %v1041 = vld [vmem:[#allocation2 + $0x168] sm:$0xff]
        %v1042 = vld [vmem:[#allocation2 + $0x170] sm:$0xff]
        %v1043 = vld [vmem:[#allocation2 + $0x178] sm:$0xff]
        %v1044 = vld [vmem:[#allocation2 + $0x180] sm:$0xff]
        %v1045 = vld [vmem:[#allocation2 + $0x188] sm:$0xff]
        %v1046 = vld [vmem:[#allocation2 + $0x190] sm:$0xff]
        %v1047 = vld [vmem:[#allocation2 + $0x198] sm:$0xff]
        %v1048 = vld [vmem:[#allocation2 + $0x1a0] sm:$0xff]
        %v1049 = vld [vmem:[#allocation2 + $0x1a8] sm:$0xff]
        %v1050 = vld [vmem:[#allocation2 + $0x1b0] sm:$0xff]
        %v1051 = vld [vmem:[#allocation2 + $0x1b8] sm:$0xff]
        %v1052 = vld [vmem:[#allocation2 + $0x1c0] sm:$0xff]
        %v1053 = vld [vmem:[#allocation2 + $0x1c8] sm:$0xff]
        %v1054 = vld [vmem:[#allocation2 + $0x1d0] sm:$0xff]
        %v1055 = vld [vmem:[#allocation2 + $0x1d8] sm:$0xff]
        %v1056 = vld [vmem:[#allocation2 + $0x1e0] sm:$0xff]
        %v1057 = vld [vmem:[#allocation2 + $0x1e8] sm:$0xff]
        %v1058 = vld [vmem:[#allocation2 + $0x1f0] sm:$0xff]
        %v1059 = vld [vmem:[#allocation2 + $0x1f8] sm:$0xff]
        %v1060 = vld [vmem:[%s319] sm:$0x3]
        %v1062 = vperm.slane %v1060, 0
        %v1063 = vperm.slane %v1060, 1
        %v1066 = vadd.f32 %v996, %v1062
        %v1067 = vadd.f32 %v997, %v1063
        %v1068 = vadd.f32 %v998, %v1062
        %v1069 = vadd.f32 %v999, %v1063
        %v1070 = vadd.f32 %v1000, %v1062
        %v1071 = vadd.f32 %v1001, %v1063
        %v1072 = vadd.f32 %v1002, %v1062
        %v1073 = vadd.f32 %v1003, %v1063
        %v1074 = vadd.f32 %v1004, %v1062
        %v1075 = vadd.f32 %v1005, %v1063
        %v1076 = vadd.f32 %v1006, %v1062
        %v1077 = vadd.f32 %v1007, %v1063
        %v1078 = vadd.f32 %v1008, %v1062
        %v1079 = vadd.f32 %v1009, %v1063
        %v1080 = vadd.f32 %v1010, %v1062
        %v1081 = vadd.f32 %v1011, %v1063
        %v1082 = vadd.f32 %v1012, %v1062
        %v1083 = vadd.f32 %v1013, %v1063
        %v1084 = vadd.f32 %v1014, %v1062
        %v1085 = vadd.f32 %v1015, %v1063
        %v1086 = vadd.f32 %v1016, %v1062
        %v1087 = vadd.f32 %v1017, %v1063
        %v1088 = vadd.f32 %v1018, %v1062
        %v1089 = vadd.f32 %v1019, %v1063
        %v1090 = vadd.f32 %v1020, %v1062
        %v1091 = vadd.f32 %v1021, %v1063
        %v1092 = vadd.f32 %v1022, %v1062
        %v1093 = vadd.f32 %v1023, %v1063
        %v1094 = vadd.f32 %v1024, %v1062
        %v1095 = vadd.f32 %v1025, %v1063
        %v1096 = vadd.f32 %v1026, %v1062
        %v1097 = vadd.f32 %v1027, %v1063
        %v1098 = vadd.f32 %v1028, %v1062
        %v1099 = vadd.f32 %v1029, %v1063
        %v1100 = vadd.f32 %v1030, %v1062
        %v1101 = vadd.f32 %v1031, %v1063
        %v1102 = vadd.f32 %v1032, %v1062
        %v1103 = vadd.f32 %v1033, %v1063
        %v1104 = vadd.f32 %v1034, %v1062
        %v1105 = vadd.f32 %v1035, %v1063
        %v1106 = vadd.f32 %v1036, %v1062
        %v1107 = vadd.f32 %v1037, %v1063
        %v1108 = vadd.f32 %v1038, %v1062
        %v1109 = vadd.f32 %v1039, %v1063
        %v1110 = vadd.f32 %v1040, %v1062
        %v1111 = vadd.f32 %v1041, %v1063
        %v1112 = vadd.f32 %v1042, %v1062
        %v1113 = vadd.f32 %v1043, %v1063
        %v1114 = vadd.f32 %v1044, %v1062
        %v1115 = vadd.f32 %v1045, %v1063
        %v1116 = vadd.f32 %v1046, %v1062
        %v1117 = vadd.f32 %v1047, %v1063
        %v1118 = vadd.f32 %v1048, %v1062
        %v1119 = vadd.f32 %v1049, %v1063
        %v1120 = vadd.f32 %v1050, %v1062
        %v1121 = vadd.f32 %v1051, %v1063
        %v1122 = vadd.f32 %v1052, %v1062
        %v1123 = vadd.f32 %v1053, %v1063
        %v1124 = vadd.f32 %v1054, %v1062
        %v1125 = vadd.f32 %v1055, %v1063
        %v1126 = vadd.f32 %v1056, %v1062
        %v1127 = vadd.f32 %v1057, %v1063
        %v1128 = vadd.f32 %v1058, %v1062
        %v1129 = vadd.f32 %v1059, %v1063
        %v1130 = vld [vmem:[%s330] sm:$0xff]
        %v1131 = vld [vmem:[%s330 + $0x8] sm:$0xff]
        %v1132 = vld [vmem:[%s330 + $0x10] sm:$0xff]
        %v1133 = vld [vmem:[%s330 + $0x18] sm:$0xff]
        %v1134 = vld [vmem:[%s330 + $0x20] sm:$0xff]
        %v1135 = vld [vmem:[%s330 + $0x28] sm:$0xff]
        %v1136 = vld [vmem:[%s330 + $0x30] sm:$0xff]
        %v1137 = vld [vmem:[%s330 + $0x38] sm:$0xff]
        %v1138 = vld [vmem:[%s330 + $0x40] sm:$0xff]
        %v1139 = vld [vmem:[%s330 + $0x48] sm:$0xff]
        %v1140 = vld [vmem:[%s330 + $0x50] sm:$0xff]
        %v1141 = vld [vmem:[%s330 + $0x58] sm:$0xff]
        %v1142 = vld [vmem:[%s330 + $0x60] sm:$0xff]
        %v1143 = vld [vmem:[%s330 + $0x68] sm:$0xff]
        %v1144 = vld [vmem:[%s330 + $0x70] sm:$0xff]
        %v1145 = vld [vmem:[%s330 + $0x78] sm:$0xff]
        %v1146 = vld [vmem:[%s330 + $0x80] sm:$0xff]
        %v1147 = vld [vmem:[%s330 + $0x88] sm:$0xff]
        %v1148 = vld [vmem:[%s330 + $0x90] sm:$0xff]
        %v1149 = vld [vmem:[%s330 + $0x98] sm:$0xff]
        %v1150 = vld [vmem:[%s330 + $0xa0] sm:$0xff]
        %v1151 = vld [vmem:[%s330 + $0xa8] sm:$0xff]
        %v1152 = vld [vmem:[%s330 + $0xb0] sm:$0xff]
        %v1153 = vld [vmem:[%s330 + $0xb8] sm:$0xff]
        %v1154 = vld [vmem:[%s330 + $0xc0] sm:$0xff]
        %v1155 = vld [vmem:[%s330 + $0xc8] sm:$0xff]
        %v1156 = vld [vmem:[%s330 + $0xd0] sm:$0xff]
        %v1157 = vld [vmem:[%s330 + $0xd8] sm:$0xff]
        %v1158 = vld [vmem:[%s330 + $0xe0] sm:$0xff]
        %v1159 = vld [vmem:[%s330 + $0xe8] sm:$0xff]
        %v1160 = vld [vmem:[%s330 + $0xf0] sm:$0xff]
        %v1161 = vld [vmem:[%s330 + $0xf8] sm:$0xff]
        %v1162 = vunpack.c.l.bf16 %v1130
        %v1163 = vunpack.c.h.bf16 %v1130
        %v1164 = vunpack.c.l.bf16 %v1131
        %v1165 = vunpack.c.h.bf16 %v1131
        %v1166 = vunpack.c.l.bf16 %v1132
        %v1167 = vunpack.c.h.bf16 %v1132
        %v1168 = vunpack.c.l.bf16 %v1133
        %v1169 = vunpack.c.h.bf16 %v1133
        %v1170 = vunpack.c.l.bf16 %v1134
        %v1171 = vunpack.c.h.bf16 %v1134
        %v1172 = vunpack.c.l.bf16 %v1135
        %v1173 = vunpack.c.h.bf16 %v1135
        %v1174 = vunpack.c.l.bf16 %v1136
        %v1175 = vunpack.c.h.bf16 %v1136
        %v1176 = vunpack.c.l.bf16 %v1137
        %v1177 = vunpack.c.h.bf16 %v1137
        %v1178 = vunpack.c.l.bf16 %v1138
        %v1179 = vunpack.c.h.bf16 %v1138
        %v1180 = vunpack.c.l.bf16 %v1139
        %v1181 = vunpack.c.h.bf16 %v1139
        %v1182 = vunpack.c.l.bf16 %v1140
        %v1183 = vunpack.c.h.bf16 %v1140
        %v1184 = vunpack.c.l.bf16 %v1141
        %v1185 = vunpack.c.h.bf16 %v1141
        %v1186 = vunpack.c.l.bf16 %v1142
        %v1187 = vunpack.c.h.bf16 %v1142
        %v1188 = vunpack.c.l.bf16 %v1143
        %v1189 = vunpack.c.h.bf16 %v1143
        %v1190 = vunpack.c.l.bf16 %v1144
        %v1191 = vunpack.c.h.bf16 %v1144
        %v1192 = vunpack.c.l.bf16 %v1145
        %v1193 = vunpack.c.h.bf16 %v1145
        %v1194 = vunpack.c.l.bf16 %v1146
        %v1195 = vunpack.c.h.bf16 %v1146
        %v1196 = vunpack.c.l.bf16 %v1147
        %v1197 = vunpack.c.h.bf16 %v1147
        %v1198 = vunpack.c.l.bf16 %v1148
        %v1199 = vunpack.c.h.bf16 %v1148
        %v1200 = vunpack.c.l.bf16 %v1149
        %v1201 = vunpack.c.h.bf16 %v1149
        %v1202 = vunpack.c.l.bf16 %v1150
        %v1203 = vunpack.c.h.bf16 %v1150
        %v1204 = vunpack.c.l.bf16 %v1151
        %v1205 = vunpack.c.h.bf16 %v1151
        %v1206 = vunpack.c.l.bf16 %v1152
        %v1207 = vunpack.c.h.bf16 %v1152
        %v1208 = vunpack.c.l.bf16 %v1153
        %v1209 = vunpack.c.h.bf16 %v1153
        %v1210 = vunpack.c.l.bf16 %v1154
        %v1211 = vunpack.c.h.bf16 %v1154
        %v1212 = vunpack.c.l.bf16 %v1155
        %v1213 = vunpack.c.h.bf16 %v1155
        %v1214 = vunpack.c.l.bf16 %v1156
        %v1215 = vunpack.c.h.bf16 %v1156
        %v1216 = vunpack.c.l.bf16 %v1157
        %v1217 = vunpack.c.h.bf16 %v1157
        %v1218 = vunpack.c.l.bf16 %v1158
        %v1219 = vunpack.c.h.bf16 %v1158
        %v1220 = vunpack.c.l.bf16 %v1159
        %v1221 = vunpack.c.h.bf16 %v1159
        %v1222 = vunpack.c.l.bf16 %v1160
        %v1223 = vunpack.c.h.bf16 %v1160
        %v1224 = vunpack.c.l.bf16 %v1161
        %v1225 = vunpack.c.h.bf16 %v1161
        %v1226 = vadd.f32 %v1066, %v1162
        %v1227 = vadd.f32 %v1067, %v1163
        %v1228 = vadd.f32 %v1068, %v1164
        %v1229 = vadd.f32 %v1069, %v1165
        %v1230 = vadd.f32 %v1070, %v1166
        %v1231 = vadd.f32 %v1071, %v1167
        %v1232 = vadd.f32 %v1072, %v1168
        %v1233 = vadd.f32 %v1073, %v1169
        %v1234 = vadd.f32 %v1074, %v1170
        %v1235 = vadd.f32 %v1075, %v1171
        %v1236 = vadd.f32 %v1076, %v1172
        %v1237 = vadd.f32 %v1077, %v1173
        %v1238 = vadd.f32 %v1078, %v1174
        %v1239 = vadd.f32 %v1079, %v1175
        %v1240 = vadd.f32 %v1080, %v1176
        %v1241 = vadd.f32 %v1081, %v1177
        %v1242 = vadd.f32 %v1082, %v1178
        %v1243 = vadd.f32 %v1083, %v1179
        %v1244 = vadd.f32 %v1084, %v1180
        %v1245 = vadd.f32 %v1085, %v1181
        %v1246 = vadd.f32 %v1086, %v1182
        %v1247 = vadd.f32 %v1087, %v1183
        %v1248 = vadd.f32 %v1088, %v1184
        %v1249 = vadd.f32 %v1089, %v1185
        %v1250 = vadd.f32 %v1090, %v1186
        %v1251 = vadd.f32 %v1091, %v1187
        %v1252 = vadd.f32 %v1092, %v1188
        %v1253 = vadd.f32 %v1093, %v1189
        %v1254 = vadd.f32 %v1094, %v1190
        %v1255 = vadd.f32 %v1095, %v1191
        %v1256 = vadd.f32 %v1096, %v1192
        %v1257 = vadd.f32 %v1097, %v1193
        %v1258 = vadd.f32 %v1098, %v1194
        %v1259 = vadd.f32 %v1099, %v1195
        %v1260 = vadd.f32 %v1100, %v1196
        %v1261 = vadd.f32 %v1101, %v1197
        %v1262 = vadd.f32 %v1102, %v1198
        %v1263 = vadd.f32 %v1103, %v1199
        %v1264 = vadd.f32 %v1104, %v1200
        %v1265 = vadd.f32 %v1105, %v1201
        %v1266 = vadd.f32 %v1106, %v1202
        %v1267 = vadd.f32 %v1107, %v1203
        %v1268 = vadd.f32 %v1108, %v1204
        %v1269 = vadd.f32 %v1109, %v1205
        %v1270 = vadd.f32 %v1110, %v1206
        %v1271 = vadd.f32 %v1111, %v1207
        %v1272 = vadd.f32 %v1112, %v1208
        %v1273 = vadd.f32 %v1113, %v1209
        %v1274 = vadd.f32 %v1114, %v1210
        %v1275 = vadd.f32 %v1115, %v1211
        %v1276 = vadd.f32 %v1116, %v1212
        %v1277 = vadd.f32 %v1117, %v1213
        %v1278 = vadd.f32 %v1118, %v1214
        %v1279 = vadd.f32 %v1119, %v1215
        %v1280 = vadd.f32 %v1120, %v1216
        %v1281 = vadd.f32 %v1121, %v1217
        %v1282 = vadd.f32 %v1122, %v1218
        %v1283 = vadd.f32 %v1123, %v1219
        %v1284 = vadd.f32 %v1124, %v1220
        %v1285 = vadd.f32 %v1125, %v1221
        %v1286 = vadd.f32 %v1126, %v1222
        %v1287 = vadd.f32 %v1127, %v1223
        %v1288 = vadd.f32 %v1128, %v1224
        %v1289 = vadd.f32 %v1129, %v1225
        %v1290 = vmax.f32 %v1226, 0.0
        %v1291 = vmax.f32 %v1227, 0.0
        %v1292 = vmax.f32 %v1228, 0.0
        %v1293 = vmax.f32 %v1229, 0.0
        %v1294 = vmax.f32 %v1230, 0.0
        %v1295 = vmax.f32 %v1231, 0.0
        %v1296 = vmax.f32 %v1232, 0.0
        %v1297 = vmax.f32 %v1233, 0.0
        %v1298 = vmax.f32 %v1234, 0.0
        %v1299 = vmax.f32 %v1235, 0.0
        %v1300 = vmax.f32 %v1236, 0.0
        %v1301 = vmax.f32 %v1237, 0.0
        %v1302 = vmax.f32 %v1238, 0.0
        %v1303 = vmax.f32 %v1239, 0.0
        %v1304 = vmax.f32 %v1240, 0.0
        %v1305 = vmax.f32 %v1241, 0.0
        %v1306 = vmax.f32 %v1242, 0.0
        %v1307 = vmax.f32 %v1243, 0.0
        %v1308 = vmax.f32 %v1244, 0.0
        %v1309 = vmax.f32 %v1245, 0.0
        %v1310 = vmax.f32 %v1246, 0.0
        %v1311 = vmax.f32 %v1247, 0.0
        %v1312 = vmax.f32 %v1248, 0.0
        %v1313 = vmax.f32 %v1249, 0.0
        %v1314 = vmax.f32 %v1250, 0.0
        %v1315 = vmax.f32 %v1251, 0.0
        %v1316 = vmax.f32 %v1252, 0.0
        %v1317 = vmax.f32 %v1253, 0.0
        %v1318 = vmax.f32 %v1254, 0.0
        %v1319 = vmax.f32 %v1255, 0.0
        %v1320 = vmax.f32 %v1256, 0.0
        %v1321 = vmax.f32 %v1257, 0.0
        %v1322 = vmax.f32 %v1258, 0.0
        %v1323 = vmax.f32 %v1259, 0.0
        %v1324 = vmax.f32 %v1260, 0.0
        %v1325 = vmax.f32 %v1261, 0.0
        %v1326 = vmax.f32 %v1262, 0.0
        %v1327 = vmax.f32 %v1263, 0.0
        %v1328 = vmax.f32 %v1264, 0.0
        %v1329 = vmax.f32 %v1265, 0.0
        %v1330 = vmax.f32 %v1266, 0.0
        %v1331 = vmax.f32 %v1267, 0.0
        %v1332 = vmax.f32 %v1268, 0.0
        %v1333 = vmax.f32 %v1269, 0.0
        %v1334 = vmax.f32 %v1270, 0.0
        %v1335 = vmax.f32 %v1271, 0.0
        %v1336 = vmax.f32 %v1272, 0.0
        %v1337 = vmax.f32 %v1273, 0.0
        %v1338 = vmax.f32 %v1274, 0.0
        %v1339 = vmax.f32 %v1275, 0.0
        %v1340 = vmax.f32 %v1276, 0.0
        %v1341 = vmax.f32 %v1277, 0.0
        %v1342 = vmax.f32 %v1278, 0.0
        %v1343 = vmax.f32 %v1279, 0.0
        %v1344 = vmax.f32 %v1280, 0.0
        %v1345 = vmax.f32 %v1281, 0.0
        %v1346 = vmax.f32 %v1282, 0.0
        %v1347 = vmax.f32 %v1283, 0.0
        %v1348 = vmax.f32 %v1284, 0.0
        %v1349 = vmax.f32 %v1285, 0.0
        %v1350 = vmax.f32 %v1286, 0.0
        %v1351 = vmax.f32 %v1287, 0.0
        %v1352 = vmax.f32 %v1288, 0.0
        %v1353 = vmax.f32 %v1289, 0.0
        %v1354 = vpack.c.bf16 %v1291, %v1290
        %v1355 = vpack.c.bf16 %v1293, %v1292
        %v1356 = vpack.c.bf16 %v1295, %v1294
        %v1357 = vpack.c.bf16 %v1297, %v1296
        %v1358 = vpack.c.bf16 %v1299, %v1298
        %v1359 = vpack.c.bf16 %v1301, %v1300
        %v1360 = vpack.c.bf16 %v1303, %v1302
        %v1361 = vpack.c.bf16 %v1305, %v1304
        %v1362 = vpack.c.bf16 %v1307, %v1306
        %v1363 = vpack.c.bf16 %v1309, %v1308
        %v1364 = vpack.c.bf16 %v1311, %v1310
        %v1365 = vpack.c.bf16 %v1313, %v1312
        %v1366 = vpack.c.bf16 %v1315, %v1314
        %v1367 = vpack.c.bf16 %v1317, %v1316
        %v1368 = vpack.c.bf16 %v1319, %v1318
        %v1369 = vpack.c.bf16 %v1321, %v1320
        %v1370 = vpack.c.bf16 %v1323, %v1322
        %v1371 = vpack.c.bf16 %v1325, %v1324
        %v1372 = vpack.c.bf16 %v1327, %v1326
        %v1373 = vpack.c.bf16 %v1329, %v1328
        %v1374 = vpack.c.bf16 %v1331, %v1330
        %v1375 = vpack.c.bf16 %v1333, %v1332
        %v1376 = vpack.c.bf16 %v1335, %v1334
        %v1377 = vpack.c.bf16 %v1337, %v1336
        %v1378 = vpack.c.bf16 %v1339, %v1338
        %v1379 = vpack.c.bf16 %v1341, %v1340
        %v1380 = vpack.c.bf16 %v1343, %v1342
        %v1381 = vpack.c.bf16 %v1345, %v1344
        %v1382 = vpack.c.bf16 %v1347, %v1346
        %v1383 = vpack.c.bf16 %v1349, %v1348
        %v1384 = vpack.c.bf16 %v1351, %v1350
        %v1385 = vpack.c.bf16 %v1353, %v1352
        %1386 = vst [vmem:[%s342] sm:$0xff] %v1354
        %1387 = vst [vmem:[%s342 + $0x8] sm:$0xff] %v1355
        %1388 = vst [vmem:[%s342 + $0x10] sm:$0xff] %v1356
        %1389 = vst [vmem:[%s342 + $0x18] sm:$0xff] %v1357
        %1390 = vst [vmem:[%s342 + $0x20] sm:$0xff] %v1358
        %1391 = vst [vmem:[%s342 + $0x28] sm:$0xff] %v1359
        %1392 = vst [vmem:[%s342 + $0x30] sm:$0xff] %v1360
        %1393 = vst [vmem:[%s342 + $0x38] sm:$0xff] %v1361
        %1394 = vst [vmem:[%s342 + $0x40] sm:$0xff] %v1362
        %1395 = vst [vmem:[%s342 + $0x48] sm:$0xff] %v1363
        %1396 = vst [vmem:[%s342 + $0x50] sm:$0xff] %v1364
        %1397 = vst [vmem:[%s342 + $0x58] sm:$0xff] %v1365
        %1398 = vst [vmem:[%s342 + $0x60] sm:$0xff] %v1366
        %1399 = vst [vmem:[%s342 + $0x68] sm:$0xff] %v1367
        %1400 = vst [vmem:[%s342 + $0x70] sm:$0xff] %v1368
        %1401 = vst [vmem:[%s342 + $0x78] sm:$0xff] %v1369
        %1402 = vst [vmem:[%s342 + $0x80] sm:$0xff] %v1370
        %1403 = vst [vmem:[%s342 + $0x88] sm:$0xff] %v1371
        %1404 = vst [vmem:[%s342 + $0x90] sm:$0xff] %v1372
        %1405 = vst [vmem:[%s342 + $0x98] sm:$0xff] %v1373
        %1406 = vst [vmem:[%s342 + $0xa0] sm:$0xff] %v1374
        %1407 = vst [vmem:[%s342 + $0xa8] sm:$0xff] %v1375
        %1408 = vst [vmem:[%s342 + $0xb0] sm:$0xff] %v1376
        %1409 = vst [vmem:[%s342 + $0xb8] sm:$0xff] %v1377
        %1410 = vst [vmem:[%s342 + $0xc0] sm:$0xff] %v1378
        %1411 = vst [vmem:[%s342 + $0xc8] sm:$0xff] %v1379
        %1412 = vst [vmem:[%s342 + $0xd0] sm:$0xff] %v1380
        %1413 = vst [vmem:[%s342 + $0xd8] sm:$0xff] %v1381
        %1414 = vst [vmem:[%s342 + $0xe0] sm:$0xff] %v1382
        %1415 = vst [vmem:[%s342 + $0xe8] sm:$0xff] %v1383
        %1416 = vst [vmem:[%s342 + $0xf0] sm:$0xff] %v1384
        %1417 = vst [vmem:[%s342 + $0xf8] sm:$0xff] %v1385
      $region44: #{_lambda_.10} parent=35 // pred_fallthru
        _
      %s1418 = smul.u32 32, %s20
      %s1419 = smul.u32 2, %s21
      %p1420 = scmp.lt.s32.totalorder %s1418, 63
      %s1421 = scalar_select %p1420, %s1418, 63
      %p1422 = scmp.lt.s32.totalorder %s1419, 1
      %s1423 = scalar_select %p1422, %s1419, 1
      %s1424 = smul.addr %s1421, 2
      %s1425 = sadd.s32 %s1423, %s1424
      %s1426 = smul.addr %s1425, 4
      %s1427 = scalar_lea.vmem %s4, %s1426
      // Predicated region
      $region45: #{_lambda_.10} parent=35 // pred_check
        %p1428 = pneg %p164
      $region46: #{_lambda_.10} parent=35 // pred_check_branch
        %1430 = sbr.rel (%p1428) target = $region48
      $region47: #{_lambda_.10} parent=35 // pred_region
        %s1431 = smul.u32 32, %s20
        %s1432 = smul.u32 2, %s21
      $region48: #{_lambda_.10} parent=35 // pred_fallthru
        _
    $region36: #{_lambda_.10} parent=5 // pred_fallthru
      _
    %p1433 = scmp.le.s32.totalorder 2, %s10
    // Predicated region
    $region49: #{_lambda_.10} parent=5 // pred_check
      %p1434 = pneg %p1433
    $region50: #{_lambda_.10} parent=5 // pred_check_branch
      %1436 = sbr.rel (%p1434) target = $region52
    $region51: #{_lambda_.10} parent=5 // pred_region
      %s1437 = ssub.s32 %s10, 2
      // Predicated region
      $region53: #{_lambda_.10} parent=51 // pred_check
        %p1438 = pneg %p170
      $region54: #{_lambda_.10} parent=51 // pred_check_branch
        %1440 = sbr.rel (%p1438) target = $region56
      $region55: #{_lambda_.10} parent=51 // pred_region
        %s1441 = smul.u32 32, %s23
        %s1442 = smul.u32 2, %s24
        %p1443 = scmp.lt.s32.totalorder %s1441, 63
        %s1444 = scalar_select %p1443, %s1441, 63
        %p1445 = scmp.lt.s32.totalorder %s1442, 1
        %s1446 = scalar_select %p1445, %s1442, 1
        %s1447 = smul.addr %s1444, 2
        %s1448 = sadd.s32 %s1446, %s1447
        %s1449 = smul.addr %s1448, 4
        %s1450 = scalar_lea.vmem %s4, %s1449
      $region56: #{_lambda_.10} parent=51 // pred_fallthru
        _
    $region52: #{_lambda_.10} parent=5 // pred_fallthru
      _
  $region6: #{_lambda_.10} parent=0 // loop_footer
    %s14 = sadd.s32 1, %s10
  $region7: #{_lambda_.10} parent=0 // loop_footer_branch
    %9 = sbr.rel target = $region3
  $region8: #{_lambda_.10} parent=0 // loop_exit
    _

// kernel: _lambda_.8
$region0: #{_lambda_.8}
  #allocation0 [shape = 'u32[]', space=smem, size = 0x4, offset = 0x4, fixed_abs, tag = 'smem constant byte address 0x4 - core index']
  #allocation1 [shape = 'u32[72,128]{1,0:T(1,128)}', space=vmem, size = 0x9000, scoped, tag = 'internal scratch']
  %s0 = inlined_call_operand.vmem [shape: bf16[2,18,18,64], index: 0, kind: input, shape index: {}]
  %s1 = inlined_call_operand.vmem [shape: bf16[3,3,64,64], index: 1, kind: input, shape index: {}]
  %s2 = inlined_call_operand.vmem [shape: f32[1,64], index: 2, kind: input, shape index: {}]
  %s3 = inlined_call_operand.vmem [shape: bf16[2,16,16,64], index: 3, kind: output, shape index: {}]
  %s4 = sld [smem:[#allocation0]]
  $region45: #{_lambda_.8} parent=0
    _
  %s6 = ssub.s32 1, %s4
  %s7 = scalar_select 0, %s6, %s4
  loop: start=0, step=1, limit=4
  $region2: #{_lambda_.8} parent=0 // loop_pre_header
    _
  $region3: #{_lambda_.8} parent=0 // loop_header
    %s9 = sphi 0, %s13
    %p10 = scmp.ge.s32.totalorder %s9, 4
    %s16 = sphi 0, %s28
    %s17 = sphi 0, %s24
    %s18 = sphi 0, %s16
    %s19 = sphi 0, %s17
    %s20 = sphi 0, %s18
    %s21 = sphi 0, %s19
    %s31 = sphi 0, %s33
    %s34 = sphi 0, %s31
    %s35 = sphi 0, %s34
    %s51 = sphi 0, %s35
    %s57 = sphi 0, %s59
    %s60 = sphi 0, %s57
    %s61 = sphi 0, %s60
    %s77 = sphi 0, %s61
    %s83 = sphi 0, %s85
    %s86 = sphi 0, %s83
    %s87 = sphi 0, %s86
    %s103 = sphi 0, %s87
    %s111 = sphi 0, %s113
    %s114 = sphi 0, %s111
    %s115 = sphi 0, %s114
    %s131 = sphi 0, %s115
  $region4: #{_lambda_.8} parent=0 // loop_header_branch
    %12 = sbr.rel (%p10) target = $region8
  $region5: #{_lambda_.8} parent=0 // loop_body
    %s14 = ssub.s32 %s9, 1
    %s15 = ssub.s32 %s9, 2
    %s22 = sadd.s32 1, %s17
    %p23 = scmp.ge.s32.totalorder %s22, 1
    %s24 = scalar_select %p23, 0, %s22
    %s25 = sadd.s32 1, %s16
    %s26 = scalar_select %p23, %s25, %s16
    %p27 = scmp.ge.s32.totalorder %s26, 2
    %s28 = scalar_select %p27, 0, %s26
    %s29 = ssub.s32 %s16, %s28
    %p30 = scmp.eq.s32.totalorder %s29, 0
    %s32 = sadd.s32 %s31, 1
    %s33 = scalar_select %p30, %s31, %s32
    %p36 = pneg %p30
    %p37 = scmp.eq.s32.totalorder %s9, 1
    %p38 = por %p36, %p37
    %p39 = scmp.ne.s32.totalorder %s31, %s34
    %p40 = scmp.eq.s32.totalorder %s9, 0
    %p41 = por %p39, %p40
    %p42 = scmp.ne.s32.totalorder %s31, %s34
    %p43 = scmp.eq.s32.totalorder %s14, 1
    %p44 = por %p42, %p43
    %p45 = scmp.ne.s32.totalorder %s34, %s35
    %p46 = scmp.eq.s32.totalorder %s14, 0
    %p47 = por %p45, %p46
    %p48 = scmp.ne.s32.totalorder %s34, %s35
    %p49 = scmp.eq.s32.totalorder %s15, 1
    %p50 = por %p48, %p49
    %p52 = scmp.ne.s32.totalorder %s35, %s51
    %p53 = scmp.eq.s32.totalorder %s15, 0
    %p54 = por %p52, %p53
    %s55 = ssub.s32 %s17, %s24
    %p56 = scmp.eq.s32.totalorder %s55, 0
    %s58 = sadd.s32 %s57, 1
    %s59 = scalar_select %p56, %s57, %s58
    %p62 = pneg %p56
    %p63 = scmp.eq.s32.totalorder %s9, 1
    %p64 = por %p62, %p63
    %p65 = scmp.ne.s32.totalorder %s57, %s60
    %p66 = scmp.eq.s32.totalorder %s9, 0
    %p67 = por %p65, %p66
    %p68 = scmp.ne.s32.totalorder %s57, %s60
    %p69 = scmp.eq.s32.totalorder %s14, 1
    %p70 = por %p68, %p69
    %p71 = scmp.ne.s32.totalorder %s60, %s61
    %p72 = scmp.eq.s32.totalorder %s14, 0
    %p73 = por %p71, %p72
    %p74 = scmp.ne.s32.totalorder %s60, %s61
    %p75 = scmp.eq.s32.totalorder %s15, 1
    %p76 = por %p74, %p75
    %p78 = scmp.ne.s32.totalorder %s61, %s77
    %p79 = scmp.eq.s32.totalorder %s15, 0
    %p80 = por %p78, %p79
    %s81 = ssub.s32 %s17, %s24
    %p82 = scmp.eq.s32.totalorder %s81, 0
    %s84 = sadd.s32 %s83, 1
    %s85 = scalar_select %p82, %s83, %s84
    %p88 = pneg %p82
    %p89 = scmp.eq.s32.totalorder %s9, 1
    %p90 = por %p88, %p89
    %p91 = scmp.ne.s32.totalorder %s83, %s86
    %p92 = scmp.eq.s32.totalorder %s9, 0
    %p93 = por %p91, %p92
    %p94 = scmp.ne.s32.totalorder %s83, %s86
    %p95 = scmp.eq.s32.totalorder %s14, 1
    %p96 = por %p94, %p95
    %p97 = scmp.ne.s32.totalorder %s86, %s87
    %p98 = scmp.eq.s32.totalorder %s14, 0
    %p99 = por %p97, %p98
    %p100 = scmp.ne.s32.totalorder %s86, %s87
    %p101 = scmp.eq.s32.totalorder %s15, 1
    %p102 = por %p100, %p101
    %p104 = scmp.ne.s32.totalorder %s87, %s103
    %p105 = scmp.eq.s32.totalorder %s15, 0
    %p106 = por %p104, %p105
    %s107 = ssub.s32 %s16, %s28
    %s108 = ssub.s32 %s17, %s24
    %s109 = sor.u32 %s107, %s108
    %p110 = scmp.eq.s32.totalorder %s109, 0
    %s112 = sadd.s32 %s111, 1
    %s113 = scalar_select %p110, %s111, %s112
    %p116 = pneg %p110
    %p117 = scmp.eq.s32.totalorder %s9, 1
    %p118 = por %p116, %p117
    %p119 = scmp.ne.s32.totalorder %s111, %s114
    %p120 = scmp.eq.s32.totalorder %s9, 0
    %p121 = por %p119, %p120
    %p122 = scmp.ne.s32.totalorder %s111, %s114
    %p123 = scmp.eq.s32.totalorder %s14, 1
    %p124 = por %p122, %p123
    %p125 = scmp.ne.s32.totalorder %s114, %s115
    %p126 = scmp.eq.s32.totalorder %s14, 0
    %p127 = por %p125, %p126
    %p128 = scmp.ne.s32.totalorder %s114, %s115
    %p129 = scmp.eq.s32.totalorder %s15, 1
    %p130 = por %p128, %p129
    %p132 = scmp.ne.s32.totalorder %s115, %s131
    %p133 = scmp.eq.s32.totalorder %s15, 0
    %p134 = por %p132, %p133
    %p135 = scmp.le.s32.totalorder 1, %s9
    %p136 = scmp.lt.s32.totalorder %s9, 3
    %p137 = pnand %p135, %p136
    %p138 = pneg %p137
    // Predicated region
    $region9: #{_lambda_.8} parent=5 // pred_check
      _
    $region10: #{_lambda_.8} parent=5 // pred_check_branch
      %140 = sbr.rel (%p137) target = $region12
    $region11: #{_lambda_.8} parent=5 // pred_region
      %s141 = ssub.s32 %s9, 1
      // Predicated region
      $region13: #{_lambda_.8} parent=11 // pred_check
        %p142 = pneg %p73
      $region14: #{_lambda_.8} parent=11 // pred_check_branch
        %144 = sbr.rel (%p142) target = $region16
      $region15: #{_lambda_.8} parent=11 // pred_region
        %p145 = scmp.lt.s32.totalorder %s19, 0
        %s146 = scalar_select %p145, %s19, 0
        %s147 = smul.addr %s146, 4
        %s148 = scalar_lea.vmem %s1, %s147
      $region16: #{_lambda_.8} parent=11 // pred_fallthru
        _
      // Predicated region
      $region17: #{_lambda_.8} parent=11 // pred_check
        %p149 = pneg %p99
      $region18: #{_lambda_.8} parent=11 // pred_check_branch
        %151 = sbr.rel (%p149) target = $region20
      $region19: #{_lambda_.8} parent=11 // pred_region
        %p152 = scmp.lt.s32.totalorder %s19, 0
        %s153 = scalar_select %p152, %s19, 0
        %s154 = scalar_lea.vmem %s2, %s153
      $region20: #{_lambda_.8} parent=11 // pred_fallthru
        _
    $region12: #{_lambda_.8} parent=5 // pred_fallthru
      _
    %p155 = scmp.lt.s32.totalorder %s9, 2
    // Predicated region
    $region21: #{_lambda_.8} parent=5 // pred_check
      %p156 = pneg %p155
    $region22: #{_lambda_.8} parent=5 // pred_check_branch
      %158 = sbr.rel (%p156) target = $region24
    $region23: #{_lambda_.8} parent=5 // pred_region
      // Predicated region
      $region25: #{_lambda_.8} parent=23 // pred_check
        %p159 = pneg %p41
      $region26: #{_lambda_.8} parent=23 // pred_check_branch
        %161 = sbr.rel (%p159) target = $region28
      $region27: #{_lambda_.8} parent=23 // pred_region
        %p162 = scmp.lt.s32.totalorder %s16, 1
        %s163 = scalar_select %p162, %s16, 1
        %s164 = smul.addr %s163, 54
        %s165 = smul.addr %s164, 4
        %s166 = scalar_lea.vmem %s0, %s165
      $region28: #{_lambda_.8} parent=23 // pred_fallthru
        _
    $region24: #{_lambda_.8} parent=5 // pred_fallthru
      _
    %p167 = scmp.le.s32.totalorder 1, %s9
    %p168 = scmp.lt.s32.totalorder %s9, 3
    %p169 = pnand %p167, %p168
    %p170 = pneg %p169
    // Predicated region
    $region29: #{_lambda_.8} parent=5 // pred_check
      _
    $region30: #{_lambda_.8} parent=5 // pred_check_branch
      %172 = sbr.rel (%p169) target = $region32
    $region31: #{_lambda_.8} parent=5 // pred_region
      %s173 = ssub.s32 %s9, 1
      %p174 = scmp.lt.s32.totalorder %s18, 1
      %s175 = scalar_select %p174, %s18, 1
      %s176 = smul.addr %s175, 54
      %s177 = smul.addr %s176, 4
      %s178 = scalar_lea.vmem %s0, %s177
      %p179 = pneg %p47
      %p180 = pneg %p44
      %p181 = scmp.lt.s32.totalorder %s19, 0
      %s182 = scalar_select %p181, %s19, 0
      %s183 = smul.addr %s182, 4
      %s184 = scalar_lea.vmem %s1, %s183
      %p185 = pneg %p73
      %p186 = pneg %p70
      %p187 = scmp.lt.s32.totalorder %s19, 0
      %s188 = scalar_select %p187, %s19, 0
      %s189 = scalar_lea.vmem %s2, %s188
      %p190 = pneg %p99
      %p191 = pneg %p96
      %p192 = pneg %p127
      %p193 = pneg %p124
      %p194 = scmp.lt.s32.totalorder %s18, 1
      %s195 = scalar_select %p194, %s18, 1
      %p196 = scmp.lt.s32.totalorder %s19, 0
      %s197 = scalar_select %p196, %s19, 0
      %s198 = smul.addr %s195, 32
      %s199 = sadd.s32 %s197, %s198
      %s200 = smul.addr %s199, 4
      %s201 = scalar_lea.vmem %s3, %s200
      %p202 = scmp.lt.s32.totalorder %s18, 1
      %s203 = scalar_select %p202, %s18, 1
      %s204 = smul.addr %s203, 54
      %s205 = smul.addr %s204, 4
      %s206 = scalar_lea.vmem %s0, %s205
      %p207 = scmp.lt.s32.totalorder %s19, 0
      %s208 = scalar_select %p207, %s19, 0
      %s209 = smul.addr %s208, 4
      %s210 = scalar_lea.vmem %s1, %s209
      %p211 = scmp.lt.s32.totalorder %s19, 0
      %s212 = scalar_select %p211, %s19, 0
      %s213 = scalar_lea.vmem %s2, %s212
      %p214 = scmp.lt.s32.totalorder %s18, 1
      %s215 = scalar_select %p214, %s18, 1
      %p216 = scmp.lt.s32.totalorder %s19, 0
      %s217 = scalar_select %p216, %s19, 0
      %s218 = smul.addr %s215, 32
      %s219 = sadd.s32 %s217, %s218
      %s220 = smul.addr %s219, 4
      %s221 = scalar_lea.vmem %s3, %s220
      %v223 = vld [vmem:[%s206] sm:$0xf]
      %v224 = vld [vmem:[%s206 + $0x4] sm:$0xf]
      %v225 = vld [vmem:[%s206 + $0x8] sm:$0x1]
      %v226 = vld [vmem:[%s206 + $0xc] sm:$0xf]
      %v227 = vld [vmem:[%s206 + $0x10] sm:$0xf]
      %v228 = vld [vmem:[%s206 + $0x14] sm:$0x1]
      %v229 = vld [vmem:[%s206 + $0x18] sm:$0xf]
      %v230 = vld [vmem:[%s206 + $0x1c] sm:$0xf]
      %v231 = vld [vmem:[%s206 + $0x20] sm:$0x1]
      %v232 = vld [vmem:[%s206 + $0x24] sm:$0xf]
      %v233 = vld [vmem:[%s206 + $0x28] sm:$0xf]
      %v234 = vld [vmem:[%s206 + $0x2c] sm:$0x1]
      %v235 = vld [vmem:[%s206 + $0x30] sm:$0xf]
      %v236 = vld [vmem:[%s206 + $0x34] sm:$0xf]
      %v237 = vld [vmem:[%s206 + $0x38] sm:$0x1]
      %v238 = vld [vmem:[%s206 + $0x3c] sm:$0xf]
      %v239 = vld [vmem:[%s206 + $0x40] sm:$0xf]
      %v240 = vld [vmem:[%s206 + $0x44] sm:$0x1]
      %v241 = vld [vmem:[%s206 + $0x48] sm:$0xf]
      %v242 = vld [vmem:[%s206 + $0x4c] sm:$0xf]
      %v243 = vld [vmem:[%s206 + $0x50] sm:$0x1]
      %v244 = vld [vmem:[%s206 + $0x54] sm:$0xf]
      %v245 = vld [vmem:[%s206 + $0x58] sm:$0xf]
      %v246 = vld [vmem:[%s206 + $0x5c] sm:$0x1]
      %v247 = vld [vmem:[%s206 + $0x60] sm:$0xf]
      %v248 = vld [vmem:[%s206 + $0x64] sm:$0xf]
      %v249 = vld [vmem:[%s206 + $0x68] sm:$0x1]
      %v250 = vld [vmem:[%s206 + $0x6c] sm:$0xf]
      %v251 = vld [vmem:[%s206 + $0x70] sm:$0xf]
      %v252 = vld [vmem:[%s206 + $0x74] sm:$0x1]
      %v253 = vld [vmem:[%s206 + $0x78] sm:$0xf]
      %v254 = vld [vmem:[%s206 + $0x7c] sm:$0xf]
      %v255 = vld [vmem:[%s206 + $0x80] sm:$0x1]
      %v256 = vld [vmem:[%s206 + $0x84] sm:$0xf]
      %v257 = vld [vmem:[%s206 + $0x88] sm:$0xf]
      %v258 = vld [vmem:[%s206 + $0x8c] sm:$0x1]
      %v259 = vld [vmem:[%s206 + $0x90] sm:$0xf]
      %v260 = vld [vmem:[%s206 + $0x94] sm:$0xf]
      %v261 = vld [vmem:[%s206 + $0x98] sm:$0x1]
      %v262 = vld [vmem:[%s206 + $0x9c] sm:$0xf]
      %v263 = vld [vmem:[%s206 + $0xa0] sm:$0xf]
      %v264 = vld [vmem:[%s206 + $0xa4] sm:$0x1]
      %v265 = vld [vmem:[%s206 + $0xa8] sm:$0xf]
      %v266 = vld [vmem:[%s206 + $0xac] sm:$0xf]
      %v267 = vld [vmem:[%s206 + $0xb0] sm:$0x1]
      %v268 = vld [vmem:[%s206 + $0xb4] sm:$0xf]
      %v269 = vld [vmem:[%s206 + $0xb8] sm:$0xf]
      %v270 = vld [vmem:[%s206 + $0xbc] sm:$0x1]
      %v271 = vld [vmem:[%s206 + $0xc0] sm:$0xf]
      %v272 = vld [vmem:[%s206 + $0xc4] sm:$0xf]
      %v273 = vld [vmem:[%s206 + $0xc8] sm:$0x1]
      %v274 = vld [vmem:[%s206 + $0xcc] sm:$0xf]
      %v275 = vld [vmem:[%s206 + $0xd0] sm:$0xf]
      %v276 = vld [vmem:[%s206 + $0xd4] sm:$0x1]
      %v277 = vld [vmem:[%s210] sm:$0xf]
      %v278 = vld [vmem:[%s210 + $0x4] sm:$0xf]
      %v279 = vld [vmem:[%s210 + $0x8] sm:$0xf]
      %v280 = vld [vmem:[%s210 + $0xc] sm:$0xf]
      %v281 = vld [vmem:[%s210 + $0x10] sm:$0xf]
      %v282 = vld [vmem:[%s210 + $0x14] sm:$0xf]
      %v283 = vld [vmem:[%s210 + $0x18] sm:$0xf]
      %v284 = vld [vmem:[%s210 + $0x1c] sm:$0xf]
      %v285 = vld [vmem:[%s210 + $0x20] sm:$0xf]
      %v286 = vld [vmem:[%s210 + $0x24] sm:$0xf]
      %v287 = vld [vmem:[%s210 + $0x28] sm:$0xf]
      %v288 = vld [vmem:[%s210 + $0x2c] sm:$0xf]
      %v289 = vld [vmem:[%s210 + $0x30] sm:$0xf]
      %v290 = vld [vmem:[%s210 + $0x34] sm:$0xf]
      %v291 = vld [vmem:[%s210 + $0x38] sm:$0xf]
      %v292 = vld [vmem:[%s210 + $0x3c] sm:$0xf]
      %v293 = vld [vmem:[%s210 + $0x40] sm:$0xf]
      %v294 = vld [vmem:[%s210 + $0x44] sm:$0xf]
      %v295 = vld [vmem:[%s210 + $0x48] sm:$0xf]
      %v296 = vld [vmem:[%s210 + $0x4c] sm:$0xf]
      %v297 = vld [vmem:[%s210 + $0x50] sm:$0xf]
      %v298 = vld [vmem:[%s210 + $0x54] sm:$0xf]
      %v299 = vld [vmem:[%s210 + $0x58] sm:$0xf]
      %v300 = vld [vmem:[%s210 + $0x5c] sm:$0xf]
      %v301 = vld [vmem:[%s210 + $0x60] sm:$0xf]
      %v302 = vld [vmem:[%s210 + $0x64] sm:$0xf]
      %v303 = vld [vmem:[%s210 + $0x68] sm:$0xf]
      %v304 = vld [vmem:[%s210 + $0x6c] sm:$0xf]
      %v305 = vld [vmem:[%s210 + $0x70] sm:$0xf]
      %v306 = vld [vmem:[%s210 + $0x74] sm:$0xf]
      %v307 = vld [vmem:[%s210 + $0x78] sm:$0xf]
      %v308 = vld [vmem:[%s210 + $0x7c] sm:$0xf]
      %v309 = vld [vmem:[%s210 + $0x80] sm:$0xf]
      %v310 = vld [vmem:[%s210 + $0x84] sm:$0xf]
      %v311 = vld [vmem:[%s210 + $0x88] sm:$0xf]
      %v312 = vld [vmem:[%s210 + $0x8c] sm:$0xf]
      %v313 = vld [vmem:[%s210 + $0x90] sm:$0xf]
      %v314 = vld [vmem:[%s210 + $0x94] sm:$0xf]
      %v315 = vld [vmem:[%s210 + $0x98] sm:$0xf]
      %v316 = vld [vmem:[%s210 + $0x9c] sm:$0xf]
      %v317 = vld [vmem:[%s210 + $0xa0] sm:$0xf]
      %v318 = vld [vmem:[%s210 + $0xa4] sm:$0xf]
      %v319 = vld [vmem:[%s210 + $0xa8] sm:$0xf]
      %v320 = vld [vmem:[%s210 + $0xac] sm:$0xf]
      %v321 = vld [vmem:[%s210 + $0xb0] sm:$0xf]
      %v322 = vld [vmem:[%s210 + $0xb4] sm:$0xf]
      %v323 = vld [vmem:[%s210 + $0xb8] sm:$0xf]
      %v324 = vld [vmem:[%s210 + $0xbc] sm:$0xf]
      %v325 = vld [vmem:[%s210 + $0xc0] sm:$0xf]
      %v326 = vld [vmem:[%s210 + $0xc4] sm:$0xf]
      %v327 = vld [vmem:[%s210 + $0xc8] sm:$0xf]
      %v328 = vld [vmem:[%s210 + $0xcc] sm:$0xf]
      %v329 = vld [vmem:[%s210 + $0xd0] sm:$0xf]
      %v330 = vld [vmem:[%s210 + $0xd4] sm:$0xf]
      %v331 = vld [vmem:[%s210 + $0xd8] sm:$0xf]
      %v332 = vld [vmem:[%s210 + $0xdc] sm:$0xf]
      %v333 = vld [vmem:[%s210 + $0xe0] sm:$0xf]
      %v334 = vld [vmem:[%s210 + $0xe4] sm:$0xf]
      %v335 = vld [vmem:[%s210 + $0xe8] sm:$0xf]
      %v336 = vld [vmem:[%s210 + $0xec] sm:$0xf]
      %v337 = vld [vmem:[%s210 + $0xf0] sm:$0xf]
      %v338 = vld [vmem:[%s210 + $0xf4] sm:$0xf]
      %v339 = vld [vmem:[%s210 + $0xf8] sm:$0xf]
      %v340 = vld [vmem:[%s210 + $0xfc] sm:$0xf]
      %v341 = vld [vmem:[%s210 + $0x100] sm:$0xf]
      %v342 = vld [vmem:[%s210 + $0x104] sm:$0xf]
      %v343 = vld [vmem:[%s210 + $0x108] sm:$0xf]
      %v344 = vld [vmem:[%s210 + $0x10c] sm:$0xf]
      %v345 = vld [vmem:[%s210 + $0x110] sm:$0xf]
      %v346 = vld [vmem:[%s210 + $0x114] sm:$0xf]
      %v347 = vld [vmem:[%s210 + $0x118] sm:$0xf]
      %v348 = vld [vmem:[%s210 + $0x11c] sm:$0xf]
      %vm349 = vsmask.f32 3328
      %vm350 = vsmask.f32 7440
      %vm351 = vmor %vm349, %vm350
      %v353 = vshrl.u32 %v223, 16
      %v355 = vrot.slane %v353, 4
      %v356 = vshll.u32 %v223, 16
      %v358 = vrot.slane %v356, 5
      %v359 = vor.u32 %v355, %v358
      %v360 = vrot.slane %v359, 4
      %v362 = vshll.u32 %v224, 16
      %v364 = vrot.slane %v362, 5
      %v365 = vsel %vm351, %v360, %v364
      %v366 = vshrl.u32 %v224, 16
      %v368 = vrot.slane %v366, 4
      %v369 = vor.u32 %v368, %v364
      %v370 = vrot.slane %v369, 4
      %v372 = vshll.u32 %v225, 16
      %v374 = vrot.slane %v372, 5
      %v375 = vsel %vm351, %v370, %v374
      %v377 = vshrl.u32 %v226, 16
      %v379 = vrot.slane %v377, 4
      %v380 = vshll.u32 %v226, 16
      %v382 = vrot.slane %v380, 5
      %v383 = vor.u32 %v379, %v382
      %v384 = vrot.slane %v383, 4
      %v386 = vshll.u32 %v227, 16
      %v388 = vrot.slane %v386, 5
      %v389 = vsel %vm351, %v384, %v388
      %v390 = vshrl.u32 %v227, 16
      %v392 = vrot.slane %v390, 4
      %v393 = vor.u32 %v392, %v388
      %v394 = vrot.slane %v393, 4
      %v396 = vshll.u32 %v228, 16
      %v398 = vrot.slane %v396, 5
      %v399 = vsel %vm351, %v394, %v398
      %v401 = vshrl.u32 %v229, 16
      %v403 = vrot.slane %v401, 4
      %v404 = vshll.u32 %v229, 16
      %v406 = vrot.slane %v404, 5
      %v407 = vor.u32 %v403, %v406
      %v408 = vrot.slane %v407, 4
      %v410 = vshll.u32 %v230, 16
      %v412 = vrot.slane %v410, 5
      %v413 = vsel %vm351, %v408, %v412
      %v414 = vshrl.u32 %v230, 16
      %v416 = vrot.slane %v414, 4
      %v417 = vor.u32 %v416, %v412
      %v418 = vrot.slane %v417, 4
      %v420 = vshll.u32 %v231, 16
      %v422 = vrot.slane %v420, 5
      %v423 = vsel %vm351, %v418, %v422
      %v425 = vshrl.u32 %v232, 16
      %v427 = vrot.slane %v425, 4
      %v428 = vshll.u32 %v232, 16
      %v430 = vrot.slane %v428, 5
      %v431 = vor.u32 %v427, %v430
      %v432 = vrot.slane %v431, 4
      %v434 = vshll.u32 %v233, 16
      %v436 = vrot.slane %v434, 5
      %v437 = vsel %vm351, %v432, %v436
      %v438 = vshrl.u32 %v233, 16
      %v440 = vrot.slane %v438, 4
      %v441 = vor.u32 %v440, %v436
      %v442 = vrot.slane %v441, 4
      %v444 = vshll.u32 %v234, 16
      %v446 = vrot.slane %v444, 5
      %v447 = vsel %vm351, %v442, %v446
      %v449 = vshrl.u32 %v235, 16
      %v451 = vrot.slane %v449, 4
      %v452 = vshll.u32 %v235, 16
      %v454 = vrot.slane %v452, 5
      %v455 = vor.u32 %v451, %v454
      %v456 = vrot.slane %v455, 4
      %v458 = vshll.u32 %v236, 16
      %v460 = vrot.slane %v458, 5
      %v461 = vsel %vm351, %v456, %v460
      %v462 = vshrl.u32 %v236, 16
      %v464 = vrot.slane %v462, 4
      %v465 = vor.u32 %v464, %v460
      %v466 = vrot.slane %v465, 4
      %v468 = vshll.u32 %v237, 16
      %v470 = vrot.slane %v468, 5
      %v471 = vsel %vm351, %v466, %v470
      %v473 = vshrl.u32 %v238, 16
      %v475 = vrot.slane %v473, 4
      %v476 = vshll.u32 %v238, 16
      %v478 = vrot.slane %v476, 5
      %v479 = vor.u32 %v475, %v478
      %v480 = vrot.slane %v479, 4
      %v482 = vshll.u32 %v239, 16
      %v484 = vrot.slane %v482, 5
      %v485 = vsel %vm351, %v480, %v484
      %v486 = vshrl.u32 %v239, 16
      %v488 = vrot.slane %v486, 4
      %v489 = vor.u32 %v488, %v484
      %v490 = vrot.slane %v489, 4
      %v492 = vshll.u32 %v240, 16
      %v494 = vrot.slane %v492, 5
      %v495 = vsel %vm351, %v490, %v494
      %v497 = vshrl.u32 %v241, 16
      %v499 = vrot.slane %v497, 4
      %v500 = vshll.u32 %v241, 16
      %v502 = vrot.slane %v500, 5
      %v503 = vor.u32 %v499, %v502
      %v504 = vrot.slane %v503, 4
      %v506 = vshll.u32 %v242, 16
      %v508 = vrot.slane %v506, 5
      %v509 = vsel %vm351, %v504, %v508
      %v510 = vshrl.u32 %v242, 16
      %v512 = vrot.slane %v510, 4
      %v513 = vor.u32 %v512, %v508
      %v514 = vrot.slane %v513, 4
      %v516 = vshll.u32 %v243, 16
      %v518 = vrot.slane %v516, 5
      %v519 = vsel %vm351, %v514, %v518
      %v521 = vshrl.u32 %v244, 16
      %v523 = vrot.slane %v521, 4
      %v524 = vshll.u32 %v244, 16
      %v526 = vrot.slane %v524, 5
      %v527 = vor.u32 %v523, %v526
      %v528 = vrot.slane %v527, 4
      %v530 = vshll.u32 %v245, 16
      %v532 = vrot.slane %v530, 5
      %v533 = vsel %vm351, %v528, %v532
      %v534 = vshrl.u32 %v245, 16
      %v536 = vrot.slane %v534, 4
      %v537 = vor.u32 %v536, %v532
      %v538 = vrot.slane %v537, 4
      %v540 = vshll.u32 %v246, 16
      %v542 = vrot.slane %v540, 5
      %v543 = vsel %vm351, %v538, %v542
      %v545 = vshrl.u32 %v247, 16
      %v547 = vrot.slane %v545, 4
      %v548 = vshll.u32 %v247, 16
      %v550 = vrot.slane %v548, 5
      %v551 = vor.u32 %v547, %v550
      %v552 = vrot.slane %v551, 4
      %v554 = vshll.u32 %v248, 16
      %v556 = vrot.slane %v554, 5
      %v557 = vsel %vm351, %v552, %v556
      %v558 = vshrl.u32 %v248, 16
      %v560 = vrot.slane %v558, 4
      %v561 = vor.u32 %v560, %v556
      %v562 = vrot.slane %v561, 4
      %v564 = vshll.u32 %v249, 16
      %v566 = vrot.slane %v564, 5
      %v567 = vsel %vm351, %v562, %v566
      %v569 = vshrl.u32 %v250, 16
      %v571 = vrot.slane %v569, 4
      %v572 = vshll.u32 %v250, 16
      %v574 = vrot.slane %v572, 5
      %v575 = vor.u32 %v571, %v574
      %v576 = vrot.slane %v575, 4
      %v578 = vshll.u32 %v251, 16
      %v580 = vrot.slane %v578, 5
      %v581 = vsel %vm351, %v576, %v580
      %v582 = vshrl.u32 %v251, 16
      %v584 = vrot.slane %v582, 4
      %v585 = vor.u32 %v584, %v580
      %v586 = vrot.slane %v585, 4
      %v588 = vshll.u32 %v252, 16
      %v590 = vrot.slane %v588, 5
      %v591 = vsel %vm351, %v586, %v590
      %v593 = vshrl.u32 %v253, 16
      %v595 = vrot.slane %v593, 4
      %v596 = vshll.u32 %v253, 16
      %v598 = vrot.slane %v596, 5
      %v599 = vor.u32 %v595, %v598
      %v600 = vrot.slane %v599, 4
      %v602 = vshll.u32 %v254, 16
      %v604 = vrot.slane %v602, 5
      %v605 = vsel %vm351, %v600, %v604
      %v606 = vshrl.u32 %v254, 16
      %v608 = vrot.slane %v606, 4
      %v609 = vor.u32 %v608, %v604
      %v610 = vrot.slane %v609, 4
      %v612 = vshll.u32 %v255, 16
      %v614 = vrot.slane %v612, 5
      %v615 = vsel %vm351, %v610, %v614
      %v617 = vshrl.u32 %v256, 16
      %v619 = vrot.slane %v617, 4
      %v620 = vshll.u32 %v256, 16
      %v622 = vrot.slane %v620, 5
      %v623 = vor.u32 %v619, %v622
      %v624 = vrot.slane %v623, 4
      %v626 = vshll.u32 %v257, 16
      %v628 = vrot.slane %v626, 5
      %v629 = vsel %vm351, %v624, %v628
      %v630 = vshrl.u32 %v257, 16
      %v632 = vrot.slane %v630, 4
      %v633 = vor.u32 %v632, %v628
      %v634 = vrot.slane %v633, 4
      %v636 = vshll.u32 %v258, 16
      %v638 = vrot.slane %v636, 5
      %v639 = vsel %vm351, %v634, %v638
      %v641 = vshrl.u32 %v259, 16
      %v643 = vrot.slane %v641, 4
      %v644 = vshll.u32 %v259, 16
      %v646 = vrot.slane %v644, 5
      %v647 = vor.u32 %v643, %v646
      %v648 = vrot.slane %v647, 4
      %v650 = vshll.u32 %v260, 16
      %v652 = vrot.slane %v650, 5
      %v653 = vsel %vm351, %v648, %v652
      %v654 = vshrl.u32 %v260, 16
      %v656 = vrot.slane %v654, 4
      %v657 = vor.u32 %v656, %v652
      %v658 = vrot.slane %v657, 4
      %v660 = vshll.u32 %v261, 16
      %v662 = vrot.slane %v660, 5
      %v663 = vsel %vm351, %v658, %v662
      %v665 = vshrl.u32 %v262, 16
      %v667 = vrot.slane %v665, 4
      %v668 = vshll.u32 %v262, 16
      %v670 = vrot.slane %v668, 5
      %v671 = vor.u32 %v667, %v670
      %v672 = vrot.slane %v671, 4
      %v674 = vshll.u32 %v263, 16
      %v676 = vrot.slane %v674, 5
      %v677 = vsel %vm351, %v672, %v676
      %v678 = vshrl.u32 %v263, 16
      %v680 = vrot.slane %v678, 4
      %v681 = vor.u32 %v680, %v676
      %v682 = vrot.slane %v681, 4
      %v684 = vshll.u32 %v264, 16
      %v686 = vrot.slane %v684, 5
      %v687 = vsel %vm351, %v682, %v686
      %v689 = vshrl.u32 %v265, 16
      %v691 = vrot.slane %v689, 4
      %v692 = vshll.u32 %v265, 16
      %v694 = vrot.slane %v692, 5
      %v695 = vor.u32 %v691, %v694
      %v696 = vrot.slane %v695, 4
      %v698 = vshll.u32 %v266, 16
      %v700 = vrot.slane %v698, 5
      %v701 = vsel %vm351, %v696, %v700
      %v702 = vshrl.u32 %v266, 16
      %v704 = vrot.slane %v702, 4
      %v705 = vor.u32 %v704, %v700
      %v706 = vrot.slane %v705, 4
      %v708 = vshll.u32 %v267, 16
      %v710 = vrot.slane %v708, 5
      %v711 = vsel %vm351, %v706, %v710
      %v713 = vshrl.u32 %v268, 16
      %v715 = vrot.slane %v713, 4
      %v716 = vshll.u32 %v268, 16
      %v718 = vrot.slane %v716, 5
      %v719 = vor.u32 %v715, %v718
      %v720 = vrot.slane %v719, 4
      %v722 = vshll.u32 %v269, 16
      %v724 = vrot.slane %v722, 5
      %v725 = vsel %vm351, %v720, %v724
      %v726 = vshrl.u32 %v269, 16
      %v728 = vrot.slane %v726, 4
      %v729 = vor.u32 %v728, %v724
      %v730 = vrot.slane %v729, 4
      %v732 = vshll.u32 %v270, 16
      %v734 = vrot.slane %v732, 5
      %v735 = vsel %vm351, %v730, %v734
      %v736 = vunpack.c.l.b16 %v365
      %v737 = vunpack.c.l.b16 %v375
      %v738 = vunpack.c.l.b16 %v389
      %v739 = vunpack.c.l.b16 %v399
      %v740 = vunpack.c.l.b16 %v413
      %v741 = vunpack.c.l.b16 %v423
      %v742 = vunpack.c.l.b16 %v437
      %v743 = vunpack.c.l.b16 %v447
      %v744 = vunpack.c.l.b16 %v461
      %v745 = vunpack.c.l.b16 %v471
      %v746 = vunpack.c.l.b16 %v485
      %v747 = vunpack.c.l.b16 %v495
      %v748 = vunpack.c.l.b16 %v509
      %v749 = vunpack.c.l.b16 %v519
      %v750 = vunpack.c.l.b16 %v533
      %v751 = vunpack.c.l.b16 %v543
      %v752 = vunpack.c.l.b16 %v557
      %v753 = vunpack.c.l.b16 %v567
      %v754 = vunpack.c.l.b16 %v581
      %v755 = vunpack.c.l.b16 %v591
      %v756 = vunpack.c.l.b16 %v605
      %v757 = vunpack.c.l.b16 %v615
      %v758 = vunpack.c.l.b16 %v629
      %v759 = vunpack.c.l.b16 %v639
      %v760 = vunpack.c.l.b16 %v653
      %v761 = vunpack.c.l.b16 %v663
      %v762 = vunpack.c.l.b16 %v677
      %v763 = vunpack.c.l.b16 %v687
      %v764 = vunpack.c.l.b16 %v701
      %v765 = vunpack.c.l.b16 %v711
      %v766 = vunpack.c.l.b16 %v725
      %v767 = vunpack.c.l.b16 %v735
      %v768 = vpack.c.b16 %v737, %v736
      %v769 = vpack.c.b16 %v739, %v738
      %v770 = vpack.c.b16 %v741, %v740
      %v771 = vpack.c.b16 %v743, %v742
      %v772 = vpack.c.b16 %v745, %v744
      %v773 = vpack.c.b16 %v747, %v746
      %v774 = vpack.c.b16 %v749, %v748
      %v775 = vpack.c.b16 %v751, %v750
      %v776 = vpack.c.b16 %v753, %v752
      %v777 = vpack.c.b16 %v755, %v754
      %v778 = vpack.c.b16 %v757, %v756
      %v779 = vpack.c.b16 %v759, %v758
      %v780 = vpack.c.b16 %v761, %v760
      %v781 = vpack.c.b16 %v763, %v762
      %v782 = vpack.c.b16 %v765, %v764
      %v783 = vpack.c.b16 %v767, %v766
      %v792 = vunpack.c.l.b16 %v285
      %v793 = vunpack.c.l.b16 %v286
      %v794 = vunpack.c.l.b16 %v287
      %v795 = vunpack.c.l.b16 %v288
      %v796 = vunpack.c.l.b16 %v289
      %v797 = vunpack.c.l.b16 %v290
      %v798 = vunpack.c.l.b16 %v291
      %v799 = vunpack.c.l.b16 %v292
      %v800 = vpack.c.b16 %v793, %v792
      %v801 = vpack.c.b16 %v795, %v794
      %v802 = vpack.c.b16 %v797, %v796
      %v803 = vpack.c.b16 %v799, %v798
      %vm808 = vcmask 523264
      %v810 = vsel %vm808, %v768, 0
      %v813 = vsel %vm808, %v769, 0
      %v816 = vsel %vm808, %v770, 0
      %v819 = vsel %vm808, %v771, 0
      %v822 = vsel %vm808, %v772, 0
      %v825 = vsel %vm808, %v773, 0
      %v828 = vsel %vm808, %v774, 0
      %v831 = vsel %vm808, %v775, 0
      %v834 = vsel %vm808, %v776, 0
      %v837 = vsel %vm808, %v777, 0
      %v840 = vsel %vm808, %v778, 0
      %v843 = vsel %vm808, %v779, 0
      %v846 = vsel %vm808, %v780, 0
      %v849 = vsel %vm808, %v781, 0
      %v852 = vsel %vm808, %v782, 0
      %v855 = vsel %vm808, %v783, 0
      %857 = vmatpush.bf16.msra.mxu0 0
      %858 = vmatpush.bf16.msra.mxu0 0
      %859 = vmatpush.bf16.msra.mxu0 0
      %860 = vmatpush.bf16.msra.mxu0 0
      %861 = vmatpush.bf16.msra.mxu0 %v803
      %862 = vmatpush.bf16.msra.mxu0 %v802
      %863 = vmatpush.bf16.msra.mxu0 %v801
      %864 = vmatpush.bf16.msra.mxu0 %v800
      %865 = vmatmul.bf16.gmra.mxu0 %v810
      %v866 = vpop.f32.mrf.mxu0
      %v867 = vadd.f32 0.0, %v866
      %v868 = vpop.f32.mrf.mxu0
      %v869 = vadd.f32 0.0, %v868
      %870 = vmatmul.bf16.gmra.mxu0 %v813
      %v871 = vpop.f32.mrf.mxu0
      %v872 = vadd.f32 0.0, %v871
      %v873 = vpop.f32.mrf.mxu0
      %v874 = vadd.f32 0.0, %v873
      %875 = vmatmul.bf16.gmra.mxu0 %v816
      %v876 = vpop.f32.mrf.mxu0
      %v877 = vadd.f32 0.0, %v876
      %v878 = vpop.f32.mrf.mxu0
      %v879 = vadd.f32 0.0, %v878
      %880 = vmatmul.bf16.gmra.mxu0 %v819
      %v881 = vpop.f32.mrf.mxu0
      %v882 = vadd.f32 0.0, %v881
      %v883 = vpop.f32.mrf.mxu0
      %v884 = vadd.f32 0.0, %v883
      %885 = vmatmul.bf16.gmra.mxu0 %v822
      %v886 = vpop.f32.mrf.mxu0
      %v887 = vadd.f32 0.0, %v886
      %v888 = vpop.f32.mrf.mxu0
      %v889 = vadd.f32 0.0, %v888
      %890 = vmatmul.bf16.gmra.mxu0 %v825
      %v891 = vpop.f32.mrf.mxu0
      %v892 = vadd.f32 0.0, %v891
      %v893 = vpop.f32.mrf.mxu0
      %v894 = vadd.f32 0.0, %v893
      %895 = vmatmul.bf16.gmra.mxu0 %v828
      %v896 = vpop.f32.mrf.mxu0
      %v897 = vadd.f32 0.0, %v896
      %v898 = vpop.f32.mrf.mxu0
      %v899 = vadd.f32 0.0, %v898
      %900 = vmatmul.bf16.gmra.mxu0 %v831
      %v901 = vpop.f32.mrf.mxu0
      %v902 = vadd.f32 0.0, %v901
      %v903 = vpop.f32.mrf.mxu0
      %v904 = vadd.f32 0.0, %v903
      %905 = vmatmul.bf16.gmra.mxu0 %v834
      %v906 = vpop.f32.mrf.mxu0
      %v907 = vadd.f32 0.0, %v906
      %v908 = vpop.f32.mrf.mxu0
      %v909 = vadd.f32 0.0, %v908
      %910 = vmatmul.bf16.gmra.mxu0 %v837
      %v911 = vpop.f32.mrf.mxu0
      %v912 = vadd.f32 0.0, %v911
      %v913 = vpop.f32.mrf.mxu0
      %v914 = vadd.f32 0.0, %v913
      %915 = vmatmul.bf16.gmra.mxu0 %v840
      %v916 = vpop.f32.mrf.mxu0
      %v917 = vadd.f32 0.0, %v916
      %v918 = vpop.f32.mrf.mxu0
      %v919 = vadd.f32 0.0, %v918
      %920 = vmatmul.bf16.gmra.mxu0 %v843
      %v921 = vpop.f32.mrf.mxu0
      %v922 = vadd.f32 0.0, %v921
      %v923 = vpop.f32.mrf.mxu0
      %v924 = vadd.f32 0.0, %v923
      %925 = vmatmul.bf16.gmra.mxu0 %v846
      %v926 = vpop.f32.mrf.mxu0
      %v927 = vadd.f32 0.0, %v926
      %v928 = vpop.f32.mrf.mxu0
      %v929 = vadd.f32 0.0, %v928
      %930 = vmatmul.bf16.gmra.mxu0 %v849
      %v931 = vpop.f32.mrf.mxu0
      %v932 = vadd.f32 0.0, %v931
      %v933 = vpop.f32.mrf.mxu0
      %v934 = vadd.f32 0.0, %v933
      %935 = vmatmul.bf16.gmra.mxu0 %v852
      %v936 = vpop.f32.mrf.mxu0
      %v937 = vadd.f32 0.0, %v936
      %v938 = vpop.f32.mrf.mxu0
      %v939 = vadd.f32 0.0, %v938
      %940 = vmatmul.bf16.gmra.mxu0 %v855
      %v941 = vpop.f32.mrf.mxu0
      %v942 = vadd.f32 0.0, %v941
      %v943 = vpop.f32.mrf.mxu0
      %v944 = vadd.f32 0.0, %v943
      %945 = vdwg.mxu0
      %v978 = vunpack.c.l.b16 %v223
      %v979 = vunpack.c.l.b16 %v224
      %v980 = vunpack.c.l.b16 %v226
      %v981 = vunpack.c.l.b16 %v227
      %v982 = vunpack.c.l.b16 %v229
      %v983 = vunpack.c.l.b16 %v230
      %v984 = vunpack.c.l.b16 %v232
      %v985 = vunpack.c.l.b16 %v233
      %v986 = vunpack.c.l.b16 %v235
      %v987 = vunpack.c.l.b16 %v236
      %v988 = vunpack.c.l.b16 %v238
      %v989 = vunpack.c.l.b16 %v239
      %v990 = vunpack.c.l.b16 %v241
      %v991 = vunpack.c.l.b16 %v242
      %v992 = vunpack.c.l.b16 %v244
      %v993 = vunpack.c.l.b16 %v245
      %v994 = vunpack.c.l.b16 %v247
      %v995 = vunpack.c.l.b16 %v248
      %v996 = vunpack.c.l.b16 %v250
      %v997 = vunpack.c.l.b16 %v251
      %v998 = vunpack.c.l.b16 %v253
      %v999 = vunpack.c.l.b16 %v254
      %v1000 = vunpack.c.l.b16 %v256
      %v1001 = vunpack.c.l.b16 %v257
      %v1002 = vunpack.c.l.b16 %v259
      %v1003 = vunpack.c.l.b16 %v260
      %v1004 = vunpack.c.l.b16 %v262
      %v1005 = vunpack.c.l.b16 %v263
      %v1006 = vunpack.c.l.b16 %v265
      %v1007 = vunpack.c.l.b16 %v266
      %v1008 = vunpack.c.l.b16 %v268
      %v1009 = vunpack.c.l.b16 %v269
      %v1010 = vpack.c.b16 %v979, %v978
      %v1011 = vpack.c.b16 %v981, %v980
      %v1012 = vpack.c.b16 %v983, %v982
      %v1013 = vpack.c.b16 %v985, %v984
      %v1014 = vpack.c.b16 %v987, %v986
      %v1015 = vpack.c.b16 %v989, %v988
      %v1016 = vpack.c.b16 %v991, %v990
      %v1017 = vpack.c.b16 %v993, %v992
      %v1018 = vpack.c.b16 %v995, %v994
      %v1019 = vpack.c.b16 %v997, %v996
      %v1020 = vpack.c.b16 %v999, %v998
      %v1021 = vpack.c.b16 %v1001, %v1000
      %v1022 = vpack.c.b16 %v1003, %v1002
      %v1023 = vpack.c.b16 %v1005, %v1004
      %v1024 = vpack.c.b16 %v1007, %v1006
      %v1025 = vpack.c.b16 %v1009, %v1008
      %v1034 = vunpack.c.l.b16 %v277
      %v1035 = vunpack.c.l.b16 %v278
      %v1036 = vunpack.c.l.b16 %v279
      %v1037 = vunpack.c.l.b16 %v280
      %v1038 = vunpack.c.l.b16 %v281
      %v1039 = vunpack.c.l.b16 %v282
      %v1040 = vunpack.c.l.b16 %v283
      %v1041 = vunpack.c.l.b16 %v284
      %v1042 = vpack.c.b16 %v1035, %v1034
      %v1043 = vpack.c.b16 %v1037, %v1036
      %v1044 = vpack.c.b16 %v1039, %v1038
      %v1045 = vpack.c.b16 %v1041, %v1040
      %v1051 = vsel %vm808, %v1010, 0
      %v1054 = vsel %vm808, %v1011, 0
      %v1057 = vsel %vm808, %v1012, 0
      %v1060 = vsel %vm808, %v1013, 0
      %v1063 = vsel %vm808, %v1014, 0
      %v1066 = vsel %vm808, %v1015, 0
      %v1069 = vsel %vm808, %v1016, 0
      %v1072 = vsel %vm808, %v1017, 0
      %v1075 = vsel %vm808, %v1018, 0
      %v1078 = vsel %vm808, %v1019, 0
      %v1081 = vsel %vm808, %v1020, 0
      %v1084 = vsel %vm808, %v1021, 0
      %v1087 = vsel %vm808, %v1022, 0
      %v1090 = vsel %vm808, %v1023, 0
      %v1093 = vsel %vm808, %v1024, 0
      %v1096 = vsel %vm808, %v1025, 0
      %1098 = vmatpush.bf16.msra.mxu0 0
      %1099 = vmatpush.bf16.msra.mxu0 0
      %1100 = vmatpush.bf16.msra.mxu0 0
      %1101 = vmatpush.bf16.msra.mxu0 0
      %1102 = vmatpush.bf16.msra.mxu0 %v1045
      %1103 = vmatpush.bf16.msra.mxu0 %v1044
      %1104 = vmatpush.bf16.msra.mxu0 %v1043
      %1105 = vmatpush.bf16.msra.mxu0 %v1042
      %1106 = vmatmul.bf16.gmra.mxu0 %v1051
      %v1107 = vpop.f32.mrf.mxu0
      %v1108 = vadd.f32 %v867, %v1107
      %v1109 = vpop.f32.mrf.mxu0
      %v1110 = vadd.f32 %v869, %v1109
      %1111 = vmatmul.bf16.gmra.mxu0 %v1054
      %v1112 = vpop.f32.mrf.mxu0
      %v1113 = vadd.f32 %v872, %v1112
      %v1114 = vpop.f32.mrf.mxu0
      %v1115 = vadd.f32 %v874, %v1114
      %1116 = vmatmul.bf16.gmra.mxu0 %v1057
      %v1117 = vpop.f32.mrf.mxu0
      %v1118 = vadd.f32 %v877, %v1117
      %v1119 = vpop.f32.mrf.mxu0
      %v1120 = vadd.f32 %v879, %v1119
      %1121 = vmatmul.bf16.gmra.mxu0 %v1060
      %v1122 = vpop.f32.mrf.mxu0
      %v1123 = vadd.f32 %v882, %v1122
      %v1124 = vpop.f32.mrf.mxu0
      %v1125 = vadd.f32 %v884, %v1124
      %1126 = vmatmul.bf16.gmra.mxu0 %v1063
      %v1127 = vpop.f32.mrf.mxu0
      %v1128 = vadd.f32 %v887, %v1127
      %v1129 = vpop.f32.mrf.mxu0
      %v1130 = vadd.f32 %v889, %v1129
      %1131 = vmatmul.bf16.gmra.mxu0 %v1066
      %v1132 = vpop.f32.mrf.mxu0
      %v1133 = vadd.f32 %v892, %v1132
      %v1134 = vpop.f32.mrf.mxu0
      %v1135 = vadd.f32 %v894, %v1134
      %1136 = vmatmul.bf16.gmra.mxu0 %v1069
      %v1137 = vpop.f32.mrf.mxu0
      %v1138 = vadd.f32 %v897, %v1137
      %v1139 = vpop.f32.mrf.mxu0
      %v1140 = vadd.f32 %v899, %v1139
      %1141 = vmatmul.bf16.gmra.mxu0 %v1072
      %v1142 = vpop.f32.mrf.mxu0
      %v1143 = vadd.f32 %v902, %v1142
      %v1144 = vpop.f32.mrf.mxu0
      %v1145 = vadd.f32 %v904, %v1144
      %1146 = vmatmul.bf16.gmra.mxu0 %v1075
      %v1147 = vpop.f32.mrf.mxu0
      %v1148 = vadd.f32 %v907, %v1147
      %v1149 = vpop.f32.mrf.mxu0
      %v1150 = vadd.f32 %v909, %v1149
      %1151 = vmatmul.bf16.gmra.mxu0 %v1078
      %v1152 = vpop.f32.mrf.mxu0
      %v1153 = vadd.f32 %v912, %v1152
      %v1154 = vpop.f32.mrf.mxu0
      %v1155 = vadd.f32 %v914, %v1154
      %1156 = vmatmul.bf16.gmra.mxu0 %v1081
      %v1157 = vpop.f32.mrf.mxu0
      %v1158 = vadd.f32 %v917, %v1157
      %v1159 = vpop.f32.mrf.mxu0
      %v1160 = vadd.f32 %v919, %v1159
      %1161 = vmatmul.bf16.gmra.mxu0 %v1084
      %v1162 = vpop.f32.mrf.mxu0
      %v1163 = vadd.f32 %v922, %v1162
      %v1164 = vpop.f32.mrf.mxu0
      %v1165 = vadd.f32 %v924, %v1164
      %1166 = vmatmul.bf16.gmra.mxu0 %v1087
      %v1167 = vpop.f32.mrf.mxu0
      %v1168 = vadd.f32 %v927, %v1167
      %v1169 = vpop.f32.mrf.mxu0
      %v1170 = vadd.f32 %v929, %v1169
      %1171 = vmatmul.bf16.gmra.mxu0 %v1090
      %v1172 = vpop.f32.mrf.mxu0
      %v1173 = vadd.f32 %v932, %v1172
      %v1174 = vpop.f32.mrf.mxu0
      %v1175 = vadd.f32 %v934, %v1174
      %1176 = vmatmul.bf16.gmra.mxu0 %v1093
      %v1177 = vpop.f32.mrf.mxu0
      %v1178 = vadd.f32 %v937, %v1177
      %v1179 = vpop.f32.mrf.mxu0
      %v1180 = vadd.f32 %v939, %v1179
      %1181 = vmatmul.bf16.gmra.mxu0 %v1096
      %v1182 = vpop.f32.mrf.mxu0
      %v1183 = vadd.f32 %v942, %v1182
      %v1184 = vpop.f32.mrf.mxu0
      %v1185 = vadd.f32 %v944, %v1184
      %1186 = vdwg.mxu0
      %vm1203 = vcmask 1042432
      %vm1204 = vcmask 1046532
      %vm1205 = vmor %vm1203, %vm1204
      %v1206 = vrot.slane %v223, 5
      %v1207 = vrot.slane %v1206, 4
      %v1208 = vrot.slane %v224, 5
      %v1209 = vsel %vm1205, %v1207, %v1208
      %v1210 = vrot.slane %v1208, 4
      %v1211 = vrot.slane %v225, 5
      %v1212 = vsel %vm1205, %v1210, %v1211
      %v1213 = vrot.slane %v226, 5
      %v1214 = vrot.slane %v1213, 4
      %v1215 = vrot.slane %v227, 5
      %v1216 = vsel %vm1205, %v1214, %v1215
      %v1217 = vrot.slane %v1215, 4
      %v1218 = vrot.slane %v228, 5
      %v1219 = vsel %vm1205, %v1217, %v1218
      %v1220 = vrot.slane %v229, 5
      %v1221 = vrot.slane %v1220, 4
      %v1222 = vrot.slane %v230, 5
      %v1223 = vsel %vm1205, %v1221, %v1222
      %v1224 = vrot.slane %v1222, 4
      %v1225 = vrot.slane %v231, 5
      %v1226 = vsel %vm1205, %v1224, %v1225
      %v1227 = vrot.slane %v232, 5
      %v1228 = vrot.slane %v1227, 4
      %v1229 = vrot.slane %v233, 5
      %v1230 = vsel %vm1205, %v1228, %v1229
      %v1231 = vrot.slane %v1229, 4
      %v1232 = vrot.slane %v234, 5
      %v1233 = vsel %vm1205, %v1231, %v1232
      %v1234 = vrot.slane %v235, 5
      %v1235 = vrot.slane %v1234, 4
      %v1236 = vrot.slane %v236, 5
      %v1237 = vsel %vm1205, %v1235, %v1236
      %v1238 = vrot.slane %v1236, 4
      %v1239 = vrot.slane %v237, 5
      %v1240 = vsel %vm1205, %v1238, %v1239
      %v1241 = vrot.slane %v238, 5
      %v1242 = vrot.slane %v1241, 4
      %v1243 = vrot.slane %v239, 5
      %v1244 = vsel %vm1205, %v1242, %v1243
      %v1245 = vrot.slane %v1243, 4
      %v1246 = vrot.slane %v240, 5
      %v1247 = vsel %vm1205, %v1245, %v1246
      %v1248 = vrot.slane %v241, 5
      %v1249 = vrot.slane %v1248, 4
      %v1250 = vrot.slane %v242, 5
      %v1251 = vsel %vm1205, %v1249, %v1250
      %v1252 = vrot.slane %v1250, 4
      %v1253 = vrot.slane %v243, 5
      %v1254 = vsel %vm1205, %v1252, %v1253
      %v1255 = vrot.slane %v244, 5
      %v1256 = vrot.slane %v1255, 4
      %v1257 = vrot.slane %v245, 5
      %v1258 = vsel %vm1205, %v1256, %v1257
      %v1259 = vrot.slane %v1257, 4
      %v1260 = vrot.slane %v246, 5
      %v1261 = vsel %vm1205, %v1259, %v1260
      %v1262 = vrot.slane %v247, 5
      %v1263 = vrot.slane %v1262, 4
      %v1264 = vrot.slane %v248, 5
      %v1265 = vsel %vm1205, %v1263, %v1264
      %v1266 = vrot.slane %v1264, 4
      %v1267 = vrot.slane %v249, 5
      %v1268 = vsel %vm1205, %v1266, %v1267
      %v1269 = vrot.slane %v250, 5
      %v1270 = vrot.slane %v1269, 4
      %v1271 = vrot.slane %v251, 5
      %v1272 = vsel %vm1205, %v1270, %v1271
      %v1273 = vrot.slane %v1271, 4
      %v1274 = vrot.slane %v252, 5
      %v1275 = vsel %vm1205, %v1273, %v1274
      %v1276 = vrot.slane %v253, 5
      %v1277 = vrot.slane %v1276, 4
      %v1278 = vrot.slane %v254, 5
      %v1279 = vsel %vm1205, %v1277, %v1278
      %v1280 = vrot.slane %v1278, 4
      %v1281 = vrot.slane %v255, 5
      %v1282 = vsel %vm1205, %v1280, %v1281
      %v1283 = vrot.slane %v256, 5
      %v1284 = vrot.slane %v1283, 4
      %v1285 = vrot.slane %v257, 5
      %v1286 = vsel %vm1205, %v1284, %v1285
      %v1287 = vrot.slane %v1285, 4
      %v1288 = vrot.slane %v258, 5
      %v1289 = vsel %vm1205, %v1287, %v1288
      %v1290 = vrot.slane %v259, 5
      %v1291 = vrot.slane %v1290, 4
      %v1292 = vrot.slane %v260, 5
      %v1293 = vsel %vm1205, %v1291, %v1292
      %v1294 = vrot.slane %v1292, 4
      %v1295 = vrot.slane %v261, 5
      %v1296 = vsel %vm1205, %v1294, %v1295
      %v1297 = vrot.slane %v262, 5
      %v1298 = vrot.slane %v1297, 4
      %v1299 = vrot.slane %v263, 5
      %v1300 = vsel %vm1205, %v1298, %v1299
      %v1301 = vrot.slane %v1299, 4
      %v1302 = vrot.slane %v264, 5
      %v1303 = vsel %vm1205, %v1301, %v1302
      %v1304 = vrot.slane %v265, 5
      %v1305 = vrot.slane %v1304, 4
      %v1306 = vrot.slane %v266, 5
      %v1307 = vsel %vm1205, %v1305, %v1306
      %v1308 = vrot.slane %v1306, 4
      %v1309 = vrot.slane %v267, 5
      %v1310 = vsel %vm1205, %v1308, %v1309
      %v1311 = vrot.slane %v268, 5
      %v1312 = vrot.slane %v1311, 4
      %v1313 = vrot.slane %v269, 5
      %v1314 = vsel %vm1205, %v1312, %v1313
      %v1315 = vrot.slane %v1313, 4
      %v1316 = vrot.slane %v270, 5
      %v1317 = vsel %vm1205, %v1315, %v1316
      %v1318 = vunpack.c.l.b16 %v1209
      %v1319 = vunpack.c.l.b16 %v1212
      %v1320 = vunpack.c.l.b16 %v1216
      %v1321 = vunpack.c.l.b16 %v1219
      %v1322 = vunpack.c.l.b16 %v1223
      %v1323 = vunpack.c.l.b16 %v1226
      %v1324 = vunpack.c.l.b16 %v1230
      %v1325 = vunpack.c.l.b16 %v1233
      %v1326 = vunpack.c.l.b16 %v1237
      %v1327 = vunpack.c.l.b16 %v1240
      %v1328 = vunpack.c.l.b16 %v1244
      %v1329 = vunpack.c.l.b16 %v1247
      %v1330 = vunpack.c.l.b16 %v1251
      %v1331 = vunpack.c.l.b16 %v1254
      %v1332 = vunpack.c.l.b16 %v1258
      %v1333 = vunpack.c.l.b16 %v1261
      %v1334 = vunpack.c.l.b16 %v1265
      %v1335 = vunpack.c.l.b16 %v1268
      %v1336 = vunpack.c.l.b16 %v1272
      %v1337 = vunpack.c.l.b16 %v1275
      %v1338 = vunpack.c.l.b16 %v1279
      %v1339 = vunpack.c.l.b16 %v1282
      %v1340 = vunpack.c.l.b16 %v1286
      %v1341 = vunpack.c.l.b16 %v1289
      %v1342 = vunpack.c.l.b16 %v1293
      %v1343 = vunpack.c.l.b16 %v1296
      %v1344 = vunpack.c.l.b16 %v1300
      %v1345 = vunpack.c.l.b16 %v1303
      %v1346 = vunpack.c.l.b16 %v1307
      %v1347 = vunpack.c.l.b16 %v1310
      %v1348 = vunpack.c.l.b16 %v1314
      %v1349 = vunpack.c.l.b16 %v1317
      %v1350 = vpack.c.b16 %v1319, %v1318
      %v1351 = vpack.c.b16 %v1321, %v1320
      %v1352 = vpack.c.b16 %v1323, %v1322
      %v1353 = vpack.c.b16 %v1325, %v1324
      %v1354 = vpack.c.b16 %v1327, %v1326
      %v1355 = vpack.c.b16 %v1329, %v1328
      %v1356 = vpack.c.b16 %v1331, %v1330
      %v1357 = vpack.c.b16 %v1333, %v1332
      %v1358 = vpack.c.b16 %v1335, %v1334
      %v1359 = vpack.c.b16 %v1337, %v1336
      %v1360 = vpack.c.b16 %v1339, %v1338
      %v1361 = vpack.c.b16 %v1341, %v1340
      %v1362 = vpack.c.b16 %v1343, %v1342
      %v1363 = vpack.c.b16 %v1345, %v1344
      %v1364 = vpack.c.b16 %v1347, %v1346
      %v1365 = vpack.c.b16 %v1349, %v1348
      %v1374 = vunpack.c.l.b16 %v293
      %v1375 = vunpack.c.l.b16 %v294
      %v1376 = vunpack.c.l.b16 %v295
      %v1377 = vunpack.c.l.b16 %v296
      %v1378 = vunpack.c.l.b16 %v297
      %v1379 = vunpack.c.l.b16 %v298
      %v1380 = vunpack.c.l.b16 %v299
      %v1381 = vunpack.c.l.b16 %v300
      %v1382 = vpack.c.b16 %v1375, %v1374
      %v1383 = vpack.c.b16 %v1377, %v1376
      %v1384 = vpack.c.b16 %v1379, %v1378
      %v1385 = vpack.c.b16 %v1381, %v1380
      %v1391 = vsel %vm808, %v1350, 0
      %v1394 = vsel %vm808, %v1351, 0
      %v1397 = vsel %vm808, %v1352, 0
      %v1400 = vsel %vm808, %v1353, 0
      %v1403 = vsel %vm808, %v1354, 0
      %v1406 = vsel %vm808, %v1355, 0
      %v1409 = vsel %vm808, %v1356, 0
      %v1412 = vsel %vm808, %v1357, 0
      %v1415 = vsel %vm808, %v1358, 0
      %v1418 = vsel %vm808, %v1359, 0
      %v1421 = vsel %vm808, %v1360, 0
      %v1424 = vsel %vm808, %v1361, 0
      %v1427 = vsel %vm808, %v1362, 0
      %v1430 = vsel %vm808, %v1363, 0
      %v1433 = vsel %vm808, %v1364, 0
      %v1436 = vsel %vm808, %v1365, 0
      %1438 = vmatpush.bf16.msra.mxu0 0
      %1439 = vmatpush.bf16.msra.mxu0 0
      %1440 = vmatpush.bf16.msra.mxu0 0
      %1441 = vmatpush.bf16.msra.mxu0 0
      %1442 = vmatpush.bf16.msra.mxu0 %v1385
      %1443 = vmatpush.bf16.msra.mxu0 %v1384
      %1444 = vmatpush.bf16.msra.mxu0 %v1383
      %1445 = vmatpush.bf16.msra.mxu0 %v1382
      %1446 = vmatmul.bf16.gmra.mxu0 %v1391
      %v1447 = vpop.f32.mrf.mxu0
      %v1448 = vadd.f32 0.0, %v1447
      %v1449 = vpop.f32.mrf.mxu0
      %v1450 = vadd.f32 0.0, %v1449
      %1451 = vmatmul.bf16.gmra.mxu0 %v1394
      %v1452 = vpop.f32.mrf.mxu0
      %v1453 = vadd.f32 0.0, %v1452
      %v1454 = vpop.f32.mrf.mxu0
      %v1455 = vadd.f32 0.0, %v1454
      %1456 = vmatmul.bf16.gmra.mxu0 %v1397
      %v1457 = vpop.f32.mrf.mxu0
      %v1458 = vadd.f32 0.0, %v1457
      %v1459 = vpop.f32.mrf.mxu0
      %v1460 = vadd.f32 0.0, %v1459
      %1461 = vmatmul.bf16.gmra.mxu0 %v1400
      %v1462 = vpop.f32.mrf.mxu0
      %v1463 = vadd.f32 0.0, %v1462
      %v1464 = vpop.f32.mrf.mxu0
      %v1465 = vadd.f32 0.0, %v1464
      %1466 = vmatmul.bf16.gmra.mxu0 %v1403
      %v1467 = vpop.f32.mrf.mxu0
      %v1468 = vadd.f32 0.0, %v1467
      %v1469 = vpop.f32.mrf.mxu0
      %v1470 = vadd.f32 0.0, %v1469
      %1471 = vmatmul.bf16.gmra.mxu0 %v1406
      %v1472 = vpop.f32.mrf.mxu0
      %v1473 = vadd.f32 0.0, %v1472
      %v1474 = vpop.f32.mrf.mxu0
      %v1475 = vadd.f32 0.0, %v1474
      %1476 = vmatmul.bf16.gmra.mxu0 %v1409
      %v1477 = vpop.f32.mrf.mxu0
      %v1478 = vadd.f32 0.0, %v1477
      %v1479 = vpop.f32.mrf.mxu0
      %v1480 = vadd.f32 0.0, %v1479
      %1481 = vmatmul.bf16.gmra.mxu0 %v1412
      %v1482 = vpop.f32.mrf.mxu0
      %v1483 = vadd.f32 0.0, %v1482
      %v1484 = vpop.f32.mrf.mxu0
      %v1485 = vadd.f32 0.0, %v1484
      %1486 = vmatmul.bf16.gmra.mxu0 %v1415
      %v1487 = vpop.f32.mrf.mxu0
      %v1488 = vadd.f32 0.0, %v1487
      %v1489 = vpop.f32.mrf.mxu0
      %v1490 = vadd.f32 0.0, %v1489
      %1491 = vmatmul.bf16.gmra.mxu0 %v1418
      %v1492 = vpop.f32.mrf.mxu0
      %v1493 = vadd.f32 0.0, %v1492
      %v1494 = vpop.f32.mrf.mxu0
      %v1495 = vadd.f32 0.0, %v1494
      %1496 = vmatmul.bf16.gmra.mxu0 %v1421
      %v1497 = vpop.f32.mrf.mxu0
      %v1498 = vadd.f32 0.0, %v1497
      %v1499 = vpop.f32.mrf.mxu0
      %v1500 = vadd.f32 0.0, %v1499
      %1501 = vmatmul.bf16.gmra.mxu0 %v1424
      %v1502 = vpop.f32.mrf.mxu0
      %v1503 = vadd.f32 0.0, %v1502
      %v1504 = vpop.f32.mrf.mxu0
      %v1505 = vadd.f32 0.0, %v1504
      %1506 = vmatmul.bf16.gmra.mxu0 %v1427
      %v1507 = vpop.f32.mrf.mxu0
      %v1508 = vadd.f32 0.0, %v1507
      %v1509 = vpop.f32.mrf.mxu0
      %v1510 = vadd.f32 0.0, %v1509
      %1511 = vmatmul.bf16.gmra.mxu0 %v1430
      %v1512 = vpop.f32.mrf.mxu0
      %v1513 = vadd.f32 0.0, %v1512
      %v1514 = vpop.f32.mrf.mxu0
      %v1515 = vadd.f32 0.0, %v1514
      %1516 = vmatmul.bf16.gmra.mxu0 %v1433
      %v1517 = vpop.f32.mrf.mxu0
      %v1518 = vadd.f32 0.0, %v1517
      %v1519 = vpop.f32.mrf.mxu0
      %v1520 = vadd.f32 0.0, %v1519
      %1521 = vmatmul.bf16.gmra.mxu0 %v1436
      %v1522 = vpop.f32.mrf.mxu0
      %v1523 = vadd.f32 0.0, %v1522
      %v1524 = vpop.f32.mrf.mxu0
      %v1525 = vadd.f32 0.0, %v1524
      %1526 = vdwg.mxu0
      %v1527 = vadd.f32 %v1108, %v1448
      %v1528 = vadd.f32 %v1110, %v1450
      %v1529 = vadd.f32 %v1113, %v1453
      %v1530 = vadd.f32 %v1115, %v1455
      %v1531 = vadd.f32 %v1118, %v1458
      %v1532 = vadd.f32 %v1120, %v1460
      %v1533 = vadd.f32 %v1123, %v1463
      %v1534 = vadd.f32 %v1125, %v1465
      %v1535 = vadd.f32 %v1128, %v1468
      %v1536 = vadd.f32 %v1130, %v1470
      %v1537 = vadd.f32 %v1133, %v1473
      %v1538 = vadd.f32 %v1135, %v1475
      %v1539 = vadd.f32 %v1138, %v1478
      %v1540 = vadd.f32 %v1140, %v1480
      %v1541 = vadd.f32 %v1143, %v1483
      %v1542 = vadd.f32 %v1145, %v1485
      %v1543 = vadd.f32 %v1148, %v1488
      %v1544 = vadd.f32 %v1150, %v1490
      %v1545 = vadd.f32 %v1153, %v1493
      %v1546 = vadd.f32 %v1155, %v1495
      %v1547 = vadd.f32 %v1158, %v1498
      %v1548 = vadd.f32 %v1160, %v1500
      %v1549 = vadd.f32 %v1163, %v1503
      %v1550 = vadd.f32 %v1165, %v1505
      %v1551 = vadd.f32 %v1168, %v1508
      %v1552 = vadd.f32 %v1170, %v1510
      %v1553 = vadd.f32 %v1173, %v1513
      %v1554 = vadd.f32 %v1175, %v1515
      %v1555 = vadd.f32 %v1178, %v1518
      %v1556 = vadd.f32 %v1180, %v1520
      %v1557 = vadd.f32 %v1183, %v1523
      %v1558 = vadd.f32 %v1185, %v1525
      %v1561 = vunpack.c.l.b16 %v271
      %v1562 = vunpack.c.l.b16 %v272
      %v1563 = vpack.c.b16 %v1562, %v1561
      %v1572 = vunpack.c.l.b16 %v301
      %v1573 = vunpack.c.l.b16 %v302
      %v1574 = vunpack.c.l.b16 %v303
      %v1575 = vunpack.c.l.b16 %v304
      %v1576 = vunpack.c.l.b16 %v305
      %v1577 = vunpack.c.l.b16 %v306
      %v1578 = vunpack.c.l.b16 %v307
      %v1579 = vunpack.c.l.b16 %v308
      %v1580 = vpack.c.b16 %v1573, %v1572
      %v1581 = vpack.c.b16 %v1575, %v1574
      %v1582 = vpack.c.b16 %v1577, %v1576
      %v1583 = vpack.c.b16 %v1579, %v1578
      %v1589 = vsel %vm808, %v1563, 0
      %1591 = vmatpush.bf16.msra.mxu0 0
      %1592 = vmatpush.bf16.msra.mxu0 0
      %1593 = vmatpush.bf16.msra.mxu0 0
      %1594 = vmatpush.bf16.msra.mxu0 0
      %1595 = vmatpush.bf16.msra.mxu0 %v1583
      %1596 = vmatpush.bf16.msra.mxu0 %v1582
      %1597 = vmatpush.bf16.msra.mxu0 %v1581
      %1598 = vmatpush.bf16.msra.mxu0 %v1580
      %1599 = vmatmul.bf16.gmra.mxu0 %v1054
      %v1600 = vpop.f32.mrf.mxu0
      %v1601 = vadd.f32 0.0, %v1600
      %v1602 = vpop.f32.mrf.mxu0
      %v1603 = vadd.f32 0.0, %v1602
      %1604 = vmatmul.bf16.gmra.mxu0 %v1057
      %v1605 = vpop.f32.mrf.mxu0
      %v1606 = vadd.f32 0.0, %v1605
      %v1607 = vpop.f32.mrf.mxu0
      %v1608 = vadd.f32 0.0, %v1607
      %1609 = vmatmul.bf16.gmra.mxu0 %v1060
      %v1610 = vpop.f32.mrf.mxu0
      %v1611 = vadd.f32 0.0, %v1610
      %v1612 = vpop.f32.mrf.mxu0
      %v1613 = vadd.f32 0.0, %v1612
      %1614 = vmatmul.bf16.gmra.mxu0 %v1063
      %v1615 = vpop.f32.mrf.mxu0
      %v1616 = vadd.f32 0.0, %v1615
      %v1617 = vpop.f32.mrf.mxu0
      %v1618 = vadd.f32 0.0, %v1617
      %1619 = vmatmul.bf16.gmra.mxu0 %v1066
      %v1620 = vpop.f32.mrf.mxu0
      %v1621 = vadd.f32 0.0, %v1620
      %v1622 = vpop.f32.mrf.mxu0
      %v1623 = vadd.f32 0.0, %v1622
      %1624 = vmatmul.bf16.gmra.mxu0 %v1069
      %v1625 = vpop.f32.mrf.mxu0
      %v1626 = vadd.f32 0.0, %v1625
      %v1627 = vpop.f32.mrf.mxu0
      %v1628 = vadd.f32 0.0, %v1627
      %1629 = vmatmul.bf16.gmra.mxu0 %v1072
      %v1630 = vpop.f32.mrf.mxu0
      %v1631 = vadd.f32 0.0, %v1630
      %v1632 = vpop.f32.mrf.mxu0
      %v1633 = vadd.f32 0.0, %v1632
      %1634 = vmatmul.bf16.gmra.mxu0 %v1075
      %v1635 = vpop.f32.mrf.mxu0
      %v1636 = vadd.f32 0.0, %v1635
      %v1637 = vpop.f32.mrf.mxu0
      %v1638 = vadd.f32 0.0, %v1637
      %1639 = vmatmul.bf16.gmra.mxu0 %v1078
      %v1640 = vpop.f32.mrf.mxu0
      %v1641 = vadd.f32 0.0, %v1640
      %v1642 = vpop.f32.mrf.mxu0
      %v1643 = vadd.f32 0.0, %v1642
      %1644 = vmatmul.bf16.gmra.mxu0 %v1081
      %v1645 = vpop.f32.mrf.mxu0
      %v1646 = vadd.f32 0.0, %v1645
      %v1647 = vpop.f32.mrf.mxu0
      %v1648 = vadd.f32 0.0, %v1647
      %1649 = vmatmul.bf16.gmra.mxu0 %v1084
      %v1650 = vpop.f32.mrf.mxu0
      %v1651 = vadd.f32 0.0, %v1650
      %v1652 = vpop.f32.mrf.mxu0
      %v1653 = vadd.f32 0.0, %v1652
      %1654 = vmatmul.bf16.gmra.mxu0 %v1087
      %v1655 = vpop.f32.mrf.mxu0
      %v1656 = vadd.f32 0.0, %v1655
      %v1657 = vpop.f32.mrf.mxu0
      %v1658 = vadd.f32 0.0, %v1657
      %1659 = vmatmul.bf16.gmra.mxu0 %v1090
      %v1660 = vpop.f32.mrf.mxu0
      %v1661 = vadd.f32 0.0, %v1660
      %v1662 = vpop.f32.mrf.mxu0
      %v1663 = vadd.f32 0.0, %v1662
      %1664 = vmatmul.bf16.gmra.mxu0 %v1093
      %v1665 = vpop.f32.mrf.mxu0
      %v1666 = vadd.f32 0.0, %v1665
      %v1667 = vpop.f32.mrf.mxu0
      %v1668 = vadd.f32 0.0, %v1667
      %1669 = vmatmul.bf16.gmra.mxu0 %v1096
      %v1670 = vpop.f32.mrf.mxu0
      %v1671 = vadd.f32 0.0, %v1670
      %v1672 = vpop.f32.mrf.mxu0
      %v1673 = vadd.f32 0.0, %v1672
      %1674 = vmatmul.bf16.gmra.mxu0 %v1589
      %v1675 = vpop.f32.mrf.mxu0
      %v1676 = vadd.f32 0.0, %v1675
      %v1677 = vpop.f32.mrf.mxu0
      %v1678 = vadd.f32 0.0, %v1677
      %1679 = vdwg.mxu0
      %v1680 = vadd.f32 %v1527, %v1601
      %v1681 = vadd.f32 %v1528, %v1603
      %v1682 = vadd.f32 %v1529, %v1606
      %v1683 = vadd.f32 %v1530, %v1608
      %v1684 = vadd.f32 %v1531, %v1611
      %v1685 = vadd.f32 %v1532, %v1613
      %v1686 = vadd.f32 %v1533, %v1616
      %v1687 = vadd.f32 %v1534, %v1618
      %v1688 = vadd.f32 %v1535, %v1621
      %v1689 = vadd.f32 %v1536, %v1623
      %v1690 = vadd.f32 %v1537, %v1626
      %v1691 = vadd.f32 %v1538, %v1628
      %v1692 = vadd.f32 %v1539, %v1631
      %v1693 = vadd.f32 %v1540, %v1633
      %v1694 = vadd.f32 %v1541, %v1636
      %v1695 = vadd.f32 %v1542, %v1638
      %v1696 = vadd.f32 %v1543, %v1641
      %v1697 = vadd.f32 %v1544, %v1643
      %v1698 = vadd.f32 %v1545, %v1646
      %v1699 = vadd.f32 %v1546, %v1648
      %v1700 = vadd.f32 %v1547, %v1651
      %v1701 = vadd.f32 %v1548, %v1653
      %v1702 = vadd.f32 %v1549, %v1656
      %v1703 = vadd.f32 %v1550, %v1658
      %v1704 = vadd.f32 %v1551, %v1661
      %v1705 = vadd.f32 %v1552, %v1663
      %v1706 = vadd.f32 %v1553, %v1666
      %v1707 = vadd.f32 %v1554, %v1668
      %v1708 = vadd.f32 %v1555, %v1671
      %v1709 = vadd.f32 %v1556, %v1673
      %v1710 = vadd.f32 %v1557, %v1676
      %v1711 = vadd.f32 %v1558, %v1678
      %v1713 = vshrl.u32 %v271, 16
      %v1715 = vrot.slane %v1713, 4
      %v1716 = vshll.u32 %v271, 16
      %v1718 = vrot.slane %v1716, 5
      %v1719 = vor.u32 %v1715, %v1718
      %v1720 = vrot.slane %v1719, 4
      %v1722 = vshll.u32 %v272, 16
      %v1724 = vrot.slane %v1722, 5
      %v1725 = vsel %vm351, %v1720, %v1724
      %v1726 = vshrl.u32 %v272, 16
      %v1728 = vrot.slane %v1726, 4
      %v1729 = vor.u32 %v1728, %v1724
      %v1730 = vrot.slane %v1729, 4
      %v1732 = vshll.u32 %v273, 16
      %v1734 = vrot.slane %v1732, 5
      %v1735 = vsel %vm351, %v1730, %v1734
      %v1736 = vunpack.c.l.b16 %v1725
      %v1737 = vunpack.c.l.b16 %v1735
      %v1738 = vpack.c.b16 %v1737, %v1736
      %v1747 = vunpack.c.l.b16 %v309
      %v1748 = vunpack.c.l.b16 %v310
      %v1749 = vunpack.c.l.b16 %v311
      %v1750 = vunpack.c.l.b16 %v312
      %v1751 = vunpack.c.l.b16 %v313
      %v1752 = vunpack.c.l.b16 %v314
      %v1753 = vunpack.c.l.b16 %v315
      %v1754 = vunpack.c.l.b16 %v316
      %v1755 = vpack.c.b16 %v1748, %v1747
      %v1756 = vpack.c.b16 %v1750, %v1749
      %v1757 = vpack.c.b16 %v1752, %v1751
      %v1758 = vpack.c.b16 %v1754, %v1753
      %v1764 = vsel %vm808, %v1738, 0
      %1766 = vmatpush.bf16.msra.mxu0 0
      %1767 = vmatpush.bf16.msra.mxu0 0
      %1768 = vmatpush.bf16.msra.mxu0 0
      %1769 = vmatpush.bf16.msra.mxu0 0
      %1770 = vmatpush.bf16.msra.mxu0 %v1758
      %1771 = vmatpush.bf16.msra.mxu0 %v1757
      %1772 = vmatpush.bf16.msra.mxu0 %v1756
      %1773 = vmatpush.bf16.msra.mxu0 %v1755
      %1774 = vmatmul.bf16.gmra.mxu0 %v813
      %v1775 = vpop.f32.mrf.mxu0
      %v1776 = vadd.f32 0.0, %v1775
      %v1777 = vpop.f32.mrf.mxu0
      %v1778 = vadd.f32 0.0, %v1777
      %1779 = vmatmul.bf16.gmra.mxu0 %v816
      %v1780 = vpop.f32.mrf.mxu0
      %v1781 = vadd.f32 0.0, %v1780
      %v1782 = vpop.f32.mrf.mxu0
      %v1783 = vadd.f32 0.0, %v1782
      %1784 = vmatmul.bf16.gmra.mxu0 %v819
      %v1785 = vpop.f32.mrf.mxu0
      %v1786 = vadd.f32 0.0, %v1785
      %v1787 = vpop.f32.mrf.mxu0
      %v1788 = vadd.f32 0.0, %v1787
      %1789 = vmatmul.bf16.gmra.mxu0 %v822
      %v1790 = vpop.f32.mrf.mxu0
      %v1791 = vadd.f32 0.0, %v1790
      %v1792 = vpop.f32.mrf.mxu0
      %v1793 = vadd.f32 0.0, %v1792
      %1794 = vmatmul.bf16.gmra.mxu0 %v825
      %v1795 = vpop.f32.mrf.mxu0
      %v1796 = vadd.f32 0.0, %v1795
      %v1797 = vpop.f32.mrf.mxu0
      %v1798 = vadd.f32 0.0, %v1797
      %1799 = vmatmul.bf16.gmra.mxu0 %v828
      %v1800 = vpop.f32.mrf.mxu0
      %v1801 = vadd.f32 0.0, %v1800
      %v1802 = vpop.f32.mrf.mxu0
      %v1803 = vadd.f32 0.0, %v1802
      %1804 = vmatmul.bf16.gmra.mxu0 %v831
      %v1805 = vpop.f32.mrf.mxu0
      %v1806 = vadd.f32 0.0, %v1805
      %v1807 = vpop.f32.mrf.mxu0
      %v1808 = vadd.f32 0.0, %v1807
      %1809 = vmatmul.bf16.gmra.mxu0 %v834
      %v1810 = vpop.f32.mrf.mxu0
      %v1811 = vadd.f32 0.0, %v1810
      %v1812 = vpop.f32.mrf.mxu0
      %v1813 = vadd.f32 0.0, %v1812
      %1814 = vmatmul.bf16.gmra.mxu0 %v837
      %v1815 = vpop.f32.mrf.mxu0
      %v1816 = vadd.f32 0.0, %v1815
      %v1817 = vpop.f32.mrf.mxu0
      %v1818 = vadd.f32 0.0, %v1817
      %1819 = vmatmul.bf16.gmra.mxu0 %v840
      %v1820 = vpop.f32.mrf.mxu0
      %v1821 = vadd.f32 0.0, %v1820
      %v1822 = vpop.f32.mrf.mxu0
      %v1823 = vadd.f32 0.0, %v1822
      %1824 = vmatmul.bf16.gmra.mxu0 %v843
      %v1825 = vpop.f32.mrf.mxu0
      %v1826 = vadd.f32 0.0, %v1825
      %v1827 = vpop.f32.mrf.mxu0
      %v1828 = vadd.f32 0.0, %v1827
      %1829 = vmatmul.bf16.gmra.mxu0 %v846
      %v1830 = vpop.f32.mrf.mxu0
      %v1831 = vadd.f32 0.0, %v1830
      %v1832 = vpop.f32.mrf.mxu0
      %v1833 = vadd.f32 0.0, %v1832
      %1834 = vmatmul.bf16.gmra.mxu0 %v849
      %v1835 = vpop.f32.mrf.mxu0
      %v1836 = vadd.f32 0.0, %v1835
      %v1837 = vpop.f32.mrf.mxu0
      %v1838 = vadd.f32 0.0, %v1837
      %1839 = vmatmul.bf16.gmra.mxu0 %v852
      %v1840 = vpop.f32.mrf.mxu0
      %v1841 = vadd.f32 0.0, %v1840
      %v1842 = vpop.f32.mrf.mxu0
      %v1843 = vadd.f32 0.0, %v1842
      %1844 = vmatmul.bf16.gmra.mxu0 %v855
      %v1845 = vpop.f32.mrf.mxu0
      %v1846 = vadd.f32 0.0, %v1845
      %v1847 = vpop.f32.mrf.mxu0
      %v1848 = vadd.f32 0.0, %v1847
      %1849 = vmatmul.bf16.gmra.mxu0 %v1764
      %v1850 = vpop.f32.mrf.mxu0
      %v1851 = vadd.f32 0.0, %v1850
      %v1852 = vpop.f32.mrf.mxu0
      %v1853 = vadd.f32 0.0, %v1852
      %1854 = vdwg.mxu0
      %v1855 = vadd.f32 %v1680, %v1776
      %v1856 = vadd.f32 %v1681, %v1778
      %v1857 = vadd.f32 %v1682, %v1781
      %v1858 = vadd.f32 %v1683, %v1783
      %v1859 = vadd.f32 %v1684, %v1786
      %v1860 = vadd.f32 %v1685, %v1788
      %v1861 = vadd.f32 %v1686, %v1791
      %v1862 = vadd.f32 %v1687, %v1793
      %v1863 = vadd.f32 %v1688, %v1796
      %v1864 = vadd.f32 %v1689, %v1798
      %v1865 = vadd.f32 %v1690, %v1801
      %v1866 = vadd.f32 %v1691, %v1803
      %v1867 = vadd.f32 %v1692, %v1806
      %v1868 = vadd.f32 %v1693, %v1808
      %v1869 = vadd.f32 %v1694, %v1811
      %v1870 = vadd.f32 %v1695, %v1813
      %v1871 = vadd.f32 %v1696, %v1816
      %v1872 = vadd.f32 %v1697, %v1818
      %v1873 = vadd.f32 %v1698, %v1821
      %v1874 = vadd.f32 %v1699, %v1823
      %v1875 = vadd.f32 %v1700, %v1826
      %v1876 = vadd.f32 %v1701, %v1828
      %v1877 = vadd.f32 %v1702, %v1831
      %v1878 = vadd.f32 %v1703, %v1833
      %v1879 = vadd.f32 %v1704, %v1836
      %v1880 = vadd.f32 %v1705, %v1838
      %v1881 = vadd.f32 %v1706, %v1841
      %v1882 = vadd.f32 %v1707, %v1843
      %v1883 = vadd.f32 %v1708, %v1846
      %v1884 = vadd.f32 %v1709, %v1848
      %v1885 = vadd.f32 %v1710, %v1851
      %v1886 = vadd.f32 %v1711, %v1853
      %v1888 = vrot.slane %v271, 5
      %v1889 = vrot.slane %v1888, 4
      %v1890 = vrot.slane %v272, 5
      %v1891 = vsel %vm1205, %v1889, %v1890
      %v1892 = vrot.slane %v1890, 4
      %v1893 = vrot.slane %v273, 5
      %v1894 = vsel %vm1205, %v1892, %v1893
      %v1895 = vunpack.c.l.b16 %v1891
      %v1896 = vunpack.c.l.b16 %v1894
      %v1897 = vpack.c.b16 %v1896, %v1895
      %v1906 = vunpack.c.l.b16 %v317
      %v1907 = vunpack.c.l.b16 %v318
      %v1908 = vunpack.c.l.b16 %v319
      %v1909 = vunpack.c.l.b16 %v320
      %v1910 = vunpack.c.l.b16 %v321
      %v1911 = vunpack.c.l.b16 %v322
      %v1912 = vunpack.c.l.b16 %v323
      %v1913 = vunpack.c.l.b16 %v324
      %v1914 = vpack.c.b16 %v1907, %v1906
      %v1915 = vpack.c.b16 %v1909, %v1908
      %v1916 = vpack.c.b16 %v1911, %v1910
      %v1917 = vpack.c.b16 %v1913, %v1912
      %v1923 = vsel %vm808, %v1897, 0
      %1925 = vmatpush.bf16.msra.mxu0 0
      %1926 = vmatpush.bf16.msra.mxu0 0
      %1927 = vmatpush.bf16.msra.mxu0 0
      %1928 = vmatpush.bf16.msra.mxu0 0
      %1929 = vmatpush.bf16.msra.mxu0 %v1917
      %1930 = vmatpush.bf16.msra.mxu0 %v1916
      %1931 = vmatpush.bf16.msra.mxu0 %v1915
      %1932 = vmatpush.bf16.msra.mxu0 %v1914
      %1933 = vmatmul.bf16.gmra.mxu0 %v1394
      %v1934 = vpop.f32.mrf.mxu0
      %v1935 = vadd.f32 0.0, %v1934
      %v1936 = vpop.f32.mrf.mxu0
      %v1937 = vadd.f32 0.0, %v1936
      %1938 = vmatmul.bf16.gmra.mxu0 %v1397
      %v1939 = vpop.f32.mrf.mxu0
      %v1940 = vadd.f32 0.0, %v1939
      %v1941 = vpop.f32.mrf.mxu0
      %v1942 = vadd.f32 0.0, %v1941
      %1943 = vmatmul.bf16.gmra.mxu0 %v1400
      %v1944 = vpop.f32.mrf.mxu0
      %v1945 = vadd.f32 0.0, %v1944
      %v1946 = vpop.f32.mrf.mxu0
      %v1947 = vadd.f32 0.0, %v1946
      %1948 = vmatmul.bf16.gmra.mxu0 %v1403
      %v1949 = vpop.f32.mrf.mxu0
      %v1950 = vadd.f32 0.0, %v1949
      %v1951 = vpop.f32.mrf.mxu0
      %v1952 = vadd.f32 0.0, %v1951
      %1953 = vmatmul.bf16.gmra.mxu0 %v1406
      %v1954 = vpop.f32.mrf.mxu0
      %v1955 = vadd.f32 0.0, %v1954
      %v1956 = vpop.f32.mrf.mxu0
      %v1957 = vadd.f32 0.0, %v1956
      %1958 = vmatmul.bf16.gmra.mxu0 %v1409
      %v1959 = vpop.f32.mrf.mxu0
      %v1960 = vadd.f32 0.0, %v1959
      %v1961 = vpop.f32.mrf.mxu0
      %v1962 = vadd.f32 0.0, %v1961
      %1963 = vmatmul.bf16.gmra.mxu0 %v1412
      %v1964 = vpop.f32.mrf.mxu0
      %v1965 = vadd.f32 0.0, %v1964
      %v1966 = vpop.f32.mrf.mxu0
      %v1967 = vadd.f32 0.0, %v1966
      %1968 = vmatmul.bf16.gmra.mxu0 %v1415
      %v1969 = vpop.f32.mrf.mxu0
      %v1970 = vadd.f32 0.0, %v1969
      %v1971 = vpop.f32.mrf.mxu0
      %v1972 = vadd.f32 0.0, %v1971
      %1973 = vmatmul.bf16.gmra.mxu0 %v1418
      %v1974 = vpop.f32.mrf.mxu0
      %v1975 = vadd.f32 0.0, %v1974
      %v1976 = vpop.f32.mrf.mxu0
      %v1977 = vadd.f32 0.0, %v1976
      %1978 = vmatmul.bf16.gmra.mxu0 %v1421
      %v1979 = vpop.f32.mrf.mxu0
      %v1980 = vadd.f32 0.0, %v1979
      %v1981 = vpop.f32.mrf.mxu0
      %v1982 = vadd.f32 0.0, %v1981
      %1983 = vmatmul.bf16.gmra.mxu0 %v1424
      %v1984 = vpop.f32.mrf.mxu0
      %v1985 = vadd.f32 0.0, %v1984
      %v1986 = vpop.f32.mrf.mxu0
      %v1987 = vadd.f32 0.0, %v1986
      %1988 = vmatmul.bf16.gmra.mxu0 %v1427
      %v1989 = vpop.f32.mrf.mxu0
      %v1990 = vadd.f32 0.0, %v1989
      %v1991 = vpop.f32.mrf.mxu0
      %v1992 = vadd.f32 0.0, %v1991
      %1993 = vmatmul.bf16.gmra.mxu0 %v1430
      %v1994 = vpop.f32.mrf.mxu0
      %v1995 = vadd.f32 0.0, %v1994
      %v1996 = vpop.f32.mrf.mxu0
      %v1997 = vadd.f32 0.0, %v1996
      %1998 = vmatmul.bf16.gmra.mxu0 %v1433
      %v1999 = vpop.f32.mrf.mxu0
      %v2000 = vadd.f32 0.0, %v1999
      %v2001 = vpop.f32.mrf.mxu0
      %v2002 = vadd.f32 0.0, %v2001
      %2003 = vmatmul.bf16.gmra.mxu0 %v1436
      %v2004 = vpop.f32.mrf.mxu0
      %v2005 = vadd.f32 0.0, %v2004
      %v2006 = vpop.f32.mrf.mxu0
      %v2007 = vadd.f32 0.0, %v2006
      %2008 = vmatmul.bf16.gmra.mxu0 %v1923
      %v2009 = vpop.f32.mrf.mxu0
      %v2010 = vadd.f32 0.0, %v2009
      %v2011 = vpop.f32.mrf.mxu0
      %v2012 = vadd.f32 0.0, %v2011
      %2013 = vdwg.mxu0
      %v2014 = vadd.f32 %v1855, %v1935
      %v2015 = vadd.f32 %v1856, %v1937
      %v2016 = vadd.f32 %v1857, %v1940
      %v2017 = vadd.f32 %v1858, %v1942
      %v2018 = vadd.f32 %v1859, %v1945
      %v2019 = vadd.f32 %v1860, %v1947
      %v2020 = vadd.f32 %v1861, %v1950
      %v2021 = vadd.f32 %v1862, %v1952
      %v2022 = vadd.f32 %v1863, %v1955
      %v2023 = vadd.f32 %v1864, %v1957
      %v2024 = vadd.f32 %v1865, %v1960
      %v2025 = vadd.f32 %v1866, %v1962
      %v2026 = vadd.f32 %v1867, %v1965
      %v2027 = vadd.f32 %v1868, %v1967
      %v2028 = vadd.f32 %v1869, %v1970
      %v2029 = vadd.f32 %v1870, %v1972
      %v2030 = vadd.f32 %v1871, %v1975
      %v2031 = vadd.f32 %v1872, %v1977
      %v2032 = vadd.f32 %v1873, %v1980
      %v2033 = vadd.f32 %v1874, %v1982
      %v2034 = vadd.f32 %v1875, %v1985
      %v2035 = vadd.f32 %v1876, %v1987
      %v2036 = vadd.f32 %v1877, %v1990
      %v2037 = vadd.f32 %v1878, %v1992
      %v2038 = vadd.f32 %v1879, %v1995
      %v2039 = vadd.f32 %v1880, %v1997
      %v2040 = vadd.f32 %v1881, %v2000
      %v2041 = vadd.f32 %v1882, %v2002
      %v2042 = vadd.f32 %v1883, %v2005
      %v2043 = vadd.f32 %v1884, %v2007
      %v2044 = vadd.f32 %v1885, %v2010
      %v2045 = vadd.f32 %v1886, %v2012
      %v2048 = vunpack.c.l.b16 %v274
      %v2049 = vunpack.c.l.b16 %v275
      %v2050 = vpack.c.b16 %v2049, %v2048
      %v2059 = vunpack.c.l.b16 %v325
      %v2060 = vunpack.c.l.b16 %v326
      %v2061 = vunpack.c.l.b16 %v327
      %v2062 = vunpack.c.l.b16 %v328
      %v2063 = vunpack.c.l.b16 %v329
      %v2064 = vunpack.c.l.b16 %v330
      %v2065 = vunpack.c.l.b16 %v331
      %v2066 = vunpack.c.l.b16 %v332
      %v2067 = vpack.c.b16 %v2060, %v2059
      %v2068 = vpack.c.b16 %v2062, %v2061
      %v2069 = vpack.c.b16 %v2064, %v2063
      %v2070 = vpack.c.b16 %v2066, %v2065
      %v2076 = vsel %vm808, %v2050, 0
      %2078 = vmatpush.bf16.msra.mxu0 0
      %2079 = vmatpush.bf16.msra.mxu0 0
      %2080 = vmatpush.bf16.msra.mxu0 0
      %2081 = vmatpush.bf16.msra.mxu0 0
      %2082 = vmatpush.bf16.msra.mxu0 %v2070
      %2083 = vmatpush.bf16.msra.mxu0 %v2069
      %2084 = vmatpush.bf16.msra.mxu0 %v2068
      %2085 = vmatpush.bf16.msra.mxu0 %v2067
      %2086 = vmatmul.bf16.gmra.mxu0 %v1057
      %v2087 = vpop.f32.mrf.mxu0
      %v2088 = vadd.f32 0.0, %v2087
      %v2089 = vpop.f32.mrf.mxu0
      %v2090 = vadd.f32 0.0, %v2089
      %2091 = vmatmul.bf16.gmra.mxu0 %v1060
      %v2092 = vpop.f32.mrf.mxu0
      %v2093 = vadd.f32 0.0, %v2092
      %v2094 = vpop.f32.mrf.mxu0
      %v2095 = vadd.f32 0.0, %v2094
      %2096 = vmatmul.bf16.gmra.mxu0 %v1063
      %v2097 = vpop.f32.mrf.mxu0
      %v2098 = vadd.f32 0.0, %v2097
      %v2099 = vpop.f32.mrf.mxu0
      %v2100 = vadd.f32 0.0, %v2099
      %2101 = vmatmul.bf16.gmra.mxu0 %v1066
      %v2102 = vpop.f32.mrf.mxu0
      %v2103 = vadd.f32 0.0, %v2102
      %v2104 = vpop.f32.mrf.mxu0
      %v2105 = vadd.f32 0.0, %v2104
      %2106 = vmatmul.bf16.gmra.mxu0 %v1069
      %v2107 = vpop.f32.mrf.mxu0
      %v2108 = vadd.f32 0.0, %v2107
      %v2109 = vpop.f32.mrf.mxu0
      %v2110 = vadd.f32 0.0, %v2109
      %2111 = vmatmul.bf16.gmra.mxu0 %v1072
      %v2112 = vpop.f32.mrf.mxu0
      %v2113 = vadd.f32 0.0, %v2112
      %v2114 = vpop.f32.mrf.mxu0
      %v2115 = vadd.f32 0.0, %v2114
      %2116 = vmatmul.bf16.gmra.mxu0 %v1075
      %v2117 = vpop.f32.mrf.mxu0
      %v2118 = vadd.f32 0.0, %v2117
      %v2119 = vpop.f32.mrf.mxu0
      %v2120 = vadd.f32 0.0, %v2119
      %2121 = vmatmul.bf16.gmra.mxu0 %v1078
      %v2122 = vpop.f32.mrf.mxu0
      %v2123 = vadd.f32 0.0, %v2122
      %v2124 = vpop.f32.mrf.mxu0
      %v2125 = vadd.f32 0.0, %v2124
      %2126 = vmatmul.bf16.gmra.mxu0 %v1081
      %v2127 = vpop.f32.mrf.mxu0
      %v2128 = vadd.f32 0.0, %v2127
      %v2129 = vpop.f32.mrf.mxu0
      %v2130 = vadd.f32 0.0, %v2129
      %2131 = vmatmul.bf16.gmra.mxu0 %v1084
      %v2132 = vpop.f32.mrf.mxu0
      %v2133 = vadd.f32 0.0, %v2132
      %v2134 = vpop.f32.mrf.mxu0
      %v2135 = vadd.f32 0.0, %v2134
      %2136 = vmatmul.bf16.gmra.mxu0 %v1087
      %v2137 = vpop.f32.mrf.mxu0
      %v2138 = vadd.f32 0.0, %v2137
      %v2139 = vpop.f32.mrf.mxu0
      %v2140 = vadd.f32 0.0, %v2139
      %2141 = vmatmul.bf16.gmra.mxu0 %v1090
      %v2142 = vpop.f32.mrf.mxu0
      %v2143 = vadd.f32 0.0, %v2142
      %v2144 = vpop.f32.mrf.mxu0
      %v2145 = vadd.f32 0.0, %v2144
      %2146 = vmatmul.bf16.gmra.mxu0 %v1093
      %v2147 = vpop.f32.mrf.mxu0
      %v2148 = vadd.f32 0.0, %v2147
      %v2149 = vpop.f32.mrf.mxu0
      %v2150 = vadd.f32 0.0, %v2149
      %2151 = vmatmul.bf16.gmra.mxu0 %v1096
      %v2152 = vpop.f32.mrf.mxu0
      %v2153 = vadd.f32 0.0, %v2152
      %v2154 = vpop.f32.mrf.mxu0
      %v2155 = vadd.f32 0.0, %v2154
      %2156 = vmatmul.bf16.gmra.mxu0 %v1589
      %v2157 = vpop.f32.mrf.mxu0
      %v2158 = vadd.f32 0.0, %v2157
      %v2159 = vpop.f32.mrf.mxu0
      %v2160 = vadd.f32 0.0, %v2159
      %2161 = vmatmul.bf16.gmra.mxu0 %v2076
      %v2162 = vpop.f32.mrf.mxu0
      %v2163 = vadd.f32 0.0, %v2162
      %v2164 = vpop.f32.mrf.mxu0
      %v2165 = vadd.f32 0.0, %v2164
      %2166 = vdwg.mxu0
      %v2167 = vadd.f32 %v2014, %v2088
      %v2168 = vadd.f32 %v2015, %v2090
      %v2169 = vadd.f32 %v2016, %v2093
      %v2170 = vadd.f32 %v2017, %v2095
      %v2171 = vadd.f32 %v2018, %v2098
      %v2172 = vadd.f32 %v2019, %v2100
      %v2173 = vadd.f32 %v2020, %v2103
      %v2174 = vadd.f32 %v2021, %v2105
      %v2175 = vadd.f32 %v2022, %v2108
      %v2176 = vadd.f32 %v2023, %v2110
      %v2177 = vadd.f32 %v2024, %v2113
      %v2178 = vadd.f32 %v2025, %v2115
      %v2179 = vadd.f32 %v2026, %v2118
      %v2180 = vadd.f32 %v2027, %v2120
      %v2181 = vadd.f32 %v2028, %v2123
      %v2182 = vadd.f32 %v2029, %v2125
      %v2183 = vadd.f32 %v2030, %v2128
      %v2184 = vadd.f32 %v2031, %v2130
      %v2185 = vadd.f32 %v2032, %v2133
      %v2186 = vadd.f32 %v2033, %v2135
      %v2187 = vadd.f32 %v2034, %v2138
      %v2188 = vadd.f32 %v2035, %v2140
      %v2189 = vadd.f32 %v2036, %v2143
      %v2190 = vadd.f32 %v2037, %v2145
      %v2191 = vadd.f32 %v2038, %v2148
      %v2192 = vadd.f32 %v2039, %v2150
      %v2193 = vadd.f32 %v2040, %v2153
      %v2194 = vadd.f32 %v2041, %v2155
      %v2195 = vadd.f32 %v2042, %v2158
      %v2196 = vadd.f32 %v2043, %v2160
      %v2197 = vadd.f32 %v2044, %v2163
      %v2198 = vadd.f32 %v2045, %v2165
      %v2200 = vshrl.u32 %v274, 16
      %v2202 = vrot.slane %v2200, 4
      %v2203 = vshll.u32 %v274, 16
      %v2205 = vrot.slane %v2203, 5
      %v2206 = vor.u32 %v2202, %v2205
      %v2207 = vrot.slane %v2206, 4
      %v2209 = vshll.u32 %v275, 16
      %v2211 = vrot.slane %v2209, 5
      %v2212 = vsel %vm351, %v2207, %v2211
      %v2213 = vshrl.u32 %v275, 16
      %v2215 = vrot.slane %v2213, 4
      %v2216 = vor.u32 %v2215, %v2211
      %v2217 = vrot.slane %v2216, 4
      %v2219 = vshll.u32 %v276, 16
      %v2221 = vrot.slane %v2219, 5
      %v2222 = vsel %vm351, %v2217, %v2221
      %v2223 = vunpack.c.l.b16 %v2212
      %v2224 = vunpack.c.l.b16 %v2222
      %v2225 = vpack.c.b16 %v2224, %v2223
      %v2234 = vunpack.c.l.b16 %v333
      %v2235 = vunpack.c.l.b16 %v334
      %v2236 = vunpack.c.l.b16 %v335
      %v2237 = vunpack.c.l.b16 %v336
      %v2238 = vunpack.c.l.b16 %v337
      %v2239 = vunpack.c.l.b16 %v338
      %v2240 = vunpack.c.l.b16 %v339
      %v2241 = vunpack.c.l.b16 %v340
      %v2242 = vpack.c.b16 %v2235, %v2234
      %v2243 = vpack.c.b16 %v2237, %v2236
      %v2244 = vpack.c.b16 %v2239, %v2238
      %v2245 = vpack.c.b16 %v2241, %v2240
      %v2251 = vsel %vm808, %v2225, 0
      %2253 = vmatpush.bf16.msra.mxu0 0
      %2254 = vmatpush.bf16.msra.mxu0 0
      %2255 = vmatpush.bf16.msra.mxu0 0
      %2256 = vmatpush.bf16.msra.mxu0 0
      %2257 = vmatpush.bf16.msra.mxu0 %v2245
      %2258 = vmatpush.bf16.msra.mxu0 %v2244
      %2259 = vmatpush.bf16.msra.mxu0 %v2243
      %2260 = vmatpush.bf16.msra.mxu0 %v2242
      %2261 = vmatmul.bf16.gmra.mxu0 %v816
      %v2262 = vpop.f32.mrf.mxu0
      %v2263 = vadd.f32 0.0, %v2262
      %v2264 = vpop.f32.mrf.mxu0
      %v2265 = vadd.f32 0.0, %v2264
      %2266 = vmatmul.bf16.gmra.mxu0 %v819
      %v2267 = vpop.f32.mrf.mxu0
      %v2268 = vadd.f32 0.0, %v2267
      %v2269 = vpop.f32.mrf.mxu0
      %v2270 = vadd.f32 0.0, %v2269
      %2271 = vmatmul.bf16.gmra.mxu0 %v822
      %v2272 = vpop.f32.mrf.mxu0
      %v2273 = vadd.f32 0.0, %v2272
      %v2274 = vpop.f32.mrf.mxu0
      %v2275 = vadd.f32 0.0, %v2274
      %2276 = vmatmul.bf16.gmra.mxu0 %v825
      %v2277 = vpop.f32.mrf.mxu0
      %v2278 = vadd.f32 0.0, %v2277
      %v2279 = vpop.f32.mrf.mxu0
      %v2280 = vadd.f32 0.0, %v2279
      %2281 = vmatmul.bf16.gmra.mxu0 %v828
      %v2282 = vpop.f32.mrf.mxu0
      %v2283 = vadd.f32 0.0, %v2282
      %v2284 = vpop.f32.mrf.mxu0
      %v2285 = vadd.f32 0.0, %v2284
      %2286 = vmatmul.bf16.gmra.mxu0 %v831
      %v2287 = vpop.f32.mrf.mxu0
      %v2288 = vadd.f32 0.0, %v2287
      %v2289 = vpop.f32.mrf.mxu0
      %v2290 = vadd.f32 0.0, %v2289
      %2291 = vmatmul.bf16.gmra.mxu0 %v834
      %v2292 = vpop.f32.mrf.mxu0
      %v2293 = vadd.f32 0.0, %v2292
      %v2294 = vpop.f32.mrf.mxu0
      %v2295 = vadd.f32 0.0, %v2294
      %2296 = vmatmul.bf16.gmra.mxu0 %v837
      %v2297 = vpop.f32.mrf.mxu0
      %v2298 = vadd.f32 0.0, %v2297
      %v2299 = vpop.f32.mrf.mxu0
      %v2300 = vadd.f32 0.0, %v2299
      %2301 = vmatmul.bf16.gmra.mxu0 %v840
      %v2302 = vpop.f32.mrf.mxu0
      %v2303 = vadd.f32 0.0, %v2302
      %v2304 = vpop.f32.mrf.mxu0
      %v2305 = vadd.f32 0.0, %v2304
      %2306 = vmatmul.bf16.gmra.mxu0 %v843
      %v2307 = vpop.f32.mrf.mxu0
      %v2308 = vadd.f32 0.0, %v2307
      %v2309 = vpop.f32.mrf.mxu0
      %v2310 = vadd.f32 0.0, %v2309
      %2311 = vmatmul.bf16.gmra.mxu0 %v846
      %v2312 = vpop.f32.mrf.mxu0
      %v2313 = vadd.f32 0.0, %v2312
      %v2314 = vpop.f32.mrf.mxu0
      %v2315 = vadd.f32 0.0, %v2314
      %2316 = vmatmul.bf16.gmra.mxu0 %v849
      %v2317 = vpop.f32.mrf.mxu0
      %v2318 = vadd.f32 0.0, %v2317
      %v2319 = vpop.f32.mrf.mxu0
      %v2320 = vadd.f32 0.0, %v2319
      %2321 = vmatmul.bf16.gmra.mxu0 %v852
      %v2322 = vpop.f32.mrf.mxu0
      %v2323 = vadd.f32 0.0, %v2322
      %v2324 = vpop.f32.mrf.mxu0
      %v2325 = vadd.f32 0.0, %v2324
      %2326 = vmatmul.bf16.gmra.mxu0 %v855
      %v2327 = vpop.f32.mrf.mxu0
      %v2328 = vadd.f32 0.0, %v2327
      %v2329 = vpop.f32.mrf.mxu0
      %v2330 = vadd.f32 0.0, %v2329
      %2331 = vmatmul.bf16.gmra.mxu0 %v1764
      %v2332 = vpop.f32.mrf.mxu0
      %v2333 = vadd.f32 0.0, %v2332
      %v2334 = vpop.f32.mrf.mxu0
      %v2335 = vadd.f32 0.0, %v2334
      %2336 = vmatmul.bf16.gmra.mxu0 %v2251
      %v2337 = vpop.f32.mrf.mxu0
      %v2338 = vadd.f32 0.0, %v2337
      %v2339 = vpop.f32.mrf.mxu0
      %v2340 = vadd.f32 0.0, %v2339
      %2341 = vdwg.mxu0
      %v2342 = vadd.f32 %v2167, %v2263
      %v2343 = vadd.f32 %v2168, %v2265
      %v2344 = vadd.f32 %v2169, %v2268
      %v2345 = vadd.f32 %v2170, %v2270
      %v2346 = vadd.f32 %v2171, %v2273
      %v2347 = vadd.f32 %v2172, %v2275
      %v2348 = vadd.f32 %v2173, %v2278
      %v2349 = vadd.f32 %v2174, %v2280
      %v2350 = vadd.f32 %v2175, %v2283
      %v2351 = vadd.f32 %v2176, %v2285
      %v2352 = vadd.f32 %v2177, %v2288
      %v2353 = vadd.f32 %v2178, %v2290
      %v2354 = vadd.f32 %v2179, %v2293
      %v2355 = vadd.f32 %v2180, %v2295
      %v2356 = vadd.f32 %v2181, %v2298
      %v2357 = vadd.f32 %v2182, %v2300
      %v2358 = vadd.f32 %v2183, %v2303
      %v2359 = vadd.f32 %v2184, %v2305
      %v2360 = vadd.f32 %v2185, %v2308
      %v2361 = vadd.f32 %v2186, %v2310
      %v2362 = vadd.f32 %v2187, %v2313
      %v2363 = vadd.f32 %v2188, %v2315
      %v2364 = vadd.f32 %v2189, %v2318
      %v2365 = vadd.f32 %v2190, %v2320
      %v2366 = vadd.f32 %v2191, %v2323
      %v2367 = vadd.f32 %v2192, %v2325
      %v2368 = vadd.f32 %v2193, %v2328
      %v2369 = vadd.f32 %v2194, %v2330
      %v2370 = vadd.f32 %v2195, %v2333
      %v2371 = vadd.f32 %v2196, %v2335
      %v2372 = vadd.f32 %v2197, %v2338
      %v2373 = vadd.f32 %v2198, %v2340
      %v2375 = vrot.slane %v274, 5
      %v2376 = vrot.slane %v2375, 4
      %v2377 = vrot.slane %v275, 5
      %v2378 = vsel %vm1205, %v2376, %v2377
      %v2379 = vrot.slane %v2377, 4
      %v2380 = vrot.slane %v276, 5
      %v2381 = vsel %vm1205, %v2379, %v2380
      %v2382 = vunpack.c.l.b16 %v2378
      %v2383 = vunpack.c.l.b16 %v2381
      %v2384 = vpack.c.b16 %v2383, %v2382
      %v2393 = vunpack.c.l.b16 %v341
      %v2394 = vunpack.c.l.b16 %v342
      %v2395 = vunpack.c.l.b16 %v343
      %v2396 = vunpack.c.l.b16 %v344
      %v2397 = vunpack.c.l.b16 %v345
      %v2398 = vunpack.c.l.b16 %v346
      %v2399 = vunpack.c.l.b16 %v347
      %v2400 = vunpack.c.l.b16 %v348
      %v2401 = vpack.c.b16 %v2394, %v2393
      %v2402 = vpack.c.b16 %v2396, %v2395
      %v2403 = vpack.c.b16 %v2398, %v2397
      %v2404 = vpack.c.b16 %v2400, %v2399
      %v2410 = vsel %vm808, %v2384, 0
      %2412 = vmatpush.bf16.msra.mxu0 0
      %2413 = vmatpush.bf16.msra.mxu0 0
      %2414 = vmatpush.bf16.msra.mxu0 0
      %2415 = vmatpush.bf16.msra.mxu0 0
      %2416 = vmatpush.bf16.msra.mxu0 %v2404
      %2417 = vmatpush.bf16.msra.mxu0 %v2403
      %2418 = vmatpush.bf16.msra.mxu0 %v2402
      %2419 = vmatpush.bf16.msra.mxu0 %v2401
      %2420 = vmatmul.bf16.gmra.mxu0 %v1397
      %v2421 = vpop.f32.mrf.mxu0
      %v2422 = vadd.f32 0.0, %v2421
      %v2423 = vpop.f32.mrf.mxu0
      %v2424 = vadd.f32 0.0, %v2423
      %2425 = vmatmul.bf16.gmra.mxu0 %v1400
      %v2426 = vpop.f32.mrf.mxu0
      %v2427 = vadd.f32 0.0, %v2426
      %v2428 = vpop.f32.mrf.mxu0
      %v2429 = vadd.f32 0.0, %v2428
      %2430 = vmatmul.bf16.gmra.mxu0 %v1403
      %v2431 = vpop.f32.mrf.mxu0
      %v2432 = vadd.f32 0.0, %v2431
      %v2433 = vpop.f32.mrf.mxu0
      %v2434 = vadd.f32 0.0, %v2433
      %2435 = vmatmul.bf16.gmra.mxu0 %v1406
      %v2436 = vpop.f32.mrf.mxu0
      %v2437 = vadd.f32 0.0, %v2436
      %v2438 = vpop.f32.mrf.mxu0
      %v2439 = vadd.f32 0.0, %v2438
      %2440 = vmatmul.bf16.gmra.mxu0 %v1409
      %v2441 = vpop.f32.mrf.mxu0
      %v2442 = vadd.f32 0.0, %v2441
      %v2443 = vpop.f32.mrf.mxu0
      %v2444 = vadd.f32 0.0, %v2443
      %2445 = vmatmul.bf16.gmra.mxu0 %v1412
      %v2446 = vpop.f32.mrf.mxu0
      %v2447 = vadd.f32 0.0, %v2446
      %v2448 = vpop.f32.mrf.mxu0
      %v2449 = vadd.f32 0.0, %v2448
      %2450 = vmatmul.bf16.gmra.mxu0 %v1415
      %v2451 = vpop.f32.mrf.mxu0
      %v2452 = vadd.f32 0.0, %v2451
      %v2453 = vpop.f32.mrf.mxu0
      %v2454 = vadd.f32 0.0, %v2453
      %2455 = vmatmul.bf16.gmra.mxu0 %v1418
      %v2456 = vpop.f32.mrf.mxu0
      %v2457 = vadd.f32 0.0, %v2456
      %v2458 = vpop.f32.mrf.mxu0
      %v2459 = vadd.f32 0.0, %v2458
      %2460 = vmatmul.bf16.gmra.mxu0 %v1421
      %v2461 = vpop.f32.mrf.mxu0
      %v2462 = vadd.f32 0.0, %v2461
      %v2463 = vpop.f32.mrf.mxu0
      %v2464 = vadd.f32 0.0, %v2463
      %2465 = vmatmul.bf16.gmra.mxu0 %v1424
      %v2466 = vpop.f32.mrf.mxu0
      %v2467 = vadd.f32 0.0, %v2466
      %v2468 = vpop.f32.mrf.mxu0
      %v2469 = vadd.f32 0.0, %v2468
      %2470 = vmatmul.bf16.gmra.mxu0 %v1427
      %v2471 = vpop.f32.mrf.mxu0
      %v2472 = vadd.f32 0.0, %v2471
      %v2473 = vpop.f32.mrf.mxu0
      %v2474 = vadd.f32 0.0, %v2473
      %2475 = vmatmul.bf16.gmra.mxu0 %v1430
      %v2476 = vpop.f32.mrf.mxu0
      %v2477 = vadd.f32 0.0, %v2476
      %v2478 = vpop.f32.mrf.mxu0
      %v2479 = vadd.f32 0.0, %v2478
      %2480 = vmatmul.bf16.gmra.mxu0 %v1433
      %v2481 = vpop.f32.mrf.mxu0
      %v2482 = vadd.f32 0.0, %v2481
      %v2483 = vpop.f32.mrf.mxu0
      %v2484 = vadd.f32 0.0, %v2483
      %2485 = vmatmul.bf16.gmra.mxu0 %v1436
      %v2486 = vpop.f32.mrf.mxu0
      %v2487 = vadd.f32 0.0, %v2486
      %v2488 = vpop.f32.mrf.mxu0
      %v2489 = vadd.f32 0.0, %v2488
      %2490 = vmatmul.bf16.gmra.mxu0 %v1923
      %v2491 = vpop.f32.mrf.mxu0
      %v2492 = vadd.f32 0.0, %v2491
      %v2493 = vpop.f32.mrf.mxu0
      %v2494 = vadd.f32 0.0, %v2493
      %2495 = vmatmul.bf16.gmra.mxu0 %v2410
      %v2496 = vpop.f32.mrf.mxu0
      %v2497 = vadd.f32 0.0, %v2496
      %v2498 = vpop.f32.mrf.mxu0
      %v2499 = vadd.f32 0.0, %v2498
      %2500 = vdwg.mxu0
      %v2501 = vadd.f32 %v2342, %v2422
      %v2502 = vadd.f32 %v2343, %v2424
      %v2503 = vadd.f32 %v2344, %v2427
      %v2504 = vadd.f32 %v2345, %v2429
      %v2505 = vadd.f32 %v2346, %v2432
      %v2506 = vadd.f32 %v2347, %v2434
      %v2507 = vadd.f32 %v2348, %v2437
      %v2508 = vadd.f32 %v2349, %v2439
      %v2509 = vadd.f32 %v2350, %v2442
      %v2510 = vadd.f32 %v2351, %v2444
      %v2511 = vadd.f32 %v2352, %v2447
      %v2512 = vadd.f32 %v2353, %v2449
      %v2513 = vadd.f32 %v2354, %v2452
      %v2514 = vadd.f32 %v2355, %v2454
      %v2515 = vadd.f32 %v2356, %v2457
      %v2516 = vadd.f32 %v2357, %v2459
      %v2517 = vadd.f32 %v2358, %v2462
      %v2518 = vadd.f32 %v2359, %v2464
      %v2519 = vadd.f32 %v2360, %v2467
      %v2520 = vadd.f32 %v2361, %v2469
      %v2521 = vadd.f32 %v2362, %v2472
      %v2522 = vadd.f32 %v2363, %v2474
      %v2523 = vadd.f32 %v2364, %v2477
      %v2524 = vadd.f32 %v2365, %v2479
      %v2525 = vadd.f32 %v2366, %v2482
      %v2526 = vadd.f32 %v2367, %v2484
      %v2527 = vadd.f32 %v2368, %v2487
      %v2528 = vadd.f32 %v2369, %v2489
      %v2529 = vadd.f32 %v2370, %v2492
      %v2530 = vadd.f32 %v2371, %v2494
      %v2531 = vadd.f32 %v2372, %v2497
      %v2532 = vadd.f32 %v2373, %v2499
      %v2533 = vld [vmem:[%s213] sm:$0x1]
      %v2535 = vperm.slane %v2533, 0
      %v2537 = vadd.f32 %v2501, %v2535
      %v2538 = vadd.f32 %v2502, %v2535
      %v2539 = vadd.f32 %v2503, %v2535
      %v2540 = vadd.f32 %v2504, %v2535
      %v2541 = vadd.f32 %v2505, %v2535
      %v2542 = vadd.f32 %v2506, %v2535
      %v2543 = vadd.f32 %v2507, %v2535
      %v2544 = vadd.f32 %v2508, %v2535
      %v2545 = vadd.f32 %v2509, %v2535
      %v2546 = vadd.f32 %v2510, %v2535
      %v2547 = vadd.f32 %v2511, %v2535
      %v2548 = vadd.f32 %v2512, %v2535
      %v2549 = vadd.f32 %v2513, %v2535
      %v2550 = vadd.f32 %v2514, %v2535
      %v2551 = vadd.f32 %v2515, %v2535
      %v2552 = vadd.f32 %v2516, %v2535
      %v2553 = vadd.f32 %v2517, %v2535
      %v2554 = vadd.f32 %v2518, %v2535
      %v2555 = vadd.f32 %v2519, %v2535
      %v2556 = vadd.f32 %v2520, %v2535
      %v2557 = vadd.f32 %v2521, %v2535
      %v2558 = vadd.f32 %v2522, %v2535
      %v2559 = vadd.f32 %v2523, %v2535
      %v2560 = vadd.f32 %v2524, %v2535
      %v2561 = vadd.f32 %v2525, %v2535
      %v2562 = vadd.f32 %v2526, %v2535
      %v2563 = vadd.f32 %v2527, %v2535
      %v2564 = vadd.f32 %v2528, %v2535
      %v2565 = vadd.f32 %v2529, %v2535
      %v2566 = vadd.f32 %v2530, %v2535
      %v2567 = vadd.f32 %v2531, %v2535
      %v2568 = vadd.f32 %v2532, %v2535
      %v2569 = vmax.f32 %v2537, 0.0
      %v2570 = vmax.f32 %v2538, 0.0
      %v2571 = vmax.f32 %v2539, 0.0
      %v2572 = vmax.f32 %v2540, 0.0
      %v2573 = vmax.f32 %v2541, 0.0
      %v2574 = vmax.f32 %v2542, 0.0
      %v2575 = vmax.f32 %v2543, 0.0
      %v2576 = vmax.f32 %v2544, 0.0
      %v2577 = vmax.f32 %v2545, 0.0
      %v2578 = vmax.f32 %v2546, 0.0
      %v2579 = vmax.f32 %v2547, 0.0
      %v2580 = vmax.f32 %v2548, 0.0
      %v2581 = vmax.f32 %v2549, 0.0
      %v2582 = vmax.f32 %v2550, 0.0
      %v2583 = vmax.f32 %v2551, 0.0
      %v2584 = vmax.f32 %v2552, 0.0
      %v2585 = vmax.f32 %v2553, 0.0
      %v2586 = vmax.f32 %v2554, 0.0
      %v2587 = vmax.f32 %v2555, 0.0
      %v2588 = vmax.f32 %v2556, 0.0
      %v2589 = vmax.f32 %v2557, 0.0
      %v2590 = vmax.f32 %v2558, 0.0
      %v2591 = vmax.f32 %v2559, 0.0
      %v2592 = vmax.f32 %v2560, 0.0
      %v2593 = vmax.f32 %v2561, 0.0
      %v2594 = vmax.f32 %v2562, 0.0
      %v2595 = vmax.f32 %v2563, 0.0
      %v2596 = vmax.f32 %v2564, 0.0
      %v2597 = vmax.f32 %v2565, 0.0
      %v2598 = vmax.f32 %v2566, 0.0
      %v2599 = vmax.f32 %v2567, 0.0
      %v2600 = vmax.f32 %v2568, 0.0
      %v2601 = vpack.c.bf16 %v2569, %v2569
      %v2602 = vpack.c.bf16 %v2570, %v2570
      %v2603 = vpack.c.bf16 %v2571, %v2571
      %v2604 = vpack.c.bf16 %v2572, %v2572
      %v2605 = vpack.c.bf16 %v2573, %v2573
      %v2606 = vpack.c.bf16 %v2574, %v2574
      %v2607 = vpack.c.bf16 %v2575, %v2575
      %v2608 = vpack.c.bf16 %v2576, %v2576
      %v2609 = vpack.c.bf16 %v2577, %v2577
      %v2610 = vpack.c.bf16 %v2578, %v2578
      %v2611 = vpack.c.bf16 %v2579, %v2579
      %v2612 = vpack.c.bf16 %v2580, %v2580
      %v2613 = vpack.c.bf16 %v2581, %v2581
      %v2614 = vpack.c.bf16 %v2582, %v2582
      %v2615 = vpack.c.bf16 %v2583, %v2583
      %v2616 = vpack.c.bf16 %v2584, %v2584
      %v2617 = vpack.c.bf16 %v2585, %v2585
      %v2618 = vpack.c.bf16 %v2586, %v2586
      %v2619 = vpack.c.bf16 %v2587, %v2587
      %v2620 = vpack.c.bf16 %v2588, %v2588
      %v2621 = vpack.c.bf16 %v2589, %v2589
      %v2622 = vpack.c.bf16 %v2590, %v2590
      %v2623 = vpack.c.bf16 %v2591, %v2591
      %v2624 = vpack.c.bf16 %v2592, %v2592
      %v2625 = vpack.c.bf16 %v2593, %v2593
      %v2626 = vpack.c.bf16 %v2594, %v2594
      %v2627 = vpack.c.bf16 %v2595, %v2595
      %v2628 = vpack.c.bf16 %v2596, %v2596
      %v2629 = vpack.c.bf16 %v2597, %v2597
      %v2630 = vpack.c.bf16 %v2598, %v2598
      %v2631 = vpack.c.bf16 %v2599, %v2599
      %v2632 = vpack.c.bf16 %v2600, %v2600
      %vm2633 = vcmask 519168
      %2634 = vst.msk [vmem:[%s221] sm:$0xf] %vm2633, %v2601
      %2635 = vst.msk [vmem:[%s221 + $0x4] sm:$0xf] %vm2633, %v2602
      %2636 = vst.msk [vmem:[%s221 + $0x8] sm:$0xf] %vm2633, %v2603
      %2637 = vst.msk [vmem:[%s221 + $0xc] sm:$0xf] %vm2633, %v2604
      %2638 = vst.msk [vmem:[%s221 + $0x10] sm:$0xf] %vm2633, %v2605
      %2639 = vst.msk [vmem:[%s221 + $0x14] sm:$0xf] %vm2633, %v2606
      %2640 = vst.msk [vmem:[%s221 + $0x18] sm:$0xf] %vm2633, %v2607
      %2641 = vst.msk [vmem:[%s221 + $0x1c] sm:$0xf] %vm2633, %v2608
      %2642 = vst.msk [vmem:[%s221 + $0x20] sm:$0xf] %vm2633, %v2609
      %2643 = vst.msk [vmem:[%s221 + $0x24] sm:$0xf] %vm2633, %v2610
      %2644 = vst.msk [vmem:[%s221 + $0x28] sm:$0xf] %vm2633, %v2611
      %2645 = vst.msk [vmem:[%s221 + $0x2c] sm:$0xf] %vm2633, %v2612
      %2646 = vst.msk [vmem:[%s221 + $0x30] sm:$0xf] %vm2633, %v2613
      %2647 = vst.msk [vmem:[%s221 + $0x34] sm:$0xf] %vm2633, %v2614
      %2648 = vst.msk [vmem:[%s221 + $0x38] sm:$0xf] %vm2633, %v2615
      %2649 = vst.msk [vmem:[%s221 + $0x3c] sm:$0xf] %vm2633, %v2616
      %2650 = vst.msk [vmem:[%s221 + $0x40] sm:$0xf] %vm2633, %v2617
      %2651 = vst.msk [vmem:[%s221 + $0x44] sm:$0xf] %vm2633, %v2618
      %2652 = vst.msk [vmem:[%s221 + $0x48] sm:$0xf] %vm2633, %v2619
      %2653 = vst.msk [vmem:[%s221 + $0x4c] sm:$0xf] %vm2633, %v2620
      %2654 = vst.msk [vmem:[%s221 + $0x50] sm:$0xf] %vm2633, %v2621
      %2655 = vst.msk [vmem:[%s221 + $0x54] sm:$0xf] %vm2633, %v2622
      %2656 = vst.msk [vmem:[%s221 + $0x58] sm:$0xf] %vm2633, %v2623
      %2657 = vst.msk [vmem:[%s221 + $0x5c] sm:$0xf] %vm2633, %v2624
      %2658 = vst.msk [vmem:[%s221 + $0x60] sm:$0xf] %vm2633, %v2625
      %2659 = vst.msk [vmem:[%s221 + $0x64] sm:$0xf] %vm2633, %v2626
      %2660 = vst.msk [vmem:[%s221 + $0x68] sm:$0xf] %vm2633, %v2627
      %2661 = vst.msk [vmem:[%s221 + $0x6c] sm:$0xf] %vm2633, %v2628
      %2662 = vst.msk [vmem:[%s221 + $0x70] sm:$0xf] %vm2633, %v2629
      %2663 = vst.msk [vmem:[%s221 + $0x74] sm:$0xf] %vm2633, %v2630
      %2664 = vst.msk [vmem:[%s221 + $0x78] sm:$0xf] %vm2633, %v2631
      %2665 = vst.msk [vmem:[%s221 + $0x7c] sm:$0xf] %vm2633, %v2632
      %p2666 = scmp.lt.s32.totalorder %s18, 1
      %s2667 = scalar_select %p2666, %s18, 1
      %p2668 = scmp.lt.s32.totalorder %s19, 0
      %s2669 = scalar_select %p2668, %s19, 0
      %s2670 = smul.addr %s2667, 32
      %s2671 = sadd.s32 %s2669, %s2670
      %s2672 = smul.addr %s2671, 4
      %s2673 = scalar_lea.vmem %s3, %s2672
      // Predicated region
      $region33: #{_lambda_.8} parent=31 // pred_check
        %p2674 = pneg %p124
      $region34: #{_lambda_.8} parent=31 // pred_check_branch
        %2676 = sbr.rel (%p2674) target = $region36
      $region35: #{_lambda_.8} parent=31 // pred_region
        _
      $region36: #{_lambda_.8} parent=31 // pred_fallthru
        _
    $region32: #{_lambda_.8} parent=5 // pred_fallthru
      _
    %p2677 = scmp.le.s32.totalorder 2, %s9
    // Predicated region
    $region37: #{_lambda_.8} parent=5 // pred_check
      %p2678 = pneg %p2677
    $region38: #{_lambda_.8} parent=5 // pred_check_branch
      %2680 = sbr.rel (%p2678) target = $region40
    $region39: #{_lambda_.8} parent=5 // pred_region
      %s2681 = ssub.s32 %s9, 2
      // Predicated region
      $region41: #{_lambda_.8} parent=39 // pred_check
        %p2682 = pneg %p130
      $region42: #{_lambda_.8} parent=39 // pred_check_branch
        %2684 = sbr.rel (%p2682) target = $region44
      $region43: #{_lambda_.8} parent=39 // pred_region
        %p2685 = scmp.lt.s32.totalorder %s20, 1
        %s2686 = scalar_select %p2685, %s20, 1
        %p2687 = scmp.lt.s32.totalorder %s21, 0
        %s2688 = scalar_select %p2687, %s21, 0
        %s2689 = smul.addr %s2686, 32
        %s2690 = sadd.s32 %s2688, %s2689
        %s2691 = smul.addr %s2690, 4
        %s2692 = scalar_lea.vmem %s3, %s2691
      $region44: #{_lambda_.8} parent=39 // pred_fallthru
        _
    $region40: #{_lambda_.8} parent=5 // pred_fallthru
      _
  $region6: #{_lambda_.8} parent=0 // loop_footer
    %s13 = sadd.s32 1, %s9
  $region7: #{_lambda_.8} parent=0 // loop_footer_branch
    %8 = sbr.rel target = $region3
  $region8: #{_lambda_.8} parent=0 // loop_exit
    _

// kernel: _lambda_.11
$region0: #{_lambda_.11}
  #allocation0 [shape = 'u32[]', space=smem, size = 0x4, offset = 0x4, fixed_abs, tag = 'smem constant byte address 0x4 - core index']
  #allocation1 [shape = 'u32[72,128]{1,0:T(1,128)}', space=vmem, size = 0x9000, scoped, tag = 'internal scratch']
  #allocation2 [shape = 'f32[256,64]{1,0:T(8,128)}', space=vmem, size = 0x20000, scoped, tag = 'scratch operand']
  %s0 = inlined_call_operand.vmem [shape: bf16[512,256], index: 0, kind: input, shape index: {}]
  %s1 = inlined_call_operand.vmem [shape: bf16[256,64], index: 1, kind: input, shape index: {}]
  %s2 = inlined_call_operand.vmem [shape: f32[1,64], index: 2, kind: input, shape index: {}]
  %s3 = inlined_call_operand.vmem [shape: bf16[512,64], index: 3, kind: output, shape index: {}]
  %s4 = sld [smem:[#allocation0]]
  $region53: #{_lambda_.11} parent=0
    _
  %s6 = ssub.s32 1, %s4
  %s7 = scalar_select 0, %s6, %s4
  loop: start=0, step=1, limit=4
  $region2: #{_lambda_.11} parent=0 // loop_pre_header
    _
  $region3: #{_lambda_.11} parent=0 // loop_header
    %s9 = sphi 0, %s13
    %p10 = scmp.ge.s32.totalorder %s9, 4
    %s16 = sphi 0, %s35
    %s17 = sphi 0, %s31
    %s18 = sphi 0, %s27
    %s19 = sphi 0, %s16
    %s20 = sphi 0, %s17
    %s21 = sphi 0, %s18
    %s22 = sphi 0, %s19
    %s23 = sphi 0, %s20
    %s24 = sphi 0, %s21
    %s40 = sphi 0, %s42
    %s43 = sphi 0, %s40
    %s44 = sphi 0, %s43
    %s60 = sphi 0, %s44
    %s68 = sphi 0, %s70
    %s71 = sphi 0, %s68
    %s72 = sphi 0, %s71
    %s88 = sphi 0, %s72
    %s94 = sphi 0, %s96
    %s97 = sphi 0, %s94
    %s98 = sphi 0, %s97
    %s114 = sphi 0, %s98
    %s122 = sphi 0, %s124
    %s125 = sphi 0, %s122
    %s126 = sphi 0, %s125
    %s142 = sphi 0, %s126
  $region4: #{_lambda_.11} parent=0 // loop_header_branch
    %12 = sbr.rel (%p10) target = $region8
  $region5: #{_lambda_.11} parent=0 // loop_body
    %s14 = ssub.s32 %s9, 1
    %s15 = ssub.s32 %s9, 2
    %s25 = sadd.s32 1, %s18
    %p26 = scmp.ge.s32.totalorder %s25, 1
    %s27 = scalar_select %p26, 0, %s25
    %s28 = sadd.s32 1, %s17
    %s29 = scalar_select %p26, %s28, %s17
    %p30 = scmp.ge.s32.totalorder %s29, 1
    %s31 = scalar_select %p30, 0, %s29
    %s32 = sadd.s32 1, %s16
    %s33 = scalar_select %p30, %s32, %s16
    %p34 = scmp.ge.s32.totalorder %s33, 2
    %s35 = scalar_select %p34, 0, %s33
    %s36 = ssub.s32 %s16, %s35
    %s37 = ssub.s32 %s18, %s27
    %s38 = sor.u32 %s36, %s37
    %p39 = scmp.eq.s32.totalorder %s38, 0
    %s41 = sadd.s32 %s40, 1
    %s42 = scalar_select %p39, %s40, %s41
    %p45 = pneg %p39
    %p46 = scmp.eq.s32.totalorder %s9, 1
    %p47 = por %p45, %p46
    %p48 = scmp.ne.s32.totalorder %s40, %s43
    %p49 = scmp.eq.s32.totalorder %s9, 0
    %p50 = por %p48, %p49
    %p51 = scmp.ne.s32.totalorder %s40, %s43
    %p52 = scmp.eq.s32.totalorder %s14, 1
    %p53 = por %p51, %p52
    %p54 = scmp.ne.s32.totalorder %s43, %s44
    %p55 = scmp.eq.s32.totalorder %s14, 0
    %p56 = por %p54, %p55
    %p57 = scmp.ne.s32.totalorder %s43, %s44
    %p58 = scmp.eq.s32.totalorder %s15, 1
    %p59 = por %p57, %p58
    %p61 = scmp.ne.s32.totalorder %s44, %s60
    %p62 = scmp.eq.s32.totalorder %s15, 0
    %p63 = por %p61, %p62
    %s64 = ssub.s32 %s18, %s27
    %s65 = ssub.s32 %s17, %s31
    %s66 = sor.u32 %s64, %s65
    %p67 = scmp.eq.s32.totalorder %s66, 0
    %s69 = sadd.s32 %s68, 1
    %s70 = scalar_select %p67, %s68, %s69
    %p73 = pneg %p67
    %p74 = scmp.eq.s32.totalorder %s9, 1
    %p75 = por %p73, %p74
    %p76 = scmp.ne.s32.totalorder %s68, %s71
    %p77 = scmp.eq.s32.totalorder %s9, 0
    %p78 = por %p76, %p77
    %p79 = scmp.ne.s32.totalorder %s68, %s71
    %p80 = scmp.eq.s32.totalorder %s14, 1
    %p81 = por %p79, %p80
    %p82 = scmp.ne.s32.totalorder %s71, %s72
    %p83 = scmp.eq.s32.totalorder %s14, 0
    %p84 = por %p82, %p83
    %p85 = scmp.ne.s32.totalorder %s71, %s72
    %p86 = scmp.eq.s32.totalorder %s15, 1
    %p87 = por %p85, %p86
    %p89 = scmp.ne.s32.totalorder %s72, %s88
    %p90 = scmp.eq.s32.totalorder %s15, 0
    %p91 = por %p89, %p90
    %s92 = ssub.s32 %s17, %s31
    %p93 = scmp.eq.s32.totalorder %s92, 0
    %s95 = sadd.s32 %s94, 1
    %s96 = scalar_select %p93, %s94, %s95
    %p99 = pneg %p93
    %p100 = scmp.eq.s32.totalorder %s9, 1
    %p101 = por %p99, %p100
    %p102 = scmp.ne.s32.totalorder %s94, %s97
    %p103 = scmp.eq.s32.totalorder %s9, 0
    %p104 = por %p102, %p103
    %p105 = scmp.ne.s32.totalorder %s94, %s97
    %p106 = scmp.eq.s32.totalorder %s14, 1
    %p107 = por %p105, %p106
    %p108 = scmp.ne.s32.totalorder %s97, %s98
    %p109 = scmp.eq.s32.totalorder %s14, 0
    %p110 = por %p108, %p109
    %p111 = scmp.ne.s32.totalorder %s97, %s98
    %p112 = scmp.eq.s32.totalorder %s15, 1
    %p113 = por %p111, %p112
    %p115 = scmp.ne.s32.totalorder %s98, %s114
    %p116 = scmp.eq.s32.totalorder %s15, 0
    %p117 = por %p115, %p116
    %s118 = ssub.s32 %s16, %s35
    %s119 = ssub.s32 %s17, %s31
    %s120 = sor.u32 %s118, %s119
    %p121 = scmp.eq.s32.totalorder %s120, 0
    %s123 = sadd.s32 %s122, 1
    %s124 = scalar_select %p121, %s122, %s123
    %p127 = pneg %p121
    %p128 = scmp.eq.s32.totalorder %s9, 1
    %p129 = por %p127, %p128
    %p130 = scmp.ne.s32.totalorder %s122, %s125
    %p131 = scmp.eq.s32.totalorder %s9, 0
    %p132 = por %p130, %p131
    %p133 = scmp.ne.s32.totalorder %s122, %s125
    %p134 = scmp.eq.s32.totalorder %s14, 1
    %p135 = por %p133, %p134
    %p136 = scmp.ne.s32.totalorder %s125, %s126
    %p137 = scmp.eq.s32.totalorder %s14, 0
    %p138 = por %p136, %p137
    %p139 = scmp.ne.s32.totalorder %s125, %s126
    %p140 = scmp.eq.s32.totalorder %s15, 1
    %p141 = por %p139, %p140
    %p143 = scmp.ne.s32.totalorder %s126, %s142
    %p144 = scmp.eq.s32.totalorder %s15, 0
    %p145 = por %p143, %p144
    %p146 = scmp.le.s32.totalorder 1, %s9
    %p147 = scmp.lt.s32.totalorder %s9, 3
    %p148 = pnand %p146, %p147
    %p149 = pneg %p148
    // Predicated region
    $region9: #{_lambda_.11} parent=5 // pred_check
      _
    $region10: #{_lambda_.11} parent=5 // pred_check_branch
      %151 = sbr.rel (%p148) target = $region12
    $region11: #{_lambda_.11} parent=5 // pred_region
      %s152 = ssub.s32 %s9, 1
      // Predicated region
      $region13: #{_lambda_.11} parent=11 // pred_check
        %p153 = pneg %p84
      $region14: #{_lambda_.11} parent=11 // pred_check_branch
        %155 = sbr.rel (%p153) target = $region16
      $region15: #{_lambda_.11} parent=11 // pred_region
        %s156 = smul.u32 32, %s21
        %p157 = scmp.lt.s32.totalorder %s156, 31
        %s158 = scalar_select %p157, %s156, 31
        %p159 = scmp.lt.s32.totalorder %s20, 0
        %s160 = scalar_select %p159, %s20, 0
        %s161 = sadd.s32 %s160, %s158
        %s162 = smul.addr %s161, 4
        %s163 = scalar_lea.vmem %s1, %s162
        %s164 = smul.u32 32, %s21
      $region16: #{_lambda_.11} parent=11 // pred_fallthru
        _
      // Predicated region
      $region17: #{_lambda_.11} parent=11 // pred_check
        %p165 = pneg %p110
      $region18: #{_lambda_.11} parent=11 // pred_check_branch
        %167 = sbr.rel (%p165) target = $region20
      $region19: #{_lambda_.11} parent=11 // pred_region
        %p168 = scmp.lt.s32.totalorder %s20, 0
        %s169 = scalar_select %p168, %s20, 0
        %s170 = scalar_lea.vmem %s2, %s169
      $region20: #{_lambda_.11} parent=11 // pred_fallthru
        _
    $region12: #{_lambda_.11} parent=5 // pred_fallthru
      _
    %p171 = scmp.lt.s32.totalorder %s9, 2
    // Predicated region
    $region21: #{_lambda_.11} parent=5 // pred_check
      %p172 = pneg %p171
    $region22: #{_lambda_.11} parent=5 // pred_check_branch
      %174 = sbr.rel (%p172) target = $region24
    $region23: #{_lambda_.11} parent=5 // pred_region
      // Predicated region
      $region25: #{_lambda_.11} parent=23 // pred_check
        %p175 = pneg %p50
      $region26: #{_lambda_.11} parent=23 // pred_check_branch
        %177 = sbr.rel (%p175) target = $region28
      $region27: #{_lambda_.11} parent=23 // pred_region
        %s178 = smul.u32 32, %s16
        %s179 = smul.u32 2, %s18
        %p180 = scmp.lt.s32.totalorder %s178, 63
        %s181 = scalar_select %p180, %s178, 63
        %p182 = scmp.lt.s32.totalorder %s179, 1
        %s183 = scalar_select %p182, %s179, 1
        %s184 = smul.addr %s181, 2
        %s185 = sadd.s32 %s183, %s184
        %s186 = smul.addr %s185, 4
        %s187 = scalar_lea.vmem %s0, %s186
        %s188 = smul.u32 32, %s16
        %s189 = smul.u32 2, %s18
      $region28: #{_lambda_.11} parent=23 // pred_fallthru
        _
    $region24: #{_lambda_.11} parent=5 // pred_fallthru
      _
    %p190 = scmp.le.s32.totalorder 1, %s9
    %p191 = scmp.lt.s32.totalorder %s9, 3
    %p192 = pnand %p190, %p191
    %p193 = pneg %p192
    // Predicated region
    $region29: #{_lambda_.11} parent=5 // pred_check
      _
    $region30: #{_lambda_.11} parent=5 // pred_check_branch
      %195 = sbr.rel (%p192) target = $region32
    $region31: #{_lambda_.11} parent=5 // pred_region
      %s196 = ssub.s32 %s9, 1
      %s197 = smul.u32 32, %s19
      %s198 = smul.u32 2, %s21
      %p199 = scmp.lt.s32.totalorder %s197, 63
      %s200 = scalar_select %p199, %s197, 63
      %p201 = scmp.lt.s32.totalorder %s198, 1
      %s202 = scalar_select %p201, %s198, 1
      %s203 = smul.addr %s200, 2
      %s204 = sadd.s32 %s202, %s203
      %s205 = smul.addr %s204, 4
      %s206 = scalar_lea.vmem %s0, %s205
      %p207 = pneg %p56
      %p208 = pneg %p53
      %s209 = smul.u32 32, %s21
      %p210 = scmp.lt.s32.totalorder %s209, 31
      %s211 = scalar_select %p210, %s209, 31
      %p212 = scmp.lt.s32.totalorder %s20, 0
      %s213 = scalar_select %p212, %s20, 0
      %s214 = sadd.s32 %s213, %s211
      %s215 = smul.addr %s214, 4
      %s216 = scalar_lea.vmem %s1, %s215
      %p217 = pneg %p84
      %p218 = pneg %p81
      %p219 = scmp.lt.s32.totalorder %s20, 0
      %s220 = scalar_select %p219, %s20, 0
      %s221 = scalar_lea.vmem %s2, %s220
      %p222 = pneg %p110
      %p223 = pneg %p107
      %p224 = pneg %p138
      %p225 = pneg %p135
      %s226 = smul.u32 32, %s19
      %p227 = scmp.lt.s32.totalorder %s226, 63
      %s228 = scalar_select %p227, %s226, 63
      %p229 = scmp.lt.s32.totalorder %s20, 0
      %s230 = scalar_select %p229, %s20, 0
      %s231 = sadd.s32 %s230, %s228
      %s232 = smul.addr %s231, 4
      %s233 = scalar_lea.vmem %s3, %s232
      %s234 = smul.u32 32, %s19
      %s235 = smul.u32 2, %s21
      %p236 = scmp.lt.s32.totalorder %s234, 63
      %s237 = scalar_select %p236, %s234, 63
      %p238 = scmp.lt.s32.totalorder %s235, 1
      %s239 = scalar_select %p238, %s235, 1
      %s240 = smul.addr %s237, 2
      %s241 = sadd.s32 %s239, %s240
      %s242 = smul.addr %s241, 4
      %s243 = scalar_lea.vmem %s0, %s242
      %s244 = smul.u32 32, %s19
      %s245 = smul.u32 2, %s21
      %s246 = smul.u32 32, %s21
      %p247 = scmp.lt.s32.totalorder %s246, 31
      %s248 = scalar_select %p247, %s246, 31
      %p249 = scmp.lt.s32.totalorder %s20, 0
      %s250 = scalar_select %p249, %s20, 0
      %s251 = sadd.s32 %s250, %s248
      %s252 = smul.addr %s251, 4
      %s253 = scalar_lea.vmem %s1, %s252
      %s254 = smul.u32 32, %s21
      %p255 = scmp.lt.s32.totalorder %s20, 0
      %s256 = scalar_select %p255, %s20, 0
      %s257 = scalar_lea.vmem %s2, %s256
      %s258 = smul.u32 32, %s19
      %p259 = scmp.lt.s32.totalorder %s258, 63
      %s260 = scalar_select %p259, %s258, 63
      %p261 = scmp.lt.s32.totalorder %s20, 0
      %s262 = scalar_select %p261, %s20, 0
      %s263 = sadd.s32 %s262, %s260
      %s264 = smul.addr %s263, 4
      %s265 = scalar_lea.vmem %s3, %s264
      %s266 = smul.u32 32, %s19
      %p267 = scmp.eq.s32.totalorder %s21, 0
      // Predicated region
      $region33: #{_lambda_.11} parent=31 // pred_check
        %p268 = pneg %p267
      $region34: #{_lambda_.11} parent=31 // pred_check_branch
        %270 = sbr.rel (%p268) target = $region36
      $region35: #{_lambda_.11} parent=31 // pred_region
        %vm271 = vcmask 523264
        %272 = vst.msk [vmem:[#allocation2] sm:$0xff] %vm271, 0.0
        %273 = vst.msk [vmem:[#allocation2 + $0x8] sm:$0xff] %vm271, 0.0
        %274 = vst.msk [vmem:[#allocation2 + $0x10] sm:$0xff] %vm271, 0.0
        %275 = vst.msk [vmem:[#allocation2 + $0x18] sm:$0xff] %vm271, 0.0
        %276 = vst.msk [vmem:[#allocation2 + $0x20] sm:$0xff] %vm271, 0.0
        %277 = vst.msk [vmem:[#allocation2 + $0x28] sm:$0xff] %vm271, 0.0
        %278 = vst.msk [vmem:[#allocation2 + $0x30] sm:$0xff] %vm271, 0.0
        %279 = vst.msk [vmem:[#allocation2 + $0x38] sm:$0xff] %vm271, 0.0
        %280 = vst.msk [vmem:[#allocation2 + $0x40] sm:$0xff] %vm271, 0.0
        %281 = vst.msk [vmem:[#allocation2 + $0x48] sm:$0xff] %vm271, 0.0
        %282 = vst.msk [vmem:[#allocation2 + $0x50] sm:$0xff] %vm271, 0.0
        %283 = vst.msk [vmem:[#allocation2 + $0x58] sm:$0xff] %vm271, 0.0
        %284 = vst.msk [vmem:[#allocation2 + $0x60] sm:$0xff] %vm271, 0.0
        %285 = vst.msk [vmem:[#allocation2 + $0x68] sm:$0xff] %vm271, 0.0
        %286 = vst.msk [vmem:[#allocation2 + $0x70] sm:$0xff] %vm271, 0.0
        %287 = vst.msk [vmem:[#allocation2 + $0x78] sm:$0xff] %vm271, 0.0
        %288 = vst.msk [vmem:[#allocation2 + $0x80] sm:$0xff] %vm271, 0.0
        %289 = vst.msk [vmem:[#allocation2 + $0x88] sm:$0xff] %vm271, 0.0
        %290 = vst.msk [vmem:[#allocation2 + $0x90] sm:$0xff] %vm271, 0.0
        %291 = vst.msk [vmem:[#allocation2 + $0x98] sm:$0xff] %vm271, 0.0
        %292 = vst.msk [vmem:[#allocation2 + $0xa0] sm:$0xff] %vm271, 0.0
        %293 = vst.msk [vmem:[#allocation2 + $0xa8] sm:$0xff] %vm271, 0.0
        %294 = vst.msk [vmem:[#allocation2 + $0xb0] sm:$0xff] %vm271, 0.0
        %295 = vst.msk [vmem:[#allocation2 + $0xb8] sm:$0xff] %vm271, 0.0
        %296 = vst.msk [vmem:[#allocation2 + $0xc0] sm:$0xff] %vm271, 0.0
        %297 = vst.msk [vmem:[#allocation2 + $0xc8] sm:$0xff] %vm271, 0.0
        %298 = vst.msk [vmem:[#allocation2 + $0xd0] sm:$0xff] %vm271, 0.0
        %299 = vst.msk [vmem:[#allocation2 + $0xd8] sm:$0xff] %vm271, 0.0
        %300 = vst.msk [vmem:[#allocation2 + $0xe0] sm:$0xff] %vm271, 0.0
        %301 = vst.msk [vmem:[#allocation2 + $0xe8] sm:$0xff] %vm271, 0.0
        %302 = vst.msk [vmem:[#allocation2 + $0xf0] sm:$0xff] %vm271, 0.0
        %303 = vst.msk [vmem:[#allocation2 + $0xf8] sm:$0xff] %vm271, 0.0
      $region36: #{_lambda_.11} parent=31 // pred_fallthru
        _
      %v304 = vld [vmem:[#allocation2] sm:$0xff]
      %v305 = vld [vmem:[#allocation2 + $0x8] sm:$0xff]
      %v306 = vld [vmem:[#allocation2 + $0x10] sm:$0xff]
      %v307 = vld [vmem:[#allocation2 + $0x18] sm:$0xff]
      %v308 = vld [vmem:[#allocation2 + $0x20] sm:$0xff]
      %v309 = vld [vmem:[#allocation2 + $0x28] sm:$0xff]
      %v310 = vld [vmem:[#allocation2 + $0x30] sm:$0xff]
      %v311 = vld [vmem:[#allocation2 + $0x38] sm:$0xff]
      %v312 = vld [vmem:[#allocation2 + $0x40] sm:$0xff]
      %v313 = vld [vmem:[#allocation2 + $0x48] sm:$0xff]
      %v314 = vld [vmem:[#allocation2 + $0x50] sm:$0xff]
      %v315 = vld [vmem:[#allocation2 + $0x58] sm:$0xff]
      %v316 = vld [vmem:[#allocation2 + $0x60] sm:$0xff]
      %v317 = vld [vmem:[#allocation2 + $0x68] sm:$0xff]
      %v318 = vld [vmem:[#allocation2 + $0x70] sm:$0xff]
      %v319 = vld [vmem:[#allocation2 + $0x78] sm:$0xff]
      %v320 = vld [vmem:[#allocation2 + $0x80] sm:$0xff]
      %v321 = vld [vmem:[#allocation2 + $0x88] sm:$0xff]
      %v322 = vld [vmem:[#allocation2 + $0x90] sm:$0xff]
      %v323 = vld [vmem:[#allocation2 + $0x98] sm:$0xff]
      %v324 = vld [vmem:[#allocation2 + $0xa0] sm:$0xff]
      %v325 = vld [vmem:[#allocation2 + $0xa8] sm:$0xff]
      %v326 = vld [vmem:[#allocation2 + $0xb0] sm:$0xff]
      %v327 = vld [vmem:[#allocation2 + $0xb8] sm:$0xff]
      %v328 = vld [vmem:[#allocation2 + $0xc0] sm:$0xff]
      %v329 = vld [vmem:[#allocation2 + $0xc8] sm:$0xff]
      %v330 = vld [vmem:[#allocation2 + $0xd0] sm:$0xff]
      %v331 = vld [vmem:[#allocation2 + $0xd8] sm:$0xff]
      %v332 = vld [vmem:[#allocation2 + $0xe0] sm:$0xff]
      %v333 = vld [vmem:[#allocation2 + $0xe8] sm:$0xff]
      %v334 = vld [vmem:[#allocation2 + $0xf0] sm:$0xff]
      %v335 = vld [vmem:[#allocation2 + $0xf8] sm:$0xff]
      %v336 = vld [vmem:[%s243] sm:$0xff]
      %v337 = vld [vmem:[%s243 + $0x8] sm:$0xff]
      %v338 = vld [vmem:[%s243 + $0x10] sm:$0xff]
      %v339 = vld [vmem:[%s243 + $0x18] sm:$0xff]
      %v340 = vld [vmem:[%s243 + $0x20] sm:$0xff]
      %v341 = vld [vmem:[%s243 + $0x28] sm:$0xff]
      %v342 = vld [vmem:[%s243 + $0x30] sm:$0xff]
      %v343 = vld [vmem:[%s243 + $0x38] sm:$0xff]
      %v344 = vld [vmem:[%s243 + $0x40] sm:$0xff]
      %v345 = vld [vmem:[%s243 + $0x48] sm:$0xff]
      %v346 = vld [vmem:[%s243 + $0x50] sm:$0xff]
      %v347 = vld [vmem:[%s243 + $0x58] sm:$0xff]
      %v348 = vld [vmem:[%s243 + $0x60] sm:$0xff]
      %v349 = vld [vmem:[%s243 + $0x68] sm:$0xff]
      %v350 = vld [vmem:[%s243 + $0x70] sm:$0xff]
      %v351 = vld [vmem:[%s243 + $0x78] sm:$0xff]
      %v352 = vld [vmem:[%s243 + $0x80] sm:$0xff]
      %v353 = vld [vmem:[%s243 + $0x88] sm:$0xff]
      %v354 = vld [vmem:[%s243 + $0x90] sm:$0xff]
      %v355 = vld [vmem:[%s243 + $0x98] sm:$0xff]
      %v356 = vld [vmem:[%s243 + $0xa0] sm:$0xff]
      %v357 = vld [vmem:[%s243 + $0xa8] sm:$0xff]
      %v358 = vld [vmem:[%s243 + $0xb0] sm:$0xff]
      %v359 = vld [vmem:[%s243 + $0xb8] sm:$0xff]
      %v360 = vld [vmem:[%s243 + $0xc0] sm:$0xff]
      %v361 = vld [vmem:[%s243 + $0xc8] sm:$0xff]
      %v362 = vld [vmem:[%s243 + $0xd0] sm:$0xff]
      %v363 = vld [vmem:[%s243 + $0xd8] sm:$0xff]
      %v364 = vld [vmem:[%s243 + $0xe0] sm:$0xff]
      %v365 = vld [vmem:[%s243 + $0xe8] sm:$0xff]
      %v366 = vld [vmem:[%s243 + $0xf0] sm:$0xff]
      %v367 = vld [vmem:[%s243 + $0xf8] sm:$0xff]
      %v368 = vld [vmem:[%s253] sm:$0xf]
      %v369 = vld [vmem:[%s253 + $0x4] sm:$0xf]
      %v370 = vld [vmem:[%s253 + $0x8] sm:$0xf]
      %v371 = vld [vmem:[%s253 + $0xc] sm:$0xf]
      %v372 = vld [vmem:[%s253 + $0x10] sm:$0xf]
      %v373 = vld [vmem:[%s253 + $0x14] sm:$0xf]
      %v374 = vld [vmem:[%s253 + $0x18] sm:$0xf]
      %v375 = vld [vmem:[%s253 + $0x1c] sm:$0xf]
      %v376 = vld [vmem:[%s253 + $0x20] sm:$0xf]
      %v377 = vld [vmem:[%s253 + $0x24] sm:$0xf]
      %v378 = vld [vmem:[%s253 + $0x28] sm:$0xf]
      %v379 = vld [vmem:[%s253 + $0x2c] sm:$0xf]
      %v380 = vld [vmem:[%s253 + $0x30] sm:$0xf]
      %v381 = vld [vmem:[%s253 + $0x34] sm:$0xf]
      %v382 = vld [vmem:[%s253 + $0x38] sm:$0xf]
      %v383 = vld [vmem:[%s253 + $0x3c] sm:$0xf]
      %v384 = vld [vmem:[%s253 + $0x40] sm:$0xf]
      %v385 = vld [vmem:[%s253 + $0x44] sm:$0xf]
      %v386 = vld [vmem:[%s253 + $0x48] sm:$0xf]
      %v387 = vld [vmem:[%s253 + $0x4c] sm:$0xf]
      %v388 = vld [vmem:[%s253 + $0x50] sm:$0xf]
      %v389 = vld [vmem:[%s253 + $0x54] sm:$0xf]
      %v390 = vld [vmem:[%s253 + $0x58] sm:$0xf]
      %v391 = vld [vmem:[%s253 + $0x5c] sm:$0xf]
      %v392 = vld [vmem:[%s253 + $0x60] sm:$0xf]
      %v393 = vld [vmem:[%s253 + $0x64] sm:$0xf]
      %v394 = vld [vmem:[%s253 + $0x68] sm:$0xf]
      %v395 = vld [vmem:[%s253 + $0x6c] sm:$0xf]
      %v396 = vld [vmem:[%s253 + $0x70] sm:$0xf]
      %v397 = vld [vmem:[%s253 + $0x74] sm:$0xf]
      %v398 = vld [vmem:[%s253 + $0x78] sm:$0xf]
      %v399 = vld [vmem:[%s253 + $0x7c] sm:$0xf]
      %v432 = vunpack.c.l.b16 %v336
      %v433 = vunpack.c.h.b16 %v336
      %v434 = vunpack.c.l.b16 %v337
      %v435 = vunpack.c.h.b16 %v337
      %v436 = vunpack.c.l.b16 %v338
      %v437 = vunpack.c.h.b16 %v338
      %v438 = vunpack.c.l.b16 %v339
      %v439 = vunpack.c.h.b16 %v339
      %v440 = vunpack.c.l.b16 %v340
      %v441 = vunpack.c.h.b16 %v340
      %v442 = vunpack.c.l.b16 %v341
      %v443 = vunpack.c.h.b16 %v341
      %v444 = vunpack.c.l.b16 %v342
      %v445 = vunpack.c.h.b16 %v342
      %v446 = vunpack.c.l.b16 %v343
      %v447 = vunpack.c.h.b16 %v343
      %v448 = vunpack.c.l.b16 %v344
      %v449 = vunpack.c.h.b16 %v344
      %v450 = vunpack.c.l.b16 %v345
      %v451 = vunpack.c.h.b16 %v345
      %v452 = vunpack.c.l.b16 %v346
      %v453 = vunpack.c.h.b16 %v346
      %v454 = vunpack.c.l.b16 %v347
      %v455 = vunpack.c.h.b16 %v347
      %v456 = vunpack.c.l.b16 %v348
      %v457 = vunpack.c.h.b16 %v348
      %v458 = vunpack.c.l.b16 %v349
      %v459 = vunpack.c.h.b16 %v349
      %v460 = vunpack.c.l.b16 %v350
      %v461 = vunpack.c.h.b16 %v350
      %v462 = vunpack.c.l.b16 %v351
      %v463 = vunpack.c.h.b16 %v351
      %v464 = vunpack.c.l.b16 %v352
      %v465 = vunpack.c.h.b16 %v352
      %v466 = vunpack.c.l.b16 %v353
      %v467 = vunpack.c.h.b16 %v353
      %v468 = vunpack.c.l.b16 %v354
      %v469 = vunpack.c.h.b16 %v354
      %v470 = vunpack.c.l.b16 %v355
      %v471 = vunpack.c.h.b16 %v355
      %v472 = vunpack.c.l.b16 %v356
      %v473 = vunpack.c.h.b16 %v356
      %v474 = vunpack.c.l.b16 %v357
      %v475 = vunpack.c.h.b16 %v357
      %v476 = vunpack.c.l.b16 %v358
      %v477 = vunpack.c.h.b16 %v358
      %v478 = vunpack.c.l.b16 %v359
      %v479 = vunpack.c.h.b16 %v359
      %v480 = vunpack.c.l.b16 %v360
      %v481 = vunpack.c.h.b16 %v360
      %v482 = vunpack.c.l.b16 %v361
      %v483 = vunpack.c.h.b16 %v361
      %v484 = vunpack.c.l.b16 %v362
      %v485 = vunpack.c.h.b16 %v362
      %v486 = vunpack.c.l.b16 %v363
      %v487 = vunpack.c.h.b16 %v363
      %v488 = vunpack.c.l.b16 %v364
      %v489 = vunpack.c.h.b16 %v364
      %v490 = vunpack.c.l.b16 %v365
      %v491 = vunpack.c.h.b16 %v365
      %v492 = vunpack.c.l.b16 %v366
      %v493 = vunpack.c.h.b16 %v366
      %v494 = vunpack.c.l.b16 %v367
      %v495 = vunpack.c.h.b16 %v367
      %v496 = vpack.c.b16 %v434, %v432
      %v497 = vpack.c.b16 %v435, %v433
      %v498 = vpack.c.b16 %v438, %v436
      %v499 = vpack.c.b16 %v439, %v437
      %v500 = vpack.c.b16 %v442, %v440
      %v501 = vpack.c.b16 %v443, %v441
      %v502 = vpack.c.b16 %v446, %v444
      %v503 = vpack.c.b16 %v447, %v445
      %v504 = vpack.c.b16 %v450, %v448
      %v505 = vpack.c.b16 %v451, %v449
      %v506 = vpack.c.b16 %v454, %v452
      %v507 = vpack.c.b16 %v455, %v453
      %v508 = vpack.c.b16 %v458, %v456
      %v509 = vpack.c.b16 %v459, %v457
      %v510 = vpack.c.b16 %v462, %v460
      %v511 = vpack.c.b16 %v463, %v461
      %v512 = vpack.c.b16 %v466, %v464
      %v513 = vpack.c.b16 %v467, %v465
      %v514 = vpack.c.b16 %v470, %v468
      %v515 = vpack.c.b16 %v471, %v469
      %v516 = vpack.c.b16 %v474, %v472
      %v517 = vpack.c.b16 %v475, %v473
      %v518 = vpack.c.b16 %v478, %v476
      %v519 = vpack.c.b16 %v479, %v477
      %v520 = vpack.c.b16 %v482, %v480
      %v521 = vpack.c.b16 %v483, %v481
      %v522 = vpack.c.b16 %v486, %v484
      %v523 = vpack.c.b16 %v487, %v485
      %v524 = vpack.c.b16 %v490, %v488
      %v525 = vpack.c.b16 %v491, %v489
      %v526 = vpack.c.b16 %v494, %v492
      %v527 = vpack.c.b16 %v495, %v493
      %v592 = vunpack.c.l.b16 %v368
      %v593 = vunpack.c.l.b16 %v369
      %v594 = vunpack.c.l.b16 %v370
      %v595 = vunpack.c.l.b16 %v371
      %v596 = vunpack.c.l.b16 %v372
      %v597 = vunpack.c.l.b16 %v373
      %v598 = vunpack.c.l.b16 %v374
      %v599 = vunpack.c.l.b16 %v375
      %v600 = vunpack.c.l.b16 %v376
      %v601 = vunpack.c.l.b16 %v377
      %v602 = vunpack.c.l.b16 %v378
      %v603 = vunpack.c.l.b16 %v379
      %v604 = vunpack.c.l.b16 %v380
      %v605 = vunpack.c.l.b16 %v381
      %v606 = vunpack.c.l.b16 %v382
      %v607 = vunpack.c.l.b16 %v383
      %v608 = vunpack.c.l.b16 %v384
      %v609 = vunpack.c.l.b16 %v385
      %v610 = vunpack.c.l.b16 %v386
      %v611 = vunpack.c.l.b16 %v387
      %v612 = vunpack.c.l.b16 %v388
      %v613 = vunpack.c.l.b16 %v389
      %v614 = vunpack.c.l.b16 %v390
      %v615 = vunpack.c.l.b16 %v391
      %v616 = vunpack.c.l.b16 %v392
      %v617 = vunpack.c.l.b16 %v393
      %v618 = vunpack.c.l.b16 %v394
      %v619 = vunpack.c.l.b16 %v395
      %v620 = vunpack.c.l.b16 %v396
      %v621 = vunpack.c.l.b16 %v397
      %v622 = vunpack.c.l.b16 %v398
      %v623 = vunpack.c.l.b16 %v399
      %v624 = vpack.c.b16 %v593, %v592
      %v625 = vpack.c.b16 %v595, %v594
      %v626 = vpack.c.b16 %v597, %v596
      %v627 = vpack.c.b16 %v599, %v598
      %v628 = vpack.c.b16 %v601, %v600
      %v629 = vpack.c.b16 %v603, %v602
      %v630 = vpack.c.b16 %v605, %v604
      %v631 = vpack.c.b16 %v607, %v606
      %v632 = vpack.c.b16 %v609, %v608
      %v633 = vpack.c.b16 %v611, %v610
      %v634 = vpack.c.b16 %v613, %v612
      %v635 = vpack.c.b16 %v615, %v614
      %v636 = vpack.c.b16 %v617, %v616
      %v637 = vpack.c.b16 %v619, %v618
      %v638 = vpack.c.b16 %v621, %v620
      %v639 = vpack.c.b16 %v623, %v622
      %656 = vmatpush.bf16.msra.mxu0 %v631
      %657 = vmatpush.bf16.msra.mxu0 %v630
      %658 = vmatpush.bf16.msra.mxu0 %v629
      %659 = vmatpush.bf16.msra.mxu0 %v628
      %660 = vmatpush.bf16.msra.mxu0 %v627
      %661 = vmatpush.bf16.msra.mxu0 %v626
      %662 = vmatpush.bf16.msra.mxu0 %v625
      %663 = vmatpush.bf16.msra.mxu0 %v624
      %664 = vmatmul.bf16.gmra.mxu0 %v496
      %v665 = vpop.f32.mrf.mxu0
      %v666 = vadd.f32 0.0, %v665
      %v667 = vpop.f32.mrf.mxu0
      %v668 = vadd.f32 0.0, %v667
      %669 = vmatmul.bf16.gmra.mxu0 %v498
      %v670 = vpop.f32.mrf.mxu0
      %v671 = vadd.f32 0.0, %v670
      %v672 = vpop.f32.mrf.mxu0
      %v673 = vadd.f32 0.0, %v672
      %674 = vmatmul.bf16.gmra.mxu0 %v500
      %v675 = vpop.f32.mrf.mxu0
      %v676 = vadd.f32 0.0, %v675
      %v677 = vpop.f32.mrf.mxu0
      %v678 = vadd.f32 0.0, %v677
      %679 = vmatmul.bf16.gmra.mxu0 %v502
      %v680 = vpop.f32.mrf.mxu0
      %v681 = vadd.f32 0.0, %v680
      %v682 = vpop.f32.mrf.mxu0
      %v683 = vadd.f32 0.0, %v682
      %684 = vmatmul.bf16.gmra.mxu0 %v504
      %v685 = vpop.f32.mrf.mxu0
      %v686 = vadd.f32 0.0, %v685
      %v687 = vpop.f32.mrf.mxu0
      %v688 = vadd.f32 0.0, %v687
      %689 = vmatmul.bf16.gmra.mxu0 %v506
      %v690 = vpop.f32.mrf.mxu0
      %v691 = vadd.f32 0.0, %v690
      %v692 = vpop.f32.mrf.mxu0
      %v693 = vadd.f32 0.0, %v692
      %694 = vmatmul.bf16.gmra.mxu0 %v508
      %v695 = vpop.f32.mrf.mxu0
      %v696 = vadd.f32 0.0, %v695
      %v697 = vpop.f32.mrf.mxu0
      %v698 = vadd.f32 0.0, %v697
      %699 = vmatmul.bf16.gmra.mxu0 %v510
      %v700 = vpop.f32.mrf.mxu0
      %v701 = vadd.f32 0.0, %v700
      %v702 = vpop.f32.mrf.mxu0
      %v703 = vadd.f32 0.0, %v702
      %704 = vmatmul.bf16.gmra.mxu0 %v512
      %v705 = vpop.f32.mrf.mxu0
      %v706 = vadd.f32 0.0, %v705
      %v707 = vpop.f32.mrf.mxu0
      %v708 = vadd.f32 0.0, %v707
      %709 = vmatmul.bf16.gmra.mxu0 %v514
      %v710 = vpop.f32.mrf.mxu0
      %v711 = vadd.f32 0.0, %v710
      %v712 = vpop.f32.mrf.mxu0
      %v713 = vadd.f32 0.0, %v712
      %714 = vmatmul.bf16.gmra.mxu0 %v516
      %v715 = vpop.f32.mrf.mxu0
      %v716 = vadd.f32 0.0, %v715
      %v717 = vpop.f32.mrf.mxu0
      %v718 = vadd.f32 0.0, %v717
      %719 = vmatmul.bf16.gmra.mxu0 %v518
      %v720 = vpop.f32.mrf.mxu0
      %v721 = vadd.f32 0.0, %v720
      %v722 = vpop.f32.mrf.mxu0
      %v723 = vadd.f32 0.0, %v722
      %724 = vmatmul.bf16.gmra.mxu0 %v520
      %v725 = vpop.f32.mrf.mxu0
      %v726 = vadd.f32 0.0, %v725
      %v727 = vpop.f32.mrf.mxu0
      %v728 = vadd.f32 0.0, %v727
      %729 = vmatmul.bf16.gmra.mxu0 %v522
      %v730 = vpop.f32.mrf.mxu0
      %v731 = vadd.f32 0.0, %v730
      %v732 = vpop.f32.mrf.mxu0
      %v733 = vadd.f32 0.0, %v732
      %734 = vmatmul.bf16.gmra.mxu0 %v524
      %v735 = vpop.f32.mrf.mxu0
      %v736 = vadd.f32 0.0, %v735
      %v737 = vpop.f32.mrf.mxu0
      %v738 = vadd.f32 0.0, %v737
      %739 = vmatmul.bf16.gmra.mxu0 %v526
      %v740 = vpop.f32.mrf.mxu0
      %v741 = vadd.f32 0.0, %v740
      %v742 = vpop.f32.mrf.mxu0
      %v743 = vadd.f32 0.0, %v742
      %744 = vdwg.mxu0
      %745 = vmatpush.bf16.msra.mxu0 %v639
      %746 = vmatpush.bf16.msra.mxu0 %v638
      %747 = vmatpush.bf16.msra.mxu0 %v637
      %748 = vmatpush.bf16.msra.mxu0 %v636
      %749 = vmatpush.bf16.msra.mxu0 %v635
      %750 = vmatpush.bf16.msra.mxu0 %v634
      %751 = vmatpush.bf16.msra.mxu0 %v633
      %752 = vmatpush.bf16.msra.mxu0 %v632
      %753 = vmatmul.bf16.gmra.mxu0 %v497
      %v754 = vpop.f32.mrf.mxu0
      %v755 = vadd.f32 %v666, %v754
      %v756 = vpop.f32.mrf.mxu0
      %v757 = vadd.f32 %v668, %v756
      %758 = vmatmul.bf16.gmra.mxu0 %v499
      %v759 = vpop.f32.mrf.mxu0
      %v760 = vadd.f32 %v671, %v759
      %v761 = vpop.f32.mrf.mxu0
      %v762 = vadd.f32 %v673, %v761
      %763 = vmatmul.bf16.gmra.mxu0 %v501
      %v764 = vpop.f32.mrf.mxu0
      %v765 = vadd.f32 %v676, %v764
      %v766 = vpop.f32.mrf.mxu0
      %v767 = vadd.f32 %v678, %v766
      %768 = vmatmul.bf16.gmra.mxu0 %v503
      %v769 = vpop.f32.mrf.mxu0
      %v770 = vadd.f32 %v681, %v769
      %v771 = vpop.f32.mrf.mxu0
      %v772 = vadd.f32 %v683, %v771
      %773 = vmatmul.bf16.gmra.mxu0 %v505
      %v774 = vpop.f32.mrf.mxu0
      %v775 = vadd.f32 %v686, %v774
      %v776 = vpop.f32.mrf.mxu0
      %v777 = vadd.f32 %v688, %v776
      %778 = vmatmul.bf16.gmra.mxu0 %v507
      %v779 = vpop.f32.mrf.mxu0
      %v780 = vadd.f32 %v691, %v779
      %v781 = vpop.f32.mrf.mxu0
      %v782 = vadd.f32 %v693, %v781
      %783 = vmatmul.bf16.gmra.mxu0 %v509
      %v784 = vpop.f32.mrf.mxu0
      %v785 = vadd.f32 %v696, %v784
      %v786 = vpop.f32.mrf.mxu0
      %v787 = vadd.f32 %v698, %v786
      %788 = vmatmul.bf16.gmra.mxu0 %v511
      %v789 = vpop.f32.mrf.mxu0
      %v790 = vadd.f32 %v701, %v789
      %v791 = vpop.f32.mrf.mxu0
      %v792 = vadd.f32 %v703, %v791
      %793 = vmatmul.bf16.gmra.mxu0 %v513
      %v794 = vpop.f32.mrf.mxu0
      %v795 = vadd.f32 %v706, %v794
      %v796 = vpop.f32.mrf.mxu0
      %v797 = vadd.f32 %v708, %v796
      %798 = vmatmul.bf16.gmra.mxu0 %v515
      %v799 = vpop.f32.mrf.mxu0
      %v800 = vadd.f32 %v711, %v799
      %v801 = vpop.f32.mrf.mxu0
      %v802 = vadd.f32 %v713, %v801
      %803 = vmatmul.bf16.gmra.mxu0 %v517
      %v804 = vpop.f32.mrf.mxu0
      %v805 = vadd.f32 %v716, %v804
      %v806 = vpop.f32.mrf.mxu0
      %v807 = vadd.f32 %v718, %v806
      %808 = vmatmul.bf16.gmra.mxu0 %v519
      %v809 = vpop.f32.mrf.mxu0
      %v810 = vadd.f32 %v721, %v809
      %v811 = vpop.f32.mrf.mxu0
      %v812 = vadd.f32 %v723, %v811
      %813 = vmatmul.bf16.gmra.mxu0 %v521
      %v814 = vpop.f32.mrf.mxu0
      %v815 = vadd.f32 %v726, %v814
      %v816 = vpop.f32.mrf.mxu0
      %v817 = vadd.f32 %v728, %v816
      %818 = vmatmul.bf16.gmra.mxu0 %v523
      %v819 = vpop.f32.mrf.mxu0
      %v820 = vadd.f32 %v731, %v819
      %v821 = vpop.f32.mrf.mxu0
      %v822 = vadd.f32 %v733, %v821
      %823 = vmatmul.bf16.gmra.mxu0 %v525
      %v824 = vpop.f32.mrf.mxu0
      %v825 = vadd.f32 %v736, %v824
      %v826 = vpop.f32.mrf.mxu0
      %v827 = vadd.f32 %v738, %v826
      %828 = vmatmul.bf16.gmra.mxu0 %v527
      %v829 = vpop.f32.mrf.mxu0
      %v830 = vadd.f32 %v741, %v829
      %v831 = vpop.f32.mrf.mxu0
      %v832 = vadd.f32 %v743, %v831
      %833 = vdwg.mxu0
      %v834 = vadd.f32 %v304, %v755
      %v835 = vadd.f32 %v305, %v757
      %v836 = vadd.f32 %v306, %v760
      %v837 = vadd.f32 %v307, %v762
      %v838 = vadd.f32 %v308, %v765
      %v839 = vadd.f32 %v309, %v767
      %v840 = vadd.f32 %v310, %v770
      %v841 = vadd.f32 %v311, %v772
      %v842 = vadd.f32 %v312, %v775
      %v843 = vadd.f32 %v313, %v777
      %v844 = vadd.f32 %v314, %v780
      %v845 = vadd.f32 %v315, %v782
      %v846 = vadd.f32 %v316, %v785
      %v847 = vadd.f32 %v317, %v787
      %v848 = vadd.f32 %v318, %v790
      %v849 = vadd.f32 %v319, %v792
      %v850 = vadd.f32 %v320, %v795
      %v851 = vadd.f32 %v321, %v797
      %v852 = vadd.f32 %v322, %v800
      %v853 = vadd.f32 %v323, %v802
      %v854 = vadd.f32 %v324, %v805
      %v855 = vadd.f32 %v325, %v807
      %v856 = vadd.f32 %v326, %v810
      %v857 = vadd.f32 %v327, %v812
      %v858 = vadd.f32 %v328, %v815
      %v859 = vadd.f32 %v329, %v817
      %v860 = vadd.f32 %v330, %v820
      %v861 = vadd.f32 %v331, %v822
      %v862 = vadd.f32 %v332, %v825
      %v863 = vadd.f32 %v333, %v827
      %v864 = vadd.f32 %v334, %v830
      %v865 = vadd.f32 %v335, %v832
      %vm866 = vcmask 523264
      %867 = vst.msk [vmem:[#allocation2] sm:$0xff] %vm866, %v834
      %868 = vst.msk [vmem:[#allocation2 + $0x8] sm:$0xff] %vm866, %v835
      %869 = vst.msk [vmem:[#allocation2 + $0x10] sm:$0xff] %vm866, %v836
      %870 = vst.msk [vmem:[#allocation2 + $0x18] sm:$0xff] %vm866, %v837
      %871 = vst.msk [vmem:[#allocation2 + $0x20] sm:$0xff] %vm866, %v838
      %872 = vst.msk [vmem:[#allocation2 + $0x28] sm:$0xff] %vm866, %v839
      %873 = vst.msk [vmem:[#allocation2 + $0x30] sm:$0xff] %vm866, %v840
      %874 = vst.msk [vmem:[#allocation2 + $0x38] sm:$0xff] %vm866, %v841
      %875 = vst.msk [vmem:[#allocation2 + $0x40] sm:$0xff] %vm866, %v842
      %876 = vst.msk [vmem:[#allocation2 + $0x48] sm:$0xff] %vm866, %v843
      %877 = vst.msk [vmem:[#allocation2 + $0x50] sm:$0xff] %vm866, %v844
      %878 = vst.msk [vmem:[#allocation2 + $0x58] sm:$0xff] %vm866, %v845
      %879 = vst.msk [vmem:[#allocation2 + $0x60] sm:$0xff] %vm866, %v846
      %880 = vst.msk [vmem:[#allocation2 + $0x68] sm:$0xff] %vm866, %v847
      %881 = vst.msk [vmem:[#allocation2 + $0x70] sm:$0xff] %vm866, %v848
      %882 = vst.msk [vmem:[#allocation2 + $0x78] sm:$0xff] %vm866, %v849
      %883 = vst.msk [vmem:[#allocation2 + $0x80] sm:$0xff] %vm866, %v850
      %884 = vst.msk [vmem:[#allocation2 + $0x88] sm:$0xff] %vm866, %v851
      %885 = vst.msk [vmem:[#allocation2 + $0x90] sm:$0xff] %vm866, %v852
      %886 = vst.msk [vmem:[#allocation2 + $0x98] sm:$0xff] %vm866, %v853
      %887 = vst.msk [vmem:[#allocation2 + $0xa0] sm:$0xff] %vm866, %v854
      %888 = vst.msk [vmem:[#allocation2 + $0xa8] sm:$0xff] %vm866, %v855
      %889 = vst.msk [vmem:[#allocation2 + $0xb0] sm:$0xff] %vm866, %v856
      %890 = vst.msk [vmem:[#allocation2 + $0xb8] sm:$0xff] %vm866, %v857
      %891 = vst.msk [vmem:[#allocation2 + $0xc0] sm:$0xff] %vm866, %v858
      %892 = vst.msk [vmem:[#allocation2 + $0xc8] sm:$0xff] %vm866, %v859
      %893 = vst.msk [vmem:[#allocation2 + $0xd0] sm:$0xff] %vm866, %v860
      %894 = vst.msk [vmem:[#allocation2 + $0xd8] sm:$0xff] %vm866, %v861
      %895 = vst.msk [vmem:[#allocation2 + $0xe0] sm:$0xff] %vm866, %v862
      %896 = vst.msk [vmem:[#allocation2 + $0xe8] sm:$0xff] %vm866, %v863
      %897 = vst.msk [vmem:[#allocation2 + $0xf0] sm:$0xff] %vm866, %v864
      %898 = vst.msk [vmem:[#allocation2 + $0xf8] sm:$0xff] %vm866, %v865
      // Predicated region
      $region37: #{_lambda_.11} parent=31 // pred_check
        %p899 = pneg %p267
      $region38: #{_lambda_.11} parent=31 // pred_check_branch
        %901 = sbr.rel (%p899) target = $region40
      $region39: #{_lambda_.11} parent=31 // pred_region
        %v902 = vld [vmem:[#allocation2] sm:$0xff]
        %v903 = vld [vmem:[#allocation2 + $0x8] sm:$0xff]
        %v904 = vld [vmem:[#allocation2 + $0x10] sm:$0xff]
        %v905 = vld [vmem:[#allocation2 + $0x18] sm:$0xff]
        %v906 = vld [vmem:[#allocation2 + $0x20] sm:$0xff]
        %v907 = vld [vmem:[#allocation2 + $0x28] sm:$0xff]
        %v908 = vld [vmem:[#allocation2 + $0x30] sm:$0xff]
        %v909 = vld [vmem:[#allocation2 + $0x38] sm:$0xff]
        %v910 = vld [vmem:[#allocation2 + $0x40] sm:$0xff]
        %v911 = vld [vmem:[#allocation2 + $0x48] sm:$0xff]
        %v912 = vld [vmem:[#allocation2 + $0x50] sm:$0xff]
        %v913 = vld [vmem:[#allocation2 + $0x58] sm:$0xff]
        %v914 = vld [vmem:[#allocation2 + $0x60] sm:$0xff]
        %v915 = vld [vmem:[#allocation2 + $0x68] sm:$0xff]
        %v916 = vld [vmem:[#allocation2 + $0x70] sm:$0xff]
        %v917 = vld [vmem:[#allocation2 + $0x78] sm:$0xff]
        %v918 = vld [vmem:[#allocation2 + $0x80] sm:$0xff]
        %v919 = vld [vmem:[#allocation2 + $0x88] sm:$0xff]
        %v920 = vld [vmem:[#allocation2 + $0x90] sm:$0xff]
        %v921 = vld [vmem:[#allocation2 + $0x98] sm:$0xff]
        %v922 = vld [vmem:[#allocation2 + $0xa0] sm:$0xff]
        %v923 = vld [vmem:[#allocation2 + $0xa8] sm:$0xff]
        %v924 = vld [vmem:[#allocation2 + $0xb0] sm:$0xff]
        %v925 = vld [vmem:[#allocation2 + $0xb8] sm:$0xff]
        %v926 = vld [vmem:[#allocation2 + $0xc0] sm:$0xff]
        %v927 = vld [vmem:[#allocation2 + $0xc8] sm:$0xff]
        %v928 = vld [vmem:[#allocation2 + $0xd0] sm:$0xff]
        %v929 = vld [vmem:[#allocation2 + $0xd8] sm:$0xff]
        %v930 = vld [vmem:[#allocation2 + $0xe0] sm:$0xff]
        %v931 = vld [vmem:[#allocation2 + $0xe8] sm:$0xff]
        %v932 = vld [vmem:[#allocation2 + $0xf0] sm:$0xff]
        %v933 = vld [vmem:[#allocation2 + $0xf8] sm:$0xff]
        %v934 = vld [vmem:[%s257] sm:$0x1]
        %v936 = vperm.slane %v934, 0
        %v938 = vadd.f32 %v902, %v936
        %v939 = vadd.f32 %v903, %v936
        %v940 = vadd.f32 %v904, %v936
        %v941 = vadd.f32 %v905, %v936
        %v942 = vadd.f32 %v906, %v936
        %v943 = vadd.f32 %v907, %v936
        %v944 = vadd.f32 %v908, %v936
        %v945 = vadd.f32 %v909, %v936
        %v946 = vadd.f32 %v910, %v936
        %v947 = vadd.f32 %v911, %v936
        %v948 = vadd.f32 %v912, %v936
        %v949 = vadd.f32 %v913, %v936
        %v950 = vadd.f32 %v914, %v936
        %v951 = vadd.f32 %v915, %v936
        %v952 = vadd.f32 %v916, %v936
        %v953 = vadd.f32 %v917, %v936
        %v954 = vadd.f32 %v918, %v936
        %v955 = vadd.f32 %v919, %v936
        %v956 = vadd.f32 %v920, %v936
        %v957 = vadd.f32 %v921, %v936
        %v958 = vadd.f32 %v922, %v936
        %v959 = vadd.f32 %v923, %v936
        %v960 = vadd.f32 %v924, %v936
        %v961 = vadd.f32 %v925, %v936
        %v962 = vadd.f32 %v926, %v936
        %v963 = vadd.f32 %v927, %v936
        %v964 = vadd.f32 %v928, %v936
        %v965 = vadd.f32 %v929, %v936
        %v966 = vadd.f32 %v930, %v936
        %v967 = vadd.f32 %v931, %v936
        %v968 = vadd.f32 %v932, %v936
        %v969 = vadd.f32 %v933, %v936
        %v970 = vmax.f32 %v938, 0.0
        %v971 = vmax.f32 %v939, 0.0
        %v972 = vmax.f32 %v940, 0.0
        %v973 = vmax.f32 %v941, 0.0
        %v974 = vmax.f32 %v942, 0.0
        %v975 = vmax.f32 %v943, 0.0
        %v976 = vmax.f32 %v944, 0.0
        %v977 = vmax.f32 %v945, 0.0
        %v978 = vmax.f32 %v946, 0.0
        %v979 = vmax.f32 %v947, 0.0
        %v980 = vmax.f32 %v948, 0.0
        %v981 = vmax.f32 %v949, 0.0
        %v982 = vmax.f32 %v950, 0.0
        %v983 = vmax.f32 %v951, 0.0
        %v984 = vmax.f32 %v952, 0.0
        %v985 = vmax.f32 %v953, 0.0
        %v986 = vmax.f32 %v954, 0.0
        %v987 = vmax.f32 %v955, 0.0
        %v988 = vmax.f32 %v956, 0.0
        %v989 = vmax.f32 %v957, 0.0
        %v990 = vmax.f32 %v958, 0.0
        %v991 = vmax.f32 %v959, 0.0
        %v992 = vmax.f32 %v960, 0.0
        %v993 = vmax.f32 %v961, 0.0
        %v994 = vmax.f32 %v962, 0.0
        %v995 = vmax.f32 %v963, 0.0
        %v996 = vmax.f32 %v964, 0.0
        %v997 = vmax.f32 %v965, 0.0
        %v998 = vmax.f32 %v966, 0.0
        %v999 = vmax.f32 %v967, 0.0
        %v1000 = vmax.f32 %v968, 0.0
        %v1001 = vmax.f32 %v969, 0.0
        %v1002 = vpack.c.bf16 %v970, %v970
        %v1003 = vpack.c.bf16 %v971, %v971
        %v1004 = vpack.c.bf16 %v972, %v972
        %v1005 = vpack.c.bf16 %v973, %v973
        %v1006 = vpack.c.bf16 %v974, %v974
        %v1007 = vpack.c.bf16 %v975, %v975
        %v1008 = vpack.c.bf16 %v976, %v976
        %v1009 = vpack.c.bf16 %v977, %v977
        %v1010 = vpack.c.bf16 %v978, %v978
        %v1011 = vpack.c.bf16 %v979, %v979
        %v1012 = vpack.c.bf16 %v980, %v980
        %v1013 = vpack.c.bf16 %v981, %v981
        %v1014 = vpack.c.bf16 %v982, %v982
        %v1015 = vpack.c.bf16 %v983, %v983
        %v1016 = vpack.c.bf16 %v984, %v984
        %v1017 = vpack.c.bf16 %v985, %v985
        %v1018 = vpack.c.bf16 %v986, %v986
        %v1019 = vpack.c.bf16 %v987, %v987
        %v1020 = vpack.c.bf16 %v988, %v988
        %v1021 = vpack.c.bf16 %v989, %v989
        %v1022 = vpack.c.bf16 %v990, %v990
        %v1023 = vpack.c.bf16 %v991, %v991
        %v1024 = vpack.c.bf16 %v992, %v992
        %v1025 = vpack.c.bf16 %v993, %v993
        %v1026 = vpack.c.bf16 %v994, %v994
        %v1027 = vpack.c.bf16 %v995, %v995
        %v1028 = vpack.c.bf16 %v996, %v996
        %v1029 = vpack.c.bf16 %v997, %v997
        %v1030 = vpack.c.bf16 %v998, %v998
        %v1031 = vpack.c.bf16 %v999, %v999
        %v1032 = vpack.c.bf16 %v1000, %v1000
        %v1033 = vpack.c.bf16 %v1001, %v1001
        %vm1034 = vcmask 519168
        %1035 = vst.msk [vmem:[%s265] sm:$0xf] %vm1034, %v1002
        %1036 = vst.msk [vmem:[%s265 + $0x4] sm:$0xf] %vm1034, %v1003
        %1037 = vst.msk [vmem:[%s265 + $0x8] sm:$0xf] %vm1034, %v1004
        %1038 = vst.msk [vmem:[%s265 + $0xc] sm:$0xf] %vm1034, %v1005
        %1039 = vst.msk [vmem:[%s265 + $0x10] sm:$0xf] %vm1034, %v1006
        %1040 = vst.msk [vmem:[%s265 + $0x14] sm:$0xf] %vm1034, %v1007
        %1041 = vst.msk [vmem:[%s265 + $0x18] sm:$0xf] %vm1034, %v1008
        %1042 = vst.msk [vmem:[%s265 + $0x1c] sm:$0xf] %vm1034, %v1009
        %1043 = vst.msk [vmem:[%s265 + $0x20] sm:$0xf] %vm1034, %v1010
        %1044 = vst.msk [vmem:[%s265 + $0x24] sm:$0xf] %vm1034, %v1011
        %1045 = vst.msk [vmem:[%s265 + $0x28] sm:$0xf] %vm1034, %v1012
        %1046 = vst.msk [vmem:[%s265 + $0x2c] sm:$0xf] %vm1034, %v1013
        %1047 = vst.msk [vmem:[%s265 + $0x30] sm:$0xf] %vm1034, %v1014
        %1048 = vst.msk [vmem:[%s265 + $0x34] sm:$0xf] %vm1034, %v1015
        %1049 = vst.msk [vmem:[%s265 + $0x38] sm:$0xf] %vm1034, %v1016
        %1050 = vst.msk [vmem:[%s265 + $0x3c] sm:$0xf] %vm1034, %v1017
        %1051 = vst.msk [vmem:[%s265 + $0x40] sm:$0xf] %vm1034, %v1018
        %1052 = vst.msk [vmem:[%s265 + $0x44] sm:$0xf] %vm1034, %v1019
        %1053 = vst.msk [vmem:[%s265 + $0x48] sm:$0xf] %vm1034, %v1020
        %1054 = vst.msk [vmem:[%s265 + $0x4c] sm:$0xf] %vm1034, %v1021
        %1055 = vst.msk [vmem:[%s265 + $0x50] sm:$0xf] %vm1034, %v1022
        %1056 = vst.msk [vmem:[%s265 + $0x54] sm:$0xf] %vm1034, %v1023
        %1057 = vst.msk [vmem:[%s265 + $0x58] sm:$0xf] %vm1034, %v1024
        %1058 = vst.msk [vmem:[%s265 + $0x5c] sm:$0xf] %vm1034, %v1025
        %1059 = vst.msk [vmem:[%s265 + $0x60] sm:$0xf] %vm1034, %v1026
        %1060 = vst.msk [vmem:[%s265 + $0x64] sm:$0xf] %vm1034, %v1027
        %1061 = vst.msk [vmem:[%s265 + $0x68] sm:$0xf] %vm1034, %v1028
        %1062 = vst.msk [vmem:[%s265 + $0x6c] sm:$0xf] %vm1034, %v1029
        %1063 = vst.msk [vmem:[%s265 + $0x70] sm:$0xf] %vm1034, %v1030
        %1064 = vst.msk [vmem:[%s265 + $0x74] sm:$0xf] %vm1034, %v1031
        %1065 = vst.msk [vmem:[%s265 + $0x78] sm:$0xf] %vm1034, %v1032
        %1066 = vst.msk [vmem:[%s265 + $0x7c] sm:$0xf] %vm1034, %v1033
      $region40: #{_lambda_.11} parent=31 // pred_fallthru
        _
      %s1067 = smul.u32 32, %s19
      %p1068 = scmp.lt.s32.totalorder %s1067, 63
      %s1069 = scalar_select %p1068, %s1067, 63
      %p1070 = scmp.lt.s32.totalorder %s20, 0
      %s1071 = scalar_select %p1070, %s20, 0
      %s1072 = sadd.s32 %s1071, %s1069
      %s1073 = smul.addr %s1072, 4
      %s1074 = scalar_lea.vmem %s3, %s1073
      // Predicated region
      $region41: #{_lambda_.11} parent=31 // pred_check
        %p1075 = pneg %p135
      $region42: #{_lambda_.11} parent=31 // pred_check_branch
        %1077 = sbr.rel (%p1075) target = $region44
      $region43: #{_lambda_.11} parent=31 // pred_region
        %s1078 = smul.u32 32, %s19
      $region44: #{_lambda_.11} parent=31 // pred_fallthru
        _
    $region32: #{_lambda_.11} parent=5 // pred_fallthru
      _
    %p1079 = scmp.le.s32.totalorder 2, %s9
    // Predicated region
    $region45: #{_lambda_.11} parent=5 // pred_check
      %p1080 = pneg %p1079
    $region46: #{_lambda_.11} parent=5 // pred_check_branch
      %1082 = sbr.rel (%p1080) target = $region48
    $region47: #{_lambda_.11} parent=5 // pred_region
      %s1083 = ssub.s32 %s9, 2
      // Predicated region
      $region49: #{_lambda_.11} parent=47 // pred_check
        %p1084 = pneg %p141
      $region50: #{_lambda_.11} parent=47 // pred_check_branch
        %1086 = sbr.rel (%p1084) target = $region52
      $region51: #{_lambda_.11} parent=47 // pred_region
        %s1087 = smul.u32 32, %s22
        %p1088 = scmp.lt.s32.totalorder %s1087, 63
        %s1089 = scalar_select %p1088, %s1087, 63
        %p1090 = scmp.lt.s32.totalorder %s23, 0
        %s1091 = scalar_select %p1090, %s23, 0
        %s1092 = sadd.s32 %s1091, %s1089
        %s1093 = smul.addr %s1092, 4
        %s1094 = scalar_lea.vmem %s3, %s1093
      $region52: #{_lambda_.11} parent=47 // pred_fallthru
        _
    $region48: #{_lambda_.11} parent=5 // pred_fallthru
      _
  $region6: #{_lambda_.11} parent=0 // loop_footer
    %s13 = sadd.s32 1, %s9
  $region7: #{_lambda_.11} parent=0 // loop_footer_branch
    %8 = sbr.rel target = $region3
  $region8: #{_lambda_.11} parent=0 // loop_exit
    _

</llo_original>
